<compile_context>
chip_gen: v7x
topology: tpu7x:2x2x1
jax: 0.10.0
libtpu: 0.0.40
codegen_flags: <defaults>
</compile_context>

<pallas_src>
import jax
import jax.numpy as jnp
from jax.experimental import pallas as pl
from jax.experimental.pallas import tpu as pltpu


_LANE = 128
_FC4_IN = 7 * 7 * 64            # 3136 (PyTorch fc4 input features)
_FC4_SPATIAL = 49               # 7*7
_FC4_SPATIAL_PAD = 56           # round_up(49, 8)
_FC4_K_PAD = _FC4_SPATIAL_PAD * _LANE   # 7168 (= 2 * 3584)
_FC4_TK = 3584
_NUM_ACTIONS = 18


def _round_up(x, m):
    return (x + m - 1) // m * m


# ------------------- single-K-tile matmul + bias + ReLU -------------------- #

def _matmul_bias_relu_kernel(x_ref, w_ref, b_ref, o_ref):
    """o = relu(x @ w + b); K fits in one tile so no accumulator is needed."""
    out = jnp.dot(x_ref[...], w_ref[...], preferred_element_type=jnp.float32)
    out = jnp.maximum(out + b_ref[...], 0.0)
    o_ref[...] = out.astype(o_ref.dtype)


def _pick_m_tile(m):
    """Return (tm, m_padded): tm multiple of 8, <= 256 when possible."""
    m8 = _round_up(m, 8)
    if m8 <= 256:
        return m8, m8
    for t in range(256, 127, -8):
        if m8 % t == 0:
            return t, m8
    return 256, _round_up(m8, 256)


def pallas_conv_gemm(x, w, b, *, out_dtype=jnp.bfloat16):
    """x: (M, K) bf16, w: (K, 128) bf16, b: (1, 128) f32 -> (Mp, 128)."""
    M, K = x.shape
    K2, N = w.shape
    assert K == K2 and N == _LANE and K % _LANE == 0

    tm, Mp = _pick_m_tile(M)
    if Mp != M:
        x = jnp.pad(x, ((0, Mp - M), (0, 0)))

    return pl.pallas_call(
        _matmul_bias_relu_kernel,
        out_shape=jax.ShapeDtypeStruct((Mp, N), out_dtype),
        grid_spec=pltpu.PrefetchScalarGridSpec(
            num_scalar_prefetch=0,
            grid=(Mp // tm,),
            in_specs=[
                pl.BlockSpec((tm, K), lambda i: (i, 0)),
                pl.BlockSpec((K, N), lambda i: (0, 0)),
                pl.BlockSpec((1, N), lambda i: (0, 0)),
            ],
            out_specs=pl.BlockSpec((tm, N), lambda i: (i, 0))),
        compiler_params=pltpu.CompilerParams(
            dimension_semantics=("parallel",)),
    )(x, w, b)


# --------------------------- fused fc4 + fc5 kernel ------------------------ #

def _fused_fc_kernel(x_ref, w4_ref, b4_ref, w5_ref, b5_ref, o_ref, acc_ref):
    """hidden = relu(x @ w4 + b4) kept in VMEM; o = hidden @ w5 + b5."""
    k = pl.program_id(0)

    @pl.when(k == 0)
    def _init():
        acc_ref[...] = jnp.zeros_like(acc_ref)

    acc_ref[...] += jnp.dot(x_ref[...], w4_ref[...],
                            preferred_element_type=jnp.float32)

    @pl.when(k == pl.num_programs(0) - 1)
    def _finalize():
        hidden = jnp.maximum(acc_ref[...] + b4_ref[...], 0.0)
        out = jnp.dot(hidden.astype(w5_ref.dtype), w5_ref[...],
                      preferred_element_type=jnp.float32)
        o_ref[...] = (out + b5_ref[...]).astype(o_ref.dtype)


def pallas_fused_fc(xf, w4, b4, w5, b5, *, tk=_FC4_TK):
    """xf: (Mp, Kp) bf16, w4: (Kp, 512) bf16, w5: (512, 128) bf16 -> (Mp, 128) f32."""
    Mp, Kp = xf.shape
    Kp2, H = w4.shape
    H2, Np = w5.shape
    assert Kp == Kp2 and H == H2
    assert Mp % 8 == 0 and Kp % tk == 0 and H % _LANE == 0 and Np % _LANE == 0

    return pl.pallas_call(
        _fused_fc_kernel,
        out_shape=jax.ShapeDtypeStruct((Mp, Np), jnp.float32),
        grid_spec=pltpu.PrefetchScalarGridSpec(
            num_scalar_prefetch=0,
            grid=(Kp // tk,),
            in_specs=[
                pl.BlockSpec((Mp, tk), lambda k: (0, k)),
                pl.BlockSpec((tk, H), lambda k: (k, 0)),
                pl.BlockSpec((1, H), lambda k: (0, 0)),
                pl.BlockSpec((H, Np), lambda k: (0, 0)),
                pl.BlockSpec((1, Np), lambda k: (0, 0)),
            ],
            out_specs=pl.BlockSpec((Mp, Np), lambda k: (0, 0)),
            scratch_shapes=[pltpu.VMEM((Mp, H), jnp.float32)]),
        compiler_params=pltpu.CompilerParams(
            dimension_semantics=("arbitrary",),
            vmem_limit_bytes=32 * 1024 * 1024),
    )(xf, w4, b4, w5, b5)


# ----------------- lane-dense patch construction (wrapper) ----------------- #

def _space_to_depth(x, f):
    """(B, H, W, C) -> (B, H/f, W/f, f*f*C), channel order (dh, dw, c)."""
    B, H, W, C = x.shape
    x = x.reshape(B, H // f, f, W // f, f, C)
    x = x.transpose(0, 1, 3, 2, 4, 5)
    return x.reshape(B, H // f, W // f, f * f * C)


def _im2col_k_s1(x, k):
    """Stride-1 im2col: (B, H, W, C) -> (B, H-k+1, W-k+1, k*k*C)."""
    B, H, W, C = x.shape
    OH, OW = H - k + 1, W - k + 1
    slabs = [x[:, i:i + OH, j:j + OW, :] for i in range(k) for j in range(k)]
    return jnp.concatenate(slabs, axis=-1)


def _conv_weight_s2d(w, f, c_pad):
    """PyTorch conv weight (OC, C, k, k) with stride f -> GEMM matrix
    (kk*kk*f*f*c_pad, 128) matching space-to-depth(f) + im2col(k//f, s=1)."""
    oc, c, k, _ = w.shape
    kk = k // f
    w6 = w.reshape(oc, c, kk, f, kk, f)                 # [oc, c, ki, dh, kj, dw]
    w6 = jnp.pad(w6, ((0, 0), (0, c_pad - c), (0, 0), (0, 0), (0, 0), (0, 0)))
    w6 = w6.transpose(2, 4, 3, 5, 1, 0)                 # (ki, kj, dh, dw, c, oc)
    w_mat = w6.reshape(kk * kk * f * f * c_pad, oc)
    return jnp.pad(w_mat, ((0, 0), (0, _LANE - oc)))


# ------------------------- parameters (PyTorch layout) --------------------- #

def init_dqn_params(key, in_channels=4, num_actions=_NUM_ACTIONS):
    def uinit(key, shape, fan_in):
        bound = 1.0 / jnp.sqrt(float(fan_in))
        return jax.random.uniform(key, shape, jnp.float32, -bound, bound)

    ks = jax.random.split(key, 10)
    p = {}
    p["w1"] = uinit(ks[0], (32, in_channels, 8, 8), in_channels * 8 * 8)
    p["b1"] = uinit(ks[1], (32,), in_channels * 8 * 8)
    p["w2"] = uinit(ks[2], (64, 32, 4, 4), 32 * 4 * 4)
    p["b2"] = uinit(ks[3], (64,), 32 * 4 * 4)
    p["w3"] = uinit(ks[4], (64, 64, 3, 3), 64 * 3 * 3)
    p["b3"] = uinit(ks[5], (64,), 64 * 3 * 3)
    p["w4"] = uinit(ks[6], (512, _FC4_IN), _FC4_IN)     # PyTorch (out, in)
    p["b4"] = uinit(ks[7], (512,), _FC4_IN)
    p["w5"] = uinit(ks[8], (num_actions, 512), 512)
    p["b5"] = uinit(ks[9], (num_actions,), 512)
    return p


def prepare_params(p):
    """One-time (outside jit) reorder / pad / bf16-cast of PyTorch params."""
    out = {}
    c_in = p["w1"].shape[1]
    # conv1: s2d(4) makes it k=2,s=1 over 16*c_in channels (K = 64*c_in).
    out["w1"] = _conv_weight_s2d(p["w1"], f=4, c_pad=c_in).astype(jnp.bfloat16)
    out["b1"] = jnp.pad(p["b1"], (0, _LANE - 32)).reshape(1, _LANE).astype(jnp.float32)
    # conv2: input kept at 128 padded lanes, s2d(2) -> k=2,s=1, K = 4*512 = 2048.
    out["w2"] = _conv_weight_s2d(p["w2"], f=2, c_pad=_LANE).astype(jnp.bfloat16)
    out["b2"] = jnp.pad(p["b2"], (0, _LANE - 64)).reshape(1, _LANE).astype(jnp.float32)
    # conv3: input kept at 128 padded lanes, k=3,s=1, K = 9*128 = 1152.
    out["w3"] = _conv_weight_s2d(p["w3"], f=1, c_pad=_LANE).astype(jnp.bfloat16)
    out["b3"] = jnp.pad(p["b3"], (0, _LANE - 64)).reshape(1, _LANE).astype(jnp.float32)
    # fc4: PyTorch (c, h, w) flatten -> (h, w, c_pad128) order, spatial padded
    # 49 -> 56 with zero rows, transpose to (K, 512) = (7168, 512).
    w4 = p["w4"].reshape(512, 64, 7, 7).transpose(0, 2, 3, 1)       # (512,7,7,64)
    w4 = jnp.pad(w4, ((0, 0), (0, 0), (0, 0), (0, _LANE - 64)))     # (512,7,7,128)
    w4 = w4.reshape(512, _FC4_SPATIAL, _LANE)
    w4 = jnp.pad(w4, ((0, 0), (0, _FC4_SPATIAL_PAD - _FC4_SPATIAL), (0, 0)))
    out["w4"] = w4.reshape(512, _FC4_K_PAD).T.astype(jnp.bfloat16)  # (7168,512)
    out["b4"] = p["b4"].reshape(1, 512).astype(jnp.float32)
    # fc5: (A, 512) -> (512, 128) with actions zero-padded to 128 lanes.
    na = p["w5"].shape[0]
    out["w5"] = jnp.pad(p["w5"].T, ((0, 0), (0, _LANE - na))).astype(jnp.bfloat16)
    out["b5"] = jnp.pad(p["b5"], (0, _LANE - na)).reshape(1, _LANE).astype(jnp.float32)
    return out


# --------------------------------- forward --------------------------------- #

@jax.jit
def dqn_forward(prepped, x):
    """x: (B, in_channels, 84, 84) f32 NCHW -> (B, num_actions) f32."""
    B, C = x.shape[0], x.shape[1]
    xb = x.astype(jnp.bfloat16)

    # conv1: NCHW -> space-to-depth(4) NHWC in ONE transpose; channel order
    # (dh, dw, c). (B, C, 84, 84) -> (B, 21, 21, 16*C).
    h = xb.reshape(B, C, 21, 4, 21, 4).transpose(0, 2, 4, 3, 5, 1)
    h = h.reshape(B, 21, 21, 16 * C)
    p1 = _im2col_k_s1(h, 2).reshape(B * 20 * 20, 4 * 16 * C)        # K = 64*C
    o1 = pallas_conv_gemm(p1, prepped["w1"], prepped["b1"])
    h = o1.reshape(B, 20, 20, _LANE)                 # keep padded 128 channels

    # conv2: s2d(2) -> k=2,s=1; 4 lane-dense width-512 slabs, K = 2048.
    h = _space_to_depth(h, 2)                                        # (B,10,10,512)
    p2 = _im2col_k_s1(h, 2).reshape(B * 9 * 9, 4 * 512)
    o2 = pallas_conv_gemm(p2, prepped["w2"], prepped["b2"])
    h = o2[:B * 81].reshape(B, 9, 9, _LANE)

    # conv3: k=3,s=1; 9 lane-dense width-128 slabs, K = 1152. Spatial padded
    # 49 -> 56 per batch so the output reshapes directly into the fc4 layout.
    p3 = _im2col_k_s1(h, 3).reshape(B, _FC4_SPATIAL, 9 * _LANE)
    p3 = jnp.pad(p3, ((0, 0), (0, _FC4_SPATIAL_PAD - _FC4_SPATIAL), (0, 0)))
    o3 = pallas_conv_gemm(p3.reshape(B * _FC4_SPATIAL_PAD, 9 * _LANE),
                          prepped["w3"], prepped["b3"])

    # fused fc4 + fc5; fc4 input is (B, 56*128) = (B, 7168), two K steps.
    xf = o3.reshape(B, _FC4_K_PAD)
    Mp = _round_up(B, 8)
    xf = jnp.pad(xf, ((0, Mp - B), (0, 0)))
    out = pallas_fused_fc(xf, prepped["w4"], prepped["b4"],
                          prepped["w5"], prepped["b5"])
    return out[:B, :_NUM_ACTIONS]


# ------------------------- pure-JAX f32 reference --------------------------- #

_CONV_REF = (("w1", "b1", 4, 32), ("w2", "b2", 2, 64), ("w3", "b3", 1, 64))


def _reference_forward(params, x):
    h = x
    for wname, bname, stride, oc in _CONV_REF:
        h = jax.lax.conv_general_dilated(
            h, params[wname], (stride, stride), "VALID",
            dimension_numbers=("NCHW", "OIHW", "NCHW"))
        h = jax.nn.relu(h + params[bname].reshape(1, oc, 1, 1))
    hf = h.reshape(h.shape[0], -1)                     # PyTorch (c, h, w) flatten
    hf = jax.nn.relu(hf @ params["w4"].T + params["b4"])
    return hf @ params["w5"].T + params["b5"]


# ----------------------------------- main ----------------------------------- #

if __name__ == "__main__":
    key = jax.random.PRNGKey(0)
    pkey, xkey = jax.random.split(key)

    # fc4 hard-codes 7*7*64 inputs => 84x84 frames (standard Atari DQN).
    B, C, H, W = 2, 4, 84, 84
    params = init_dqn_params(pkey, in_channels=C, num_actions=_NUM_ACTIONS)
    prepped = prepare_params(params)
    x = jax.random.normal(xkey, (B, C, H, W), dtype=jnp.float32)

    out = jax.block_until_ready(dqn_forward(prepped, x))
    assert out.shape == (B, _NUM_ACTIONS), out.shape
    assert bool(jnp.all(jnp.isfinite(out)))

    # Loose check vs f32 reference (kernel path runs bf16 matmul inputs).
    ref = _reference_forward(params, x)
    err = float(jnp.max(jnp.abs(out - ref)))
    scale = float(jnp.max(jnp.abs(ref))) + 1e-3
    assert err <= 0.15 * scale, (err, scale)

    print("KERNEL_OK")
</pallas_src>

<mosaic_0001>
module attributes {stable_mosaic.version = 11 : i64} {
  func.func @_matmul_bias_relu_kernel(%arg0: i32, %arg1: memref<200x256xbf16, #tpu.memory_space<vmem>>, %arg2: memref<256x128xbf16, #tpu.memory_space<vmem>>, %arg3: memref<1x128xf32, #tpu.memory_space<vmem>>, %arg4: memref<200x128xbf16, #tpu.memory_space<vmem>>) attributes {dimension_semantics = [#tpu.dimension_semantics<parallel>], iteration_bounds = array<i64: 4>, scalar_prefetch = 0 : i64, scratch_operands = 0 : i64, tpu.core_type = #tpu.core_type<tc>, window_params = [{transform_indices = @transform_0, window_bounds = array<i64: 200, 256>}, {pipeline_mode = #tpu.pipeline_mode<synchronous>, transform_indices = @transform_1, window_bounds = array<i64: 256, 128>}, {pipeline_mode = #tpu.pipeline_mode<synchronous>, transform_indices = @transform_2, window_bounds = array<i64: 1, 128>}, {transform_indices = @transform_3, window_bounds = array<i64: 200, 128>}]} {
    %c0 = arith.constant 0 : index
    %c0_0 = arith.constant 0 : index
    %0 = vector.load %arg1[%c0, %c0_0] : memref<200x256xbf16, #tpu.memory_space<vmem>>, vector<200x256xbf16>
    %c0_1 = arith.constant 0 : index
    %c0_2 = arith.constant 0 : index
    %1 = vector.load %arg2[%c0_1, %c0_2] : memref<256x128xbf16, #tpu.memory_space<vmem>>, vector<256x128xbf16>
    %cst = arith.constant dense<0.000000e+00> : vector<200x128xf32>
    %2 = tpu.matmul %0, %1, %cst {dimension_numbers = #tpu.dot_dimension_numbers<[1], [0], [0], [1], [0, 0, 1, 1], [], []>} : vector<200x256xbf16>, vector<256x128xbf16>, vector<200x128xf32> -> vector<200x128xf32>
    %c0_3 = arith.constant 0 : index
    %c0_4 = arith.constant 0 : index
    %3 = vector.load %arg3[%c0_3, %c0_4] : memref<1x128xf32, #tpu.memory_space<vmem>>, vector<1x128xf32>
    %4 = vector.broadcast %3 : vector<1x128xf32> to vector<200x128xf32>
    %5 = arith.addf %2, %4 : vector<200x128xf32>
    %cst_5 = arith.constant 0.000000e+00 : f32
    %6 = vector.broadcast %cst_5 : f32 to vector<200x128xf32>
    %7 = arith.maximumf %5, %6 : vector<200x128xf32>
    %8 = arith.truncf %7 : vector<200x128xf32> to vector<200x128xbf16>
    %c0_6 = arith.constant 0 : index
    %c0_7 = arith.constant 0 : index
    %9 = vector.load %arg4[%c0_6, %c0_7] : memref<200x128xbf16, #tpu.memory_space<vmem>>, vector<200x128xbf16>
    tpu.vector_store %arg4[%c0_6, %c0_7], %8 {strides = array<i32>} : memref<200x128xbf16, #tpu.memory_space<vmem>>, vector<200x128xbf16>,
    return
  }
  func.func @transform_0(%arg0: i32) -> (i32, i32) {
    %c0_i32 = arith.constant 0 : i32
    %c0_i32_0 = arith.constant 0 : i32
    return %arg0, %c0_i32 : i32, i32
  }
  func.func @transform_1(%arg0: i32) -> (i32, i32) {
    %c0_i32 = arith.constant 0 : i32
    %c0_i32_0 = arith.constant 0 : i32
    %c0_i32_1 = arith.constant 0 : i32
    return %c0_i32, %c0_i32_0 : i32, i32
  }
  func.func @transform_2(%arg0: i32) -> (i32, i32) {
    %c0_i32 = arith.constant 0 : i32
    %c0_i32_0 = arith.constant 0 : i32
    %c0_i32_1 = arith.constant 0 : i32
    return %c0_i32, %c0_i32_0 : i32, i32
  }
  func.func @transform_3(%arg0: i32) -> (i32, i32) {
    %c0_i32 = arith.constant 0 : i32
    %c0_i32_0 = arith.constant 0 : i32
    return %arg0, %c0_i32 : i32, i32
  }
}

module attributes {stable_mosaic.version = 11 : i64} {
  func.func @_matmul_bias_relu_kernel(%arg0: i32, %arg1: memref<168x2048xbf16, #tpu.memory_space<vmem>>, %arg2: memref<2048x128xbf16, #tpu.memory_space<vmem>>, %arg3: memref<1x128xf32, #tpu.memory_space<vmem>>, %arg4: memref<168x128xbf16, #tpu.memory_space<vmem>>) attributes {dimension_semantics = [#tpu.dimension_semantics<parallel>], iteration_bounds = array<i64: 1>, scalar_prefetch = 0 : i64, scratch_operands = 0 : i64, tpu.core_type = #tpu.core_type<tc>, window_params = [{transform_indices = @transform_0, window_bounds = array<i64: 168, 2048>}, {pipeline_mode = #tpu.pipeline_mode<synchronous>, transform_indices = @transform_1, window_bounds = array<i64: 2048, 128>}, {pipeline_mode = #tpu.pipeline_mode<synchronous>, transform_indices = @transform_2, window_bounds = array<i64: 1, 128>}, {transform_indices = @transform_3, window_bounds = array<i64: 168, 128>}]} {
    %c0 = arith.constant 0 : index
    %c0_0 = arith.constant 0 : index
    %0 = vector.load %arg1[%c0, %c0_0] : memref<168x2048xbf16, #tpu.memory_space<vmem>>, vector<168x2048xbf16>
    %c0_1 = arith.constant 0 : index
    %c0_2 = arith.constant 0 : index
    %1 = vector.load %arg2[%c0_1, %c0_2] : memref<2048x128xbf16, #tpu.memory_space<vmem>>, vector<2048x128xbf16>
    %cst = arith.constant dense<0.000000e+00> : vector<168x128xf32>
    %2 = tpu.matmul %0, %1, %cst {dimension_numbers = #tpu.dot_dimension_numbers<[1], [0], [0], [1], [0, 0, 1, 1], [], []>} : vector<168x2048xbf16>, vector<2048x128xbf16>, vector<168x128xf32> -> vector<168x128xf32>
    %c0_3 = arith.constant 0 : index
    %c0_4 = arith.constant 0 : index
    %3 = vector.load %arg3[%c0_3, %c0_4] : memref<1x128xf32, #tpu.memory_space<vmem>>, vector<1x128xf32>
    %4 = vector.broadcast %3 : vector<1x128xf32> to vector<168x128xf32>
    %5 = arith.addf %2, %4 : vector<168x128xf32>
    %cst_5 = arith.constant 0.000000e+00 : f32
    %6 = vector.broadcast %cst_5 : f32 to vector<168x128xf32>
    %7 = arith.maximumf %5, %6 : vector<168x128xf32>
    %8 = arith.truncf %7 : vector<168x128xf32> to vector<168x128xbf16>
    %c0_6 = arith.constant 0 : index
    %c0_7 = arith.constant 0 : index
    %9 = vector.load %arg4[%c0_6, %c0_7] : memref<168x128xbf16, #tpu.memory_space<vmem>>, vector<168x128xbf16>
    tpu.vector_store %arg4[%c0_6, %c0_7], %8 {strides = array<i32>} : memref<168x128xbf16, #tpu.memory_space<vmem>>, vector<168x128xbf16>,
    return
  }
  func.func @transform_0(%arg0: i32) -> (i32, i32) {
    %c0_i32 = arith.constant 0 : i32
    %c0_i32_0 = arith.constant 0 : i32
    return %arg0, %c0_i32 : i32, i32
  }
  func.func @transform_1(%arg0: i32) -> (i32, i32) {
    %c0_i32 = arith.constant 0 : i32
    %c0_i32_0 = arith.constant 0 : i32
    %c0_i32_1 = arith.constant 0 : i32
    return %c0_i32, %c0_i32_0 : i32, i32
  }
  func.func @transform_2(%arg0: i32) -> (i32, i32) {
    %c0_i32 = arith.constant 0 : i32
    %c0_i32_0 = arith.constant 0 : i32
    %c0_i32_1 = arith.constant 0 : i32
    return %c0_i32, %c0_i32_0 : i32, i32
  }
  func.func @transform_3(%arg0: i32) -> (i32, i32) {
    %c0_i32 = arith.constant 0 : i32
    %c0_i32_0 = arith.constant 0 : i32
    return %arg0, %c0_i32 : i32, i32
  }
}

module attributes {stable_mosaic.version = 11 : i64} {
  func.func @_matmul_bias_relu_kernel(%arg0: i32, %arg1: memref<112x1152xbf16, #tpu.memory_space<vmem>>, %arg2: memref<1152x128xbf16, #tpu.memory_space<vmem>>, %arg3: memref<1x128xf32, #tpu.memory_space<vmem>>, %arg4: memref<112x128xbf16, #tpu.memory_space<vmem>>) attributes {dimension_semantics = [#tpu.dimension_semantics<parallel>], iteration_bounds = array<i64: 1>, scalar_prefetch = 0 : i64, scratch_operands = 0 : i64, tpu.core_type = #tpu.core_type<tc>, window_params = [{transform_indices = @transform_0, window_bounds = array<i64: 112, 1152>}, {pipeline_mode = #tpu.pipeline_mode<synchronous>, transform_indices = @transform_1, window_bounds = array<i64: 1152, 128>}, {pipeline_mode = #tpu.pipeline_mode<synchronous>, transform_indices = @transform_2, window_bounds = array<i64: 1, 128>}, {transform_indices = @transform_3, window_bounds = array<i64: 112, 128>}]} {
    %c0 = arith.constant 0 : index
    %c0_0 = arith.constant 0 : index
    %0 = vector.load %arg1[%c0, %c0_0] : memref<112x1152xbf16, #tpu.memory_space<vmem>>, vector<112x1152xbf16>
    %c0_1 = arith.constant 0 : index
    %c0_2 = arith.constant 0 : index
    %1 = vector.load %arg2[%c0_1, %c0_2] : memref<1152x128xbf16, #tpu.memory_space<vmem>>, vector<1152x128xbf16>
    %cst = arith.constant dense<0.000000e+00> : vector<112x128xf32>
    %2 = tpu.matmul %0, %1, %cst {dimension_numbers = #tpu.dot_dimension_numbers<[1], [0], [0], [1], [0, 0, 1, 1], [], []>} : vector<112x1152xbf16>, vector<1152x128xbf16>, vector<112x128xf32> -> vector<112x128xf32>
    %c0_3 = arith.constant 0 : index
    %c0_4 = arith.constant 0 : index
    %3 = vector.load %arg3[%c0_3, %c0_4] : memref<1x128xf32, #tpu.memory_space<vmem>>, vector<1x128xf32>
    %4 = vector.broadcast %3 : vector<1x128xf32> to vector<112x128xf32>
    %5 = arith.addf %2, %4 : vector<112x128xf32>
    %cst_5 = arith.constant 0.000000e+00 : f32
    %6 = vector.broadcast %cst_5 : f32 to vector<112x128xf32>
    %7 = arith.maximumf %5, %6 : vector<112x128xf32>
    %8 = arith.truncf %7 : vector<112x128xf32> to vector<112x128xbf16>
    %c0_6 = arith.constant 0 : index
    %c0_7 = arith.constant 0 : index
    %9 = vector.load %arg4[%c0_6, %c0_7] : memref<112x128xbf16, #tpu.memory_space<vmem>>, vector<112x128xbf16>
    tpu.vector_store %arg4[%c0_6, %c0_7], %8 {strides = array<i32>} : memref<112x128xbf16, #tpu.memory_space<vmem>>, vector<112x128xbf16>,
    return
  }
  func.func @transform_0(%arg0: i32) -> (i32, i32) {
    %c0_i32 = arith.constant 0 : i32
    %c0_i32_0 = arith.constant 0 : i32
    return %arg0, %c0_i32 : i32, i32
  }
  func.func @transform_1(%arg0: i32) -> (i32, i32) {
    %c0_i32 = arith.constant 0 : i32
    %c0_i32_0 = arith.constant 0 : i32
    %c0_i32_1 = arith.constant 0 : i32
    return %c0_i32, %c0_i32_0 : i32, i32
  }
  func.func @transform_2(%arg0: i32) -> (i32, i32) {
    %c0_i32 = arith.constant 0 : i32
    %c0_i32_0 = arith.constant 0 : i32
    %c0_i32_1 = arith.constant 0 : i32
    return %c0_i32, %c0_i32_0 : i32, i32
  }
  func.func @transform_3(%arg0: i32) -> (i32, i32) {
    %c0_i32 = arith.constant 0 : i32
    %c0_i32_0 = arith.constant 0 : i32
    return %arg0, %c0_i32 : i32, i32
  }
}

module attributes {stable_mosaic.version = 11 : i64} {
  func.func @_fused_fc_kernel(%arg0: i32, %arg1: memref<8x3584xbf16, #tpu.memory_space<vmem>>, %arg2: memref<3584x512xbf16, #tpu.memory_space<vmem>>, %arg3: memref<1x512xf32, #tpu.memory_space<vmem>>, %arg4: memref<512x128xbf16, #tpu.memory_space<vmem>>, %arg5: memref<1x128xf32, #tpu.memory_space<vmem>>, %arg6: memref<8x128xf32, #tpu.memory_space<vmem>>, %arg7: memref<8x512xf32, #tpu.memory_space<vmem>>) attributes {dimension_semantics = [#tpu.dimension_semantics<arbitrary>], iteration_bounds = array<i64: 2>, scalar_prefetch = 0 : i64, scratch_operands = 1 : i64, tpu.core_type = #tpu.core_type<tc>, window_params = [{transform_indices = @transform_0, window_bounds = array<i64: 8, 3584>}, {transform_indices = @transform_1, window_bounds = array<i64: 3584, 512>}, {pipeline_mode = #tpu.pipeline_mode<synchronous>, transform_indices = @transform_2, window_bounds = array<i64: 1, 512>}, {pipeline_mode = #tpu.pipeline_mode<synchronous>, transform_indices = @transform_3, window_bounds = array<i64: 512, 128>}, {pipeline_mode = #tpu.pipeline_mode<synchronous>, transform_indices = @transform_4, window_bounds = array<i64: 1, 128>}, {pipeline_mode = #tpu.pipeline_mode<synchronous>, transform_indices = @transform_5, window_bounds = array<i64: 8, 128>}]} {
    %c0_i32 = arith.constant 0 : i32
    %0 = arith.cmpi eq, %arg0, %c0_i32 : i32
    %1 = arith.extui %0 : i1 to i32
    %c0_i32_0 = arith.constant 0 : i32
    %2 = arith.cmpi ne, %1, %c0_i32_0 : i32
    scf.if %2 {
      %cst_9 = arith.constant 0.000000e+00 : f32
      %12 = vector.broadcast %cst_9 : f32 to vector<8x512xf32>
      %c0_10 = arith.constant 0 : index
      %c0_11 = arith.constant 0 : index
      %13 = vector.load %arg7[%c0_10, %c0_11] : memref<8x512xf32, #tpu.memory_space<vmem>>, vector<8x512xf32>
      tpu.vector_store %arg7[%c0_10, %c0_11], %12 {strides = array<i32>} : memref<8x512xf32, #tpu.memory_space<vmem>>, vector<8x512xf32>,
    } else {
    }
    %c0 = arith.constant 0 : index
    %c0_1 = arith.constant 0 : index
    %3 = vector.load %arg7[%c0, %c0_1] : memref<8x512xf32, #tpu.memory_space<vmem>>, vector<8x512xf32>
    %c0_2 = arith.constant 0 : index
    %c0_3 = arith.constant 0 : index
    %4 = vector.load %arg1[%c0_2, %c0_3] : memref<8x3584xbf16, #tpu.memory_space<vmem>>, vector<8x3584xbf16>
    %c0_4 = arith.constant 0 : index
    %c0_5 = arith.constant 0 : index
    %5 = vector.load %arg2[%c0_4, %c0_5] : memref<3584x512xbf16, #tpu.memory_space<vmem>>, vector<3584x512xbf16>
    %cst = arith.constant dense<0.000000e+00> : vector<8x512xf32>
    %6 = tpu.matmul %4, %5, %cst {dimension_numbers = #tpu.dot_dimension_numbers<[1], [0], [0], [1], [0, 0, 1, 1], [], []>} : vector<8x3584xbf16>, vector<3584x512xbf16>, vector<8x512xf32> -> vector<8x512xf32>
    %7 = arith.addf %3, %6 : vector<8x512xf32>
    %c0_6 = arith.constant 0 : index
    %c0_7 = arith.constant 0 : index
    %8 = vector.load %arg7[%c0_6, %c0_7] : memref<8x512xf32, #tpu.memory_space<vmem>>, vector<8x512xf32>
    tpu.vector_store %arg7[%c0_6, %c0_7], %7 {strides = array<i32>} : memref<8x512xf32, #tpu.memory_space<vmem>>, vector<8x512xf32>,
    %c1_i32 = arith.constant 1 : i32
    %9 = arith.cmpi eq, %arg0, %c1_i32 : i32
    %10 = arith.extui %9 : i1 to i32
    %c0_i32_8 = arith.constant 0 : i32
    %11 = arith.cmpi ne, %10, %c0_i32_8 : i32
    scf.if %11 {
      %c0_9 = arith.constant 0 : index
      %c0_10 = arith.constant 0 : index
      %12 = vector.load %arg7[%c0_9, %c0_10] : memref<8x512xf32, #tpu.memory_space<vmem>>, vector<8x512xf32>
      %c0_11 = arith.constant 0 : index
      %c0_12 = arith.constant 0 : index
      %13 = vector.load %arg3[%c0_11, %c0_12] : memref<1x512xf32, #tpu.memory_space<vmem>>, vector<1x512xf32>
      %14 = vector.broadcast %13 : vector<1x512xf32> to vector<8x512xf32>
      %15 = arith.addf %12, %14 : vector<8x512xf32>
      %cst_13 = arith.constant 0.000000e+00 : f32
      %16 = vector.broadcast %cst_13 : f32 to vector<8x512xf32>
      %17 = arith.maximumf %15, %16 : vector<8x512xf32>
      %18 = arith.truncf %17 : vector<8x512xf32> to vector<8x512xbf16>
      %c0_14 = arith.constant 0 : index
      %c0_15 = arith.constant 0 : index
      %19 = vector.load %arg4[%c0_14, %c0_15] : memref<512x128xbf16, #tpu.memory_space<vmem>>, vector<512x128xbf16>
      %cst_16 = arith.constant dense<0.000000e+00> : vector<8x128xf32>
      %20 = tpu.matmul %18, %19, %cst_16 {dimension_numbers = #tpu.dot_dimension_numbers<[1], [0], [0], [1], [0, 0, 1, 1], [], []>} : vector<8x512xbf16>, vector<512x128xbf16>, vector<8x128xf32> -> vector<8x128xf32>
      %c0_17 = arith.constant 0 : index
      %c0_18 = arith.constant 0 : index
      %21 = vector.load %arg5[%c0_17, %c0_18] : memref<1x128xf32, #tpu.memory_space<vmem>>, vector<1x128xf32>
      %22 = vector.broadcast %21 : vector<1x128xf32> to vector<8x128xf32>
      %23 = arith.addf %20, %22 : vector<8x128xf32>
      %c0_19 = arith.constant 0 : index
      %c0_20 = arith.constant 0 : index
      %24 = vector.load %arg6[%c0_19, %c0_20] : memref<8x128xf32, #tpu.memory_space<vmem>>, vector<8x128xf32>
      tpu.vector_store %arg6[%c0_19, %c0_20], %23 {strides = array<i32>} : memref<8x128xf32, #tpu.memory_space<vmem>>, vector<8x128xf32>,
    } else {
    }
    return
  }
  func.func @transform_0(%arg0: i32) -> (i32, i32) {
    %c0_i32 = arith.constant 0 : i32
    %c0_i32_0 = arith.constant 0 : i32
    return %c0_i32, %arg0 : i32, i32
  }
  func.func @transform_1(%arg0: i32) -> (i32, i32) {
    %c0_i32 = arith.constant 0 : i32
    %c0_i32_0 = arith.constant 0 : i32
    return %arg0, %c0_i32 : i32, i32
  }
  func.func @transform_2(%arg0: i32) -> (i32, i32) {
    %c0_i32 = arith.constant 0 : i32
    %c0_i32_0 = arith.constant 0 : i32
    %c0_i32_1 = arith.constant 0 : i32
    return %c0_i32, %c0_i32_0 : i32, i32
  }
  func.func @transform_3(%arg0: i32) -> (i32, i32) {
    %c0_i32 = arith.constant 0 : i32
    %c0_i32_0 = arith.constant 0 : i32
    %c0_i32_1 = arith.constant 0 : i32
    return %c0_i32, %c0_i32_0 : i32, i32
  }
  func.func @transform_4(%arg0: i32) -> (i32, i32) {
    %c0_i32 = arith.constant 0 : i32
    %c0_i32_0 = arith.constant 0 : i32
    %c0_i32_1 = arith.constant 0 : i32
    return %c0_i32, %c0_i32_0 : i32, i32
  }
  func.func @transform_5(%arg0: i32) -> (i32, i32) {
    %c0_i32 = arith.constant 0 : i32
    %c0_i32_0 = arith.constant 0 : i32
    %c0_i32_1 = arith.constant 0 : i32
    return %c0_i32, %c0_i32_0 : i32, i32
  }
}

</mosaic_0001>

<llo_original>
// kernel: dqn_forward.4
$region0: #{dqn_forward.4}
  #allocation0 [shape = 'u32[]', space=smem, size = 0x4, offset = 0x4, fixed_abs, tag = 'smem constant byte address 0x4 - core index']
  #allocation1 [shape = 'u32[144,128]{1,0:T(1,128)}', space=vmem, size = 0x12000, scoped, tag = 'internal scratch']
  %s0 = inlined_call_operand.vmem [shape: bf16[800,256], index: 0, kind: input, shape index: {}]
  %s1 = inlined_call_operand.vmem [shape: bf16[256,128], index: 1, kind: input, shape index: {}]
  %s2 = inlined_call_operand.vmem [shape: f32[1,128], index: 2, kind: input, shape index: {}]
  %s3 = inlined_call_operand.vmem [shape: bf16[800,128], index: 3, kind: output, shape index: {}]
  %s4 = sld [smem:[#allocation0]]
  $region45: #{dqn_forward.4} parent=0
    _
  %s6 = ssub.s32 1, %s4
  %s7 = scalar_select 0, %s6, %s4
  loop: start=0, step=1, limit=6
  $region2: #{dqn_forward.4} parent=0 // loop_pre_header
    _
  $region3: #{dqn_forward.4} parent=0 // loop_header
    %s9 = sphi 0, %s13
    %p10 = scmp.ge.s32.totalorder %s9, 6
    %s19 = sphi 0, %s21
    %s22 = sphi 0, %s19
    %s23 = sphi 0, %s22
    %s39 = sphi 0, %s23
    %s43 = sphi 0, %s43
    %s45 = sphi 0, %s43
    %s46 = sphi 0, %s45
    %s60 = sphi 0, %s46
    %s64 = sphi 0, %s64
    %s66 = sphi 0, %s64
    %s67 = sphi 0, %s66
    %s81 = sphi 0, %s67
    %s87 = sphi 0, %s89
    %s90 = sphi 0, %s87
    %s91 = sphi 0, %s90
    %s107 = sphi 0, %s91
  $region4: #{dqn_forward.4} parent=0 // loop_header_branch
    %12 = sbr.rel (%p10) target = $region8
  $region5: #{dqn_forward.4} parent=0 // loop_body
    %s14 = ssub.s32 %s9, 1
    %s15 = ssub.s32 %s9, 2
    %s16 = sadd.s32 %s9, 1
    %s17 = ssub.s32 %s9, %s16
    %p18 = scmp.eq.s32.totalorder %s17, 0
    %s20 = sadd.s32 %s19, 1
    %s21 = scalar_select %p18, %s19, %s20
    %p24 = pneg %p18
    %p25 = scmp.eq.s32.totalorder %s9, 3
    %p26 = por %p24, %p25
    %p27 = scmp.ne.s32.totalorder %s19, %s22
    %p28 = scmp.eq.s32.totalorder %s9, 0
    %p29 = por %p27, %p28
    %p30 = scmp.ne.s32.totalorder %s19, %s22
    %p31 = scmp.eq.s32.totalorder %s14, 3
    %p32 = por %p30, %p31
    %p33 = scmp.ne.s32.totalorder %s22, %s23
    %p34 = scmp.eq.s32.totalorder %s14, 0
    %p35 = por %p33, %p34
    %p36 = scmp.ne.s32.totalorder %s22, %s23
    %p37 = scmp.eq.s32.totalorder %s15, 3
    %p38 = por %p36, %p37
    %p40 = scmp.ne.s32.totalorder %s23, %s39
    %p41 = scmp.eq.s32.totalorder %s15, 0
    %p42 = por %p40, %p41
    %s44 = sadd.s32 %s43, 1
    %p47 = scmp.eq.s32.totalorder %s9, 3
    %p48 = scmp.ne.s32.totalorder %s43, %s45
    %p49 = scmp.eq.s32.totalorder %s9, 0
    %p50 = por %p48, %p49
    %p51 = scmp.ne.s32.totalorder %s43, %s45
    %p52 = scmp.eq.s32.totalorder %s14, 3
    %p53 = por %p51, %p52
    %p54 = scmp.ne.s32.totalorder %s45, %s46
    %p55 = scmp.eq.s32.totalorder %s14, 0
    %p56 = por %p54, %p55
    %p57 = scmp.ne.s32.totalorder %s45, %s46
    %p58 = scmp.eq.s32.totalorder %s15, 3
    %p59 = por %p57, %p58
    %p61 = scmp.ne.s32.totalorder %s46, %s60
    %p62 = scmp.eq.s32.totalorder %s15, 0
    %p63 = por %p61, %p62
    %s65 = sadd.s32 %s64, 1
    %p68 = scmp.eq.s32.totalorder %s9, 3
    %p69 = scmp.ne.s32.totalorder %s64, %s66
    %p70 = scmp.eq.s32.totalorder %s9, 0
    %p71 = por %p69, %p70
    %p72 = scmp.ne.s32.totalorder %s64, %s66
    %p73 = scmp.eq.s32.totalorder %s14, 3
    %p74 = por %p72, %p73
    %p75 = scmp.ne.s32.totalorder %s66, %s67
    %p76 = scmp.eq.s32.totalorder %s14, 0
    %p77 = por %p75, %p76
    %p78 = scmp.ne.s32.totalorder %s66, %s67
    %p79 = scmp.eq.s32.totalorder %s15, 3
    %p80 = por %p78, %p79
    %p82 = scmp.ne.s32.totalorder %s67, %s81
    %p83 = scmp.eq.s32.totalorder %s15, 0
    %p84 = por %p82, %p83
    %s85 = ssub.s32 %s9, %s16
    %p86 = scmp.eq.s32.totalorder %s85, 0
    %s88 = sadd.s32 %s87, 1
    %s89 = scalar_select %p86, %s87, %s88
    %p92 = pneg %p86
    %p93 = scmp.eq.s32.totalorder %s9, 3
    %p94 = por %p92, %p93
    %p95 = scmp.ne.s32.totalorder %s87, %s90
    %p96 = scmp.eq.s32.totalorder %s9, 0
    %p97 = por %p95, %p96
    %p98 = scmp.ne.s32.totalorder %s87, %s90
    %p99 = scmp.eq.s32.totalorder %s14, 3
    %p100 = por %p98, %p99
    %p101 = scmp.ne.s32.totalorder %s90, %s91
    %p102 = scmp.eq.s32.totalorder %s14, 0
    %p103 = por %p101, %p102
    %p104 = scmp.ne.s32.totalorder %s90, %s91
    %p105 = scmp.eq.s32.totalorder %s15, 3
    %p106 = por %p104, %p105
    %p108 = scmp.ne.s32.totalorder %s91, %s107
    %p109 = scmp.eq.s32.totalorder %s15, 0
    %p110 = por %p108, %p109
    %p111 = scmp.le.s32.totalorder 1, %s9
    %p112 = scmp.lt.s32.totalorder %s9, 5
    %p113 = pnand %p111, %p112
    %p114 = pneg %p113
    // Predicated region
    $region9: #{dqn_forward.4} parent=5 // pred_check
      _
    $region10: #{dqn_forward.4} parent=5 // pred_check_branch
      %116 = sbr.rel (%p113) target = $region12
    $region11: #{dqn_forward.4} parent=5 // pred_region
      %s117 = ssub.s32 %s9, 1
      // Predicated region
      $region13: #{dqn_forward.4} parent=11 // pred_check
        %p118 = pneg %p56
      $region14: #{dqn_forward.4} parent=11 // pred_check_branch
        %120 = sbr.rel (%p118) target = $region16
      $region15: #{dqn_forward.4} parent=11 // pred_region
        _
      $region16: #{dqn_forward.4} parent=11 // pred_fallthru
        _
      // Predicated region
      $region17: #{dqn_forward.4} parent=11 // pred_check
        %p121 = pneg %p77
      $region18: #{dqn_forward.4} parent=11 // pred_check_branch
        %123 = sbr.rel (%p121) target = $region20
      $region19: #{dqn_forward.4} parent=11 // pred_region
        _
      $region20: #{dqn_forward.4} parent=11 // pred_fallthru
        _
    $region12: #{dqn_forward.4} parent=5 // pred_fallthru
      _
    %p124 = scmp.lt.s32.totalorder %s9, 4
    // Predicated region
    $region21: #{dqn_forward.4} parent=5 // pred_check
      %p125 = pneg %p124
    $region22: #{dqn_forward.4} parent=5 // pred_check_branch
      %127 = sbr.rel (%p125) target = $region24
    $region23: #{dqn_forward.4} parent=5 // pred_region
      // Predicated region
      $region25: #{dqn_forward.4} parent=23 // pred_check
        %p128 = pneg %p29
      $region26: #{dqn_forward.4} parent=23 // pred_check_branch
        %130 = sbr.rel (%p128) target = $region28
      $region27: #{dqn_forward.4} parent=23 // pred_region
        %s131 = smul.u32 25, %s9
        %p132 = scmp.lt.s32.totalorder %s131, 99
        %s133 = scalar_select %p132, %s131, 99
        %s134 = smul.addr %s133, 2
        %s135 = smul.addr %s134, 4
        %s136 = scalar_lea.vmem %s0, %s135
        %s137 = smul.u32 25, %s9
      $region28: #{dqn_forward.4} parent=23 // pred_fallthru
        _
    $region24: #{dqn_forward.4} parent=5 // pred_fallthru
      _
    %p138 = scmp.le.s32.totalorder 1, %s9
    %p139 = scmp.lt.s32.totalorder %s9, 5
    %p140 = pnand %p138, %p139
    %p141 = pneg %p140
    // Predicated region
    $region29: #{dqn_forward.4} parent=5 // pred_check
      _
    $region30: #{dqn_forward.4} parent=5 // pred_check_branch
      %143 = sbr.rel (%p140) target = $region32
    $region31: #{dqn_forward.4} parent=5 // pred_region
      %s144 = ssub.s32 %s9, 1
      %s145 = smul.u32 25, %s14
      %p146 = scmp.lt.s32.totalorder %s145, 99
      %s147 = scalar_select %p146, %s145, 99
      %s148 = smul.addr %s147, 2
      %s149 = smul.addr %s148, 4
      %s150 = scalar_lea.vmem %s0, %s149
      %p151 = pneg %p35
      %p152 = pneg %p32
      %p153 = pneg %p56
      %p154 = pneg %p53
      %p155 = pneg %p77
      %p156 = pneg %p74
      %p157 = pneg %p103
      %p158 = pneg %p100
      %s159 = smul.u32 25, %s14
      %p160 = scmp.lt.s32.totalorder %s159, 99
      %s161 = scalar_select %p160, %s159, 99
      %s162 = smul.addr %s161, 4
      %s163 = scalar_lea.vmem %s3, %s162
      %s164 = smul.u32 25, %s14
      %p165 = scmp.lt.s32.totalorder %s164, 99
      %s166 = scalar_select %p165, %s164, 99
      %s167 = smul.addr %s166, 2
      %s168 = smul.addr %s167, 4
      %s169 = scalar_lea.vmem %s0, %s168
      %s170 = smul.u32 25, %s14
      %s171 = smul.u32 25, %s14
      %p172 = scmp.lt.s32.totalorder %s171, 99
      %s173 = scalar_select %p172, %s171, 99
      %s174 = smul.addr %s173, 4
      %s175 = scalar_lea.vmem %s3, %s174
      %s176 = smul.u32 25, %s14
      %v178 = vld [vmem:[%s169] sm:$0xff]
      %v179 = vld [vmem:[%s169 + $0x8] sm:$0xff]
      %v180 = vld [vmem:[%s169 + $0x10] sm:$0xff]
      %v181 = vld [vmem:[%s169 + $0x18] sm:$0xff]
      %v182 = vld [vmem:[%s169 + $0x20] sm:$0xff]
      %v183 = vld [vmem:[%s169 + $0x28] sm:$0xff]
      %v184 = vld [vmem:[%s169 + $0x30] sm:$0xff]
      %v185 = vld [vmem:[%s169 + $0x38] sm:$0xff]
      %v186 = vld [vmem:[%s169 + $0x40] sm:$0xff]
      %v187 = vld [vmem:[%s169 + $0x48] sm:$0xff]
      %v188 = vld [vmem:[%s169 + $0x50] sm:$0xff]
      %v189 = vld [vmem:[%s169 + $0x58] sm:$0xff]
      %v190 = vld [vmem:[%s169 + $0x60] sm:$0xff]
      %v191 = vld [vmem:[%s169 + $0x68] sm:$0xff]
      %v192 = vld [vmem:[%s169 + $0x70] sm:$0xff]
      %v193 = vld [vmem:[%s169 + $0x78] sm:$0xff]
      %v194 = vld [vmem:[%s169 + $0x80] sm:$0xff]
      %v195 = vld [vmem:[%s169 + $0x88] sm:$0xff]
      %v196 = vld [vmem:[%s169 + $0x90] sm:$0xff]
      %v197 = vld [vmem:[%s169 + $0x98] sm:$0xff]
      %v198 = vld [vmem:[%s169 + $0xa0] sm:$0xff]
      %v199 = vld [vmem:[%s169 + $0xa8] sm:$0xff]
      %v200 = vld [vmem:[%s169 + $0xb0] sm:$0xff]
      %v201 = vld [vmem:[%s169 + $0xb8] sm:$0xff]
      %v202 = vld [vmem:[%s169 + $0xc0] sm:$0xff]
      %v203 = vld [vmem:[%s1] sm:$0xf]
      %v204 = vld [vmem:[%s1 + $0x4] sm:$0xf]
      %v205 = vld [vmem:[%s1 + $0x8] sm:$0xf]
      %v206 = vld [vmem:[%s1 + $0xc] sm:$0xf]
      %v207 = vld [vmem:[%s1 + $0x10] sm:$0xf]
      %v208 = vld [vmem:[%s1 + $0x14] sm:$0xf]
      %v209 = vld [vmem:[%s1 + $0x18] sm:$0xf]
      %v210 = vld [vmem:[%s1 + $0x1c] sm:$0xf]
      %v211 = vld [vmem:[%s1 + $0x20] sm:$0xf]
      %v212 = vld [vmem:[%s1 + $0x24] sm:$0xf]
      %v213 = vld [vmem:[%s1 + $0x28] sm:$0xf]
      %v214 = vld [vmem:[%s1 + $0x2c] sm:$0xf]
      %v215 = vld [vmem:[%s1 + $0x30] sm:$0xf]
      %v216 = vld [vmem:[%s1 + $0x34] sm:$0xf]
      %v217 = vld [vmem:[%s1 + $0x38] sm:$0xf]
      %v218 = vld [vmem:[%s1 + $0x3c] sm:$0xf]
      %v219 = vld [vmem:[%s1 + $0x40] sm:$0xf]
      %v220 = vld [vmem:[%s1 + $0x44] sm:$0xf]
      %v221 = vld [vmem:[%s1 + $0x48] sm:$0xf]
      %v222 = vld [vmem:[%s1 + $0x4c] sm:$0xf]
      %v223 = vld [vmem:[%s1 + $0x50] sm:$0xf]
      %v224 = vld [vmem:[%s1 + $0x54] sm:$0xf]
      %v225 = vld [vmem:[%s1 + $0x58] sm:$0xf]
      %v226 = vld [vmem:[%s1 + $0x5c] sm:$0xf]
      %v227 = vld [vmem:[%s1 + $0x60] sm:$0xf]
      %v228 = vld [vmem:[%s1 + $0x64] sm:$0xf]
      %v229 = vld [vmem:[%s1 + $0x68] sm:$0xf]
      %v230 = vld [vmem:[%s1 + $0x6c] sm:$0xf]
      %v231 = vld [vmem:[%s1 + $0x70] sm:$0xf]
      %v232 = vld [vmem:[%s1 + $0x74] sm:$0xf]
      %v233 = vld [vmem:[%s1 + $0x78] sm:$0xf]
      %v234 = vld [vmem:[%s1 + $0x7c] sm:$0xf]
      %v235 = vld [vmem:[%s2] sm:$0x1]
      %v237 = vlaneseq
      %v238 = vshrl.u32 %v237, 7
      %v239 = vsub.s32 0, %v238
      %v240 = vrot.slane %v235, %v239
      %v267 = vunpack.c.l.b16 %v178
      %v268 = vunpack.c.h.b16 %v178
      %v269 = vunpack.c.l.b16 %v179
      %v270 = vunpack.c.h.b16 %v179
      %v271 = vunpack.c.l.b16 %v180
      %v272 = vunpack.c.h.b16 %v180
      %v273 = vunpack.c.l.b16 %v181
      %v274 = vunpack.c.h.b16 %v181
      %v275 = vunpack.c.l.b16 %v182
      %v276 = vunpack.c.h.b16 %v182
      %v277 = vunpack.c.l.b16 %v183
      %v278 = vunpack.c.h.b16 %v183
      %v279 = vunpack.c.l.b16 %v184
      %v280 = vunpack.c.h.b16 %v184
      %v281 = vunpack.c.l.b16 %v185
      %v282 = vunpack.c.h.b16 %v185
      %v283 = vunpack.c.l.b16 %v186
      %v284 = vunpack.c.h.b16 %v186
      %v285 = vunpack.c.l.b16 %v187
      %v286 = vunpack.c.h.b16 %v187
      %v287 = vunpack.c.l.b16 %v188
      %v288 = vunpack.c.h.b16 %v188
      %v289 = vunpack.c.l.b16 %v189
      %v290 = vunpack.c.h.b16 %v189
      %v291 = vunpack.c.l.b16 %v190
      %v292 = vunpack.c.h.b16 %v190
      %v293 = vunpack.c.l.b16 %v191
      %v294 = vunpack.c.h.b16 %v191
      %v295 = vunpack.c.l.b16 %v192
      %v296 = vunpack.c.h.b16 %v192
      %v297 = vunpack.c.l.b16 %v193
      %v298 = vunpack.c.h.b16 %v193
      %v299 = vunpack.c.l.b16 %v194
      %v300 = vunpack.c.h.b16 %v194
      %v301 = vunpack.c.l.b16 %v195
      %v302 = vunpack.c.h.b16 %v195
      %v303 = vunpack.c.l.b16 %v196
      %v304 = vunpack.c.h.b16 %v196
      %v305 = vunpack.c.l.b16 %v197
      %v306 = vunpack.c.h.b16 %v197
      %v307 = vunpack.c.l.b16 %v198
      %v308 = vunpack.c.h.b16 %v198
      %v309 = vunpack.c.l.b16 %v199
      %v310 = vunpack.c.h.b16 %v199
      %v311 = vunpack.c.l.b16 %v200
      %v312 = vunpack.c.h.b16 %v200
      %v313 = vunpack.c.l.b16 %v201
      %v314 = vunpack.c.h.b16 %v201
      %v315 = vunpack.c.l.b16 %v202
      %v316 = vunpack.c.h.b16 %v202
      %v317 = vpack.c.b16 %v269, %v267
      %v318 = vpack.c.b16 %v270, %v268
      %v319 = vpack.c.b16 %v273, %v271
      %v320 = vpack.c.b16 %v274, %v272
      %v321 = vpack.c.b16 %v277, %v275
      %v322 = vpack.c.b16 %v278, %v276
      %v323 = vpack.c.b16 %v281, %v279
      %v324 = vpack.c.b16 %v282, %v280
      %v325 = vpack.c.b16 %v285, %v283
      %v326 = vpack.c.b16 %v286, %v284
      %v327 = vpack.c.b16 %v289, %v287
      %v328 = vpack.c.b16 %v290, %v288
      %v329 = vpack.c.b16 %v293, %v291
      %v330 = vpack.c.b16 %v294, %v292
      %v331 = vpack.c.b16 %v297, %v295
      %v332 = vpack.c.b16 %v298, %v296
      %v333 = vpack.c.b16 %v301, %v299
      %v334 = vpack.c.b16 %v302, %v300
      %v335 = vpack.c.b16 %v305, %v303
      %v336 = vpack.c.b16 %v306, %v304
      %v337 = vpack.c.b16 %v309, %v307
      %v338 = vpack.c.b16 %v310, %v308
      %v339 = vpack.c.b16 %v313, %v311
      %v340 = vpack.c.b16 %v314, %v312
      %v341 = vpack.c.b16 %v315, %v315
      %v342 = vpack.c.b16 %v316, %v316
      %v401 = vunpack.c.l.b16 %v203
      %v402 = vunpack.c.l.b16 %v204
      %v403 = vunpack.c.l.b16 %v205
      %v404 = vunpack.c.l.b16 %v206
      %v405 = vunpack.c.l.b16 %v207
      %v406 = vunpack.c.l.b16 %v208
      %v407 = vunpack.c.l.b16 %v209
      %v408 = vunpack.c.l.b16 %v210
      %v409 = vunpack.c.l.b16 %v211
      %v410 = vunpack.c.l.b16 %v212
      %v411 = vunpack.c.l.b16 %v213
      %v412 = vunpack.c.l.b16 %v214
      %v413 = vunpack.c.l.b16 %v215
      %v414 = vunpack.c.l.b16 %v216
      %v415 = vunpack.c.l.b16 %v217
      %v416 = vunpack.c.l.b16 %v218
      %v417 = vunpack.c.l.b16 %v219
      %v418 = vunpack.c.l.b16 %v220
      %v419 = vunpack.c.l.b16 %v221
      %v420 = vunpack.c.l.b16 %v222
      %v421 = vunpack.c.l.b16 %v223
      %v422 = vunpack.c.l.b16 %v224
      %v423 = vunpack.c.l.b16 %v225
      %v424 = vunpack.c.l.b16 %v226
      %v425 = vunpack.c.l.b16 %v227
      %v426 = vunpack.c.l.b16 %v228
      %v427 = vunpack.c.l.b16 %v229
      %v428 = vunpack.c.l.b16 %v230
      %v429 = vunpack.c.l.b16 %v231
      %v430 = vunpack.c.l.b16 %v232
      %v431 = vunpack.c.l.b16 %v233
      %v432 = vunpack.c.l.b16 %v234
      %v433 = vpack.c.b16 %v402, %v401
      %v434 = vpack.c.b16 %v404, %v403
      %v435 = vpack.c.b16 %v406, %v405
      %v436 = vpack.c.b16 %v408, %v407
      %v437 = vpack.c.b16 %v410, %v409
      %v438 = vpack.c.b16 %v412, %v411
      %v439 = vpack.c.b16 %v414, %v413
      %v440 = vpack.c.b16 %v416, %v415
      %v441 = vpack.c.b16 %v418, %v417
      %v442 = vpack.c.b16 %v420, %v419
      %v443 = vpack.c.b16 %v422, %v421
      %v444 = vpack.c.b16 %v424, %v423
      %v445 = vpack.c.b16 %v426, %v425
      %v446 = vpack.c.b16 %v428, %v427
      %v447 = vpack.c.b16 %v430, %v429
      %v448 = vpack.c.b16 %v432, %v431
      %465 = vmatprep.subr.bf16.mxu0 0
      %466 = vmatpush1.bf16.msra.mxu0 %v433
      %467 = vmatprep.subr.bf16.mxu0 0
      %468 = vmatpush1.bf16.msra.mxu0 %v434
      %469 = vmatprep.subr.bf16.mxu0 0
      %470 = vmatpush1.bf16.msra.mxu0 %v435
      %471 = vmatprep.subr.bf16.mxu0 0
      %472 = vmatpush1.bf16.msra.mxu0 %v436
      %473 = vmatprep.subr.bf16.mxu0 0
      %474 = vmatpush1.bf16.msra.mxu0 %v437
      %475 = vmatprep.subr.bf16.mxu0 0
      %476 = vmatpush1.bf16.msra.mxu0 %v438
      %477 = vmatprep.subr.bf16.mxu0 0
      %478 = vmatpush1.bf16.msra.mxu0 %v439
      %479 = vmatprep.subr.bf16.mxu0 0
      %480 = vmatpush1.bf16.msra.mxu0 %v440
      %481 = vmatprep.subr.bf16.mxu0 0
      %482 = vmatpush1.bf16.msra.mxu0 %v441
      %483 = vmatprep.subr.bf16.mxu0 0
      %484 = vmatpush1.bf16.msra.mxu0 %v442
      %485 = vmatprep.subr.bf16.mxu0 0
      %486 = vmatpush1.bf16.msra.mxu0 %v443
      %487 = vmatprep.subr.bf16.mxu0 0
      %488 = vmatpush1.bf16.msra.mxu0 %v444
      %489 = vmatprep.subr.bf16.mxu0 0
      %490 = vmatpush1.bf16.msra.mxu0 %v445
      %491 = vmatprep.subr.bf16.mxu0 0
      %492 = vmatpush1.bf16.msra.mxu0 %v446
      %493 = vmatprep.subr.bf16.mxu0 0
      %494 = vmatpush1.bf16.msra.mxu0 %v447
      %495 = vmatprep.subr.bf16.mxu0 0
      %496 = vmatpush1.bf16.msra.mxu0 %v448
      %497 = vmatprep.mubr.bf16.mxu0 %v318
      %498 = vmatmul.mubr.bf16.gmra.mrb[0].mxu0 %v317
      %v499 = vpop.f32.mrb[0].mxu0
      %v500 = vadd.f32 %v240, %v499
      %v501 = vpop.f32.mrb[0].mxu0
      %v502 = vpop.f32.mrb[0].mxu0
      %v503 = vadd.f32 %v240, %v502
      %v504 = vpop.f32.mrb[0].mxu0
      %505 = vmatprep.mubr.bf16.mxu0 %v320
      %506 = vmatmul.mubr.bf16.gmra.mrb[0].mxu0 %v319
      %v507 = vpop.f32.mrb[0].mxu0
      %v508 = vadd.f32 %v240, %v507
      %v509 = vpop.f32.mrb[0].mxu0
      %v510 = vpop.f32.mrb[0].mxu0
      %v511 = vadd.f32 %v240, %v510
      %v512 = vpop.f32.mrb[0].mxu0
      %513 = vmatprep.mubr.bf16.mxu0 %v322
      %514 = vmatmul.mubr.bf16.gmra.mrb[0].mxu0 %v321
      %v515 = vpop.f32.mrb[0].mxu0
      %v516 = vadd.f32 %v240, %v515
      %v517 = vpop.f32.mrb[0].mxu0
      %v518 = vpop.f32.mrb[0].mxu0
      %v519 = vadd.f32 %v240, %v518
      %v520 = vpop.f32.mrb[0].mxu0
      %521 = vmatprep.mubr.bf16.mxu0 %v324
      %522 = vmatmul.mubr.bf16.gmra.mrb[0].mxu0 %v323
      %v523 = vpop.f32.mrb[0].mxu0
      %v524 = vadd.f32 %v240, %v523
      %v525 = vpop.f32.mrb[0].mxu0
      %v526 = vpop.f32.mrb[0].mxu0
      %v527 = vadd.f32 %v240, %v526
      %v528 = vpop.f32.mrb[0].mxu0
      %529 = vmatprep.mubr.bf16.mxu0 %v326
      %530 = vmatmul.mubr.bf16.gmra.mrb[0].mxu0 %v325
      %v531 = vpop.f32.mrb[0].mxu0
      %v532 = vadd.f32 %v240, %v531
      %v533 = vpop.f32.mrb[0].mxu0
      %v534 = vpop.f32.mrb[0].mxu0
      %v535 = vadd.f32 %v240, %v534
      %v536 = vpop.f32.mrb[0].mxu0
      %537 = vmatprep.mubr.bf16.mxu0 %v328
      %538 = vmatmul.mubr.bf16.gmra.mrb[0].mxu0 %v327
      %v539 = vpop.f32.mrb[0].mxu0
      %v540 = vadd.f32 %v240, %v539
      %v541 = vpop.f32.mrb[0].mxu0
      %v542 = vpop.f32.mrb[0].mxu0
      %v543 = vadd.f32 %v240, %v542
      %v544 = vpop.f32.mrb[0].mxu0
      %545 = vmatprep.mubr.bf16.mxu0 %v330
      %546 = vmatmul.mubr.bf16.gmra.mrb[0].mxu0 %v329
      %v547 = vpop.f32.mrb[0].mxu0
      %v548 = vadd.f32 %v240, %v547
      %v549 = vpop.f32.mrb[0].mxu0
      %v550 = vpop.f32.mrb[0].mxu0
      %v551 = vadd.f32 %v240, %v550
      %v552 = vpop.f32.mrb[0].mxu0
      %553 = vmatprep.mubr.bf16.mxu0 %v332
      %554 = vmatmul.mubr.bf16.gmra.mrb[0].mxu0 %v331
      %v555 = vpop.f32.mrb[0].mxu0
      %v556 = vadd.f32 %v240, %v555
      %v557 = vpop.f32.mrb[0].mxu0
      %v558 = vpop.f32.mrb[0].mxu0
      %v559 = vadd.f32 %v240, %v558
      %v560 = vpop.f32.mrb[0].mxu0
      %561 = vmatprep.mubr.bf16.mxu0 %v334
      %562 = vmatmul.mubr.bf16.gmra.mrb[0].mxu0 %v333
      %v563 = vpop.f32.mrb[0].mxu0
      %v564 = vadd.f32 %v240, %v563
      %v565 = vpop.f32.mrb[0].mxu0
      %v566 = vpop.f32.mrb[0].mxu0
      %v567 = vadd.f32 %v240, %v566
      %v568 = vpop.f32.mrb[0].mxu0
      %569 = vmatprep.mubr.bf16.mxu0 %v336
      %570 = vmatmul.mubr.bf16.gmra.mrb[0].mxu0 %v335
      %v571 = vpop.f32.mrb[0].mxu0
      %v572 = vadd.f32 %v240, %v571
      %v573 = vpop.f32.mrb[0].mxu0
      %v574 = vpop.f32.mrb[0].mxu0
      %v575 = vadd.f32 %v240, %v574
      %v576 = vpop.f32.mrb[0].mxu0
      %577 = vmatprep.mubr.bf16.mxu0 %v338
      %578 = vmatmul.mubr.bf16.gmra.mrb[0].mxu0 %v337
      %v579 = vpop.f32.mrb[0].mxu0
      %v580 = vadd.f32 %v240, %v579
      %v581 = vpop.f32.mrb[0].mxu0
      %v582 = vpop.f32.mrb[0].mxu0
      %v583 = vadd.f32 %v240, %v582
      %v584 = vpop.f32.mrb[0].mxu0
      %585 = vmatprep.mubr.bf16.mxu0 %v340
      %586 = vmatmul.mubr.bf16.gmra.mrb[0].mxu0 %v339
      %v587 = vpop.f32.mrb[0].mxu0
      %v588 = vadd.f32 %v240, %v587
      %v589 = vpop.f32.mrb[0].mxu0
      %v590 = vpop.f32.mrb[0].mxu0
      %v591 = vadd.f32 %v240, %v590
      %v592 = vpop.f32.mrb[0].mxu0
      %593 = vmatprep.mubr.bf16.mxu0 %v342
      %594 = vmatmul.mubr.bf16.gmra.mrb[0].mxu0 %v341
      %v595 = vpop.f32.mrb[0].mxu0
      %v596 = vadd.f32 %v240, %v595
      %v597 = vpop.f32.mrb[0].mxu0
      %v598 = vpop.f32.mrb[0].mxu0
      %v599 = vpop.f32.mrb[0].mxu0
      %600 = vdwg.mxu0
      %v601 = vmax.f32 %v500, 0.0
      %v602 = vmax.f32 %v503, 0.0
      %v603 = vmax.f32 %v508, 0.0
      %v604 = vmax.f32 %v511, 0.0
      %v605 = vmax.f32 %v516, 0.0
      %v606 = vmax.f32 %v519, 0.0
      %v607 = vmax.f32 %v524, 0.0
      %v608 = vmax.f32 %v527, 0.0
      %v609 = vmax.f32 %v532, 0.0
      %v610 = vmax.f32 %v535, 0.0
      %v611 = vmax.f32 %v540, 0.0
      %v612 = vmax.f32 %v543, 0.0
      %v613 = vmax.f32 %v548, 0.0
      %v614 = vmax.f32 %v551, 0.0
      %v615 = vmax.f32 %v556, 0.0
      %v616 = vmax.f32 %v559, 0.0
      %v617 = vmax.f32 %v564, 0.0
      %v618 = vmax.f32 %v567, 0.0
      %v619 = vmax.f32 %v572, 0.0
      %v620 = vmax.f32 %v575, 0.0
      %v621 = vmax.f32 %v580, 0.0
      %v622 = vmax.f32 %v583, 0.0
      %v623 = vmax.f32 %v588, 0.0
      %v624 = vmax.f32 %v591, 0.0
      %v625 = vmax.f32 %v596, 0.0
      %v626 = vpack.c.bf16 %v602, %v601
      %v627 = vpack.c.bf16 %v604, %v603
      %v628 = vpack.c.bf16 %v606, %v605
      %v629 = vpack.c.bf16 %v608, %v607
      %v630 = vpack.c.bf16 %v610, %v609
      %v631 = vpack.c.bf16 %v612, %v611
      %v632 = vpack.c.bf16 %v614, %v613
      %v633 = vpack.c.bf16 %v616, %v615
      %v634 = vpack.c.bf16 %v618, %v617
      %v635 = vpack.c.bf16 %v620, %v619
      %v636 = vpack.c.bf16 %v622, %v621
      %v637 = vpack.c.bf16 %v624, %v623
      %v638 = vpack.c.bf16 %v625, %v625
      %v652 = vunpack.c.l.b16 %v626
      %v653 = vunpack.c.h.b16 %v626
      %v654 = vunpack.c.l.b16 %v627
      %v655 = vunpack.c.h.b16 %v627
      %v656 = vunpack.c.l.b16 %v628
      %v657 = vunpack.c.h.b16 %v628
      %v658 = vunpack.c.l.b16 %v629
      %v659 = vunpack.c.h.b16 %v629
      %v660 = vunpack.c.l.b16 %v630
      %v661 = vunpack.c.h.b16 %v630
      %v662 = vunpack.c.l.b16 %v631
      %v663 = vunpack.c.h.b16 %v631
      %v664 = vunpack.c.l.b16 %v632
      %v665 = vunpack.c.h.b16 %v632
      %v666 = vunpack.c.l.b16 %v633
      %v667 = vunpack.c.h.b16 %v633
      %v668 = vunpack.c.l.b16 %v634
      %v669 = vunpack.c.h.b16 %v634
      %v670 = vunpack.c.l.b16 %v635
      %v671 = vunpack.c.h.b16 %v635
      %v672 = vunpack.c.l.b16 %v636
      %v673 = vunpack.c.h.b16 %v636
      %v674 = vunpack.c.l.b16 %v637
      %v675 = vunpack.c.h.b16 %v637
      %v676 = vunpack.c.l.b16 %v638
      %v677 = vpack.c.b16 %v652, %v652
      %v678 = vpack.c.b16 %v653, %v653
      %v679 = vpack.c.b16 %v654, %v654
      %v680 = vpack.c.b16 %v655, %v655
      %v681 = vpack.c.b16 %v656, %v656
      %v682 = vpack.c.b16 %v657, %v657
      %v683 = vpack.c.b16 %v658, %v658
      %v684 = vpack.c.b16 %v659, %v659
      %v685 = vpack.c.b16 %v660, %v660
      %v686 = vpack.c.b16 %v661, %v661
      %v687 = vpack.c.b16 %v662, %v662
      %v688 = vpack.c.b16 %v663, %v663
      %v689 = vpack.c.b16 %v664, %v664
      %v690 = vpack.c.b16 %v665, %v665
      %v691 = vpack.c.b16 %v666, %v666
      %v692 = vpack.c.b16 %v667, %v667
      %v693 = vpack.c.b16 %v668, %v668
      %v694 = vpack.c.b16 %v669, %v669
      %v695 = vpack.c.b16 %v670, %v670
      %v696 = vpack.c.b16 %v671, %v671
      %v697 = vpack.c.b16 %v672, %v672
      %v698 = vpack.c.b16 %v673, %v673
      %v699 = vpack.c.b16 %v674, %v674
      %v700 = vpack.c.b16 %v675, %v675
      %v701 = vpack.c.b16 %v676, %v676
      %727 = vst [vmem:[%s175] sm:$0xf] %v677
      %728 = vst [vmem:[%s175 + $0x4] sm:$0xf] %v678
      %729 = vst [vmem:[%s175 + $0x8] sm:$0xf] %v679
      %730 = vst [vmem:[%s175 + $0xc] sm:$0xf] %v680
      %731 = vst [vmem:[%s175 + $0x10] sm:$0xf] %v681
      %732 = vst [vmem:[%s175 + $0x14] sm:$0xf] %v682
      %733 = vst [vmem:[%s175 + $0x18] sm:$0xf] %v683
      %734 = vst [vmem:[%s175 + $0x1c] sm:$0xf] %v684
      %735 = vst [vmem:[%s175 + $0x20] sm:$0xf] %v685
      %736 = vst [vmem:[%s175 + $0x24] sm:$0xf] %v686
      %737 = vst [vmem:[%s175 + $0x28] sm:$0xf] %v687
      %738 = vst [vmem:[%s175 + $0x2c] sm:$0xf] %v688
      %739 = vst [vmem:[%s175 + $0x30] sm:$0xf] %v689
      %740 = vst [vmem:[%s175 + $0x34] sm:$0xf] %v690
      %741 = vst [vmem:[%s175 + $0x38] sm:$0xf] %v691
      %742 = vst [vmem:[%s175 + $0x3c] sm:$0xf] %v692
      %743 = vst [vmem:[%s175 + $0x40] sm:$0xf] %v693
      %744 = vst [vmem:[%s175 + $0x44] sm:$0xf] %v694
      %745 = vst [vmem:[%s175 + $0x48] sm:$0xf] %v695
      %746 = vst [vmem:[%s175 + $0x4c] sm:$0xf] %v696
      %747 = vst [vmem:[%s175 + $0x50] sm:$0xf] %v697
      %748 = vst [vmem:[%s175 + $0x54] sm:$0xf] %v698
      %749 = vst [vmem:[%s175 + $0x58] sm:$0xf] %v699
      %750 = vst [vmem:[%s175 + $0x5c] sm:$0xf] %v700
      %751 = vst [vmem:[%s175 + $0x60] sm:$0xf] %v701
      %s752 = smul.u32 25, %s14
      %p753 = scmp.lt.s32.totalorder %s752, 99
      %s754 = scalar_select %p753, %s752, 99
      %s755 = smul.addr %s754, 4
      %s756 = scalar_lea.vmem %s3, %s755
      // Predicated region
      $region33: #{dqn_forward.4} parent=31 // pred_check
        %p757 = pneg %p100
      $region34: #{dqn_forward.4} parent=31 // pred_check_branch
        %759 = sbr.rel (%p757) target = $region36
      $region35: #{dqn_forward.4} parent=31 // pred_region
        %s760 = smul.u32 25, %s14
      $region36: #{dqn_forward.4} parent=31 // pred_fallthru
        _
    $region32: #{dqn_forward.4} parent=5 // pred_fallthru
      _
    %p761 = scmp.le.s32.totalorder 2, %s9
    // Predicated region
    $region37: #{dqn_forward.4} parent=5 // pred_check
      %p762 = pneg %p761
    $region38: #{dqn_forward.4} parent=5 // pred_check_branch
      %764 = sbr.rel (%p762) target = $region40
    $region39: #{dqn_forward.4} parent=5 // pred_region
      %s765 = ssub.s32 %s9, 2
      // Predicated region
      $region41: #{dqn_forward.4} parent=39 // pred_check
        %p766 = pneg %p106
      $region42: #{dqn_forward.4} parent=39 // pred_check_branch
        %768 = sbr.rel (%p766) target = $region44
      $region43: #{dqn_forward.4} parent=39 // pred_region
        %s769 = smul.u32 25, %s15
        %p770 = scmp.lt.s32.totalorder %s769, 99
        %s771 = scalar_select %p770, %s769, 99
        %s772 = smul.addr %s771, 4
        %s773 = scalar_lea.vmem %s3, %s772
      $region44: #{dqn_forward.4} parent=39 // pred_fallthru
        _
    $region40: #{dqn_forward.4} parent=5 // pred_fallthru
      _
  $region6: #{dqn_forward.4} parent=0 // loop_footer
    %s13 = sadd.s32 1, %s9
  $region7: #{dqn_forward.4} parent=0 // loop_footer_branch
    %8 = sbr.rel target = $region3
  $region8: #{dqn_forward.4} parent=0 // loop_exit
    _

// kernel: dqn_forward.5
$region0: #{dqn_forward.5}
  #allocation0 [shape = 'u32[]', space=smem, size = 0x4, offset = 0x4, fixed_abs, tag = 'smem constant byte address 0x4 - core index']
  #allocation1 [shape = 'u32[144,128]{1,0:T(1,128)}', space=vmem, size = 0x12000, scoped, tag = 'internal scratch']
  %s0 = inlined_call_operand.vmem [shape: bf16[168,2048], index: 0, kind: input, shape index: {}]
  %s1 = inlined_call_operand.vmem [shape: bf16[2048,128], index: 1, kind: input, shape index: {}]
  %s2 = inlined_call_operand.vmem [shape: f32[1,128], index: 2, kind: input, shape index: {}]
  %s3 = inlined_call_operand.vmem [shape: bf16[168,128], index: 3, kind: output, shape index: {}]
  %s4 = sld [smem:[#allocation0]]
  $region22: #{dqn_forward.5} parent=0
    _
  %s6 = ssub.s32 1, %s4
  %s7 = scalar_select 0, %s6, %s4
  // Predicated region
  $region2: #{dqn_forward.5} parent=0 // pred_check
    _
  $region3: #{dqn_forward.5} parent=0 // pred_check_branch
    %9 = sbr.rel (0) target = $region5
  $region4: #{dqn_forward.5} parent=0 // pred_region
    _
  $region5: #{dqn_forward.5} parent=0 // pred_fallthru
    _
  // Predicated region
  $region6: #{dqn_forward.5} parent=0 // pred_check
    _
  $region7: #{dqn_forward.5} parent=0 // pred_check_branch
    %11 = sbr.rel (0) target = $region9
  $region8: #{dqn_forward.5} parent=0 // pred_region
    _
  $region9: #{dqn_forward.5} parent=0 // pred_fallthru
    _
  // Predicated region
  $region10: #{dqn_forward.5} parent=0 // pred_check
    _
  $region11: #{dqn_forward.5} parent=0 // pred_check_branch
    %13 = sbr.rel (0) target = $region13
  $region12: #{dqn_forward.5} parent=0 // pred_region
    _
  $region13: #{dqn_forward.5} parent=0 // pred_fallthru
    _
  %v15 = vld [vmem:[%s0] sm:$0xff]
  %v16 = vld [vmem:[%s0 + $0x8] sm:$0xff]
  %v17 = vld [vmem:[%s0 + $0x10] sm:$0xff]
  %v18 = vld [vmem:[%s0 + $0x18] sm:$0xff]
  %v19 = vld [vmem:[%s0 + $0x20] sm:$0xff]
  %v20 = vld [vmem:[%s0 + $0x28] sm:$0xff]
  %v21 = vld [vmem:[%s0 + $0x30] sm:$0xff]
  %v22 = vld [vmem:[%s0 + $0x38] sm:$0xff]
  %v23 = vld [vmem:[%s0 + $0x40] sm:$0xff]
  %v24 = vld [vmem:[%s0 + $0x48] sm:$0xff]
  %v25 = vld [vmem:[%s0 + $0x50] sm:$0xff]
  %v26 = vld [vmem:[%s0 + $0x58] sm:$0xff]
  %v27 = vld [vmem:[%s0 + $0x60] sm:$0xff]
  %v28 = vld [vmem:[%s0 + $0x68] sm:$0xff]
  %v29 = vld [vmem:[%s0 + $0x70] sm:$0xff]
  %v30 = vld [vmem:[%s0 + $0x78] sm:$0xff]
  %v31 = vld [vmem:[%s0 + $0x80] sm:$0xff]
  %v32 = vld [vmem:[%s0 + $0x88] sm:$0xff]
  %v33 = vld [vmem:[%s0 + $0x90] sm:$0xff]
  %v34 = vld [vmem:[%s0 + $0x98] sm:$0xff]
  %v35 = vld [vmem:[%s0 + $0xa0] sm:$0xff]
  %v36 = vld [vmem:[%s0 + $0xa8] sm:$0xff]
  %v37 = vld [vmem:[%s0 + $0xb0] sm:$0xff]
  %v38 = vld [vmem:[%s0 + $0xb8] sm:$0xff]
  %v39 = vld [vmem:[%s0 + $0xc0] sm:$0xff]
  %v40 = vld [vmem:[%s0 + $0xc8] sm:$0xff]
  %v41 = vld [vmem:[%s0 + $0xd0] sm:$0xff]
  %v42 = vld [vmem:[%s0 + $0xd8] sm:$0xff]
  %v43 = vld [vmem:[%s0 + $0xe0] sm:$0xff]
  %v44 = vld [vmem:[%s0 + $0xe8] sm:$0xff]
  %v45 = vld [vmem:[%s0 + $0xf0] sm:$0xff]
  %v46 = vld [vmem:[%s0 + $0xf8] sm:$0xff]
  %v47 = vld [vmem:[%s0 + $0x100] sm:$0xff]
  %v48 = vld [vmem:[%s0 + $0x108] sm:$0xff]
  %v49 = vld [vmem:[%s0 + $0x110] sm:$0xff]
  %v50 = vld [vmem:[%s0 + $0x118] sm:$0xff]
  %v51 = vld [vmem:[%s0 + $0x120] sm:$0xff]
  %v52 = vld [vmem:[%s0 + $0x128] sm:$0xff]
  %v53 = vld [vmem:[%s0 + $0x130] sm:$0xff]
  %v54 = vld [vmem:[%s0 + $0x138] sm:$0xff]
  %v55 = vld [vmem:[%s0 + $0x140] sm:$0xff]
  %v56 = vld [vmem:[%s0 + $0x148] sm:$0xff]
  %v57 = vld [vmem:[%s0 + $0x150] sm:$0xff]
  %v58 = vld [vmem:[%s0 + $0x158] sm:$0xff]
  %v59 = vld [vmem:[%s0 + $0x160] sm:$0xff]
  %v60 = vld [vmem:[%s0 + $0x168] sm:$0xff]
  %v61 = vld [vmem:[%s0 + $0x170] sm:$0xff]
  %v62 = vld [vmem:[%s0 + $0x178] sm:$0xff]
  %v63 = vld [vmem:[%s0 + $0x180] sm:$0xff]
  %v64 = vld [vmem:[%s0 + $0x188] sm:$0xff]
  %v65 = vld [vmem:[%s0 + $0x190] sm:$0xff]
  %v66 = vld [vmem:[%s0 + $0x198] sm:$0xff]
  %v67 = vld [vmem:[%s0 + $0x1a0] sm:$0xff]
  %v68 = vld [vmem:[%s0 + $0x1a8] sm:$0xff]
  %v69 = vld [vmem:[%s0 + $0x1b0] sm:$0xff]
  %v70 = vld [vmem:[%s0 + $0x1b8] sm:$0xff]
  %v71 = vld [vmem:[%s0 + $0x1c0] sm:$0xff]
  %v72 = vld [vmem:[%s0 + $0x1c8] sm:$0xff]
  %v73 = vld [vmem:[%s0 + $0x1d0] sm:$0xff]
  %v74 = vld [vmem:[%s0 + $0x1d8] sm:$0xff]
  %v75 = vld [vmem:[%s0 + $0x1e0] sm:$0xff]
  %v76 = vld [vmem:[%s0 + $0x1e8] sm:$0xff]
  %v77 = vld [vmem:[%s0 + $0x1f0] sm:$0xff]
  %v78 = vld [vmem:[%s0 + $0x1f8] sm:$0xff]
  %v79 = vld [vmem:[%s0 + $0x200] sm:$0xff]
  %v80 = vld [vmem:[%s0 + $0x208] sm:$0xff]
  %v81 = vld [vmem:[%s0 + $0x210] sm:$0xff]
  %v82 = vld [vmem:[%s0 + $0x218] sm:$0xff]
  %v83 = vld [vmem:[%s0 + $0x220] sm:$0xff]
  %v84 = vld [vmem:[%s0 + $0x228] sm:$0xff]
  %v85 = vld [vmem:[%s0 + $0x230] sm:$0xff]
  %v86 = vld [vmem:[%s0 + $0x238] sm:$0xff]
  %v87 = vld [vmem:[%s0 + $0x240] sm:$0xff]
  %v88 = vld [vmem:[%s0 + $0x248] sm:$0xff]
  %v89 = vld [vmem:[%s0 + $0x250] sm:$0xff]
  %v90 = vld [vmem:[%s0 + $0x258] sm:$0xff]
  %v91 = vld [vmem:[%s0 + $0x260] sm:$0xff]
  %v92 = vld [vmem:[%s0 + $0x268] sm:$0xff]
  %v93 = vld [vmem:[%s0 + $0x270] sm:$0xff]
  %v94 = vld [vmem:[%s0 + $0x278] sm:$0xff]
  %v95 = vld [vmem:[%s0 + $0x280] sm:$0xff]
  %v96 = vld [vmem:[%s0 + $0x288] sm:$0xff]
  %v97 = vld [vmem:[%s0 + $0x290] sm:$0xff]
  %v98 = vld [vmem:[%s0 + $0x298] sm:$0xff]
  %v99 = vld [vmem:[%s0 + $0x2a0] sm:$0xff]
  %v100 = vld [vmem:[%s0 + $0x2a8] sm:$0xff]
  %v101 = vld [vmem:[%s0 + $0x2b0] sm:$0xff]
  %v102 = vld [vmem:[%s0 + $0x2b8] sm:$0xff]
  %v103 = vld [vmem:[%s0 + $0x2c0] sm:$0xff]
  %v104 = vld [vmem:[%s0 + $0x2c8] sm:$0xff]
  %v105 = vld [vmem:[%s0 + $0x2d0] sm:$0xff]
  %v106 = vld [vmem:[%s0 + $0x2d8] sm:$0xff]
  %v107 = vld [vmem:[%s0 + $0x2e0] sm:$0xff]
  %v108 = vld [vmem:[%s0 + $0x2e8] sm:$0xff]
  %v109 = vld [vmem:[%s0 + $0x2f0] sm:$0xff]
  %v110 = vld [vmem:[%s0 + $0x2f8] sm:$0xff]
  %v111 = vld [vmem:[%s0 + $0x300] sm:$0xff]
  %v112 = vld [vmem:[%s0 + $0x308] sm:$0xff]
  %v113 = vld [vmem:[%s0 + $0x310] sm:$0xff]
  %v114 = vld [vmem:[%s0 + $0x318] sm:$0xff]
  %v115 = vld [vmem:[%s0 + $0x320] sm:$0xff]
  %v116 = vld [vmem:[%s0 + $0x328] sm:$0xff]
  %v117 = vld [vmem:[%s0 + $0x330] sm:$0xff]
  %v118 = vld [vmem:[%s0 + $0x338] sm:$0xff]
  %v119 = vld [vmem:[%s0 + $0x340] sm:$0xff]
  %v120 = vld [vmem:[%s0 + $0x348] sm:$0xff]
  %v121 = vld [vmem:[%s0 + $0x350] sm:$0xff]
  %v122 = vld [vmem:[%s0 + $0x358] sm:$0xff]
  %v123 = vld [vmem:[%s0 + $0x360] sm:$0xff]
  %v124 = vld [vmem:[%s0 + $0x368] sm:$0xff]
  %v125 = vld [vmem:[%s0 + $0x370] sm:$0xff]
  %v126 = vld [vmem:[%s0 + $0x378] sm:$0xff]
  %v127 = vld [vmem:[%s0 + $0x380] sm:$0xff]
  %v128 = vld [vmem:[%s0 + $0x388] sm:$0xff]
  %v129 = vld [vmem:[%s0 + $0x390] sm:$0xff]
  %v130 = vld [vmem:[%s0 + $0x398] sm:$0xff]
  %v131 = vld [vmem:[%s0 + $0x3a0] sm:$0xff]
  %v132 = vld [vmem:[%s0 + $0x3a8] sm:$0xff]
  %v133 = vld [vmem:[%s0 + $0x3b0] sm:$0xff]
  %v134 = vld [vmem:[%s0 + $0x3b8] sm:$0xff]
  %v135 = vld [vmem:[%s0 + $0x3c0] sm:$0xff]
  %v136 = vld [vmem:[%s0 + $0x3c8] sm:$0xff]
  %v137 = vld [vmem:[%s0 + $0x3d0] sm:$0xff]
  %v138 = vld [vmem:[%s0 + $0x3d8] sm:$0xff]
  %v139 = vld [vmem:[%s0 + $0x3e0] sm:$0xff]
  %v140 = vld [vmem:[%s0 + $0x3e8] sm:$0xff]
  %v141 = vld [vmem:[%s0 + $0x3f0] sm:$0xff]
  %v142 = vld [vmem:[%s0 + $0x3f8] sm:$0xff]
  %v143 = vld [vmem:[%s0 + $0x400] sm:$0xff]
  %v144 = vld [vmem:[%s0 + $0x408] sm:$0xff]
  %v145 = vld [vmem:[%s0 + $0x410] sm:$0xff]
  %v146 = vld [vmem:[%s0 + $0x418] sm:$0xff]
  %v147 = vld [vmem:[%s0 + $0x420] sm:$0xff]
  %v148 = vld [vmem:[%s0 + $0x428] sm:$0xff]
  %v149 = vld [vmem:[%s0 + $0x430] sm:$0xff]
  %v150 = vld [vmem:[%s0 + $0x438] sm:$0xff]
  %v151 = vld [vmem:[%s0 + $0x440] sm:$0xff]
  %v152 = vld [vmem:[%s0 + $0x448] sm:$0xff]
  %v153 = vld [vmem:[%s0 + $0x450] sm:$0xff]
  %v154 = vld [vmem:[%s0 + $0x458] sm:$0xff]
  %v155 = vld [vmem:[%s0 + $0x460] sm:$0xff]
  %v156 = vld [vmem:[%s0 + $0x468] sm:$0xff]
  %v157 = vld [vmem:[%s0 + $0x470] sm:$0xff]
  %v158 = vld [vmem:[%s0 + $0x478] sm:$0xff]
  %v159 = vld [vmem:[%s0 + $0x480] sm:$0xff]
  %v160 = vld [vmem:[%s0 + $0x488] sm:$0xff]
  %v161 = vld [vmem:[%s0 + $0x490] sm:$0xff]
  %v162 = vld [vmem:[%s0 + $0x498] sm:$0xff]
  %v163 = vld [vmem:[%s0 + $0x4a0] sm:$0xff]
  %v164 = vld [vmem:[%s0 + $0x4a8] sm:$0xff]
  %v165 = vld [vmem:[%s0 + $0x4b0] sm:$0xff]
  %v166 = vld [vmem:[%s0 + $0x4b8] sm:$0xff]
  %v167 = vld [vmem:[%s0 + $0x4c0] sm:$0xff]
  %v168 = vld [vmem:[%s0 + $0x4c8] sm:$0xff]
  %v169 = vld [vmem:[%s0 + $0x4d0] sm:$0xff]
  %v170 = vld [vmem:[%s0 + $0x4d8] sm:$0xff]
  %v171 = vld [vmem:[%s0 + $0x4e0] sm:$0xff]
  %v172 = vld [vmem:[%s0 + $0x4e8] sm:$0xff]
  %v173 = vld [vmem:[%s0 + $0x4f0] sm:$0xff]
  %v174 = vld [vmem:[%s0 + $0x4f8] sm:$0xff]
  %v175 = vld [vmem:[%s0 + $0x500] sm:$0xff]
  %v176 = vld [vmem:[%s0 + $0x508] sm:$0xff]
  %v177 = vld [vmem:[%s0 + $0x510] sm:$0xff]
  %v178 = vld [vmem:[%s0 + $0x518] sm:$0xff]
  %v179 = vld [vmem:[%s0 + $0x520] sm:$0xff]
  %v180 = vld [vmem:[%s0 + $0x528] sm:$0xff]
  %v181 = vld [vmem:[%s0 + $0x530] sm:$0xff]
  %v182 = vld [vmem:[%s0 + $0x538] sm:$0xff]
  %v183 = vld [vmem:[%s1] sm:$0xf]
  %v184 = vld [vmem:[%s1 + $0x4] sm:$0xf]
  %v185 = vld [vmem:[%s1 + $0x8] sm:$0xf]
  %v186 = vld [vmem:[%s1 + $0xc] sm:$0xf]
  %v187 = vld [vmem:[%s1 + $0x10] sm:$0xf]
  %v188 = vld [vmem:[%s1 + $0x14] sm:$0xf]
  %v189 = vld [vmem:[%s1 + $0x18] sm:$0xf]
  %v190 = vld [vmem:[%s1 + $0x1c] sm:$0xf]
  %v191 = vld [vmem:[%s1 + $0x20] sm:$0xf]
  %v192 = vld [vmem:[%s1 + $0x24] sm:$0xf]
  %v193 = vld [vmem:[%s1 + $0x28] sm:$0xf]
  %v194 = vld [vmem:[%s1 + $0x2c] sm:$0xf]
  %v195 = vld [vmem:[%s1 + $0x30] sm:$0xf]
  %v196 = vld [vmem:[%s1 + $0x34] sm:$0xf]
  %v197 = vld [vmem:[%s1 + $0x38] sm:$0xf]
  %v198 = vld [vmem:[%s1 + $0x3c] sm:$0xf]
  %v199 = vld [vmem:[%s1 + $0x40] sm:$0xf]
  %v200 = vld [vmem:[%s1 + $0x44] sm:$0xf]
  %v201 = vld [vmem:[%s1 + $0x48] sm:$0xf]
  %v202 = vld [vmem:[%s1 + $0x4c] sm:$0xf]
  %v203 = vld [vmem:[%s1 + $0x50] sm:$0xf]
  %v204 = vld [vmem:[%s1 + $0x54] sm:$0xf]
  %v205 = vld [vmem:[%s1 + $0x58] sm:$0xf]
  %v206 = vld [vmem:[%s1 + $0x5c] sm:$0xf]
  %v207 = vld [vmem:[%s1 + $0x60] sm:$0xf]
  %v208 = vld [vmem:[%s1 + $0x64] sm:$0xf]
  %v209 = vld [vmem:[%s1 + $0x68] sm:$0xf]
  %v210 = vld [vmem:[%s1 + $0x6c] sm:$0xf]
  %v211 = vld [vmem:[%s1 + $0x70] sm:$0xf]
  %v212 = vld [vmem:[%s1 + $0x74] sm:$0xf]
  %v213 = vld [vmem:[%s1 + $0x78] sm:$0xf]
  %v214 = vld [vmem:[%s1 + $0x7c] sm:$0xf]
  %v215 = vld [vmem:[%s1 + $0x80] sm:$0xf]
  %v216 = vld [vmem:[%s1 + $0x84] sm:$0xf]
  %v217 = vld [vmem:[%s1 + $0x88] sm:$0xf]
  %v218 = vld [vmem:[%s1 + $0x8c] sm:$0xf]
  %v219 = vld [vmem:[%s1 + $0x90] sm:$0xf]
  %v220 = vld [vmem:[%s1 + $0x94] sm:$0xf]
  %v221 = vld [vmem:[%s1 + $0x98] sm:$0xf]
  %v222 = vld [vmem:[%s1 + $0x9c] sm:$0xf]
  %v223 = vld [vmem:[%s1 + $0xa0] sm:$0xf]
  %v224 = vld [vmem:[%s1 + $0xa4] sm:$0xf]
  %v225 = vld [vmem:[%s1 + $0xa8] sm:$0xf]
  %v226 = vld [vmem:[%s1 + $0xac] sm:$0xf]
  %v227 = vld [vmem:[%s1 + $0xb0] sm:$0xf]
  %v228 = vld [vmem:[%s1 + $0xb4] sm:$0xf]
  %v229 = vld [vmem:[%s1 + $0xb8] sm:$0xf]
  %v230 = vld [vmem:[%s1 + $0xbc] sm:$0xf]
  %v231 = vld [vmem:[%s1 + $0xc0] sm:$0xf]
  %v232 = vld [vmem:[%s1 + $0xc4] sm:$0xf]
  %v233 = vld [vmem:[%s1 + $0xc8] sm:$0xf]
  %v234 = vld [vmem:[%s1 + $0xcc] sm:$0xf]
  %v235 = vld [vmem:[%s1 + $0xd0] sm:$0xf]
  %v236 = vld [vmem:[%s1 + $0xd4] sm:$0xf]
  %v237 = vld [vmem:[%s1 + $0xd8] sm:$0xf]
  %v238 = vld [vmem:[%s1 + $0xdc] sm:$0xf]
  %v239 = vld [vmem:[%s1 + $0xe0] sm:$0xf]
  %v240 = vld [vmem:[%s1 + $0xe4] sm:$0xf]
  %v241 = vld [vmem:[%s1 + $0xe8] sm:$0xf]
  %v242 = vld [vmem:[%s1 + $0xec] sm:$0xf]
  %v243 = vld [vmem:[%s1 + $0xf0] sm:$0xf]
  %v244 = vld [vmem:[%s1 + $0xf4] sm:$0xf]
  %v245 = vld [vmem:[%s1 + $0xf8] sm:$0xf]
  %v246 = vld [vmem:[%s1 + $0xfc] sm:$0xf]
  %v247 = vld [vmem:[%s1 + $0x100] sm:$0xf]
  %v248 = vld [vmem:[%s1 + $0x104] sm:$0xf]
  %v249 = vld [vmem:[%s1 + $0x108] sm:$0xf]
  %v250 = vld [vmem:[%s1 + $0x10c] sm:$0xf]
  %v251 = vld [vmem:[%s1 + $0x110] sm:$0xf]
  %v252 = vld [vmem:[%s1 + $0x114] sm:$0xf]
  %v253 = vld [vmem:[%s1 + $0x118] sm:$0xf]
  %v254 = vld [vmem:[%s1 + $0x11c] sm:$0xf]
  %v255 = vld [vmem:[%s1 + $0x120] sm:$0xf]
  %v256 = vld [vmem:[%s1 + $0x124] sm:$0xf]
  %v257 = vld [vmem:[%s1 + $0x128] sm:$0xf]
  %v258 = vld [vmem:[%s1 + $0x12c] sm:$0xf]
  %v259 = vld [vmem:[%s1 + $0x130] sm:$0xf]
  %v260 = vld [vmem:[%s1 + $0x134] sm:$0xf]
  %v261 = vld [vmem:[%s1 + $0x138] sm:$0xf]
  %v262 = vld [vmem:[%s1 + $0x13c] sm:$0xf]
  %v263 = vld [vmem:[%s1 + $0x140] sm:$0xf]
  %v264 = vld [vmem:[%s1 + $0x144] sm:$0xf]
  %v265 = vld [vmem:[%s1 + $0x148] sm:$0xf]
  %v266 = vld [vmem:[%s1 + $0x14c] sm:$0xf]
  %v267 = vld [vmem:[%s1 + $0x150] sm:$0xf]
  %v268 = vld [vmem:[%s1 + $0x154] sm:$0xf]
  %v269 = vld [vmem:[%s1 + $0x158] sm:$0xf]
  %v270 = vld [vmem:[%s1 + $0x15c] sm:$0xf]
  %v271 = vld [vmem:[%s1 + $0x160] sm:$0xf]
  %v272 = vld [vmem:[%s1 + $0x164] sm:$0xf]
  %v273 = vld [vmem:[%s1 + $0x168] sm:$0xf]
  %v274 = vld [vmem:[%s1 + $0x16c] sm:$0xf]
  %v275 = vld [vmem:[%s1 + $0x170] sm:$0xf]
  %v276 = vld [vmem:[%s1 + $0x174] sm:$0xf]
  %v277 = vld [vmem:[%s1 + $0x178] sm:$0xf]
  %v278 = vld [vmem:[%s1 + $0x17c] sm:$0xf]
  %v279 = vld [vmem:[%s1 + $0x180] sm:$0xf]
  %v280 = vld [vmem:[%s1 + $0x184] sm:$0xf]
  %v281 = vld [vmem:[%s1 + $0x188] sm:$0xf]
  %v282 = vld [vmem:[%s1 + $0x18c] sm:$0xf]
  %v283 = vld [vmem:[%s1 + $0x190] sm:$0xf]
  %v284 = vld [vmem:[%s1 + $0x194] sm:$0xf]
  %v285 = vld [vmem:[%s1 + $0x198] sm:$0xf]
  %v286 = vld [vmem:[%s1 + $0x19c] sm:$0xf]
  %v287 = vld [vmem:[%s1 + $0x1a0] sm:$0xf]
  %v288 = vld [vmem:[%s1 + $0x1a4] sm:$0xf]
  %v289 = vld [vmem:[%s1 + $0x1a8] sm:$0xf]
  %v290 = vld [vmem:[%s1 + $0x1ac] sm:$0xf]
  %v291 = vld [vmem:[%s1 + $0x1b0] sm:$0xf]
  %v292 = vld [vmem:[%s1 + $0x1b4] sm:$0xf]
  %v293 = vld [vmem:[%s1 + $0x1b8] sm:$0xf]
  %v294 = vld [vmem:[%s1 + $0x1bc] sm:$0xf]
  %v295 = vld [vmem:[%s1 + $0x1c0] sm:$0xf]
  %v296 = vld [vmem:[%s1 + $0x1c4] sm:$0xf]
  %v297 = vld [vmem:[%s1 + $0x1c8] sm:$0xf]
  %v298 = vld [vmem:[%s1 + $0x1cc] sm:$0xf]
  %v299 = vld [vmem:[%s1 + $0x1d0] sm:$0xf]
  %v300 = vld [vmem:[%s1 + $0x1d4] sm:$0xf]
  %v301 = vld [vmem:[%s1 + $0x1d8] sm:$0xf]
  %v302 = vld [vmem:[%s1 + $0x1dc] sm:$0xf]
  %v303 = vld [vmem:[%s1 + $0x1e0] sm:$0xf]
  %v304 = vld [vmem:[%s1 + $0x1e4] sm:$0xf]
  %v305 = vld [vmem:[%s1 + $0x1e8] sm:$0xf]
  %v306 = vld [vmem:[%s1 + $0x1ec] sm:$0xf]
  %v307 = vld [vmem:[%s1 + $0x1f0] sm:$0xf]
  %v308 = vld [vmem:[%s1 + $0x1f4] sm:$0xf]
  %v309 = vld [vmem:[%s1 + $0x1f8] sm:$0xf]
  %v310 = vld [vmem:[%s1 + $0x1fc] sm:$0xf]
  %v311 = vld [vmem:[%s1 + $0x200] sm:$0xf]
  %v312 = vld [vmem:[%s1 + $0x204] sm:$0xf]
  %v313 = vld [vmem:[%s1 + $0x208] sm:$0xf]
  %v314 = vld [vmem:[%s1 + $0x20c] sm:$0xf]
  %v315 = vld [vmem:[%s1 + $0x210] sm:$0xf]
  %v316 = vld [vmem:[%s1 + $0x214] sm:$0xf]
  %v317 = vld [vmem:[%s1 + $0x218] sm:$0xf]
  %v318 = vld [vmem:[%s1 + $0x21c] sm:$0xf]
  %v319 = vld [vmem:[%s1 + $0x220] sm:$0xf]
  %v320 = vld [vmem:[%s1 + $0x224] sm:$0xf]
  %v321 = vld [vmem:[%s1 + $0x228] sm:$0xf]
  %v322 = vld [vmem:[%s1 + $0x22c] sm:$0xf]
  %v323 = vld [vmem:[%s1 + $0x230] sm:$0xf]
  %v324 = vld [vmem:[%s1 + $0x234] sm:$0xf]
  %v325 = vld [vmem:[%s1 + $0x238] sm:$0xf]
  %v326 = vld [vmem:[%s1 + $0x23c] sm:$0xf]
  %v327 = vld [vmem:[%s1 + $0x240] sm:$0xf]
  %v328 = vld [vmem:[%s1 + $0x244] sm:$0xf]
  %v329 = vld [vmem:[%s1 + $0x248] sm:$0xf]
  %v330 = vld [vmem:[%s1 + $0x24c] sm:$0xf]
  %v331 = vld [vmem:[%s1 + $0x250] sm:$0xf]
  %v332 = vld [vmem:[%s1 + $0x254] sm:$0xf]
  %v333 = vld [vmem:[%s1 + $0x258] sm:$0xf]
  %v334 = vld [vmem:[%s1 + $0x25c] sm:$0xf]
  %v335 = vld [vmem:[%s1 + $0x260] sm:$0xf]
  %v336 = vld [vmem:[%s1 + $0x264] sm:$0xf]
  %v337 = vld [vmem:[%s1 + $0x268] sm:$0xf]
  %v338 = vld [vmem:[%s1 + $0x26c] sm:$0xf]
  %v339 = vld [vmem:[%s1 + $0x270] sm:$0xf]
  %v340 = vld [vmem:[%s1 + $0x274] sm:$0xf]
  %v341 = vld [vmem:[%s1 + $0x278] sm:$0xf]
  %v342 = vld [vmem:[%s1 + $0x27c] sm:$0xf]
  %v343 = vld [vmem:[%s1 + $0x280] sm:$0xf]
  %v344 = vld [vmem:[%s1 + $0x284] sm:$0xf]
  %v345 = vld [vmem:[%s1 + $0x288] sm:$0xf]
  %v346 = vld [vmem:[%s1 + $0x28c] sm:$0xf]
  %v347 = vld [vmem:[%s1 + $0x290] sm:$0xf]
  %v348 = vld [vmem:[%s1 + $0x294] sm:$0xf]
  %v349 = vld [vmem:[%s1 + $0x298] sm:$0xf]
  %v350 = vld [vmem:[%s1 + $0x29c] sm:$0xf]
  %v351 = vld [vmem:[%s1 + $0x2a0] sm:$0xf]
  %v352 = vld [vmem:[%s1 + $0x2a4] sm:$0xf]
  %v353 = vld [vmem:[%s1 + $0x2a8] sm:$0xf]
  %v354 = vld [vmem:[%s1 + $0x2ac] sm:$0xf]
  %v355 = vld [vmem:[%s1 + $0x2b0] sm:$0xf]
  %v356 = vld [vmem:[%s1 + $0x2b4] sm:$0xf]
  %v357 = vld [vmem:[%s1 + $0x2b8] sm:$0xf]
  %v358 = vld [vmem:[%s1 + $0x2bc] sm:$0xf]
  %v359 = vld [vmem:[%s1 + $0x2c0] sm:$0xf]
  %v360 = vld [vmem:[%s1 + $0x2c4] sm:$0xf]
  %v361 = vld [vmem:[%s1 + $0x2c8] sm:$0xf]
  %v362 = vld [vmem:[%s1 + $0x2cc] sm:$0xf]
  %v363 = vld [vmem:[%s1 + $0x2d0] sm:$0xf]
  %v364 = vld [vmem:[%s1 + $0x2d4] sm:$0xf]
  %v365 = vld [vmem:[%s1 + $0x2d8] sm:$0xf]
  %v366 = vld [vmem:[%s1 + $0x2dc] sm:$0xf]
  %v367 = vld [vmem:[%s1 + $0x2e0] sm:$0xf]
  %v368 = vld [vmem:[%s1 + $0x2e4] sm:$0xf]
  %v369 = vld [vmem:[%s1 + $0x2e8] sm:$0xf]
  %v370 = vld [vmem:[%s1 + $0x2ec] sm:$0xf]
  %v371 = vld [vmem:[%s1 + $0x2f0] sm:$0xf]
  %v372 = vld [vmem:[%s1 + $0x2f4] sm:$0xf]
  %v373 = vld [vmem:[%s1 + $0x2f8] sm:$0xf]
  %v374 = vld [vmem:[%s1 + $0x2fc] sm:$0xf]
  %v375 = vld [vmem:[%s1 + $0x300] sm:$0xf]
  %v376 = vld [vmem:[%s1 + $0x304] sm:$0xf]
  %v377 = vld [vmem:[%s1 + $0x308] sm:$0xf]
  %v378 = vld [vmem:[%s1 + $0x30c] sm:$0xf]
  %v379 = vld [vmem:[%s1 + $0x310] sm:$0xf]
  %v380 = vld [vmem:[%s1 + $0x314] sm:$0xf]
  %v381 = vld [vmem:[%s1 + $0x318] sm:$0xf]
  %v382 = vld [vmem:[%s1 + $0x31c] sm:$0xf]
  %v383 = vld [vmem:[%s1 + $0x320] sm:$0xf]
  %v384 = vld [vmem:[%s1 + $0x324] sm:$0xf]
  %v385 = vld [vmem:[%s1 + $0x328] sm:$0xf]
  %v386 = vld [vmem:[%s1 + $0x32c] sm:$0xf]
  %v387 = vld [vmem:[%s1 + $0x330] sm:$0xf]
  %v388 = vld [vmem:[%s1 + $0x334] sm:$0xf]
  %v389 = vld [vmem:[%s1 + $0x338] sm:$0xf]
  %v390 = vld [vmem:[%s1 + $0x33c] sm:$0xf]
  %v391 = vld [vmem:[%s1 + $0x340] sm:$0xf]
  %v392 = vld [vmem:[%s1 + $0x344] sm:$0xf]
  %v393 = vld [vmem:[%s1 + $0x348] sm:$0xf]
  %v394 = vld [vmem:[%s1 + $0x34c] sm:$0xf]
  %v395 = vld [vmem:[%s1 + $0x350] sm:$0xf]
  %v396 = vld [vmem:[%s1 + $0x354] sm:$0xf]
  %v397 = vld [vmem:[%s1 + $0x358] sm:$0xf]
  %v398 = vld [vmem:[%s1 + $0x35c] sm:$0xf]
  %v399 = vld [vmem:[%s1 + $0x360] sm:$0xf]
  %v400 = vld [vmem:[%s1 + $0x364] sm:$0xf]
  %v401 = vld [vmem:[%s1 + $0x368] sm:$0xf]
  %v402 = vld [vmem:[%s1 + $0x36c] sm:$0xf]
  %v403 = vld [vmem:[%s1 + $0x370] sm:$0xf]
  %v404 = vld [vmem:[%s1 + $0x374] sm:$0xf]
  %v405 = vld [vmem:[%s1 + $0x378] sm:$0xf]
  %v406 = vld [vmem:[%s1 + $0x37c] sm:$0xf]
  %v407 = vld [vmem:[%s1 + $0x380] sm:$0xf]
  %v408 = vld [vmem:[%s1 + $0x384] sm:$0xf]
  %v409 = vld [vmem:[%s1 + $0x388] sm:$0xf]
  %v410 = vld [vmem:[%s1 + $0x38c] sm:$0xf]
  %v411 = vld [vmem:[%s1 + $0x390] sm:$0xf]
  %v412 = vld [vmem:[%s1 + $0x394] sm:$0xf]
  %v413 = vld [vmem:[%s1 + $0x398] sm:$0xf]
  %v414 = vld [vmem:[%s1 + $0x39c] sm:$0xf]
  %v415 = vld [vmem:[%s1 + $0x3a0] sm:$0xf]
  %v416 = vld [vmem:[%s1 + $0x3a4] sm:$0xf]
  %v417 = vld [vmem:[%s1 + $0x3a8] sm:$0xf]
  %v418 = vld [vmem:[%s1 + $0x3ac] sm:$0xf]
  %v419 = vld [vmem:[%s1 + $0x3b0] sm:$0xf]
  %v420 = vld [vmem:[%s1 + $0x3b4] sm:$0xf]
  %v421 = vld [vmem:[%s1 + $0x3b8] sm:$0xf]
  %v422 = vld [vmem:[%s1 + $0x3bc] sm:$0xf]
  %v423 = vld [vmem:[%s1 + $0x3c0] sm:$0xf]
  %v424 = vld [vmem:[%s1 + $0x3c4] sm:$0xf]
  %v425 = vld [vmem:[%s1 + $0x3c8] sm:$0xf]
  %v426 = vld [vmem:[%s1 + $0x3cc] sm:$0xf]
  %v427 = vld [vmem:[%s1 + $0x3d0] sm:$0xf]
  %v428 = vld [vmem:[%s1 + $0x3d4] sm:$0xf]
  %v429 = vld [vmem:[%s1 + $0x3d8] sm:$0xf]
  %v430 = vld [vmem:[%s1 + $0x3dc] sm:$0xf]
  %v431 = vld [vmem:[%s1 + $0x3e0] sm:$0xf]
  %v432 = vld [vmem:[%s1 + $0x3e4] sm:$0xf]
  %v433 = vld [vmem:[%s1 + $0x3e8] sm:$0xf]
  %v434 = vld [vmem:[%s1 + $0x3ec] sm:$0xf]
  %v435 = vld [vmem:[%s1 + $0x3f0] sm:$0xf]
  %v436 = vld [vmem:[%s1 + $0x3f4] sm:$0xf]
  %v437 = vld [vmem:[%s1 + $0x3f8] sm:$0xf]
  %v438 = vld [vmem:[%s1 + $0x3fc] sm:$0xf]
  %v439 = vld [vmem:[%s2] sm:$0x1]
  %v441 = vlaneseq
  %v442 = vshrl.u32 %v441, 7
  %v443 = vsub.s32 0, %v442
  %v444 = vrot.slane %v439, %v443
  %v614 = vunpack.c.l.b16 %v15
  %v615 = vunpack.c.h.b16 %v15
  %v616 = vunpack.c.l.b16 %v16
  %v617 = vunpack.c.h.b16 %v16
  %v618 = vunpack.c.l.b16 %v17
  %v619 = vunpack.c.h.b16 %v17
  %v620 = vunpack.c.l.b16 %v18
  %v621 = vunpack.c.h.b16 %v18
  %v622 = vunpack.c.l.b16 %v19
  %v623 = vunpack.c.h.b16 %v19
  %v624 = vunpack.c.l.b16 %v20
  %v625 = vunpack.c.h.b16 %v20
  %v626 = vunpack.c.l.b16 %v21
  %v627 = vunpack.c.h.b16 %v21
  %v628 = vunpack.c.l.b16 %v22
  %v629 = vunpack.c.h.b16 %v22
  %v630 = vunpack.c.l.b16 %v23
  %v631 = vunpack.c.h.b16 %v23
  %v632 = vunpack.c.l.b16 %v24
  %v633 = vunpack.c.h.b16 %v24
  %v634 = vunpack.c.l.b16 %v25
  %v635 = vunpack.c.h.b16 %v25
  %v636 = vunpack.c.l.b16 %v26
  %v637 = vunpack.c.h.b16 %v26
  %v638 = vunpack.c.l.b16 %v27
  %v639 = vunpack.c.h.b16 %v27
  %v640 = vunpack.c.l.b16 %v28
  %v641 = vunpack.c.h.b16 %v28
  %v642 = vunpack.c.l.b16 %v29
  %v643 = vunpack.c.h.b16 %v29
  %v644 = vunpack.c.l.b16 %v30
  %v645 = vunpack.c.h.b16 %v30
  %v646 = vunpack.c.l.b16 %v31
  %v647 = vunpack.c.h.b16 %v31
  %v648 = vunpack.c.l.b16 %v32
  %v649 = vunpack.c.h.b16 %v32
  %v650 = vunpack.c.l.b16 %v33
  %v651 = vunpack.c.h.b16 %v33
  %v652 = vunpack.c.l.b16 %v34
  %v653 = vunpack.c.h.b16 %v34
  %v654 = vunpack.c.l.b16 %v35
  %v655 = vunpack.c.h.b16 %v35
  %v656 = vunpack.c.l.b16 %v36
  %v657 = vunpack.c.h.b16 %v36
  %v658 = vunpack.c.l.b16 %v37
  %v659 = vunpack.c.h.b16 %v37
  %v660 = vunpack.c.l.b16 %v38
  %v661 = vunpack.c.h.b16 %v38
  %v662 = vunpack.c.l.b16 %v39
  %v663 = vunpack.c.h.b16 %v39
  %v664 = vunpack.c.l.b16 %v40
  %v665 = vunpack.c.h.b16 %v40
  %v666 = vunpack.c.l.b16 %v41
  %v667 = vunpack.c.h.b16 %v41
  %v668 = vunpack.c.l.b16 %v42
  %v669 = vunpack.c.h.b16 %v42
  %v670 = vunpack.c.l.b16 %v43
  %v671 = vunpack.c.h.b16 %v43
  %v672 = vunpack.c.l.b16 %v44
  %v673 = vunpack.c.h.b16 %v44
  %v674 = vunpack.c.l.b16 %v45
  %v675 = vunpack.c.h.b16 %v45
  %v676 = vunpack.c.l.b16 %v46
  %v677 = vunpack.c.h.b16 %v46
  %v678 = vunpack.c.l.b16 %v47
  %v679 = vunpack.c.h.b16 %v47
  %v680 = vunpack.c.l.b16 %v48
  %v681 = vunpack.c.h.b16 %v48
  %v682 = vunpack.c.l.b16 %v49
  %v683 = vunpack.c.h.b16 %v49
  %v684 = vunpack.c.l.b16 %v50
  %v685 = vunpack.c.h.b16 %v50
  %v686 = vunpack.c.l.b16 %v51
  %v687 = vunpack.c.h.b16 %v51
  %v688 = vunpack.c.l.b16 %v52
  %v689 = vunpack.c.h.b16 %v52
  %v690 = vunpack.c.l.b16 %v53
  %v691 = vunpack.c.h.b16 %v53
  %v692 = vunpack.c.l.b16 %v54
  %v693 = vunpack.c.h.b16 %v54
  %v694 = vunpack.c.l.b16 %v55
  %v695 = vunpack.c.h.b16 %v55
  %v696 = vunpack.c.l.b16 %v56
  %v697 = vunpack.c.h.b16 %v56
  %v698 = vunpack.c.l.b16 %v57
  %v699 = vunpack.c.h.b16 %v57
  %v700 = vunpack.c.l.b16 %v58
  %v701 = vunpack.c.h.b16 %v58
  %v702 = vunpack.c.l.b16 %v59
  %v703 = vunpack.c.h.b16 %v59
  %v704 = vunpack.c.l.b16 %v60
  %v705 = vunpack.c.h.b16 %v60
  %v706 = vunpack.c.l.b16 %v61
  %v707 = vunpack.c.h.b16 %v61
  %v708 = vunpack.c.l.b16 %v62
  %v709 = vunpack.c.h.b16 %v62
  %v710 = vunpack.c.l.b16 %v63
  %v711 = vunpack.c.h.b16 %v63
  %v712 = vunpack.c.l.b16 %v64
  %v713 = vunpack.c.h.b16 %v64
  %v714 = vunpack.c.l.b16 %v65
  %v715 = vunpack.c.h.b16 %v65
  %v716 = vunpack.c.l.b16 %v66
  %v717 = vunpack.c.h.b16 %v66
  %v718 = vunpack.c.l.b16 %v67
  %v719 = vunpack.c.h.b16 %v67
  %v720 = vunpack.c.l.b16 %v68
  %v721 = vunpack.c.h.b16 %v68
  %v722 = vunpack.c.l.b16 %v69
  %v723 = vunpack.c.h.b16 %v69
  %v724 = vunpack.c.l.b16 %v70
  %v725 = vunpack.c.h.b16 %v70
  %v726 = vunpack.c.l.b16 %v71
  %v727 = vunpack.c.h.b16 %v71
  %v728 = vunpack.c.l.b16 %v72
  %v729 = vunpack.c.h.b16 %v72
  %v730 = vunpack.c.l.b16 %v73
  %v731 = vunpack.c.h.b16 %v73
  %v732 = vunpack.c.l.b16 %v74
  %v733 = vunpack.c.h.b16 %v74
  %v734 = vunpack.c.l.b16 %v75
  %v735 = vunpack.c.h.b16 %v75
  %v736 = vunpack.c.l.b16 %v76
  %v737 = vunpack.c.h.b16 %v76
  %v738 = vunpack.c.l.b16 %v77
  %v739 = vunpack.c.h.b16 %v77
  %v740 = vunpack.c.l.b16 %v78
  %v741 = vunpack.c.h.b16 %v78
  %v742 = vunpack.c.l.b16 %v79
  %v743 = vunpack.c.h.b16 %v79
  %v744 = vunpack.c.l.b16 %v80
  %v745 = vunpack.c.h.b16 %v80
  %v746 = vunpack.c.l.b16 %v81
  %v747 = vunpack.c.h.b16 %v81
  %v748 = vunpack.c.l.b16 %v82
  %v749 = vunpack.c.h.b16 %v82
  %v750 = vunpack.c.l.b16 %v83
  %v751 = vunpack.c.h.b16 %v83
  %v752 = vunpack.c.l.b16 %v84
  %v753 = vunpack.c.h.b16 %v84
  %v754 = vunpack.c.l.b16 %v85
  %v755 = vunpack.c.h.b16 %v85
  %v756 = vunpack.c.l.b16 %v86
  %v757 = vunpack.c.h.b16 %v86
  %v758 = vunpack.c.l.b16 %v87
  %v759 = vunpack.c.h.b16 %v87
  %v760 = vunpack.c.l.b16 %v88
  %v761 = vunpack.c.h.b16 %v88
  %v762 = vunpack.c.l.b16 %v89
  %v763 = vunpack.c.h.b16 %v89
  %v764 = vunpack.c.l.b16 %v90
  %v765 = vunpack.c.h.b16 %v90
  %v766 = vunpack.c.l.b16 %v91
  %v767 = vunpack.c.h.b16 %v91
  %v768 = vunpack.c.l.b16 %v92
  %v769 = vunpack.c.h.b16 %v92
  %v770 = vunpack.c.l.b16 %v93
  %v771 = vunpack.c.h.b16 %v93
  %v772 = vunpack.c.l.b16 %v94
  %v773 = vunpack.c.h.b16 %v94
  %v774 = vunpack.c.l.b16 %v95
  %v775 = vunpack.c.h.b16 %v95
  %v776 = vunpack.c.l.b16 %v96
  %v777 = vunpack.c.h.b16 %v96
  %v778 = vunpack.c.l.b16 %v97
  %v779 = vunpack.c.h.b16 %v97
  %v780 = vunpack.c.l.b16 %v98
  %v781 = vunpack.c.h.b16 %v98
  %v782 = vunpack.c.l.b16 %v99
  %v783 = vunpack.c.h.b16 %v99
  %v784 = vunpack.c.l.b16 %v100
  %v785 = vunpack.c.h.b16 %v100
  %v786 = vunpack.c.l.b16 %v101
  %v787 = vunpack.c.h.b16 %v101
  %v788 = vunpack.c.l.b16 %v102
  %v789 = vunpack.c.h.b16 %v102
  %v790 = vunpack.c.l.b16 %v103
  %v791 = vunpack.c.h.b16 %v103
  %v792 = vunpack.c.l.b16 %v104
  %v793 = vunpack.c.h.b16 %v104
  %v794 = vunpack.c.l.b16 %v105
  %v795 = vunpack.c.h.b16 %v105
  %v796 = vunpack.c.l.b16 %v106
  %v797 = vunpack.c.h.b16 %v106
  %v798 = vunpack.c.l.b16 %v107
  %v799 = vunpack.c.h.b16 %v107
  %v800 = vunpack.c.l.b16 %v108
  %v801 = vunpack.c.h.b16 %v108
  %v802 = vunpack.c.l.b16 %v109
  %v803 = vunpack.c.h.b16 %v109
  %v804 = vunpack.c.l.b16 %v110
  %v805 = vunpack.c.h.b16 %v110
  %v806 = vunpack.c.l.b16 %v111
  %v807 = vunpack.c.h.b16 %v111
  %v808 = vunpack.c.l.b16 %v112
  %v809 = vunpack.c.h.b16 %v112
  %v810 = vunpack.c.l.b16 %v113
  %v811 = vunpack.c.h.b16 %v113
  %v812 = vunpack.c.l.b16 %v114
  %v813 = vunpack.c.h.b16 %v114
  %v814 = vunpack.c.l.b16 %v115
  %v815 = vunpack.c.h.b16 %v115
  %v816 = vunpack.c.l.b16 %v116
  %v817 = vunpack.c.h.b16 %v116
  %v818 = vunpack.c.l.b16 %v117
  %v819 = vunpack.c.h.b16 %v117
  %v820 = vunpack.c.l.b16 %v118
  %v821 = vunpack.c.h.b16 %v118
  %v822 = vunpack.c.l.b16 %v119
  %v823 = vunpack.c.h.b16 %v119
  %v824 = vunpack.c.l.b16 %v120
  %v825 = vunpack.c.h.b16 %v120
  %v826 = vunpack.c.l.b16 %v121
  %v827 = vunpack.c.h.b16 %v121
  %v828 = vunpack.c.l.b16 %v122
  %v829 = vunpack.c.h.b16 %v122
  %v830 = vunpack.c.l.b16 %v123
  %v831 = vunpack.c.h.b16 %v123
  %v832 = vunpack.c.l.b16 %v124
  %v833 = vunpack.c.h.b16 %v124
  %v834 = vunpack.c.l.b16 %v125
  %v835 = vunpack.c.h.b16 %v125
  %v836 = vunpack.c.l.b16 %v126
  %v837 = vunpack.c.h.b16 %v126
  %v838 = vunpack.c.l.b16 %v127
  %v839 = vunpack.c.h.b16 %v127
  %v840 = vunpack.c.l.b16 %v128
  %v841 = vunpack.c.h.b16 %v128
  %v842 = vunpack.c.l.b16 %v129
  %v843 = vunpack.c.h.b16 %v129
  %v844 = vunpack.c.l.b16 %v130
  %v845 = vunpack.c.h.b16 %v130
  %v846 = vunpack.c.l.b16 %v131
  %v847 = vunpack.c.h.b16 %v131
  %v848 = vunpack.c.l.b16 %v132
  %v849 = vunpack.c.h.b16 %v132
  %v850 = vunpack.c.l.b16 %v133
  %v851 = vunpack.c.h.b16 %v133
  %v852 = vunpack.c.l.b16 %v134
  %v853 = vunpack.c.h.b16 %v134
  %v854 = vunpack.c.l.b16 %v135
  %v855 = vunpack.c.h.b16 %v135
  %v856 = vunpack.c.l.b16 %v136
  %v857 = vunpack.c.h.b16 %v136
  %v858 = vunpack.c.l.b16 %v137
  %v859 = vunpack.c.h.b16 %v137
  %v860 = vunpack.c.l.b16 %v138
  %v861 = vunpack.c.h.b16 %v138
  %v862 = vunpack.c.l.b16 %v139
  %v863 = vunpack.c.h.b16 %v139
  %v864 = vunpack.c.l.b16 %v140
  %v865 = vunpack.c.h.b16 %v140
  %v866 = vunpack.c.l.b16 %v141
  %v867 = vunpack.c.h.b16 %v141
  %v868 = vunpack.c.l.b16 %v142
  %v869 = vunpack.c.h.b16 %v142
  %v870 = vunpack.c.l.b16 %v143
  %v871 = vunpack.c.h.b16 %v143
  %v872 = vunpack.c.l.b16 %v144
  %v873 = vunpack.c.h.b16 %v144
  %v874 = vunpack.c.l.b16 %v145
  %v875 = vunpack.c.h.b16 %v145
  %v876 = vunpack.c.l.b16 %v146
  %v877 = vunpack.c.h.b16 %v146
  %v878 = vunpack.c.l.b16 %v147
  %v879 = vunpack.c.h.b16 %v147
  %v880 = vunpack.c.l.b16 %v148
  %v881 = vunpack.c.h.b16 %v148
  %v882 = vunpack.c.l.b16 %v149
  %v883 = vunpack.c.h.b16 %v149
  %v884 = vunpack.c.l.b16 %v150
  %v885 = vunpack.c.h.b16 %v150
  %v886 = vunpack.c.l.b16 %v151
  %v887 = vunpack.c.h.b16 %v151
  %v888 = vunpack.c.l.b16 %v152
  %v889 = vunpack.c.h.b16 %v152
  %v890 = vunpack.c.l.b16 %v153
  %v891 = vunpack.c.h.b16 %v153
  %v892 = vunpack.c.l.b16 %v154
  %v893 = vunpack.c.h.b16 %v154
  %v894 = vunpack.c.l.b16 %v155
  %v895 = vunpack.c.h.b16 %v155
  %v896 = vunpack.c.l.b16 %v156
  %v897 = vunpack.c.h.b16 %v156
  %v898 = vunpack.c.l.b16 %v157
  %v899 = vunpack.c.h.b16 %v157
  %v900 = vunpack.c.l.b16 %v158
  %v901 = vunpack.c.h.b16 %v158
  %v902 = vunpack.c.l.b16 %v159
  %v903 = vunpack.c.h.b16 %v159
  %v904 = vunpack.c.l.b16 %v160
  %v905 = vunpack.c.h.b16 %v160
  %v906 = vunpack.c.l.b16 %v161
  %v907 = vunpack.c.h.b16 %v161
  %v908 = vunpack.c.l.b16 %v162
  %v909 = vunpack.c.h.b16 %v162
  %v910 = vunpack.c.l.b16 %v163
  %v911 = vunpack.c.h.b16 %v163
  %v912 = vunpack.c.l.b16 %v164
  %v913 = vunpack.c.h.b16 %v164
  %v914 = vunpack.c.l.b16 %v165
  %v915 = vunpack.c.h.b16 %v165
  %v916 = vunpack.c.l.b16 %v166
  %v917 = vunpack.c.h.b16 %v166
  %v918 = vunpack.c.l.b16 %v167
  %v919 = vunpack.c.h.b16 %v167
  %v920 = vunpack.c.l.b16 %v168
  %v921 = vunpack.c.h.b16 %v168
  %v922 = vunpack.c.l.b16 %v169
  %v923 = vunpack.c.h.b16 %v169
  %v924 = vunpack.c.l.b16 %v170
  %v925 = vunpack.c.h.b16 %v170
  %v926 = vunpack.c.l.b16 %v171
  %v927 = vunpack.c.h.b16 %v171
  %v928 = vunpack.c.l.b16 %v172
  %v929 = vunpack.c.h.b16 %v172
  %v930 = vunpack.c.l.b16 %v173
  %v931 = vunpack.c.h.b16 %v173
  %v932 = vunpack.c.l.b16 %v174
  %v933 = vunpack.c.h.b16 %v174
  %v934 = vunpack.c.l.b16 %v175
  %v935 = vunpack.c.h.b16 %v175
  %v936 = vunpack.c.l.b16 %v176
  %v937 = vunpack.c.h.b16 %v176
  %v938 = vunpack.c.l.b16 %v177
  %v939 = vunpack.c.h.b16 %v177
  %v940 = vunpack.c.l.b16 %v178
  %v941 = vunpack.c.h.b16 %v178
  %v942 = vunpack.c.l.b16 %v179
  %v943 = vunpack.c.h.b16 %v179
  %v944 = vunpack.c.l.b16 %v180
  %v945 = vunpack.c.h.b16 %v180
  %v946 = vunpack.c.l.b16 %v181
  %v947 = vunpack.c.h.b16 %v181
  %v948 = vunpack.c.l.b16 %v182
  %v949 = vunpack.c.h.b16 %v182
  %v950 = vpack.c.b16 %v630, %v614
  %v951 = vpack.c.b16 %v631, %v615
  %v952 = vpack.c.b16 %v632, %v616
  %v953 = vpack.c.b16 %v633, %v617
  %v954 = vpack.c.b16 %v634, %v618
  %v955 = vpack.c.b16 %v635, %v619
  %v956 = vpack.c.b16 %v636, %v620
  %v957 = vpack.c.b16 %v637, %v621
  %v958 = vpack.c.b16 %v638, %v622
  %v959 = vpack.c.b16 %v639, %v623
  %v960 = vpack.c.b16 %v640, %v624
  %v961 = vpack.c.b16 %v641, %v625
  %v962 = vpack.c.b16 %v642, %v626
  %v963 = vpack.c.b16 %v643, %v627
  %v964 = vpack.c.b16 %v644, %v628
  %v965 = vpack.c.b16 %v645, %v629
  %v966 = vpack.c.b16 %v662, %v646
  %v967 = vpack.c.b16 %v663, %v647
  %v968 = vpack.c.b16 %v664, %v648
  %v969 = vpack.c.b16 %v665, %v649
  %v970 = vpack.c.b16 %v666, %v650
  %v971 = vpack.c.b16 %v667, %v651
  %v972 = vpack.c.b16 %v668, %v652
  %v973 = vpack.c.b16 %v669, %v653
  %v974 = vpack.c.b16 %v670, %v654
  %v975 = vpack.c.b16 %v671, %v655
  %v976 = vpack.c.b16 %v672, %v656
  %v977 = vpack.c.b16 %v673, %v657
  %v978 = vpack.c.b16 %v674, %v658
  %v979 = vpack.c.b16 %v675, %v659
  %v980 = vpack.c.b16 %v676, %v660
  %v981 = vpack.c.b16 %v677, %v661
  %v982 = vpack.c.b16 %v694, %v678
  %v983 = vpack.c.b16 %v695, %v679
  %v984 = vpack.c.b16 %v696, %v680
  %v985 = vpack.c.b16 %v697, %v681
  %v986 = vpack.c.b16 %v698, %v682
  %v987 = vpack.c.b16 %v699, %v683
  %v988 = vpack.c.b16 %v700, %v684
  %v989 = vpack.c.b16 %v701, %v685
  %v990 = vpack.c.b16 %v702, %v686
  %v991 = vpack.c.b16 %v703, %v687
  %v992 = vpack.c.b16 %v704, %v688
  %v993 = vpack.c.b16 %v705, %v689
  %v994 = vpack.c.b16 %v706, %v690
  %v995 = vpack.c.b16 %v707, %v691
  %v996 = vpack.c.b16 %v708, %v692
  %v997 = vpack.c.b16 %v709, %v693
  %v998 = vpack.c.b16 %v726, %v710
  %v999 = vpack.c.b16 %v727, %v711
  %v1000 = vpack.c.b16 %v728, %v712
  %v1001 = vpack.c.b16 %v729, %v713
  %v1002 = vpack.c.b16 %v730, %v714
  %v1003 = vpack.c.b16 %v731, %v715
  %v1004 = vpack.c.b16 %v732, %v716
  %v1005 = vpack.c.b16 %v733, %v717
  %v1006 = vpack.c.b16 %v734, %v718
  %v1007 = vpack.c.b16 %v735, %v719
  %v1008 = vpack.c.b16 %v736, %v720
  %v1009 = vpack.c.b16 %v737, %v721
  %v1010 = vpack.c.b16 %v738, %v722
  %v1011 = vpack.c.b16 %v739, %v723
  %v1012 = vpack.c.b16 %v740, %v724
  %v1013 = vpack.c.b16 %v741, %v725
  %v1014 = vpack.c.b16 %v758, %v742
  %v1015 = vpack.c.b16 %v759, %v743
  %v1016 = vpack.c.b16 %v760, %v744
  %v1017 = vpack.c.b16 %v761, %v745
  %v1018 = vpack.c.b16 %v762, %v746
  %v1019 = vpack.c.b16 %v763, %v747
  %v1020 = vpack.c.b16 %v764, %v748
  %v1021 = vpack.c.b16 %v765, %v749
  %v1022 = vpack.c.b16 %v766, %v750
  %v1023 = vpack.c.b16 %v767, %v751
  %v1024 = vpack.c.b16 %v768, %v752
  %v1025 = vpack.c.b16 %v769, %v753
  %v1026 = vpack.c.b16 %v770, %v754
  %v1027 = vpack.c.b16 %v771, %v755
  %v1028 = vpack.c.b16 %v772, %v756
  %v1029 = vpack.c.b16 %v773, %v757
  %v1030 = vpack.c.b16 %v790, %v774
  %v1031 = vpack.c.b16 %v791, %v775
  %v1032 = vpack.c.b16 %v792, %v776
  %v1033 = vpack.c.b16 %v793, %v777
  %v1034 = vpack.c.b16 %v794, %v778
  %v1035 = vpack.c.b16 %v795, %v779
  %v1036 = vpack.c.b16 %v796, %v780
  %v1037 = vpack.c.b16 %v797, %v781
  %v1038 = vpack.c.b16 %v798, %v782
  %v1039 = vpack.c.b16 %v799, %v783
  %v1040 = vpack.c.b16 %v800, %v784
  %v1041 = vpack.c.b16 %v801, %v785
  %v1042 = vpack.c.b16 %v802, %v786
  %v1043 = vpack.c.b16 %v803, %v787
  %v1044 = vpack.c.b16 %v804, %v788
  %v1045 = vpack.c.b16 %v805, %v789
  %v1046 = vpack.c.b16 %v822, %v806
  %v1047 = vpack.c.b16 %v823, %v807
  %v1048 = vpack.c.b16 %v824, %v808
  %v1049 = vpack.c.b16 %v825, %v809
  %v1050 = vpack.c.b16 %v826, %v810
  %v1051 = vpack.c.b16 %v827, %v811
  %v1052 = vpack.c.b16 %v828, %v812
  %v1053 = vpack.c.b16 %v829, %v813
  %v1054 = vpack.c.b16 %v830, %v814
  %v1055 = vpack.c.b16 %v831, %v815
  %v1056 = vpack.c.b16 %v832, %v816
  %v1057 = vpack.c.b16 %v833, %v817
  %v1058 = vpack.c.b16 %v834, %v818
  %v1059 = vpack.c.b16 %v835, %v819
  %v1060 = vpack.c.b16 %v836, %v820
  %v1061 = vpack.c.b16 %v837, %v821
  %v1062 = vpack.c.b16 %v854, %v838
  %v1063 = vpack.c.b16 %v855, %v839
  %v1064 = vpack.c.b16 %v856, %v840
  %v1065 = vpack.c.b16 %v857, %v841
  %v1066 = vpack.c.b16 %v858, %v842
  %v1067 = vpack.c.b16 %v859, %v843
  %v1068 = vpack.c.b16 %v860, %v844
  %v1069 = vpack.c.b16 %v861, %v845
  %v1070 = vpack.c.b16 %v862, %v846
  %v1071 = vpack.c.b16 %v863, %v847
  %v1072 = vpack.c.b16 %v864, %v848
  %v1073 = vpack.c.b16 %v865, %v849
  %v1074 = vpack.c.b16 %v866, %v850
  %v1075 = vpack.c.b16 %v867, %v851
  %v1076 = vpack.c.b16 %v868, %v852
  %v1077 = vpack.c.b16 %v869, %v853
  %v1078 = vpack.c.b16 %v886, %v870
  %v1079 = vpack.c.b16 %v887, %v871
  %v1080 = vpack.c.b16 %v888, %v872
  %v1081 = vpack.c.b16 %v889, %v873
  %v1082 = vpack.c.b16 %v890, %v874
  %v1083 = vpack.c.b16 %v891, %v875
  %v1084 = vpack.c.b16 %v892, %v876
  %v1085 = vpack.c.b16 %v893, %v877
  %v1086 = vpack.c.b16 %v894, %v878
  %v1087 = vpack.c.b16 %v895, %v879
  %v1088 = vpack.c.b16 %v896, %v880
  %v1089 = vpack.c.b16 %v897, %v881
  %v1090 = vpack.c.b16 %v898, %v882
  %v1091 = vpack.c.b16 %v899, %v883
  %v1092 = vpack.c.b16 %v900, %v884
  %v1093 = vpack.c.b16 %v901, %v885
  %v1094 = vpack.c.b16 %v918, %v902
  %v1095 = vpack.c.b16 %v919, %v903
  %v1096 = vpack.c.b16 %v920, %v904
  %v1097 = vpack.c.b16 %v921, %v905
  %v1098 = vpack.c.b16 %v922, %v906
  %v1099 = vpack.c.b16 %v923, %v907
  %v1100 = vpack.c.b16 %v924, %v908
  %v1101 = vpack.c.b16 %v925, %v909
  %v1102 = vpack.c.b16 %v926, %v910
  %v1103 = vpack.c.b16 %v927, %v911
  %v1104 = vpack.c.b16 %v928, %v912
  %v1105 = vpack.c.b16 %v929, %v913
  %v1106 = vpack.c.b16 %v930, %v914
  %v1107 = vpack.c.b16 %v931, %v915
  %v1108 = vpack.c.b16 %v932, %v916
  %v1109 = vpack.c.b16 %v933, %v917
  %v1110 = vpack.c.b16 %v934, %v934
  %v1111 = vpack.c.b16 %v935, %v935
  %v1112 = vpack.c.b16 %v936, %v936
  %v1113 = vpack.c.b16 %v937, %v937
  %v1114 = vpack.c.b16 %v938, %v938
  %v1115 = vpack.c.b16 %v939, %v939
  %v1116 = vpack.c.b16 %v940, %v940
  %v1117 = vpack.c.b16 %v941, %v941
  %v1118 = vpack.c.b16 %v942, %v942
  %v1119 = vpack.c.b16 %v943, %v943
  %v1120 = vpack.c.b16 %v944, %v944
  %v1121 = vpack.c.b16 %v945, %v945
  %v1122 = vpack.c.b16 %v946, %v946
  %v1123 = vpack.c.b16 %v947, %v947
  %v1124 = vpack.c.b16 %v948, %v948
  %v1125 = vpack.c.b16 %v949, %v949
  %v1558 = vunpack.c.l.b16 %v183
  %v1559 = vunpack.c.l.b16 %v184
  %v1560 = vunpack.c.l.b16 %v185
  %v1561 = vunpack.c.l.b16 %v186
  %v1562 = vunpack.c.l.b16 %v187
  %v1563 = vunpack.c.l.b16 %v188
  %v1564 = vunpack.c.l.b16 %v189
  %v1565 = vunpack.c.l.b16 %v190
  %v1566 = vunpack.c.l.b16 %v191
  %v1567 = vunpack.c.l.b16 %v192
  %v1568 = vunpack.c.l.b16 %v193
  %v1569 = vunpack.c.l.b16 %v194
  %v1570 = vunpack.c.l.b16 %v195
  %v1571 = vunpack.c.l.b16 %v196
  %v1572 = vunpack.c.l.b16 %v197
  %v1573 = vunpack.c.l.b16 %v198
  %v1574 = vunpack.c.l.b16 %v199
  %v1575 = vunpack.c.l.b16 %v200
  %v1576 = vunpack.c.l.b16 %v201
  %v1577 = vunpack.c.l.b16 %v202
  %v1578 = vunpack.c.l.b16 %v203
  %v1579 = vunpack.c.l.b16 %v204
  %v1580 = vunpack.c.l.b16 %v205
  %v1581 = vunpack.c.l.b16 %v206
  %v1582 = vunpack.c.l.b16 %v207
  %v1583 = vunpack.c.l.b16 %v208
  %v1584 = vunpack.c.l.b16 %v209
  %v1585 = vunpack.c.l.b16 %v210
  %v1586 = vunpack.c.l.b16 %v211
  %v1587 = vunpack.c.l.b16 %v212
  %v1588 = vunpack.c.l.b16 %v213
  %v1589 = vunpack.c.l.b16 %v214
  %v1590 = vunpack.c.l.b16 %v215
  %v1591 = vunpack.c.l.b16 %v216
  %v1592 = vunpack.c.l.b16 %v217
  %v1593 = vunpack.c.l.b16 %v218
  %v1594 = vunpack.c.l.b16 %v219
  %v1595 = vunpack.c.l.b16 %v220
  %v1596 = vunpack.c.l.b16 %v221
  %v1597 = vunpack.c.l.b16 %v222
  %v1598 = vunpack.c.l.b16 %v223
  %v1599 = vunpack.c.l.b16 %v224
  %v1600 = vunpack.c.l.b16 %v225
  %v1601 = vunpack.c.l.b16 %v226
  %v1602 = vunpack.c.l.b16 %v227
  %v1603 = vunpack.c.l.b16 %v228
  %v1604 = vunpack.c.l.b16 %v229
  %v1605 = vunpack.c.l.b16 %v230
  %v1606 = vunpack.c.l.b16 %v231
  %v1607 = vunpack.c.l.b16 %v232
  %v1608 = vunpack.c.l.b16 %v233
  %v1609 = vunpack.c.l.b16 %v234
  %v1610 = vunpack.c.l.b16 %v235
  %v1611 = vunpack.c.l.b16 %v236
  %v1612 = vunpack.c.l.b16 %v237
  %v1613 = vunpack.c.l.b16 %v238
  %v1614 = vunpack.c.l.b16 %v239
  %v1615 = vunpack.c.l.b16 %v240
  %v1616 = vunpack.c.l.b16 %v241
  %v1617 = vunpack.c.l.b16 %v242
  %v1618 = vunpack.c.l.b16 %v243
  %v1619 = vunpack.c.l.b16 %v244
  %v1620 = vunpack.c.l.b16 %v245
  %v1621 = vunpack.c.l.b16 %v246
  %v1622 = vunpack.c.l.b16 %v247
  %v1623 = vunpack.c.l.b16 %v248
  %v1624 = vunpack.c.l.b16 %v249
  %v1625 = vunpack.c.l.b16 %v250
  %v1626 = vunpack.c.l.b16 %v251
  %v1627 = vunpack.c.l.b16 %v252
  %v1628 = vunpack.c.l.b16 %v253
  %v1629 = vunpack.c.l.b16 %v254
  %v1630 = vunpack.c.l.b16 %v255
  %v1631 = vunpack.c.l.b16 %v256
  %v1632 = vunpack.c.l.b16 %v257
  %v1633 = vunpack.c.l.b16 %v258
  %v1634 = vunpack.c.l.b16 %v259
  %v1635 = vunpack.c.l.b16 %v260
  %v1636 = vunpack.c.l.b16 %v261
  %v1637 = vunpack.c.l.b16 %v262
  %v1638 = vunpack.c.l.b16 %v263
  %v1639 = vunpack.c.l.b16 %v264
  %v1640 = vunpack.c.l.b16 %v265
  %v1641 = vunpack.c.l.b16 %v266
  %v1642 = vunpack.c.l.b16 %v267
  %v1643 = vunpack.c.l.b16 %v268
  %v1644 = vunpack.c.l.b16 %v269
  %v1645 = vunpack.c.l.b16 %v270
  %v1646 = vunpack.c.l.b16 %v271
  %v1647 = vunpack.c.l.b16 %v272
  %v1648 = vunpack.c.l.b16 %v273
  %v1649 = vunpack.c.l.b16 %v274
  %v1650 = vunpack.c.l.b16 %v275
  %v1651 = vunpack.c.l.b16 %v276
  %v1652 = vunpack.c.l.b16 %v277
  %v1653 = vunpack.c.l.b16 %v278
  %v1654 = vunpack.c.l.b16 %v279
  %v1655 = vunpack.c.l.b16 %v280
  %v1656 = vunpack.c.l.b16 %v281
  %v1657 = vunpack.c.l.b16 %v282
  %v1658 = vunpack.c.l.b16 %v283
  %v1659 = vunpack.c.l.b16 %v284
  %v1660 = vunpack.c.l.b16 %v285
  %v1661 = vunpack.c.l.b16 %v286
  %v1662 = vunpack.c.l.b16 %v287
  %v1663 = vunpack.c.l.b16 %v288
  %v1664 = vunpack.c.l.b16 %v289
  %v1665 = vunpack.c.l.b16 %v290
  %v1666 = vunpack.c.l.b16 %v291
  %v1667 = vunpack.c.l.b16 %v292
  %v1668 = vunpack.c.l.b16 %v293
  %v1669 = vunpack.c.l.b16 %v294
  %v1670 = vunpack.c.l.b16 %v295
  %v1671 = vunpack.c.l.b16 %v296
  %v1672 = vunpack.c.l.b16 %v297
  %v1673 = vunpack.c.l.b16 %v298
  %v1674 = vunpack.c.l.b16 %v299
  %v1675 = vunpack.c.l.b16 %v300
  %v1676 = vunpack.c.l.b16 %v301
  %v1677 = vunpack.c.l.b16 %v302
  %v1678 = vunpack.c.l.b16 %v303
  %v1679 = vunpack.c.l.b16 %v304
  %v1680 = vunpack.c.l.b16 %v305
  %v1681 = vunpack.c.l.b16 %v306
  %v1682 = vunpack.c.l.b16 %v307
  %v1683 = vunpack.c.l.b16 %v308
  %v1684 = vunpack.c.l.b16 %v309
  %v1685 = vunpack.c.l.b16 %v310
  %v1686 = vunpack.c.l.b16 %v311
  %v1687 = vunpack.c.l.b16 %v312
  %v1688 = vunpack.c.l.b16 %v313
  %v1689 = vunpack.c.l.b16 %v314
  %v1690 = vunpack.c.l.b16 %v315
  %v1691 = vunpack.c.l.b16 %v316
  %v1692 = vunpack.c.l.b16 %v317
  %v1693 = vunpack.c.l.b16 %v318
  %v1694 = vunpack.c.l.b16 %v319
  %v1695 = vunpack.c.l.b16 %v320
  %v1696 = vunpack.c.l.b16 %v321
  %v1697 = vunpack.c.l.b16 %v322
  %v1698 = vunpack.c.l.b16 %v323
  %v1699 = vunpack.c.l.b16 %v324
  %v1700 = vunpack.c.l.b16 %v325
  %v1701 = vunpack.c.l.b16 %v326
  %v1702 = vunpack.c.l.b16 %v327
  %v1703 = vunpack.c.l.b16 %v328
  %v1704 = vunpack.c.l.b16 %v329
  %v1705 = vunpack.c.l.b16 %v330
  %v1706 = vunpack.c.l.b16 %v331
  %v1707 = vunpack.c.l.b16 %v332
  %v1708 = vunpack.c.l.b16 %v333
  %v1709 = vunpack.c.l.b16 %v334
  %v1710 = vunpack.c.l.b16 %v335
  %v1711 = vunpack.c.l.b16 %v336
  %v1712 = vunpack.c.l.b16 %v337
  %v1713 = vunpack.c.l.b16 %v338
  %v1714 = vunpack.c.l.b16 %v339
  %v1715 = vunpack.c.l.b16 %v340
  %v1716 = vunpack.c.l.b16 %v341
  %v1717 = vunpack.c.l.b16 %v342
  %v1718 = vunpack.c.l.b16 %v343
  %v1719 = vunpack.c.l.b16 %v344
  %v1720 = vunpack.c.l.b16 %v345
  %v1721 = vunpack.c.l.b16 %v346
  %v1722 = vunpack.c.l.b16 %v347
  %v1723 = vunpack.c.l.b16 %v348
  %v1724 = vunpack.c.l.b16 %v349
  %v1725 = vunpack.c.l.b16 %v350
  %v1726 = vunpack.c.l.b16 %v351
  %v1727 = vunpack.c.l.b16 %v352
  %v1728 = vunpack.c.l.b16 %v353
  %v1729 = vunpack.c.l.b16 %v354
  %v1730 = vunpack.c.l.b16 %v355
  %v1731 = vunpack.c.l.b16 %v356
  %v1732 = vunpack.c.l.b16 %v357
  %v1733 = vunpack.c.l.b16 %v358
  %v1734 = vunpack.c.l.b16 %v359
  %v1735 = vunpack.c.l.b16 %v360
  %v1736 = vunpack.c.l.b16 %v361
  %v1737 = vunpack.c.l.b16 %v362
  %v1738 = vunpack.c.l.b16 %v363
  %v1739 = vunpack.c.l.b16 %v364
  %v1740 = vunpack.c.l.b16 %v365
  %v1741 = vunpack.c.l.b16 %v366
  %v1742 = vunpack.c.l.b16 %v367
  %v1743 = vunpack.c.l.b16 %v368
  %v1744 = vunpack.c.l.b16 %v369
  %v1745 = vunpack.c.l.b16 %v370
  %v1746 = vunpack.c.l.b16 %v371
  %v1747 = vunpack.c.l.b16 %v372
  %v1748 = vunpack.c.l.b16 %v373
  %v1749 = vunpack.c.l.b16 %v374
  %v1750 = vunpack.c.l.b16 %v375
  %v1751 = vunpack.c.l.b16 %v376
  %v1752 = vunpack.c.l.b16 %v377
  %v1753 = vunpack.c.l.b16 %v378
  %v1754 = vunpack.c.l.b16 %v379
  %v1755 = vunpack.c.l.b16 %v380
  %v1756 = vunpack.c.l.b16 %v381
  %v1757 = vunpack.c.l.b16 %v382
  %v1758 = vunpack.c.l.b16 %v383
  %v1759 = vunpack.c.l.b16 %v384
  %v1760 = vunpack.c.l.b16 %v385
  %v1761 = vunpack.c.l.b16 %v386
  %v1762 = vunpack.c.l.b16 %v387
  %v1763 = vunpack.c.l.b16 %v388
  %v1764 = vunpack.c.l.b16 %v389
  %v1765 = vunpack.c.l.b16 %v390
  %v1766 = vunpack.c.l.b16 %v391
  %v1767 = vunpack.c.l.b16 %v392
  %v1768 = vunpack.c.l.b16 %v393
  %v1769 = vunpack.c.l.b16 %v394
  %v1770 = vunpack.c.l.b16 %v395
  %v1771 = vunpack.c.l.b16 %v396
  %v1772 = vunpack.c.l.b16 %v397
  %v1773 = vunpack.c.l.b16 %v398
  %v1774 = vunpack.c.l.b16 %v399
  %v1775 = vunpack.c.l.b16 %v400
  %v1776 = vunpack.c.l.b16 %v401
  %v1777 = vunpack.c.l.b16 %v402
  %v1778 = vunpack.c.l.b16 %v403
  %v1779 = vunpack.c.l.b16 %v404
  %v1780 = vunpack.c.l.b16 %v405
  %v1781 = vunpack.c.l.b16 %v406
  %v1782 = vunpack.c.l.b16 %v407
  %v1783 = vunpack.c.l.b16 %v408
  %v1784 = vunpack.c.l.b16 %v409
  %v1785 = vunpack.c.l.b16 %v410
  %v1786 = vunpack.c.l.b16 %v411
  %v1787 = vunpack.c.l.b16 %v412
  %v1788 = vunpack.c.l.b16 %v413
  %v1789 = vunpack.c.l.b16 %v414
  %v1790 = vunpack.c.l.b16 %v415
  %v1791 = vunpack.c.l.b16 %v416
  %v1792 = vunpack.c.l.b16 %v417
  %v1793 = vunpack.c.l.b16 %v418
  %v1794 = vunpack.c.l.b16 %v419
  %v1795 = vunpack.c.l.b16 %v420
  %v1796 = vunpack.c.l.b16 %v421
  %v1797 = vunpack.c.l.b16 %v422
  %v1798 = vunpack.c.l.b16 %v423
  %v1799 = vunpack.c.l.b16 %v424
  %v1800 = vunpack.c.l.b16 %v425
  %v1801 = vunpack.c.l.b16 %v426
  %v1802 = vunpack.c.l.b16 %v427
  %v1803 = vunpack.c.l.b16 %v428
  %v1804 = vunpack.c.l.b16 %v429
  %v1805 = vunpack.c.l.b16 %v430
  %v1806 = vunpack.c.l.b16 %v431
  %v1807 = vunpack.c.l.b16 %v432
  %v1808 = vunpack.c.l.b16 %v433
  %v1809 = vunpack.c.l.b16 %v434
  %v1810 = vunpack.c.l.b16 %v435
  %v1811 = vunpack.c.l.b16 %v436
  %v1812 = vunpack.c.l.b16 %v437
  %v1813 = vunpack.c.l.b16 %v438
  %v1814 = vpack.c.b16 %v1559, %v1558
  %v1815 = vpack.c.b16 %v1561, %v1560
  %v1816 = vpack.c.b16 %v1563, %v1562
  %v1817 = vpack.c.b16 %v1565, %v1564
  %v1818 = vpack.c.b16 %v1567, %v1566
  %v1819 = vpack.c.b16 %v1569, %v1568
  %v1820 = vpack.c.b16 %v1571, %v1570
  %v1821 = vpack.c.b16 %v1573, %v1572
  %v1822 = vpack.c.b16 %v1575, %v1574
  %v1823 = vpack.c.b16 %v1577, %v1576
  %v1824 = vpack.c.b16 %v1579, %v1578
  %v1825 = vpack.c.b16 %v1581, %v1580
  %v1826 = vpack.c.b16 %v1583, %v1582
  %v1827 = vpack.c.b16 %v1585, %v1584
  %v1828 = vpack.c.b16 %v1587, %v1586
  %v1829 = vpack.c.b16 %v1589, %v1588
  %v1830 = vpack.c.b16 %v1591, %v1590
  %v1831 = vpack.c.b16 %v1593, %v1592
  %v1832 = vpack.c.b16 %v1595, %v1594
  %v1833 = vpack.c.b16 %v1597, %v1596
  %v1834 = vpack.c.b16 %v1599, %v1598
  %v1835 = vpack.c.b16 %v1601, %v1600
  %v1836 = vpack.c.b16 %v1603, %v1602
  %v1837 = vpack.c.b16 %v1605, %v1604
  %v1838 = vpack.c.b16 %v1607, %v1606
  %v1839 = vpack.c.b16 %v1609, %v1608
  %v1840 = vpack.c.b16 %v1611, %v1610
  %v1841 = vpack.c.b16 %v1613, %v1612
  %v1842 = vpack.c.b16 %v1615, %v1614
  %v1843 = vpack.c.b16 %v1617, %v1616
  %v1844 = vpack.c.b16 %v1619, %v1618
  %v1845 = vpack.c.b16 %v1621, %v1620
  %v1846 = vpack.c.b16 %v1623, %v1622
  %v1847 = vpack.c.b16 %v1625, %v1624
  %v1848 = vpack.c.b16 %v1627, %v1626
  %v1849 = vpack.c.b16 %v1629, %v1628
  %v1850 = vpack.c.b16 %v1631, %v1630
  %v1851 = vpack.c.b16 %v1633, %v1632
  %v1852 = vpack.c.b16 %v1635, %v1634
  %v1853 = vpack.c.b16 %v1637, %v1636
  %v1854 = vpack.c.b16 %v1639, %v1638
  %v1855 = vpack.c.b16 %v1641, %v1640
  %v1856 = vpack.c.b16 %v1643, %v1642
  %v1857 = vpack.c.b16 %v1645, %v1644
  %v1858 = vpack.c.b16 %v1647, %v1646
  %v1859 = vpack.c.b16 %v1649, %v1648
  %v1860 = vpack.c.b16 %v1651, %v1650
  %v1861 = vpack.c.b16 %v1653, %v1652
  %v1862 = vpack.c.b16 %v1655, %v1654
  %v1863 = vpack.c.b16 %v1657, %v1656
  %v1864 = vpack.c.b16 %v1659, %v1658
  %v1865 = vpack.c.b16 %v1661, %v1660
  %v1866 = vpack.c.b16 %v1663, %v1662
  %v1867 = vpack.c.b16 %v1665, %v1664
  %v1868 = vpack.c.b16 %v1667, %v1666
  %v1869 = vpack.c.b16 %v1669, %v1668
  %v1870 = vpack.c.b16 %v1671, %v1670
  %v1871 = vpack.c.b16 %v1673, %v1672
  %v1872 = vpack.c.b16 %v1675, %v1674
  %v1873 = vpack.c.b16 %v1677, %v1676
  %v1874 = vpack.c.b16 %v1679, %v1678
  %v1875 = vpack.c.b16 %v1681, %v1680
  %v1876 = vpack.c.b16 %v1683, %v1682
  %v1877 = vpack.c.b16 %v1685, %v1684
  %v1878 = vpack.c.b16 %v1687, %v1686
  %v1879 = vpack.c.b16 %v1689, %v1688
  %v1880 = vpack.c.b16 %v1691, %v1690
  %v1881 = vpack.c.b16 %v1693, %v1692
  %v1882 = vpack.c.b16 %v1695, %v1694
  %v1883 = vpack.c.b16 %v1697, %v1696
  %v1884 = vpack.c.b16 %v1699, %v1698
  %v1885 = vpack.c.b16 %v1701, %v1700
  %v1886 = vpack.c.b16 %v1703, %v1702
  %v1887 = vpack.c.b16 %v1705, %v1704
  %v1888 = vpack.c.b16 %v1707, %v1706
  %v1889 = vpack.c.b16 %v1709, %v1708
  %v1890 = vpack.c.b16 %v1711, %v1710
  %v1891 = vpack.c.b16 %v1713, %v1712
  %v1892 = vpack.c.b16 %v1715, %v1714
  %v1893 = vpack.c.b16 %v1717, %v1716
  %v1894 = vpack.c.b16 %v1719, %v1718
  %v1895 = vpack.c.b16 %v1721, %v1720
  %v1896 = vpack.c.b16 %v1723, %v1722
  %v1897 = vpack.c.b16 %v1725, %v1724
  %v1898 = vpack.c.b16 %v1727, %v1726
  %v1899 = vpack.c.b16 %v1729, %v1728
  %v1900 = vpack.c.b16 %v1731, %v1730
  %v1901 = vpack.c.b16 %v1733, %v1732
  %v1902 = vpack.c.b16 %v1735, %v1734
  %v1903 = vpack.c.b16 %v1737, %v1736
  %v1904 = vpack.c.b16 %v1739, %v1738
  %v1905 = vpack.c.b16 %v1741, %v1740
  %v1906 = vpack.c.b16 %v1743, %v1742
  %v1907 = vpack.c.b16 %v1745, %v1744
  %v1908 = vpack.c.b16 %v1747, %v1746
  %v1909 = vpack.c.b16 %v1749, %v1748
  %v1910 = vpack.c.b16 %v1751, %v1750
  %v1911 = vpack.c.b16 %v1753, %v1752
  %v1912 = vpack.c.b16 %v1755, %v1754
  %v1913 = vpack.c.b16 %v1757, %v1756
  %v1914 = vpack.c.b16 %v1759, %v1758
  %v1915 = vpack.c.b16 %v1761, %v1760
  %v1916 = vpack.c.b16 %v1763, %v1762
  %v1917 = vpack.c.b16 %v1765, %v1764
  %v1918 = vpack.c.b16 %v1767, %v1766
  %v1919 = vpack.c.b16 %v1769, %v1768
  %v1920 = vpack.c.b16 %v1771, %v1770
  %v1921 = vpack.c.b16 %v1773, %v1772
  %v1922 = vpack.c.b16 %v1775, %v1774
  %v1923 = vpack.c.b16 %v1777, %v1776
  %v1924 = vpack.c.b16 %v1779, %v1778
  %v1925 = vpack.c.b16 %v1781, %v1780
  %v1926 = vpack.c.b16 %v1783, %v1782
  %v1927 = vpack.c.b16 %v1785, %v1784
  %v1928 = vpack.c.b16 %v1787, %v1786
  %v1929 = vpack.c.b16 %v1789, %v1788
  %v1930 = vpack.c.b16 %v1791, %v1790
  %v1931 = vpack.c.b16 %v1793, %v1792
  %v1932 = vpack.c.b16 %v1795, %v1794
  %v1933 = vpack.c.b16 %v1797, %v1796
  %v1934 = vpack.c.b16 %v1799, %v1798
  %v1935 = vpack.c.b16 %v1801, %v1800
  %v1936 = vpack.c.b16 %v1803, %v1802
  %v1937 = vpack.c.b16 %v1805, %v1804
  %v1938 = vpack.c.b16 %v1807, %v1806
  %v1939 = vpack.c.b16 %v1809, %v1808
  %v1940 = vpack.c.b16 %v1811, %v1810
  %v1941 = vpack.c.b16 %v1813, %v1812
  %2070 = vmatprep.subr.bf16.mxu0 0
  %2071 = vmatpush1.bf16.msra.mxu0 %v1814
  %2072 = vmatprep.subr.bf16.mxu0 0
  %2073 = vmatpush1.bf16.msra.mxu0 %v1815
  %2074 = vmatprep.subr.bf16.mxu0 0
  %2075 = vmatpush1.bf16.msra.mxu0 %v1816
  %2076 = vmatprep.subr.bf16.mxu0 0
  %2077 = vmatpush1.bf16.msra.mxu0 %v1817
  %2078 = vmatprep.subr.bf16.mxu0 0
  %2079 = vmatpush1.bf16.msra.mxu0 %v1818
  %2080 = vmatprep.subr.bf16.mxu0 0
  %2081 = vmatpush1.bf16.msra.mxu0 %v1819
  %2082 = vmatprep.subr.bf16.mxu0 0
  %2083 = vmatpush1.bf16.msra.mxu0 %v1820
  %2084 = vmatprep.subr.bf16.mxu0 0
  %2085 = vmatpush1.bf16.msra.mxu0 %v1821
  %2086 = vmatprep.subr.bf16.mxu0 0
  %2087 = vmatpush1.bf16.msra.mxu0 %v1822
  %2088 = vmatprep.subr.bf16.mxu0 0
  %2089 = vmatpush1.bf16.msra.mxu0 %v1823
  %2090 = vmatprep.subr.bf16.mxu0 0
  %2091 = vmatpush1.bf16.msra.mxu0 %v1824
  %2092 = vmatprep.subr.bf16.mxu0 0
  %2093 = vmatpush1.bf16.msra.mxu0 %v1825
  %2094 = vmatprep.subr.bf16.mxu0 0
  %2095 = vmatpush1.bf16.msra.mxu0 %v1826
  %2096 = vmatprep.subr.bf16.mxu0 0
  %2097 = vmatpush1.bf16.msra.mxu0 %v1827
  %2098 = vmatprep.subr.bf16.mxu0 0
  %2099 = vmatpush1.bf16.msra.mxu0 %v1828
  %2100 = vmatprep.subr.bf16.mxu0 0
  %2101 = vmatpush1.bf16.msra.mxu0 %v1829
  %2102 = vmatprep.mubr.bf16.mxu0 %v951
  %2103 = vmatmul.mubr.bf16.gmra.mrb[0].mxu0 %v950
  %v2104 = vpop.f32.mrb[0].mxu0
  %v2105 = vadd.f32 %v444, %v2104
  %v2106 = vpop.f32.mrb[0].mxu0
  %v2107 = vpop.f32.mrb[0].mxu0
  %v2108 = vadd.f32 %v444, %v2107
  %v2109 = vpop.f32.mrb[0].mxu0
  %2110 = vmatprep.mubr.bf16.mxu0 %v967
  %2111 = vmatmul.mubr.bf16.gmra.mrb[0].mxu0 %v966
  %v2112 = vpop.f32.mrb[0].mxu0
  %v2113 = vadd.f32 %v444, %v2112
  %v2114 = vpop.f32.mrb[0].mxu0
  %v2115 = vpop.f32.mrb[0].mxu0
  %v2116 = vadd.f32 %v444, %v2115
  %v2117 = vpop.f32.mrb[0].mxu0
  %2118 = vmatprep.mubr.bf16.mxu0 %v983
  %2119 = vmatmul.mubr.bf16.gmra.mrb[0].mxu0 %v982
  %v2120 = vpop.f32.mrb[0].mxu0
  %v2121 = vadd.f32 %v444, %v2120
  %v2122 = vpop.f32.mrb[0].mxu0
  %v2123 = vpop.f32.mrb[0].mxu0
  %v2124 = vadd.f32 %v444, %v2123
  %v2125 = vpop.f32.mrb[0].mxu0
  %2126 = vmatprep.mubr.bf16.mxu0 %v999
  %2127 = vmatmul.mubr.bf16.gmra.mrb[0].mxu0 %v998
  %v2128 = vpop.f32.mrb[0].mxu0
  %v2129 = vadd.f32 %v444, %v2128
  %v2130 = vpop.f32.mrb[0].mxu0
  %v2131 = vpop.f32.mrb[0].mxu0
  %v2132 = vadd.f32 %v444, %v2131
  %v2133 = vpop.f32.mrb[0].mxu0
  %2134 = vmatprep.mubr.bf16.mxu0 %v1015
  %2135 = vmatmul.mubr.bf16.gmra.mrb[0].mxu0 %v1014
  %v2136 = vpop.f32.mrb[0].mxu0
  %v2137 = vadd.f32 %v444, %v2136
  %v2138 = vpop.f32.mrb[0].mxu0
  %v2139 = vpop.f32.mrb[0].mxu0
  %v2140 = vadd.f32 %v444, %v2139
  %v2141 = vpop.f32.mrb[0].mxu0
  %2142 = vmatprep.mubr.bf16.mxu0 %v1031
  %2143 = vmatmul.mubr.bf16.gmra.mrb[0].mxu0 %v1030
  %v2144 = vpop.f32.mrb[0].mxu0
  %v2145 = vadd.f32 %v444, %v2144
  %v2146 = vpop.f32.mrb[0].mxu0
  %v2147 = vpop.f32.mrb[0].mxu0
  %v2148 = vadd.f32 %v444, %v2147
  %v2149 = vpop.f32.mrb[0].mxu0
  %2150 = vmatprep.mubr.bf16.mxu0 %v1047
  %2151 = vmatmul.mubr.bf16.gmra.mrb[0].mxu0 %v1046
  %v2152 = vpop.f32.mrb[0].mxu0
  %v2153 = vadd.f32 %v444, %v2152
  %v2154 = vpop.f32.mrb[0].mxu0
  %v2155 = vpop.f32.mrb[0].mxu0
  %v2156 = vadd.f32 %v444, %v2155
  %v2157 = vpop.f32.mrb[0].mxu0
  %2158 = vmatprep.mubr.bf16.mxu0 %v1063
  %2159 = vmatmul.mubr.bf16.gmra.mrb[0].mxu0 %v1062
  %v2160 = vpop.f32.mrb[0].mxu0
  %v2161 = vadd.f32 %v444, %v2160
  %v2162 = vpop.f32.mrb[0].mxu0
  %v2163 = vpop.f32.mrb[0].mxu0
  %v2164 = vadd.f32 %v444, %v2163
  %v2165 = vpop.f32.mrb[0].mxu0
  %2166 = vmatprep.mubr.bf16.mxu0 %v1079
  %2167 = vmatmul.mubr.bf16.gmra.mrb[0].mxu0 %v1078
  %v2168 = vpop.f32.mrb[0].mxu0
  %v2169 = vadd.f32 %v444, %v2168
  %v2170 = vpop.f32.mrb[0].mxu0
  %v2171 = vpop.f32.mrb[0].mxu0
  %v2172 = vadd.f32 %v444, %v2171
  %v2173 = vpop.f32.mrb[0].mxu0
  %2174 = vmatprep.mubr.bf16.mxu0 %v1095
  %2175 = vmatmul.mubr.bf16.gmra.mrb[0].mxu0 %v1094
  %v2176 = vpop.f32.mrb[0].mxu0
  %v2177 = vadd.f32 %v444, %v2176
  %v2178 = vpop.f32.mrb[0].mxu0
  %v2179 = vpop.f32.mrb[0].mxu0
  %v2180 = vadd.f32 %v444, %v2179
  %v2181 = vpop.f32.mrb[0].mxu0
  %2182 = vmatprep.mubr.bf16.mxu0 %v1111
  %2183 = vmatmul.mubr.bf16.gmra.mrb[0].mxu0 %v1110
  %v2184 = vpop.f32.mrb[0].mxu0
  %v2185 = vadd.f32 %v444, %v2184
  %v2186 = vpop.f32.mrb[0].mxu0
  %v2187 = vpop.f32.mrb[0].mxu0
  %v2188 = vpop.f32.mrb[0].mxu0
  %2189 = vdwg.mxu0
  %2190 = vmatprep.subr.bf16.mxu0 0
  %2191 = vmatpush1.bf16.msra.mxu0 %v1830
  %2192 = vmatprep.subr.bf16.mxu0 0
  %2193 = vmatpush1.bf16.msra.mxu0 %v1831
  %2194 = vmatprep.subr.bf16.mxu0 0
  %2195 = vmatpush1.bf16.msra.mxu0 %v1832
  %2196 = vmatprep.subr.bf16.mxu0 0
  %2197 = vmatpush1.bf16.msra.mxu0 %v1833
  %2198 = vmatprep.subr.bf16.mxu0 0
  %2199 = vmatpush1.bf16.msra.mxu0 %v1834
  %2200 = vmatprep.subr.bf16.mxu0 0
  %2201 = vmatpush1.bf16.msra.mxu0 %v1835
  %2202 = vmatprep.subr.bf16.mxu0 0
  %2203 = vmatpush1.bf16.msra.mxu0 %v1836
  %2204 = vmatprep.subr.bf16.mxu0 0
  %2205 = vmatpush1.bf16.msra.mxu0 %v1837
  %2206 = vmatprep.subr.bf16.mxu0 0
  %2207 = vmatpush1.bf16.msra.mxu0 %v1838
  %2208 = vmatprep.subr.bf16.mxu0 0
  %2209 = vmatpush1.bf16.msra.mxu0 %v1839
  %2210 = vmatprep.subr.bf16.mxu0 0
  %2211 = vmatpush1.bf16.msra.mxu0 %v1840
  %2212 = vmatprep.subr.bf16.mxu0 0
  %2213 = vmatpush1.bf16.msra.mxu0 %v1841
  %2214 = vmatprep.subr.bf16.mxu0 0
  %2215 = vmatpush1.bf16.msra.mxu0 %v1842
  %2216 = vmatprep.subr.bf16.mxu0 0
  %2217 = vmatpush1.bf16.msra.mxu0 %v1843
  %2218 = vmatprep.subr.bf16.mxu0 0
  %2219 = vmatpush1.bf16.msra.mxu0 %v1844
  %2220 = vmatprep.subr.bf16.mxu0 0
  %2221 = vmatpush1.bf16.msra.mxu0 %v1845
  %2222 = vmatprep.mubr.bf16.mxu0 %v953
  %2223 = vmatmul.mubr.bf16.gmra.mrb[0].mxu0 %v952
  %v2224 = vpop.f32.mrb[0].mxu0
  %v2225 = vadd.f32 %v2105, %v2224
  %v2226 = vpop.f32.mrb[0].mxu0
  %v2227 = vpop.f32.mrb[0].mxu0
  %v2228 = vadd.f32 %v2108, %v2227
  %v2229 = vpop.f32.mrb[0].mxu0
  %2230 = vmatprep.mubr.bf16.mxu0 %v969
  %2231 = vmatmul.mubr.bf16.gmra.mrb[0].mxu0 %v968
  %v2232 = vpop.f32.mrb[0].mxu0
  %v2233 = vadd.f32 %v2113, %v2232
  %v2234 = vpop.f32.mrb[0].mxu0
  %v2235 = vpop.f32.mrb[0].mxu0
  %v2236 = vadd.f32 %v2116, %v2235
  %v2237 = vpop.f32.mrb[0].mxu0
  %2238 = vmatprep.mubr.bf16.mxu0 %v985
  %2239 = vmatmul.mubr.bf16.gmra.mrb[0].mxu0 %v984
  %v2240 = vpop.f32.mrb[0].mxu0
  %v2241 = vadd.f32 %v2121, %v2240
  %v2242 = vpop.f32.mrb[0].mxu0
  %v2243 = vpop.f32.mrb[0].mxu0
  %v2244 = vadd.f32 %v2124, %v2243
  %v2245 = vpop.f32.mrb[0].mxu0
  %2246 = vmatprep.mubr.bf16.mxu0 %v1001
  %2247 = vmatmul.mubr.bf16.gmra.mrb[0].mxu0 %v1000
  %v2248 = vpop.f32.mrb[0].mxu0
  %v2249 = vadd.f32 %v2129, %v2248
  %v2250 = vpop.f32.mrb[0].mxu0
  %v2251 = vpop.f32.mrb[0].mxu0
  %v2252 = vadd.f32 %v2132, %v2251
  %v2253 = vpop.f32.mrb[0].mxu0
  %2254 = vmatprep.mubr.bf16.mxu0 %v1017
  %2255 = vmatmul.mubr.bf16.gmra.mrb[0].mxu0 %v1016
  %v2256 = vpop.f32.mrb[0].mxu0
  %v2257 = vadd.f32 %v2137, %v2256
  %v2258 = vpop.f32.mrb[0].mxu0
  %v2259 = vpop.f32.mrb[0].mxu0
  %v2260 = vadd.f32 %v2140, %v2259
  %v2261 = vpop.f32.mrb[0].mxu0
  %2262 = vmatprep.mubr.bf16.mxu0 %v1033
  %2263 = vmatmul.mubr.bf16.gmra.mrb[0].mxu0 %v1032
  %v2264 = vpop.f32.mrb[0].mxu0
  %v2265 = vadd.f32 %v2145, %v2264
  %v2266 = vpop.f32.mrb[0].mxu0
  %v2267 = vpop.f32.mrb[0].mxu0
  %v2268 = vadd.f32 %v2148, %v2267
  %v2269 = vpop.f32.mrb[0].mxu0
  %2270 = vmatprep.mubr.bf16.mxu0 %v1049
  %2271 = vmatmul.mubr.bf16.gmra.mrb[0].mxu0 %v1048
  %v2272 = vpop.f32.mrb[0].mxu0
  %v2273 = vadd.f32 %v2153, %v2272
  %v2274 = vpop.f32.mrb[0].mxu0
  %v2275 = vpop.f32.mrb[0].mxu0
  %v2276 = vadd.f32 %v2156, %v2275
  %v2277 = vpop.f32.mrb[0].mxu0
  %2278 = vmatprep.mubr.bf16.mxu0 %v1065
  %2279 = vmatmul.mubr.bf16.gmra.mrb[0].mxu0 %v1064
  %v2280 = vpop.f32.mrb[0].mxu0
  %v2281 = vadd.f32 %v2161, %v2280
  %v2282 = vpop.f32.mrb[0].mxu0
  %v2283 = vpop.f32.mrb[0].mxu0
  %v2284 = vadd.f32 %v2164, %v2283
  %v2285 = vpop.f32.mrb[0].mxu0
  %2286 = vmatprep.mubr.bf16.mxu0 %v1081
  %2287 = vmatmul.mubr.bf16.gmra.mrb[0].mxu0 %v1080
  %v2288 = vpop.f32.mrb[0].mxu0
  %v2289 = vadd.f32 %v2169, %v2288
  %v2290 = vpop.f32.mrb[0].mxu0
  %v2291 = vpop.f32.mrb[0].mxu0
  %v2292 = vadd.f32 %v2172, %v2291
  %v2293 = vpop.f32.mrb[0].mxu0
  %2294 = vmatprep.mubr.bf16.mxu0 %v1097
  %2295 = vmatmul.mubr.bf16.gmra.mrb[0].mxu0 %v1096
  %v2296 = vpop.f32.mrb[0].mxu0
  %v2297 = vadd.f32 %v2177, %v2296
  %v2298 = vpop.f32.mrb[0].mxu0
  %v2299 = vpop.f32.mrb[0].mxu0
  %v2300 = vadd.f32 %v2180, %v2299
  %v2301 = vpop.f32.mrb[0].mxu0
  %2302 = vmatprep.mubr.bf16.mxu0 %v1113
  %2303 = vmatmul.mubr.bf16.gmra.mrb[0].mxu0 %v1112
  %v2304 = vpop.f32.mrb[0].mxu0
  %v2305 = vadd.f32 %v2185, %v2304
  %v2306 = vpop.f32.mrb[0].mxu0
  %v2307 = vpop.f32.mrb[0].mxu0
  %v2308 = vpop.f32.mrb[0].mxu0
  %2309 = vdwg.mxu0
  %2310 = vmatprep.subr.bf16.mxu0 0
  %2311 = vmatpush1.bf16.msra.mxu0 %v1846
  %2312 = vmatprep.subr.bf16.mxu0 0
  %2313 = vmatpush1.bf16.msra.mxu0 %v1847
  %2314 = vmatprep.subr.bf16.mxu0 0
  %2315 = vmatpush1.bf16.msra.mxu0 %v1848
  %2316 = vmatprep.subr.bf16.mxu0 0
  %2317 = vmatpush1.bf16.msra.mxu0 %v1849
  %2318 = vmatprep.subr.bf16.mxu0 0
  %2319 = vmatpush1.bf16.msra.mxu0 %v1850
  %2320 = vmatprep.subr.bf16.mxu0 0
  %2321 = vmatpush1.bf16.msra.mxu0 %v1851
  %2322 = vmatprep.subr.bf16.mxu0 0
  %2323 = vmatpush1.bf16.msra.mxu0 %v1852
  %2324 = vmatprep.subr.bf16.mxu0 0
  %2325 = vmatpush1.bf16.msra.mxu0 %v1853
  %2326 = vmatprep.subr.bf16.mxu0 0
  %2327 = vmatpush1.bf16.msra.mxu0 %v1854
  %2328 = vmatprep.subr.bf16.mxu0 0
  %2329 = vmatpush1.bf16.msra.mxu0 %v1855
  %2330 = vmatprep.subr.bf16.mxu0 0
  %2331 = vmatpush1.bf16.msra.mxu0 %v1856
  %2332 = vmatprep.subr.bf16.mxu0 0
  %2333 = vmatpush1.bf16.msra.mxu0 %v1857
  %2334 = vmatprep.subr.bf16.mxu0 0
  %2335 = vmatpush1.bf16.msra.mxu0 %v1858
  %2336 = vmatprep.subr.bf16.mxu0 0
  %2337 = vmatpush1.bf16.msra.mxu0 %v1859
  %2338 = vmatprep.subr.bf16.mxu0 0
  %2339 = vmatpush1.bf16.msra.mxu0 %v1860
  %2340 = vmatprep.subr.bf16.mxu0 0
  %2341 = vmatpush1.bf16.msra.mxu0 %v1861
  %2342 = vmatprep.mubr.bf16.mxu0 %v955
  %2343 = vmatmul.mubr.bf16.gmra.mrb[0].mxu0 %v954
  %v2344 = vpop.f32.mrb[0].mxu0
  %v2345 = vadd.f32 %v2225, %v2344
  %v2346 = vpop.f32.mrb[0].mxu0
  %v2347 = vpop.f32.mrb[0].mxu0
  %v2348 = vadd.f32 %v2228, %v2347
  %v2349 = vpop.f32.mrb[0].mxu0
  %2350 = vmatprep.mubr.bf16.mxu0 %v971
  %2351 = vmatmul.mubr.bf16.gmra.mrb[0].mxu0 %v970
  %v2352 = vpop.f32.mrb[0].mxu0
  %v2353 = vadd.f32 %v2233, %v2352
  %v2354 = vpop.f32.mrb[0].mxu0
  %v2355 = vpop.f32.mrb[0].mxu0
  %v2356 = vadd.f32 %v2236, %v2355
  %v2357 = vpop.f32.mrb[0].mxu0
  %2358 = vmatprep.mubr.bf16.mxu0 %v987
  %2359 = vmatmul.mubr.bf16.gmra.mrb[0].mxu0 %v986
  %v2360 = vpop.f32.mrb[0].mxu0
  %v2361 = vadd.f32 %v2241, %v2360
  %v2362 = vpop.f32.mrb[0].mxu0
  %v2363 = vpop.f32.mrb[0].mxu0
  %v2364 = vadd.f32 %v2244, %v2363
  %v2365 = vpop.f32.mrb[0].mxu0
  %2366 = vmatprep.mubr.bf16.mxu0 %v1003
  %2367 = vmatmul.mubr.bf16.gmra.mrb[0].mxu0 %v1002
  %v2368 = vpop.f32.mrb[0].mxu0
  %v2369 = vadd.f32 %v2249, %v2368
  %v2370 = vpop.f32.mrb[0].mxu0
  %v2371 = vpop.f32.mrb[0].mxu0
  %v2372 = vadd.f32 %v2252, %v2371
  %v2373 = vpop.f32.mrb[0].mxu0
  %2374 = vmatprep.mubr.bf16.mxu0 %v1019
  %2375 = vmatmul.mubr.bf16.gmra.mrb[0].mxu0 %v1018
  %v2376 = vpop.f32.mrb[0].mxu0
  %v2377 = vadd.f32 %v2257, %v2376
  %v2378 = vpop.f32.mrb[0].mxu0
  %v2379 = vpop.f32.mrb[0].mxu0
  %v2380 = vadd.f32 %v2260, %v2379
  %v2381 = vpop.f32.mrb[0].mxu0
  %2382 = vmatprep.mubr.bf16.mxu0 %v1035
  %2383 = vmatmul.mubr.bf16.gmra.mrb[0].mxu0 %v1034
  %v2384 = vpop.f32.mrb[0].mxu0
  %v2385 = vadd.f32 %v2265, %v2384
  %v2386 = vpop.f32.mrb[0].mxu0
  %v2387 = vpop.f32.mrb[0].mxu0
  %v2388 = vadd.f32 %v2268, %v2387
  %v2389 = vpop.f32.mrb[0].mxu0
  %2390 = vmatprep.mubr.bf16.mxu0 %v1051
  %2391 = vmatmul.mubr.bf16.gmra.mrb[0].mxu0 %v1050
  %v2392 = vpop.f32.mrb[0].mxu0
  %v2393 = vadd.f32 %v2273, %v2392
  %v2394 = vpop.f32.mrb[0].mxu0
  %v2395 = vpop.f32.mrb[0].mxu0
  %v2396 = vadd.f32 %v2276, %v2395
  %v2397 = vpop.f32.mrb[0].mxu0
  %2398 = vmatprep.mubr.bf16.mxu0 %v1067
  %2399 = vmatmul.mubr.bf16.gmra.mrb[0].mxu0 %v1066
  %v2400 = vpop.f32.mrb[0].mxu0
  %v2401 = vadd.f32 %v2281, %v2400
  %v2402 = vpop.f32.mrb[0].mxu0
  %v2403 = vpop.f32.mrb[0].mxu0
  %v2404 = vadd.f32 %v2284, %v2403
  %v2405 = vpop.f32.mrb[0].mxu0
  %2406 = vmatprep.mubr.bf16.mxu0 %v1083
  %2407 = vmatmul.mubr.bf16.gmra.mrb[0].mxu0 %v1082
  %v2408 = vpop.f32.mrb[0].mxu0
  %v2409 = vadd.f32 %v2289, %v2408
  %v2410 = vpop.f32.mrb[0].mxu0
  %v2411 = vpop.f32.mrb[0].mxu0
  %v2412 = vadd.f32 %v2292, %v2411
  %v2413 = vpop.f32.mrb[0].mxu0
  %2414 = vmatprep.mubr.bf16.mxu0 %v1099
  %2415 = vmatmul.mubr.bf16.gmra.mrb[0].mxu0 %v1098
  %v2416 = vpop.f32.mrb[0].mxu0
  %v2417 = vadd.f32 %v2297, %v2416
  %v2418 = vpop.f32.mrb[0].mxu0
  %v2419 = vpop.f32.mrb[0].mxu0
  %v2420 = vadd.f32 %v2300, %v2419
  %v2421 = vpop.f32.mrb[0].mxu0
  %2422 = vmatprep.mubr.bf16.mxu0 %v1115
  %2423 = vmatmul.mubr.bf16.gmra.mrb[0].mxu0 %v1114
  %v2424 = vpop.f32.mrb[0].mxu0
  %v2425 = vadd.f32 %v2305, %v2424
  %v2426 = vpop.f32.mrb[0].mxu0
  %v2427 = vpop.f32.mrb[0].mxu0
  %v2428 = vpop.f32.mrb[0].mxu0
  %2429 = vdwg.mxu0
  %2430 = vmatprep.subr.bf16.mxu0 0
  %2431 = vmatpush1.bf16.msra.mxu0 %v1862
  %2432 = vmatprep.subr.bf16.mxu0 0
  %2433 = vmatpush1.bf16.msra.mxu0 %v1863
  %2434 = vmatprep.subr.bf16.mxu0 0
  %2435 = vmatpush1.bf16.msra.mxu0 %v1864
  %2436 = vmatprep.subr.bf16.mxu0 0
  %2437 = vmatpush1.bf16.msra.mxu0 %v1865
  %2438 = vmatprep.subr.bf16.mxu0 0
  %2439 = vmatpush1.bf16.msra.mxu0 %v1866
  %2440 = vmatprep.subr.bf16.mxu0 0
  %2441 = vmatpush1.bf16.msra.mxu0 %v1867
  %2442 = vmatprep.subr.bf16.mxu0 0
  %2443 = vmatpush1.bf16.msra.mxu0 %v1868
  %2444 = vmatprep.subr.bf16.mxu0 0
  %2445 = vmatpush1.bf16.msra.mxu0 %v1869
  %2446 = vmatprep.subr.bf16.mxu0 0
  %2447 = vmatpush1.bf16.msra.mxu0 %v1870
  %2448 = vmatprep.subr.bf16.mxu0 0
  %2449 = vmatpush1.bf16.msra.mxu0 %v1871
  %2450 = vmatprep.subr.bf16.mxu0 0
  %2451 = vmatpush1.bf16.msra.mxu0 %v1872
  %2452 = vmatprep.subr.bf16.mxu0 0
  %2453 = vmatpush1.bf16.msra.mxu0 %v1873
  %2454 = vmatprep.subr.bf16.mxu0 0
  %2455 = vmatpush1.bf16.msra.mxu0 %v1874
  %2456 = vmatprep.subr.bf16.mxu0 0
  %2457 = vmatpush1.bf16.msra.mxu0 %v1875
  %2458 = vmatprep.subr.bf16.mxu0 0
  %2459 = vmatpush1.bf16.msra.mxu0 %v1876
  %2460 = vmatprep.subr.bf16.mxu0 0
  %2461 = vmatpush1.bf16.msra.mxu0 %v1877
  %2462 = vmatprep.mubr.bf16.mxu0 %v957
  %2463 = vmatmul.mubr.bf16.gmra.mrb[0].mxu0 %v956
  %v2464 = vpop.f32.mrb[0].mxu0
  %v2465 = vadd.f32 %v2345, %v2464
  %v2466 = vpop.f32.mrb[0].mxu0
  %v2467 = vpop.f32.mrb[0].mxu0
  %v2468 = vadd.f32 %v2348, %v2467
  %v2469 = vpop.f32.mrb[0].mxu0
  %2470 = vmatprep.mubr.bf16.mxu0 %v973
  %2471 = vmatmul.mubr.bf16.gmra.mrb[0].mxu0 %v972
  %v2472 = vpop.f32.mrb[0].mxu0
  %v2473 = vadd.f32 %v2353, %v2472
  %v2474 = vpop.f32.mrb[0].mxu0
  %v2475 = vpop.f32.mrb[0].mxu0
  %v2476 = vadd.f32 %v2356, %v2475
  %v2477 = vpop.f32.mrb[0].mxu0
  %2478 = vmatprep.mubr.bf16.mxu0 %v989
  %2479 = vmatmul.mubr.bf16.gmra.mrb[0].mxu0 %v988
  %v2480 = vpop.f32.mrb[0].mxu0
  %v2481 = vadd.f32 %v2361, %v2480
  %v2482 = vpop.f32.mrb[0].mxu0
  %v2483 = vpop.f32.mrb[0].mxu0
  %v2484 = vadd.f32 %v2364, %v2483
  %v2485 = vpop.f32.mrb[0].mxu0
  %2486 = vmatprep.mubr.bf16.mxu0 %v1005
  %2487 = vmatmul.mubr.bf16.gmra.mrb[0].mxu0 %v1004
  %v2488 = vpop.f32.mrb[0].mxu0
  %v2489 = vadd.f32 %v2369, %v2488
  %v2490 = vpop.f32.mrb[0].mxu0
  %v2491 = vpop.f32.mrb[0].mxu0
  %v2492 = vadd.f32 %v2372, %v2491
  %v2493 = vpop.f32.mrb[0].mxu0
  %2494 = vmatprep.mubr.bf16.mxu0 %v1021
  %2495 = vmatmul.mubr.bf16.gmra.mrb[0].mxu0 %v1020
  %v2496 = vpop.f32.mrb[0].mxu0
  %v2497 = vadd.f32 %v2377, %v2496
  %v2498 = vpop.f32.mrb[0].mxu0
  %v2499 = vpop.f32.mrb[0].mxu0
  %v2500 = vadd.f32 %v2380, %v2499
  %v2501 = vpop.f32.mrb[0].mxu0
  %2502 = vmatprep.mubr.bf16.mxu0 %v1037
  %2503 = vmatmul.mubr.bf16.gmra.mrb[0].mxu0 %v1036
  %v2504 = vpop.f32.mrb[0].mxu0
  %v2505 = vadd.f32 %v2385, %v2504
  %v2506 = vpop.f32.mrb[0].mxu0
  %v2507 = vpop.f32.mrb[0].mxu0
  %v2508 = vadd.f32 %v2388, %v2507
  %v2509 = vpop.f32.mrb[0].mxu0
  %2510 = vmatprep.mubr.bf16.mxu0 %v1053
  %2511 = vmatmul.mubr.bf16.gmra.mrb[0].mxu0 %v1052
  %v2512 = vpop.f32.mrb[0].mxu0
  %v2513 = vadd.f32 %v2393, %v2512
  %v2514 = vpop.f32.mrb[0].mxu0
  %v2515 = vpop.f32.mrb[0].mxu0
  %v2516 = vadd.f32 %v2396, %v2515
  %v2517 = vpop.f32.mrb[0].mxu0
  %2518 = vmatprep.mubr.bf16.mxu0 %v1069
  %2519 = vmatmul.mubr.bf16.gmra.mrb[0].mxu0 %v1068
  %v2520 = vpop.f32.mrb[0].mxu0
  %v2521 = vadd.f32 %v2401, %v2520
  %v2522 = vpop.f32.mrb[0].mxu0
  %v2523 = vpop.f32.mrb[0].mxu0
  %v2524 = vadd.f32 %v2404, %v2523
  %v2525 = vpop.f32.mrb[0].mxu0
  %2526 = vmatprep.mubr.bf16.mxu0 %v1085
  %2527 = vmatmul.mubr.bf16.gmra.mrb[0].mxu0 %v1084
  %v2528 = vpop.f32.mrb[0].mxu0
  %v2529 = vadd.f32 %v2409, %v2528
  %v2530 = vpop.f32.mrb[0].mxu0
  %v2531 = vpop.f32.mrb[0].mxu0
  %v2532 = vadd.f32 %v2412, %v2531
  %v2533 = vpop.f32.mrb[0].mxu0
  %2534 = vmatprep.mubr.bf16.mxu0 %v1101
  %2535 = vmatmul.mubr.bf16.gmra.mrb[0].mxu0 %v1100
  %v2536 = vpop.f32.mrb[0].mxu0
  %v2537 = vadd.f32 %v2417, %v2536
  %v2538 = vpop.f32.mrb[0].mxu0
  %v2539 = vpop.f32.mrb[0].mxu0
  %v2540 = vadd.f32 %v2420, %v2539
  %v2541 = vpop.f32.mrb[0].mxu0
  %2542 = vmatprep.mubr.bf16.mxu0 %v1117
  %2543 = vmatmul.mubr.bf16.gmra.mrb[0].mxu0 %v1116
  %v2544 = vpop.f32.mrb[0].mxu0
  %v2545 = vadd.f32 %v2425, %v2544
  %v2546 = vpop.f32.mrb[0].mxu0
  %v2547 = vpop.f32.mrb[0].mxu0
  %v2548 = vpop.f32.mrb[0].mxu0
  %2549 = vdwg.mxu0
  %2550 = vmatprep.subr.bf16.mxu0 0
  %2551 = vmatpush1.bf16.msra.mxu0 %v1878
  %2552 = vmatprep.subr.bf16.mxu0 0
  %2553 = vmatpush1.bf16.msra.mxu0 %v1879
  %2554 = vmatprep.subr.bf16.mxu0 0
  %2555 = vmatpush1.bf16.msra.mxu0 %v1880
  %2556 = vmatprep.subr.bf16.mxu0 0
  %2557 = vmatpush1.bf16.msra.mxu0 %v1881
  %2558 = vmatprep.subr.bf16.mxu0 0
  %2559 = vmatpush1.bf16.msra.mxu0 %v1882
  %2560 = vmatprep.subr.bf16.mxu0 0
  %2561 = vmatpush1.bf16.msra.mxu0 %v1883
  %2562 = vmatprep.subr.bf16.mxu0 0
  %2563 = vmatpush1.bf16.msra.mxu0 %v1884
  %2564 = vmatprep.subr.bf16.mxu0 0
  %2565 = vmatpush1.bf16.msra.mxu0 %v1885
  %2566 = vmatprep.subr.bf16.mxu0 0
  %2567 = vmatpush1.bf16.msra.mxu0 %v1886
  %2568 = vmatprep.subr.bf16.mxu0 0
  %2569 = vmatpush1.bf16.msra.mxu0 %v1887
  %2570 = vmatprep.subr.bf16.mxu0 0
  %2571 = vmatpush1.bf16.msra.mxu0 %v1888
  %2572 = vmatprep.subr.bf16.mxu0 0
  %2573 = vmatpush1.bf16.msra.mxu0 %v1889
  %2574 = vmatprep.subr.bf16.mxu0 0
  %2575 = vmatpush1.bf16.msra.mxu0 %v1890
  %2576 = vmatprep.subr.bf16.mxu0 0
  %2577 = vmatpush1.bf16.msra.mxu0 %v1891
  %2578 = vmatprep.subr.bf16.mxu0 0
  %2579 = vmatpush1.bf16.msra.mxu0 %v1892
  %2580 = vmatprep.subr.bf16.mxu0 0
  %2581 = vmatpush1.bf16.msra.mxu0 %v1893
  %2582 = vmatprep.mubr.bf16.mxu0 %v959
  %2583 = vmatmul.mubr.bf16.gmra.mrb[0].mxu0 %v958
  %v2584 = vpop.f32.mrb[0].mxu0
  %v2585 = vadd.f32 %v2465, %v2584
  %v2586 = vpop.f32.mrb[0].mxu0
  %v2587 = vpop.f32.mrb[0].mxu0
  %v2588 = vadd.f32 %v2468, %v2587
  %v2589 = vpop.f32.mrb[0].mxu0
  %2590 = vmatprep.mubr.bf16.mxu0 %v975
  %2591 = vmatmul.mubr.bf16.gmra.mrb[0].mxu0 %v974
  %v2592 = vpop.f32.mrb[0].mxu0
  %v2593 = vadd.f32 %v2473, %v2592
  %v2594 = vpop.f32.mrb[0].mxu0
  %v2595 = vpop.f32.mrb[0].mxu0
  %v2596 = vadd.f32 %v2476, %v2595
  %v2597 = vpop.f32.mrb[0].mxu0
  %2598 = vmatprep.mubr.bf16.mxu0 %v991
  %2599 = vmatmul.mubr.bf16.gmra.mrb[0].mxu0 %v990
  %v2600 = vpop.f32.mrb[0].mxu0
  %v2601 = vadd.f32 %v2481, %v2600
  %v2602 = vpop.f32.mrb[0].mxu0
  %v2603 = vpop.f32.mrb[0].mxu0
  %v2604 = vadd.f32 %v2484, %v2603
  %v2605 = vpop.f32.mrb[0].mxu0
  %2606 = vmatprep.mubr.bf16.mxu0 %v1007
  %2607 = vmatmul.mubr.bf16.gmra.mrb[0].mxu0 %v1006
  %v2608 = vpop.f32.mrb[0].mxu0
  %v2609 = vadd.f32 %v2489, %v2608
  %v2610 = vpop.f32.mrb[0].mxu0
  %v2611 = vpop.f32.mrb[0].mxu0
  %v2612 = vadd.f32 %v2492, %v2611
  %v2613 = vpop.f32.mrb[0].mxu0
  %2614 = vmatprep.mubr.bf16.mxu0 %v1023
  %2615 = vmatmul.mubr.bf16.gmra.mrb[0].mxu0 %v1022
  %v2616 = vpop.f32.mrb[0].mxu0
  %v2617 = vadd.f32 %v2497, %v2616
  %v2618 = vpop.f32.mrb[0].mxu0
  %v2619 = vpop.f32.mrb[0].mxu0
  %v2620 = vadd.f32 %v2500, %v2619
  %v2621 = vpop.f32.mrb[0].mxu0
  %2622 = vmatprep.mubr.bf16.mxu0 %v1039
  %2623 = vmatmul.mubr.bf16.gmra.mrb[0].mxu0 %v1038
  %v2624 = vpop.f32.mrb[0].mxu0
  %v2625 = vadd.f32 %v2505, %v2624
  %v2626 = vpop.f32.mrb[0].mxu0
  %v2627 = vpop.f32.mrb[0].mxu0
  %v2628 = vadd.f32 %v2508, %v2627
  %v2629 = vpop.f32.mrb[0].mxu0
  %2630 = vmatprep.mubr.bf16.mxu0 %v1055
  %2631 = vmatmul.mubr.bf16.gmra.mrb[0].mxu0 %v1054
  %v2632 = vpop.f32.mrb[0].mxu0
  %v2633 = vadd.f32 %v2513, %v2632
  %v2634 = vpop.f32.mrb[0].mxu0
  %v2635 = vpop.f32.mrb[0].mxu0
  %v2636 = vadd.f32 %v2516, %v2635
  %v2637 = vpop.f32.mrb[0].mxu0
  %2638 = vmatprep.mubr.bf16.mxu0 %v1071
  %2639 = vmatmul.mubr.bf16.gmra.mrb[0].mxu0 %v1070
  %v2640 = vpop.f32.mrb[0].mxu0
  %v2641 = vadd.f32 %v2521, %v2640
  %v2642 = vpop.f32.mrb[0].mxu0
  %v2643 = vpop.f32.mrb[0].mxu0
  %v2644 = vadd.f32 %v2524, %v2643
  %v2645 = vpop.f32.mrb[0].mxu0
  %2646 = vmatprep.mubr.bf16.mxu0 %v1087
  %2647 = vmatmul.mubr.bf16.gmra.mrb[0].mxu0 %v1086
  %v2648 = vpop.f32.mrb[0].mxu0
  %v2649 = vadd.f32 %v2529, %v2648
  %v2650 = vpop.f32.mrb[0].mxu0
  %v2651 = vpop.f32.mrb[0].mxu0
  %v2652 = vadd.f32 %v2532, %v2651
  %v2653 = vpop.f32.mrb[0].mxu0
  %2654 = vmatprep.mubr.bf16.mxu0 %v1103
  %2655 = vmatmul.mubr.bf16.gmra.mrb[0].mxu0 %v1102
  %v2656 = vpop.f32.mrb[0].mxu0
  %v2657 = vadd.f32 %v2537, %v2656
  %v2658 = vpop.f32.mrb[0].mxu0
  %v2659 = vpop.f32.mrb[0].mxu0
  %v2660 = vadd.f32 %v2540, %v2659
  %v2661 = vpop.f32.mrb[0].mxu0
  %2662 = vmatprep.mubr.bf16.mxu0 %v1119
  %2663 = vmatmul.mubr.bf16.gmra.mrb[0].mxu0 %v1118
  %v2664 = vpop.f32.mrb[0].mxu0
  %v2665 = vadd.f32 %v2545, %v2664
  %v2666 = vpop.f32.mrb[0].mxu0
  %v2667 = vpop.f32.mrb[0].mxu0
  %v2668 = vpop.f32.mrb[0].mxu0
  %2669 = vdwg.mxu0
  %2670 = vmatprep.subr.bf16.mxu0 0
  %2671 = vmatpush1.bf16.msra.mxu0 %v1894
  %2672 = vmatprep.subr.bf16.mxu0 0
  %2673 = vmatpush1.bf16.msra.mxu0 %v1895
  %2674 = vmatprep.subr.bf16.mxu0 0
  %2675 = vmatpush1.bf16.msra.mxu0 %v1896
  %2676 = vmatprep.subr.bf16.mxu0 0
  %2677 = vmatpush1.bf16.msra.mxu0 %v1897
  %2678 = vmatprep.subr.bf16.mxu0 0
  %2679 = vmatpush1.bf16.msra.mxu0 %v1898
  %2680 = vmatprep.subr.bf16.mxu0 0
  %2681 = vmatpush1.bf16.msra.mxu0 %v1899
  %2682 = vmatprep.subr.bf16.mxu0 0
  %2683 = vmatpush1.bf16.msra.mxu0 %v1900
  %2684 = vmatprep.subr.bf16.mxu0 0
  %2685 = vmatpush1.bf16.msra.mxu0 %v1901
  %2686 = vmatprep.subr.bf16.mxu0 0
  %2687 = vmatpush1.bf16.msra.mxu0 %v1902
  %2688 = vmatprep.subr.bf16.mxu0 0
  %2689 = vmatpush1.bf16.msra.mxu0 %v1903
  %2690 = vmatprep.subr.bf16.mxu0 0
  %2691 = vmatpush1.bf16.msra.mxu0 %v1904
  %2692 = vmatprep.subr.bf16.mxu0 0
  %2693 = vmatpush1.bf16.msra.mxu0 %v1905
  %2694 = vmatprep.subr.bf16.mxu0 0
  %2695 = vmatpush1.bf16.msra.mxu0 %v1906
  %2696 = vmatprep.subr.bf16.mxu0 0
  %2697 = vmatpush1.bf16.msra.mxu0 %v1907
  %2698 = vmatprep.subr.bf16.mxu0 0
  %2699 = vmatpush1.bf16.msra.mxu0 %v1908
  %2700 = vmatprep.subr.bf16.mxu0 0
  %2701 = vmatpush1.bf16.msra.mxu0 %v1909
  %2702 = vmatprep.mubr.bf16.mxu0 %v961
  %2703 = vmatmul.mubr.bf16.gmra.mrb[0].mxu0 %v960
  %v2704 = vpop.f32.mrb[0].mxu0
  %v2705 = vadd.f32 %v2585, %v2704
  %v2706 = vpop.f32.mrb[0].mxu0
  %v2707 = vpop.f32.mrb[0].mxu0
  %v2708 = vadd.f32 %v2588, %v2707
  %v2709 = vpop.f32.mrb[0].mxu0
  %2710 = vmatprep.mubr.bf16.mxu0 %v977
  %2711 = vmatmul.mubr.bf16.gmra.mrb[0].mxu0 %v976
  %v2712 = vpop.f32.mrb[0].mxu0
  %v2713 = vadd.f32 %v2593, %v2712
  %v2714 = vpop.f32.mrb[0].mxu0
  %v2715 = vpop.f32.mrb[0].mxu0
  %v2716 = vadd.f32 %v2596, %v2715
  %v2717 = vpop.f32.mrb[0].mxu0
  %2718 = vmatprep.mubr.bf16.mxu0 %v993
  %2719 = vmatmul.mubr.bf16.gmra.mrb[0].mxu0 %v992
  %v2720 = vpop.f32.mrb[0].mxu0
  %v2721 = vadd.f32 %v2601, %v2720
  %v2722 = vpop.f32.mrb[0].mxu0
  %v2723 = vpop.f32.mrb[0].mxu0
  %v2724 = vadd.f32 %v2604, %v2723
  %v2725 = vpop.f32.mrb[0].mxu0
  %2726 = vmatprep.mubr.bf16.mxu0 %v1009
  %2727 = vmatmul.mubr.bf16.gmra.mrb[0].mxu0 %v1008
  %v2728 = vpop.f32.mrb[0].mxu0
  %v2729 = vadd.f32 %v2609, %v2728
  %v2730 = vpop.f32.mrb[0].mxu0
  %v2731 = vpop.f32.mrb[0].mxu0
  %v2732 = vadd.f32 %v2612, %v2731
  %v2733 = vpop.f32.mrb[0].mxu0
  %2734 = vmatprep.mubr.bf16.mxu0 %v1025
  %2735 = vmatmul.mubr.bf16.gmra.mrb[0].mxu0 %v1024
  %v2736 = vpop.f32.mrb[0].mxu0
  %v2737 = vadd.f32 %v2617, %v2736
  %v2738 = vpop.f32.mrb[0].mxu0
  %v2739 = vpop.f32.mrb[0].mxu0
  %v2740 = vadd.f32 %v2620, %v2739
  %v2741 = vpop.f32.mrb[0].mxu0
  %2742 = vmatprep.mubr.bf16.mxu0 %v1041
  %2743 = vmatmul.mubr.bf16.gmra.mrb[0].mxu0 %v1040
  %v2744 = vpop.f32.mrb[0].mxu0
  %v2745 = vadd.f32 %v2625, %v2744
  %v2746 = vpop.f32.mrb[0].mxu0
  %v2747 = vpop.f32.mrb[0].mxu0
  %v2748 = vadd.f32 %v2628, %v2747
  %v2749 = vpop.f32.mrb[0].mxu0
  %2750 = vmatprep.mubr.bf16.mxu0 %v1057
  %2751 = vmatmul.mubr.bf16.gmra.mrb[0].mxu0 %v1056
  %v2752 = vpop.f32.mrb[0].mxu0
  %v2753 = vadd.f32 %v2633, %v2752
  %v2754 = vpop.f32.mrb[0].mxu0
  %v2755 = vpop.f32.mrb[0].mxu0
  %v2756 = vadd.f32 %v2636, %v2755
  %v2757 = vpop.f32.mrb[0].mxu0
  %2758 = vmatprep.mubr.bf16.mxu0 %v1073
  %2759 = vmatmul.mubr.bf16.gmra.mrb[0].mxu0 %v1072
  %v2760 = vpop.f32.mrb[0].mxu0
  %v2761 = vadd.f32 %v2641, %v2760
  %v2762 = vpop.f32.mrb[0].mxu0
  %v2763 = vpop.f32.mrb[0].mxu0
  %v2764 = vadd.f32 %v2644, %v2763
  %v2765 = vpop.f32.mrb[0].mxu0
  %2766 = vmatprep.mubr.bf16.mxu0 %v1089
  %2767 = vmatmul.mubr.bf16.gmra.mrb[0].mxu0 %v1088
  %v2768 = vpop.f32.mrb[0].mxu0
  %v2769 = vadd.f32 %v2649, %v2768
  %v2770 = vpop.f32.mrb[0].mxu0
  %v2771 = vpop.f32.mrb[0].mxu0
  %v2772 = vadd.f32 %v2652, %v2771
  %v2773 = vpop.f32.mrb[0].mxu0
  %2774 = vmatprep.mubr.bf16.mxu0 %v1105
  %2775 = vmatmul.mubr.bf16.gmra.mrb[0].mxu0 %v1104
  %v2776 = vpop.f32.mrb[0].mxu0
  %v2777 = vadd.f32 %v2657, %v2776
  %v2778 = vpop.f32.mrb[0].mxu0
  %v2779 = vpop.f32.mrb[0].mxu0
  %v2780 = vadd.f32 %v2660, %v2779
  %v2781 = vpop.f32.mrb[0].mxu0
  %2782 = vmatprep.mubr.bf16.mxu0 %v1121
  %2783 = vmatmul.mubr.bf16.gmra.mrb[0].mxu0 %v1120
  %v2784 = vpop.f32.mrb[0].mxu0
  %v2785 = vadd.f32 %v2665, %v2784
  %v2786 = vpop.f32.mrb[0].mxu0
  %v2787 = vpop.f32.mrb[0].mxu0
  %v2788 = vpop.f32.mrb[0].mxu0
  %2789 = vdwg.mxu0
  %2790 = vmatprep.subr.bf16.mxu0 0
  %2791 = vmatpush1.bf16.msra.mxu0 %v1910
  %2792 = vmatprep.subr.bf16.mxu0 0
  %2793 = vmatpush1.bf16.msra.mxu0 %v1911
  %2794 = vmatprep.subr.bf16.mxu0 0
  %2795 = vmatpush1.bf16.msra.mxu0 %v1912
  %2796 = vmatprep.subr.bf16.mxu0 0
  %2797 = vmatpush1.bf16.msra.mxu0 %v1913
  %2798 = vmatprep.subr.bf16.mxu0 0
  %2799 = vmatpush1.bf16.msra.mxu0 %v1914
  %2800 = vmatprep.subr.bf16.mxu0 0
  %2801 = vmatpush1.bf16.msra.mxu0 %v1915
  %2802 = vmatprep.subr.bf16.mxu0 0
  %2803 = vmatpush1.bf16.msra.mxu0 %v1916
  %2804 = vmatprep.subr.bf16.mxu0 0
  %2805 = vmatpush1.bf16.msra.mxu0 %v1917
  %2806 = vmatprep.subr.bf16.mxu0 0
  %2807 = vmatpush1.bf16.msra.mxu0 %v1918
  %2808 = vmatprep.subr.bf16.mxu0 0
  %2809 = vmatpush1.bf16.msra.mxu0 %v1919
  %2810 = vmatprep.subr.bf16.mxu0 0
  %2811 = vmatpush1.bf16.msra.mxu0 %v1920
  %2812 = vmatprep.subr.bf16.mxu0 0
  %2813 = vmatpush1.bf16.msra.mxu0 %v1921
  %2814 = vmatprep.subr.bf16.mxu0 0
  %2815 = vmatpush1.bf16.msra.mxu0 %v1922
  %2816 = vmatprep.subr.bf16.mxu0 0
  %2817 = vmatpush1.bf16.msra.mxu0 %v1923
  %2818 = vmatprep.subr.bf16.mxu0 0
  %2819 = vmatpush1.bf16.msra.mxu0 %v1924
  %2820 = vmatprep.subr.bf16.mxu0 0
  %2821 = vmatpush1.bf16.msra.mxu0 %v1925
  %2822 = vmatprep.mubr.bf16.mxu0 %v963
  %2823 = vmatmul.mubr.bf16.gmra.mrb[0].mxu0 %v962
  %v2824 = vpop.f32.mrb[0].mxu0
  %v2825 = vadd.f32 %v2705, %v2824
  %v2826 = vpop.f32.mrb[0].mxu0
  %v2827 = vpop.f32.mrb[0].mxu0
  %v2828 = vadd.f32 %v2708, %v2827
  %v2829 = vpop.f32.mrb[0].mxu0
  %2830 = vmatprep.mubr.bf16.mxu0 %v979
  %2831 = vmatmul.mubr.bf16.gmra.mrb[0].mxu0 %v978
  %v2832 = vpop.f32.mrb[0].mxu0
  %v2833 = vadd.f32 %v2713, %v2832
  %v2834 = vpop.f32.mrb[0].mxu0
  %v2835 = vpop.f32.mrb[0].mxu0
  %v2836 = vadd.f32 %v2716, %v2835
  %v2837 = vpop.f32.mrb[0].mxu0
  %2838 = vmatprep.mubr.bf16.mxu0 %v995
  %2839 = vmatmul.mubr.bf16.gmra.mrb[0].mxu0 %v994
  %v2840 = vpop.f32.mrb[0].mxu0
  %v2841 = vadd.f32 %v2721, %v2840
  %v2842 = vpop.f32.mrb[0].mxu0
  %v2843 = vpop.f32.mrb[0].mxu0
  %v2844 = vadd.f32 %v2724, %v2843
  %v2845 = vpop.f32.mrb[0].mxu0
  %2846 = vmatprep.mubr.bf16.mxu0 %v1011
  %2847 = vmatmul.mubr.bf16.gmra.mrb[0].mxu0 %v1010
  %v2848 = vpop.f32.mrb[0].mxu0
  %v2849 = vadd.f32 %v2729, %v2848
  %v2850 = vpop.f32.mrb[0].mxu0
  %v2851 = vpop.f32.mrb[0].mxu0
  %v2852 = vadd.f32 %v2732, %v2851
  %v2853 = vpop.f32.mrb[0].mxu0
  %2854 = vmatprep.mubr.bf16.mxu0 %v1027
  %2855 = vmatmul.mubr.bf16.gmra.mrb[0].mxu0 %v1026
  %v2856 = vpop.f32.mrb[0].mxu0
  %v2857 = vadd.f32 %v2737, %v2856
  %v2858 = vpop.f32.mrb[0].mxu0
  %v2859 = vpop.f32.mrb[0].mxu0
  %v2860 = vadd.f32 %v2740, %v2859
  %v2861 = vpop.f32.mrb[0].mxu0
  %2862 = vmatprep.mubr.bf16.mxu0 %v1043
  %2863 = vmatmul.mubr.bf16.gmra.mrb[0].mxu0 %v1042
  %v2864 = vpop.f32.mrb[0].mxu0
  %v2865 = vadd.f32 %v2745, %v2864
  %v2866 = vpop.f32.mrb[0].mxu0
  %v2867 = vpop.f32.mrb[0].mxu0
  %v2868 = vadd.f32 %v2748, %v2867
  %v2869 = vpop.f32.mrb[0].mxu0
  %2870 = vmatprep.mubr.bf16.mxu0 %v1059
  %2871 = vmatmul.mubr.bf16.gmra.mrb[0].mxu0 %v1058
  %v2872 = vpop.f32.mrb[0].mxu0
  %v2873 = vadd.f32 %v2753, %v2872
  %v2874 = vpop.f32.mrb[0].mxu0
  %v2875 = vpop.f32.mrb[0].mxu0
  %v2876 = vadd.f32 %v2756, %v2875
  %v2877 = vpop.f32.mrb[0].mxu0
  %2878 = vmatprep.mubr.bf16.mxu0 %v1075
  %2879 = vmatmul.mubr.bf16.gmra.mrb[0].mxu0 %v1074
  %v2880 = vpop.f32.mrb[0].mxu0
  %v2881 = vadd.f32 %v2761, %v2880
  %v2882 = vpop.f32.mrb[0].mxu0
  %v2883 = vpop.f32.mrb[0].mxu0
  %v2884 = vadd.f32 %v2764, %v2883
  %v2885 = vpop.f32.mrb[0].mxu0
  %2886 = vmatprep.mubr.bf16.mxu0 %v1091
  %2887 = vmatmul.mubr.bf16.gmra.mrb[0].mxu0 %v1090
  %v2888 = vpop.f32.mrb[0].mxu0
  %v2889 = vadd.f32 %v2769, %v2888
  %v2890 = vpop.f32.mrb[0].mxu0
  %v2891 = vpop.f32.mrb[0].mxu0
  %v2892 = vadd.f32 %v2772, %v2891
  %v2893 = vpop.f32.mrb[0].mxu0
  %2894 = vmatprep.mubr.bf16.mxu0 %v1107
  %2895 = vmatmul.mubr.bf16.gmra.mrb[0].mxu0 %v1106
  %v2896 = vpop.f32.mrb[0].mxu0
  %v2897 = vadd.f32 %v2777, %v2896
  %v2898 = vpop.f32.mrb[0].mxu0
  %v2899 = vpop.f32.mrb[0].mxu0
  %v2900 = vadd.f32 %v2780, %v2899
  %v2901 = vpop.f32.mrb[0].mxu0
  %2902 = vmatprep.mubr.bf16.mxu0 %v1123
  %2903 = vmatmul.mubr.bf16.gmra.mrb[0].mxu0 %v1122
  %v2904 = vpop.f32.mrb[0].mxu0
  %v2905 = vadd.f32 %v2785, %v2904
  %v2906 = vpop.f32.mrb[0].mxu0
  %v2907 = vpop.f32.mrb[0].mxu0
  %v2908 = vpop.f32.mrb[0].mxu0
  %2909 = vdwg.mxu0
  %2910 = vmatprep.subr.bf16.mxu0 0
  %2911 = vmatpush1.bf16.msra.mxu0 %v1926
  %2912 = vmatprep.subr.bf16.mxu0 0
  %2913 = vmatpush1.bf16.msra.mxu0 %v1927
  %2914 = vmatprep.subr.bf16.mxu0 0
  %2915 = vmatpush1.bf16.msra.mxu0 %v1928
  %2916 = vmatprep.subr.bf16.mxu0 0
  %2917 = vmatpush1.bf16.msra.mxu0 %v1929
  %2918 = vmatprep.subr.bf16.mxu0 0
  %2919 = vmatpush1.bf16.msra.mxu0 %v1930
  %2920 = vmatprep.subr.bf16.mxu0 0
  %2921 = vmatpush1.bf16.msra.mxu0 %v1931
  %2922 = vmatprep.subr.bf16.mxu0 0
  %2923 = vmatpush1.bf16.msra.mxu0 %v1932
  %2924 = vmatprep.subr.bf16.mxu0 0
  %2925 = vmatpush1.bf16.msra.mxu0 %v1933
  %2926 = vmatprep.subr.bf16.mxu0 0
  %2927 = vmatpush1.bf16.msra.mxu0 %v1934
  %2928 = vmatprep.subr.bf16.mxu0 0
  %2929 = vmatpush1.bf16.msra.mxu0 %v1935
  %2930 = vmatprep.subr.bf16.mxu0 0
  %2931 = vmatpush1.bf16.msra.mxu0 %v1936
  %2932 = vmatprep.subr.bf16.mxu0 0
  %2933 = vmatpush1.bf16.msra.mxu0 %v1937
  %2934 = vmatprep.subr.bf16.mxu0 0
  %2935 = vmatpush1.bf16.msra.mxu0 %v1938
  %2936 = vmatprep.subr.bf16.mxu0 0
  %2937 = vmatpush1.bf16.msra.mxu0 %v1939
  %2938 = vmatprep.subr.bf16.mxu0 0
  %2939 = vmatpush1.bf16.msra.mxu0 %v1940
  %2940 = vmatprep.subr.bf16.mxu0 0
  %2941 = vmatpush1.bf16.msra.mxu0 %v1941
  %2942 = vmatprep.mubr.bf16.mxu0 %v965
  %2943 = vmatmul.mubr.bf16.gmra.mrb[0].mxu0 %v964
  %v2944 = vpop.f32.mrb[0].mxu0
  %v2945 = vadd.f32 %v2825, %v2944
  %v2946 = vpop.f32.mrb[0].mxu0
  %v2947 = vpop.f32.mrb[0].mxu0
  %v2948 = vadd.f32 %v2828, %v2947
  %v2949 = vpop.f32.mrb[0].mxu0
  %2950 = vmatprep.mubr.bf16.mxu0 %v981
  %2951 = vmatmul.mubr.bf16.gmra.mrb[0].mxu0 %v980
  %v2952 = vpop.f32.mrb[0].mxu0
  %v2953 = vadd.f32 %v2833, %v2952
  %v2954 = vpop.f32.mrb[0].mxu0
  %v2955 = vpop.f32.mrb[0].mxu0
  %v2956 = vadd.f32 %v2836, %v2955
  %v2957 = vpop.f32.mrb[0].mxu0
  %2958 = vmatprep.mubr.bf16.mxu0 %v997
  %2959 = vmatmul.mubr.bf16.gmra.mrb[0].mxu0 %v996
  %v2960 = vpop.f32.mrb[0].mxu0
  %v2961 = vadd.f32 %v2841, %v2960
  %v2962 = vpop.f32.mrb[0].mxu0
  %v2963 = vpop.f32.mrb[0].mxu0
  %v2964 = vadd.f32 %v2844, %v2963
  %v2965 = vpop.f32.mrb[0].mxu0
  %2966 = vmatprep.mubr.bf16.mxu0 %v1013
  %2967 = vmatmul.mubr.bf16.gmra.mrb[0].mxu0 %v1012
  %v2968 = vpop.f32.mrb[0].mxu0
  %v2969 = vadd.f32 %v2849, %v2968
  %v2970 = vpop.f32.mrb[0].mxu0
  %v2971 = vpop.f32.mrb[0].mxu0
  %v2972 = vadd.f32 %v2852, %v2971
  %v2973 = vpop.f32.mrb[0].mxu0
  %2974 = vmatprep.mubr.bf16.mxu0 %v1029
  %2975 = vmatmul.mubr.bf16.gmra.mrb[0].mxu0 %v1028
  %v2976 = vpop.f32.mrb[0].mxu0
  %v2977 = vadd.f32 %v2857, %v2976
  %v2978 = vpop.f32.mrb[0].mxu0
  %v2979 = vpop.f32.mrb[0].mxu0
  %v2980 = vadd.f32 %v2860, %v2979
  %v2981 = vpop.f32.mrb[0].mxu0
  %2982 = vmatprep.mubr.bf16.mxu0 %v1045
  %2983 = vmatmul.mubr.bf16.gmra.mrb[0].mxu0 %v1044
  %v2984 = vpop.f32.mrb[0].mxu0
  %v2985 = vadd.f32 %v2865, %v2984
  %v2986 = vpop.f32.mrb[0].mxu0
  %v2987 = vpop.f32.mrb[0].mxu0
  %v2988 = vadd.f32 %v2868, %v2987
  %v2989 = vpop.f32.mrb[0].mxu0
  %2990 = vmatprep.mubr.bf16.mxu0 %v1061
  %2991 = vmatmul.mubr.bf16.gmra.mrb[0].mxu0 %v1060
  %v2992 = vpop.f32.mrb[0].mxu0
  %v2993 = vadd.f32 %v2873, %v2992
  %v2994 = vpop.f32.mrb[0].mxu0
  %v2995 = vpop.f32.mrb[0].mxu0
  %v2996 = vadd.f32 %v2876, %v2995
  %v2997 = vpop.f32.mrb[0].mxu0
  %2998 = vmatprep.mubr.bf16.mxu0 %v1077
  %2999 = vmatmul.mubr.bf16.gmra.mrb[0].mxu0 %v1076
  %v3000 = vpop.f32.mrb[0].mxu0
  %v3001 = vadd.f32 %v2881, %v3000
  %v3002 = vpop.f32.mrb[0].mxu0
  %v3003 = vpop.f32.mrb[0].mxu0
  %v3004 = vadd.f32 %v2884, %v3003
  %v3005 = vpop.f32.mrb[0].mxu0
  %3006 = vmatprep.mubr.bf16.mxu0 %v1093
  %3007 = vmatmul.mubr.bf16.gmra.mrb[0].mxu0 %v1092
  %v3008 = vpop.f32.mrb[0].mxu0
  %v3009 = vadd.f32 %v2889, %v3008
  %v3010 = vpop.f32.mrb[0].mxu0
  %v3011 = vpop.f32.mrb[0].mxu0
  %v3012 = vadd.f32 %v2892, %v3011
  %v3013 = vpop.f32.mrb[0].mxu0
  %3014 = vmatprep.mubr.bf16.mxu0 %v1109
  %3015 = vmatmul.mubr.bf16.gmra.mrb[0].mxu0 %v1108
  %v3016 = vpop.f32.mrb[0].mxu0
  %v3017 = vadd.f32 %v2897, %v3016
  %v3018 = vpop.f32.mrb[0].mxu0
  %v3019 = vpop.f32.mrb[0].mxu0
  %v3020 = vadd.f32 %v2900, %v3019
  %v3021 = vpop.f32.mrb[0].mxu0
  %3022 = vmatprep.mubr.bf16.mxu0 %v1125
  %3023 = vmatmul.mubr.bf16.gmra.mrb[0].mxu0 %v1124
  %v3024 = vpop.f32.mrb[0].mxu0
  %v3025 = vadd.f32 %v2905, %v3024
  %v3026 = vpop.f32.mrb[0].mxu0
  %v3027 = vpop.f32.mrb[0].mxu0
  %v3028 = vpop.f32.mrb[0].mxu0
  %3029 = vdwg.mxu0
  %v3030 = vmax.f32 %v2945, 0.0
  %v3031 = vmax.f32 %v2948, 0.0
  %v3032 = vmax.f32 %v2953, 0.0
  %v3033 = vmax.f32 %v2956, 0.0
  %v3034 = vmax.f32 %v2961, 0.0
  %v3035 = vmax.f32 %v2964, 0.0
  %v3036 = vmax.f32 %v2969, 0.0
  %v3037 = vmax.f32 %v2972, 0.0
  %v3038 = vmax.f32 %v2977, 0.0
  %v3039 = vmax.f32 %v2980, 0.0
  %v3040 = vmax.f32 %v2985, 0.0
  %v3041 = vmax.f32 %v2988, 0.0
  %v3042 = vmax.f32 %v2993, 0.0
  %v3043 = vmax.f32 %v2996, 0.0
  %v3044 = vmax.f32 %v3001, 0.0
  %v3045 = vmax.f32 %v3004, 0.0
  %v3046 = vmax.f32 %v3009, 0.0
  %v3047 = vmax.f32 %v3012, 0.0
  %v3048 = vmax.f32 %v3017, 0.0
  %v3049 = vmax.f32 %v3020, 0.0
  %v3050 = vmax.f32 %v3025, 0.0
  %v3051 = vpack.c.bf16 %v3031, %v3030
  %v3052 = vpack.c.bf16 %v3033, %v3032
  %v3053 = vpack.c.bf16 %v3035, %v3034
  %v3054 = vpack.c.bf16 %v3037, %v3036
  %v3055 = vpack.c.bf16 %v3039, %v3038
  %v3056 = vpack.c.bf16 %v3041, %v3040
  %v3057 = vpack.c.bf16 %v3043, %v3042
  %v3058 = vpack.c.bf16 %v3045, %v3044
  %v3059 = vpack.c.bf16 %v3047, %v3046
  %v3060 = vpack.c.bf16 %v3049, %v3048
  %v3061 = vpack.c.bf16 %v3050, %v3050
  %v3073 = vunpack.c.l.b16 %v3051
  %v3074 = vunpack.c.h.b16 %v3051
  %v3075 = vunpack.c.l.b16 %v3052
  %v3076 = vunpack.c.h.b16 %v3052
  %v3077 = vunpack.c.l.b16 %v3053
  %v3078 = vunpack.c.h.b16 %v3053
  %v3079 = vunpack.c.l.b16 %v3054
  %v3080 = vunpack.c.h.b16 %v3054
  %v3081 = vunpack.c.l.b16 %v3055
  %v3082 = vunpack.c.h.b16 %v3055
  %v3083 = vunpack.c.l.b16 %v3056
  %v3084 = vunpack.c.h.b16 %v3056
  %v3085 = vunpack.c.l.b16 %v3057
  %v3086 = vunpack.c.h.b16 %v3057
  %v3087 = vunpack.c.l.b16 %v3058
  %v3088 = vunpack.c.h.b16 %v3058
  %v3089 = vunpack.c.l.b16 %v3059
  %v3090 = vunpack.c.h.b16 %v3059
  %v3091 = vunpack.c.l.b16 %v3060
  %v3092 = vunpack.c.h.b16 %v3060
  %v3093 = vunpack.c.l.b16 %v3061
  %v3094 = vpack.c.b16 %v3073, %v3073
  %v3095 = vpack.c.b16 %v3074, %v3074
  %v3096 = vpack.c.b16 %v3075, %v3075
  %v3097 = vpack.c.b16 %v3076, %v3076
  %v3098 = vpack.c.b16 %v3077, %v3077
  %v3099 = vpack.c.b16 %v3078, %v3078
  %v3100 = vpack.c.b16 %v3079, %v3079
  %v3101 = vpack.c.b16 %v3080, %v3080
  %v3102 = vpack.c.b16 %v3081, %v3081
  %v3103 = vpack.c.b16 %v3082, %v3082
  %v3104 = vpack.c.b16 %v3083, %v3083
  %v3105 = vpack.c.b16 %v3084, %v3084
  %v3106 = vpack.c.b16 %v3085, %v3085
  %v3107 = vpack.c.b16 %v3086, %v3086
  %v3108 = vpack.c.b16 %v3087, %v3087
  %v3109 = vpack.c.b16 %v3088, %v3088
  %v3110 = vpack.c.b16 %v3089, %v3089
  %v3111 = vpack.c.b16 %v3090, %v3090
  %v3112 = vpack.c.b16 %v3091, %v3091
  %v3113 = vpack.c.b16 %v3092, %v3092
  %v3114 = vpack.c.b16 %v3093, %v3093
  %3136 = vst [vmem:[%s3] sm:$0xf] %v3094
  %3137 = vst [vmem:[%s3 + $0x4] sm:$0xf] %v3095
  %3138 = vst [vmem:[%s3 + $0x8] sm:$0xf] %v3096
  %3139 = vst [vmem:[%s3 + $0xc] sm:$0xf] %v3097
  %3140 = vst [vmem:[%s3 + $0x10] sm:$0xf] %v3098
  %3141 = vst [vmem:[%s3 + $0x14] sm:$0xf] %v3099
  %3142 = vst [vmem:[%s3 + $0x18] sm:$0xf] %v3100
  %3143 = vst [vmem:[%s3 + $0x1c] sm:$0xf] %v3101
  %3144 = vst [vmem:[%s3 + $0x20] sm:$0xf] %v3102
  %3145 = vst [vmem:[%s3 + $0x24] sm:$0xf] %v3103
  %3146 = vst [vmem:[%s3 + $0x28] sm:$0xf] %v3104
  %3147 = vst [vmem:[%s3 + $0x2c] sm:$0xf] %v3105
  %3148 = vst [vmem:[%s3 + $0x30] sm:$0xf] %v3106
  %3149 = vst [vmem:[%s3 + $0x34] sm:$0xf] %v3107
  %3150 = vst [vmem:[%s3 + $0x38] sm:$0xf] %v3108
  %3151 = vst [vmem:[%s3 + $0x3c] sm:$0xf] %v3109
  %3152 = vst [vmem:[%s3 + $0x40] sm:$0xf] %v3110
  %3153 = vst [vmem:[%s3 + $0x44] sm:$0xf] %v3111
  %3154 = vst [vmem:[%s3 + $0x48] sm:$0xf] %v3112
  %3155 = vst [vmem:[%s3 + $0x4c] sm:$0xf] %v3113
  %3156 = vst [vmem:[%s3 + $0x50] sm:$0xf] %v3114
  // Predicated region
  $region14: #{dqn_forward.5} parent=0 // pred_check
    _
  $region15: #{dqn_forward.5} parent=0 // pred_check_branch
    %3158 = sbr.rel (0) target = $region17
  $region16: #{dqn_forward.5} parent=0 // pred_region
    _
  $region17: #{dqn_forward.5} parent=0 // pred_fallthru
    _
  // Predicated region
  $region18: #{dqn_forward.5} parent=0 // pred_check
    _
  $region19: #{dqn_forward.5} parent=0 // pred_check_branch
    %3160 = sbr.rel (0) target = $region21
  $region20: #{dqn_forward.5} parent=0 // pred_region
    _
  $region21: #{dqn_forward.5} parent=0 // pred_fallthru
    _

// kernel: dqn_forward.6
$region0: #{dqn_forward.6}
  #allocation0 [shape = 'u32[]', space=smem, size = 0x4, offset = 0x4, fixed_abs, tag = 'smem constant byte address 0x4 - core index']
  #allocation1 [shape = 'u32[144,128]{1,0:T(1,128)}', space=vmem, size = 0x12000, scoped, tag = 'internal scratch']
  %s0 = inlined_call_operand.vmem [shape: bf16[112,1152], index: 0, kind: input, shape index: {}]
  %s1 = inlined_call_operand.vmem [shape: bf16[1152,128], index: 1, kind: input, shape index: {}]
  %s2 = inlined_call_operand.vmem [shape: f32[1,128], index: 2, kind: input, shape index: {}]
  %s3 = inlined_call_operand.vmem [shape: bf16[112,128], index: 3, kind: output, shape index: {}]
  %s4 = sld [smem:[#allocation0]]
  $region22: #{dqn_forward.6} parent=0
    _
  %s6 = ssub.s32 1, %s4
  %s7 = scalar_select 0, %s6, %s4
  // Predicated region
  $region2: #{dqn_forward.6} parent=0 // pred_check
    _
  $region3: #{dqn_forward.6} parent=0 // pred_check_branch
    %9 = sbr.rel (0) target = $region5
  $region4: #{dqn_forward.6} parent=0 // pred_region
    _
  $region5: #{dqn_forward.6} parent=0 // pred_fallthru
    _
  // Predicated region
  $region6: #{dqn_forward.6} parent=0 // pred_check
    _
  $region7: #{dqn_forward.6} parent=0 // pred_check_branch
    %11 = sbr.rel (0) target = $region9
  $region8: #{dqn_forward.6} parent=0 // pred_region
    _
  $region9: #{dqn_forward.6} parent=0 // pred_fallthru
    _
  // Predicated region
  $region10: #{dqn_forward.6} parent=0 // pred_check
    _
  $region11: #{dqn_forward.6} parent=0 // pred_check_branch
    %13 = sbr.rel (0) target = $region13
  $region12: #{dqn_forward.6} parent=0 // pred_region
    _
  $region13: #{dqn_forward.6} parent=0 // pred_fallthru
    _
  %v15 = vld [vmem:[%s0] sm:$0xff]
  %v16 = vld [vmem:[%s0 + $0x8] sm:$0xff]
  %v17 = vld [vmem:[%s0 + $0x10] sm:$0xff]
  %v18 = vld [vmem:[%s0 + $0x18] sm:$0xff]
  %v19 = vld [vmem:[%s0 + $0x20] sm:$0xf]
  %v20 = vld [vmem:[%s0 + $0x24] sm:$0xff]
  %v21 = vld [vmem:[%s0 + $0x2c] sm:$0xff]
  %v22 = vld [vmem:[%s0 + $0x34] sm:$0xff]
  %v23 = vld [vmem:[%s0 + $0x3c] sm:$0xff]
  %v24 = vld [vmem:[%s0 + $0x44] sm:$0xf]
  %v25 = vld [vmem:[%s0 + $0x48] sm:$0xff]
  %v26 = vld [vmem:[%s0 + $0x50] sm:$0xff]
  %v27 = vld [vmem:[%s0 + $0x58] sm:$0xff]
  %v28 = vld [vmem:[%s0 + $0x60] sm:$0xff]
  %v29 = vld [vmem:[%s0 + $0x68] sm:$0xf]
  %v30 = vld [vmem:[%s0 + $0x6c] sm:$0xff]
  %v31 = vld [vmem:[%s0 + $0x74] sm:$0xff]
  %v32 = vld [vmem:[%s0 + $0x7c] sm:$0xff]
  %v33 = vld [vmem:[%s0 + $0x84] sm:$0xff]
  %v34 = vld [vmem:[%s0 + $0x8c] sm:$0xf]
  %v35 = vld [vmem:[%s0 + $0x90] sm:$0xff]
  %v36 = vld [vmem:[%s0 + $0x98] sm:$0xff]
  %v37 = vld [vmem:[%s0 + $0xa0] sm:$0xff]
  %v38 = vld [vmem:[%s0 + $0xa8] sm:$0xff]
  %v39 = vld [vmem:[%s0 + $0xb0] sm:$0xf]
  %v40 = vld [vmem:[%s0 + $0xb4] sm:$0xff]
  %v41 = vld [vmem:[%s0 + $0xbc] sm:$0xff]
  %v42 = vld [vmem:[%s0 + $0xc4] sm:$0xff]
  %v43 = vld [vmem:[%s0 + $0xcc] sm:$0xff]
  %v44 = vld [vmem:[%s0 + $0xd4] sm:$0xf]
  %v45 = vld [vmem:[%s0 + $0xd8] sm:$0xff]
  %v46 = vld [vmem:[%s0 + $0xe0] sm:$0xff]
  %v47 = vld [vmem:[%s0 + $0xe8] sm:$0xff]
  %v48 = vld [vmem:[%s0 + $0xf0] sm:$0xff]
  %v49 = vld [vmem:[%s0 + $0xf8] sm:$0xf]
  %v50 = vld [vmem:[%s0 + $0xfc] sm:$0xff]
  %v51 = vld [vmem:[%s0 + $0x104] sm:$0xff]
  %v52 = vld [vmem:[%s0 + $0x10c] sm:$0xff]
  %v53 = vld [vmem:[%s0 + $0x114] sm:$0xff]
  %v54 = vld [vmem:[%s0 + $0x11c] sm:$0xf]
  %v55 = vld [vmem:[%s0 + $0x120] sm:$0xff]
  %v56 = vld [vmem:[%s0 + $0x128] sm:$0xff]
  %v57 = vld [vmem:[%s0 + $0x130] sm:$0xff]
  %v58 = vld [vmem:[%s0 + $0x138] sm:$0xff]
  %v59 = vld [vmem:[%s0 + $0x140] sm:$0xf]
  %v60 = vld [vmem:[%s0 + $0x144] sm:$0xff]
  %v61 = vld [vmem:[%s0 + $0x14c] sm:$0xff]
  %v62 = vld [vmem:[%s0 + $0x154] sm:$0xff]
  %v63 = vld [vmem:[%s0 + $0x15c] sm:$0xff]
  %v64 = vld [vmem:[%s0 + $0x164] sm:$0xf]
  %v65 = vld [vmem:[%s0 + $0x168] sm:$0xff]
  %v66 = vld [vmem:[%s0 + $0x170] sm:$0xff]
  %v67 = vld [vmem:[%s0 + $0x178] sm:$0xff]
  %v68 = vld [vmem:[%s0 + $0x180] sm:$0xff]
  %v69 = vld [vmem:[%s0 + $0x188] sm:$0xf]
  %v70 = vld [vmem:[%s0 + $0x18c] sm:$0xff]
  %v71 = vld [vmem:[%s0 + $0x194] sm:$0xff]
  %v72 = vld [vmem:[%s0 + $0x19c] sm:$0xff]
  %v73 = vld [vmem:[%s0 + $0x1a4] sm:$0xff]
  %v74 = vld [vmem:[%s0 + $0x1ac] sm:$0xf]
  %v75 = vld [vmem:[%s0 + $0x1b0] sm:$0xff]
  %v76 = vld [vmem:[%s0 + $0x1b8] sm:$0xff]
  %v77 = vld [vmem:[%s0 + $0x1c0] sm:$0xff]
  %v78 = vld [vmem:[%s0 + $0x1c8] sm:$0xff]
  %v79 = vld [vmem:[%s0 + $0x1d0] sm:$0xf]
  %v80 = vld [vmem:[%s0 + $0x1d4] sm:$0xff]
  %v81 = vld [vmem:[%s0 + $0x1dc] sm:$0xff]
  %v82 = vld [vmem:[%s0 + $0x1e4] sm:$0xff]
  %v83 = vld [vmem:[%s0 + $0x1ec] sm:$0xff]
  %v84 = vld [vmem:[%s0 + $0x1f4] sm:$0xf]
  %v85 = vld [vmem:[%s1] sm:$0xf]
  %v86 = vld [vmem:[%s1 + $0x4] sm:$0xf]
  %v87 = vld [vmem:[%s1 + $0x8] sm:$0xf]
  %v88 = vld [vmem:[%s1 + $0xc] sm:$0xf]
  %v89 = vld [vmem:[%s1 + $0x10] sm:$0xf]
  %v90 = vld [vmem:[%s1 + $0x14] sm:$0xf]
  %v91 = vld [vmem:[%s1 + $0x18] sm:$0xf]
  %v92 = vld [vmem:[%s1 + $0x1c] sm:$0xf]
  %v93 = vld [vmem:[%s1 + $0x20] sm:$0xf]
  %v94 = vld [vmem:[%s1 + $0x24] sm:$0xf]
  %v95 = vld [vmem:[%s1 + $0x28] sm:$0xf]
  %v96 = vld [vmem:[%s1 + $0x2c] sm:$0xf]
  %v97 = vld [vmem:[%s1 + $0x30] sm:$0xf]
  %v98 = vld [vmem:[%s1 + $0x34] sm:$0xf]
  %v99 = vld [vmem:[%s1 + $0x38] sm:$0xf]
  %v100 = vld [vmem:[%s1 + $0x3c] sm:$0xf]
  %v101 = vld [vmem:[%s1 + $0x40] sm:$0xf]
  %v102 = vld [vmem:[%s1 + $0x44] sm:$0xf]
  %v103 = vld [vmem:[%s1 + $0x48] sm:$0xf]
  %v104 = vld [vmem:[%s1 + $0x4c] sm:$0xf]
  %v105 = vld [vmem:[%s1 + $0x50] sm:$0xf]
  %v106 = vld [vmem:[%s1 + $0x54] sm:$0xf]
  %v107 = vld [vmem:[%s1 + $0x58] sm:$0xf]
  %v108 = vld [vmem:[%s1 + $0x5c] sm:$0xf]
  %v109 = vld [vmem:[%s1 + $0x60] sm:$0xf]
  %v110 = vld [vmem:[%s1 + $0x64] sm:$0xf]
  %v111 = vld [vmem:[%s1 + $0x68] sm:$0xf]
  %v112 = vld [vmem:[%s1 + $0x6c] sm:$0xf]
  %v113 = vld [vmem:[%s1 + $0x70] sm:$0xf]
  %v114 = vld [vmem:[%s1 + $0x74] sm:$0xf]
  %v115 = vld [vmem:[%s1 + $0x78] sm:$0xf]
  %v116 = vld [vmem:[%s1 + $0x7c] sm:$0xf]
  %v117 = vld [vmem:[%s1 + $0x80] sm:$0xf]
  %v118 = vld [vmem:[%s1 + $0x84] sm:$0xf]
  %v119 = vld [vmem:[%s1 + $0x88] sm:$0xf]
  %v120 = vld [vmem:[%s1 + $0x8c] sm:$0xf]
  %v121 = vld [vmem:[%s1 + $0x90] sm:$0xf]
  %v122 = vld [vmem:[%s1 + $0x94] sm:$0xf]
  %v123 = vld [vmem:[%s1 + $0x98] sm:$0xf]
  %v124 = vld [vmem:[%s1 + $0x9c] sm:$0xf]
  %v125 = vld [vmem:[%s1 + $0xa0] sm:$0xf]
  %v126 = vld [vmem:[%s1 + $0xa4] sm:$0xf]
  %v127 = vld [vmem:[%s1 + $0xa8] sm:$0xf]
  %v128 = vld [vmem:[%s1 + $0xac] sm:$0xf]
  %v129 = vld [vmem:[%s1 + $0xb0] sm:$0xf]
  %v130 = vld [vmem:[%s1 + $0xb4] sm:$0xf]
  %v131 = vld [vmem:[%s1 + $0xb8] sm:$0xf]
  %v132 = vld [vmem:[%s1 + $0xbc] sm:$0xf]
  %v133 = vld [vmem:[%s1 + $0xc0] sm:$0xf]
  %v134 = vld [vmem:[%s1 + $0xc4] sm:$0xf]
  %v135 = vld [vmem:[%s1 + $0xc8] sm:$0xf]
  %v136 = vld [vmem:[%s1 + $0xcc] sm:$0xf]
  %v137 = vld [vmem:[%s1 + $0xd0] sm:$0xf]
  %v138 = vld [vmem:[%s1 + $0xd4] sm:$0xf]
  %v139 = vld [vmem:[%s1 + $0xd8] sm:$0xf]
  %v140 = vld [vmem:[%s1 + $0xdc] sm:$0xf]
  %v141 = vld [vmem:[%s1 + $0xe0] sm:$0xf]
  %v142 = vld [vmem:[%s1 + $0xe4] sm:$0xf]
  %v143 = vld [vmem:[%s1 + $0xe8] sm:$0xf]
  %v144 = vld [vmem:[%s1 + $0xec] sm:$0xf]
  %v145 = vld [vmem:[%s1 + $0xf0] sm:$0xf]
  %v146 = vld [vmem:[%s1 + $0xf4] sm:$0xf]
  %v147 = vld [vmem:[%s1 + $0xf8] sm:$0xf]
  %v148 = vld [vmem:[%s1 + $0xfc] sm:$0xf]
  %v149 = vld [vmem:[%s1 + $0x100] sm:$0xf]
  %v150 = vld [vmem:[%s1 + $0x104] sm:$0xf]
  %v151 = vld [vmem:[%s1 + $0x108] sm:$0xf]
  %v152 = vld [vmem:[%s1 + $0x10c] sm:$0xf]
  %v153 = vld [vmem:[%s1 + $0x110] sm:$0xf]
  %v154 = vld [vmem:[%s1 + $0x114] sm:$0xf]
  %v155 = vld [vmem:[%s1 + $0x118] sm:$0xf]
  %v156 = vld [vmem:[%s1 + $0x11c] sm:$0xf]
  %v157 = vld [vmem:[%s1 + $0x120] sm:$0xf]
  %v158 = vld [vmem:[%s1 + $0x124] sm:$0xf]
  %v159 = vld [vmem:[%s1 + $0x128] sm:$0xf]
  %v160 = vld [vmem:[%s1 + $0x12c] sm:$0xf]
  %v161 = vld [vmem:[%s1 + $0x130] sm:$0xf]
  %v162 = vld [vmem:[%s1 + $0x134] sm:$0xf]
  %v163 = vld [vmem:[%s1 + $0x138] sm:$0xf]
  %v164 = vld [vmem:[%s1 + $0x13c] sm:$0xf]
  %v165 = vld [vmem:[%s1 + $0x140] sm:$0xf]
  %v166 = vld [vmem:[%s1 + $0x144] sm:$0xf]
  %v167 = vld [vmem:[%s1 + $0x148] sm:$0xf]
  %v168 = vld [vmem:[%s1 + $0x14c] sm:$0xf]
  %v169 = vld [vmem:[%s1 + $0x150] sm:$0xf]
  %v170 = vld [vmem:[%s1 + $0x154] sm:$0xf]
  %v171 = vld [vmem:[%s1 + $0x158] sm:$0xf]
  %v172 = vld [vmem:[%s1 + $0x15c] sm:$0xf]
  %v173 = vld [vmem:[%s1 + $0x160] sm:$0xf]
  %v174 = vld [vmem:[%s1 + $0x164] sm:$0xf]
  %v175 = vld [vmem:[%s1 + $0x168] sm:$0xf]
  %v176 = vld [vmem:[%s1 + $0x16c] sm:$0xf]
  %v177 = vld [vmem:[%s1 + $0x170] sm:$0xf]
  %v178 = vld [vmem:[%s1 + $0x174] sm:$0xf]
  %v179 = vld [vmem:[%s1 + $0x178] sm:$0xf]
  %v180 = vld [vmem:[%s1 + $0x17c] sm:$0xf]
  %v181 = vld [vmem:[%s1 + $0x180] sm:$0xf]
  %v182 = vld [vmem:[%s1 + $0x184] sm:$0xf]
  %v183 = vld [vmem:[%s1 + $0x188] sm:$0xf]
  %v184 = vld [vmem:[%s1 + $0x18c] sm:$0xf]
  %v185 = vld [vmem:[%s1 + $0x190] sm:$0xf]
  %v186 = vld [vmem:[%s1 + $0x194] sm:$0xf]
  %v187 = vld [vmem:[%s1 + $0x198] sm:$0xf]
  %v188 = vld [vmem:[%s1 + $0x19c] sm:$0xf]
  %v189 = vld [vmem:[%s1 + $0x1a0] sm:$0xf]
  %v190 = vld [vmem:[%s1 + $0x1a4] sm:$0xf]
  %v191 = vld [vmem:[%s1 + $0x1a8] sm:$0xf]
  %v192 = vld [vmem:[%s1 + $0x1ac] sm:$0xf]
  %v193 = vld [vmem:[%s1 + $0x1b0] sm:$0xf]
  %v194 = vld [vmem:[%s1 + $0x1b4] sm:$0xf]
  %v195 = vld [vmem:[%s1 + $0x1b8] sm:$0xf]
  %v196 = vld [vmem:[%s1 + $0x1bc] sm:$0xf]
  %v197 = vld [vmem:[%s1 + $0x1c0] sm:$0xf]
  %v198 = vld [vmem:[%s1 + $0x1c4] sm:$0xf]
  %v199 = vld [vmem:[%s1 + $0x1c8] sm:$0xf]
  %v200 = vld [vmem:[%s1 + $0x1cc] sm:$0xf]
  %v201 = vld [vmem:[%s1 + $0x1d0] sm:$0xf]
  %v202 = vld [vmem:[%s1 + $0x1d4] sm:$0xf]
  %v203 = vld [vmem:[%s1 + $0x1d8] sm:$0xf]
  %v204 = vld [vmem:[%s1 + $0x1dc] sm:$0xf]
  %v205 = vld [vmem:[%s1 + $0x1e0] sm:$0xf]
  %v206 = vld [vmem:[%s1 + $0x1e4] sm:$0xf]
  %v207 = vld [vmem:[%s1 + $0x1e8] sm:$0xf]
  %v208 = vld [vmem:[%s1 + $0x1ec] sm:$0xf]
  %v209 = vld [vmem:[%s1 + $0x1f0] sm:$0xf]
  %v210 = vld [vmem:[%s1 + $0x1f4] sm:$0xf]
  %v211 = vld [vmem:[%s1 + $0x1f8] sm:$0xf]
  %v212 = vld [vmem:[%s1 + $0x1fc] sm:$0xf]
  %v213 = vld [vmem:[%s1 + $0x200] sm:$0xf]
  %v214 = vld [vmem:[%s1 + $0x204] sm:$0xf]
  %v215 = vld [vmem:[%s1 + $0x208] sm:$0xf]
  %v216 = vld [vmem:[%s1 + $0x20c] sm:$0xf]
  %v217 = vld [vmem:[%s1 + $0x210] sm:$0xf]
  %v218 = vld [vmem:[%s1 + $0x214] sm:$0xf]
  %v219 = vld [vmem:[%s1 + $0x218] sm:$0xf]
  %v220 = vld [vmem:[%s1 + $0x21c] sm:$0xf]
  %v221 = vld [vmem:[%s1 + $0x220] sm:$0xf]
  %v222 = vld [vmem:[%s1 + $0x224] sm:$0xf]
  %v223 = vld [vmem:[%s1 + $0x228] sm:$0xf]
  %v224 = vld [vmem:[%s1 + $0x22c] sm:$0xf]
  %v225 = vld [vmem:[%s1 + $0x230] sm:$0xf]
  %v226 = vld [vmem:[%s1 + $0x234] sm:$0xf]
  %v227 = vld [vmem:[%s1 + $0x238] sm:$0xf]
  %v228 = vld [vmem:[%s1 + $0x23c] sm:$0xf]
  %v229 = vld [vmem:[%s2] sm:$0x1]
  %v231 = vlaneseq
  %v232 = vshrl.u32 %v231, 7
  %v233 = vsub.s32 0, %v232
  %v234 = vrot.slane %v229, %v233
  %v306 = vunpack.c.l.b16 %v15
  %v307 = vunpack.c.h.b16 %v15
  %v308 = vunpack.c.l.b16 %v16
  %v309 = vunpack.c.h.b16 %v16
  %v310 = vunpack.c.l.b16 %v17
  %v311 = vunpack.c.h.b16 %v17
  %v312 = vunpack.c.l.b16 %v18
  %v313 = vunpack.c.h.b16 %v18
  %v314 = vunpack.c.l.b16 %v19
  %v315 = vunpack.c.l.b16 %v20
  %v316 = vunpack.c.h.b16 %v20
  %v317 = vunpack.c.l.b16 %v21
  %v318 = vunpack.c.h.b16 %v21
  %v319 = vunpack.c.l.b16 %v22
  %v320 = vunpack.c.h.b16 %v22
  %v321 = vunpack.c.l.b16 %v23
  %v322 = vunpack.c.h.b16 %v23
  %v323 = vunpack.c.l.b16 %v24
  %v324 = vunpack.c.l.b16 %v25
  %v325 = vunpack.c.h.b16 %v25
  %v326 = vunpack.c.l.b16 %v26
  %v327 = vunpack.c.h.b16 %v26
  %v328 = vunpack.c.l.b16 %v27
  %v329 = vunpack.c.h.b16 %v27
  %v330 = vunpack.c.l.b16 %v28
  %v331 = vunpack.c.h.b16 %v28
  %v332 = vunpack.c.l.b16 %v29
  %v333 = vunpack.c.l.b16 %v30
  %v334 = vunpack.c.h.b16 %v30
  %v335 = vunpack.c.l.b16 %v31
  %v336 = vunpack.c.h.b16 %v31
  %v337 = vunpack.c.l.b16 %v32
  %v338 = vunpack.c.h.b16 %v32
  %v339 = vunpack.c.l.b16 %v33
  %v340 = vunpack.c.h.b16 %v33
  %v341 = vunpack.c.l.b16 %v34
  %v342 = vunpack.c.l.b16 %v35
  %v343 = vunpack.c.h.b16 %v35
  %v344 = vunpack.c.l.b16 %v36
  %v345 = vunpack.c.h.b16 %v36
  %v346 = vunpack.c.l.b16 %v37
  %v347 = vunpack.c.h.b16 %v37
  %v348 = vunpack.c.l.b16 %v38
  %v349 = vunpack.c.h.b16 %v38
  %v350 = vunpack.c.l.b16 %v39
  %v351 = vunpack.c.l.b16 %v40
  %v352 = vunpack.c.h.b16 %v40
  %v353 = vunpack.c.l.b16 %v41
  %v354 = vunpack.c.h.b16 %v41
  %v355 = vunpack.c.l.b16 %v42
  %v356 = vunpack.c.h.b16 %v42
  %v357 = vunpack.c.l.b16 %v43
  %v358 = vunpack.c.h.b16 %v43
  %v359 = vunpack.c.l.b16 %v44
  %v360 = vunpack.c.l.b16 %v45
  %v361 = vunpack.c.h.b16 %v45
  %v362 = vunpack.c.l.b16 %v46
  %v363 = vunpack.c.h.b16 %v46
  %v364 = vunpack.c.l.b16 %v47
  %v365 = vunpack.c.h.b16 %v47
  %v366 = vunpack.c.l.b16 %v48
  %v367 = vunpack.c.h.b16 %v48
  %v368 = vunpack.c.l.b16 %v49
  %v369 = vunpack.c.l.b16 %v50
  %v370 = vunpack.c.h.b16 %v50
  %v371 = vunpack.c.l.b16 %v51
  %v372 = vunpack.c.h.b16 %v51
  %v373 = vunpack.c.l.b16 %v52
  %v374 = vunpack.c.h.b16 %v52
  %v375 = vunpack.c.l.b16 %v53
  %v376 = vunpack.c.h.b16 %v53
  %v377 = vunpack.c.l.b16 %v54
  %v378 = vunpack.c.l.b16 %v55
  %v379 = vunpack.c.h.b16 %v55
  %v380 = vunpack.c.l.b16 %v56
  %v381 = vunpack.c.h.b16 %v56
  %v382 = vunpack.c.l.b16 %v57
  %v383 = vunpack.c.h.b16 %v57
  %v384 = vunpack.c.l.b16 %v58
  %v385 = vunpack.c.h.b16 %v58
  %v386 = vunpack.c.l.b16 %v59
  %v387 = vunpack.c.l.b16 %v60
  %v388 = vunpack.c.h.b16 %v60
  %v389 = vunpack.c.l.b16 %v61
  %v390 = vunpack.c.h.b16 %v61
  %v391 = vunpack.c.l.b16 %v62
  %v392 = vunpack.c.h.b16 %v62
  %v393 = vunpack.c.l.b16 %v63
  %v394 = vunpack.c.h.b16 %v63
  %v395 = vunpack.c.l.b16 %v64
  %v396 = vunpack.c.l.b16 %v65
  %v397 = vunpack.c.h.b16 %v65
  %v398 = vunpack.c.l.b16 %v66
  %v399 = vunpack.c.h.b16 %v66
  %v400 = vunpack.c.l.b16 %v67
  %v401 = vunpack.c.h.b16 %v67
  %v402 = vunpack.c.l.b16 %v68
  %v403 = vunpack.c.h.b16 %v68
  %v404 = vunpack.c.l.b16 %v69
  %v405 = vunpack.c.l.b16 %v70
  %v406 = vunpack.c.h.b16 %v70
  %v407 = vunpack.c.l.b16 %v71
  %v408 = vunpack.c.h.b16 %v71
  %v409 = vunpack.c.l.b16 %v72
  %v410 = vunpack.c.h.b16 %v72
  %v411 = vunpack.c.l.b16 %v73
  %v412 = vunpack.c.h.b16 %v73
  %v413 = vunpack.c.l.b16 %v74
  %v414 = vunpack.c.l.b16 %v75
  %v415 = vunpack.c.h.b16 %v75
  %v416 = vunpack.c.l.b16 %v76
  %v417 = vunpack.c.h.b16 %v76
  %v418 = vunpack.c.l.b16 %v77
  %v419 = vunpack.c.h.b16 %v77
  %v420 = vunpack.c.l.b16 %v78
  %v421 = vunpack.c.h.b16 %v78
  %v422 = vunpack.c.l.b16 %v79
  %v423 = vunpack.c.l.b16 %v80
  %v424 = vunpack.c.h.b16 %v80
  %v425 = vunpack.c.l.b16 %v81
  %v426 = vunpack.c.h.b16 %v81
  %v427 = vunpack.c.l.b16 %v82
  %v428 = vunpack.c.h.b16 %v82
  %v429 = vunpack.c.l.b16 %v83
  %v430 = vunpack.c.h.b16 %v83
  %v431 = vunpack.c.l.b16 %v84
  %v432 = vpack.c.b16 %v315, %v306
  %v433 = vpack.c.b16 %v316, %v307
  %v434 = vpack.c.b16 %v317, %v308
  %v435 = vpack.c.b16 %v318, %v309
  %v436 = vpack.c.b16 %v319, %v310
  %v437 = vpack.c.b16 %v320, %v311
  %v438 = vpack.c.b16 %v321, %v312
  %v439 = vpack.c.b16 %v322, %v313
  %v440 = vpack.c.b16 %v323, %v314
  %v441 = vpack.c.b16 %v333, %v324
  %v442 = vpack.c.b16 %v334, %v325
  %v443 = vpack.c.b16 %v335, %v326
  %v444 = vpack.c.b16 %v336, %v327
  %v445 = vpack.c.b16 %v337, %v328
  %v446 = vpack.c.b16 %v338, %v329
  %v447 = vpack.c.b16 %v339, %v330
  %v448 = vpack.c.b16 %v340, %v331
  %v449 = vpack.c.b16 %v341, %v332
  %v450 = vpack.c.b16 %v351, %v342
  %v451 = vpack.c.b16 %v352, %v343
  %v452 = vpack.c.b16 %v353, %v344
  %v453 = vpack.c.b16 %v354, %v345
  %v454 = vpack.c.b16 %v355, %v346
  %v455 = vpack.c.b16 %v356, %v347
  %v456 = vpack.c.b16 %v357, %v348
  %v457 = vpack.c.b16 %v358, %v349
  %v458 = vpack.c.b16 %v359, %v350
  %v459 = vpack.c.b16 %v369, %v360
  %v460 = vpack.c.b16 %v370, %v361
  %v461 = vpack.c.b16 %v371, %v362
  %v462 = vpack.c.b16 %v372, %v363
  %v463 = vpack.c.b16 %v373, %v364
  %v464 = vpack.c.b16 %v374, %v365
  %v465 = vpack.c.b16 %v375, %v366
  %v466 = vpack.c.b16 %v376, %v367
  %v467 = vpack.c.b16 %v377, %v368
  %v468 = vpack.c.b16 %v387, %v378
  %v469 = vpack.c.b16 %v388, %v379
  %v470 = vpack.c.b16 %v389, %v380
  %v471 = vpack.c.b16 %v390, %v381
  %v472 = vpack.c.b16 %v391, %v382
  %v473 = vpack.c.b16 %v392, %v383
  %v474 = vpack.c.b16 %v393, %v384
  %v475 = vpack.c.b16 %v394, %v385
  %v476 = vpack.c.b16 %v395, %v386
  %v477 = vpack.c.b16 %v405, %v396
  %v478 = vpack.c.b16 %v406, %v397
  %v479 = vpack.c.b16 %v407, %v398
  %v480 = vpack.c.b16 %v408, %v399
  %v481 = vpack.c.b16 %v409, %v400
  %v482 = vpack.c.b16 %v410, %v401
  %v483 = vpack.c.b16 %v411, %v402
  %v484 = vpack.c.b16 %v412, %v403
  %v485 = vpack.c.b16 %v413, %v404
  %v486 = vpack.c.b16 %v423, %v414
  %v487 = vpack.c.b16 %v424, %v415
  %v488 = vpack.c.b16 %v425, %v416
  %v489 = vpack.c.b16 %v426, %v417
  %v490 = vpack.c.b16 %v427, %v418
  %v491 = vpack.c.b16 %v428, %v419
  %v492 = vpack.c.b16 %v429, %v420
  %v493 = vpack.c.b16 %v430, %v421
  %v494 = vpack.c.b16 %v431, %v422
  %v702 = vunpack.c.l.b16 %v85
  %v703 = vunpack.c.l.b16 %v86
  %v704 = vunpack.c.l.b16 %v87
  %v705 = vunpack.c.l.b16 %v88
  %v706 = vunpack.c.l.b16 %v89
  %v707 = vunpack.c.l.b16 %v90
  %v708 = vunpack.c.l.b16 %v91
  %v709 = vunpack.c.l.b16 %v92
  %v710 = vunpack.c.l.b16 %v93
  %v711 = vunpack.c.l.b16 %v94
  %v712 = vunpack.c.l.b16 %v95
  %v713 = vunpack.c.l.b16 %v96
  %v714 = vunpack.c.l.b16 %v97
  %v715 = vunpack.c.l.b16 %v98
  %v716 = vunpack.c.l.b16 %v99
  %v717 = vunpack.c.l.b16 %v100
  %v718 = vunpack.c.l.b16 %v101
  %v719 = vunpack.c.l.b16 %v102
  %v720 = vunpack.c.l.b16 %v103
  %v721 = vunpack.c.l.b16 %v104
  %v722 = vunpack.c.l.b16 %v105
  %v723 = vunpack.c.l.b16 %v106
  %v724 = vunpack.c.l.b16 %v107
  %v725 = vunpack.c.l.b16 %v108
  %v726 = vunpack.c.l.b16 %v109
  %v727 = vunpack.c.l.b16 %v110
  %v728 = vunpack.c.l.b16 %v111
  %v729 = vunpack.c.l.b16 %v112
  %v730 = vunpack.c.l.b16 %v113
  %v731 = vunpack.c.l.b16 %v114
  %v732 = vunpack.c.l.b16 %v115
  %v733 = vunpack.c.l.b16 %v116
  %v734 = vunpack.c.l.b16 %v117
  %v735 = vunpack.c.l.b16 %v118
  %v736 = vunpack.c.l.b16 %v119
  %v737 = vunpack.c.l.b16 %v120
  %v738 = vunpack.c.l.b16 %v121
  %v739 = vunpack.c.l.b16 %v122
  %v740 = vunpack.c.l.b16 %v123
  %v741 = vunpack.c.l.b16 %v124
  %v742 = vunpack.c.l.b16 %v125
  %v743 = vunpack.c.l.b16 %v126
  %v744 = vunpack.c.l.b16 %v127
  %v745 = vunpack.c.l.b16 %v128
  %v746 = vunpack.c.l.b16 %v129
  %v747 = vunpack.c.l.b16 %v130
  %v748 = vunpack.c.l.b16 %v131
  %v749 = vunpack.c.l.b16 %v132
  %v750 = vunpack.c.l.b16 %v133
  %v751 = vunpack.c.l.b16 %v134
  %v752 = vunpack.c.l.b16 %v135
  %v753 = vunpack.c.l.b16 %v136
  %v754 = vunpack.c.l.b16 %v137
  %v755 = vunpack.c.l.b16 %v138
  %v756 = vunpack.c.l.b16 %v139
  %v757 = vunpack.c.l.b16 %v140
  %v758 = vunpack.c.l.b16 %v141
  %v759 = vunpack.c.l.b16 %v142
  %v760 = vunpack.c.l.b16 %v143
  %v761 = vunpack.c.l.b16 %v144
  %v762 = vunpack.c.l.b16 %v145
  %v763 = vunpack.c.l.b16 %v146
  %v764 = vunpack.c.l.b16 %v147
  %v765 = vunpack.c.l.b16 %v148
  %v766 = vunpack.c.l.b16 %v149
  %v767 = vunpack.c.l.b16 %v150
  %v768 = vunpack.c.l.b16 %v151
  %v769 = vunpack.c.l.b16 %v152
  %v770 = vunpack.c.l.b16 %v153
  %v771 = vunpack.c.l.b16 %v154
  %v772 = vunpack.c.l.b16 %v155
  %v773 = vunpack.c.l.b16 %v156
  %v774 = vunpack.c.l.b16 %v157
  %v775 = vunpack.c.l.b16 %v158
  %v776 = vunpack.c.l.b16 %v159
  %v777 = vunpack.c.l.b16 %v160
  %v778 = vunpack.c.l.b16 %v161
  %v779 = vunpack.c.l.b16 %v162
  %v780 = vunpack.c.l.b16 %v163
  %v781 = vunpack.c.l.b16 %v164
  %v782 = vunpack.c.l.b16 %v165
  %v783 = vunpack.c.l.b16 %v166
  %v784 = vunpack.c.l.b16 %v167
  %v785 = vunpack.c.l.b16 %v168
  %v786 = vunpack.c.l.b16 %v169
  %v787 = vunpack.c.l.b16 %v170
  %v788 = vunpack.c.l.b16 %v171
  %v789 = vunpack.c.l.b16 %v172
  %v790 = vunpack.c.l.b16 %v173
  %v791 = vunpack.c.l.b16 %v174
  %v792 = vunpack.c.l.b16 %v175
  %v793 = vunpack.c.l.b16 %v176
  %v794 = vunpack.c.l.b16 %v177
  %v795 = vunpack.c.l.b16 %v178
  %v796 = vunpack.c.l.b16 %v179
  %v797 = vunpack.c.l.b16 %v180
  %v798 = vunpack.c.l.b16 %v181
  %v799 = vunpack.c.l.b16 %v182
  %v800 = vunpack.c.l.b16 %v183
  %v801 = vunpack.c.l.b16 %v184
  %v802 = vunpack.c.l.b16 %v185
  %v803 = vunpack.c.l.b16 %v186
  %v804 = vunpack.c.l.b16 %v187
  %v805 = vunpack.c.l.b16 %v188
  %v806 = vunpack.c.l.b16 %v189
  %v807 = vunpack.c.l.b16 %v190
  %v808 = vunpack.c.l.b16 %v191
  %v809 = vunpack.c.l.b16 %v192
  %v810 = vunpack.c.l.b16 %v193
  %v811 = vunpack.c.l.b16 %v194
  %v812 = vunpack.c.l.b16 %v195
  %v813 = vunpack.c.l.b16 %v196
  %v814 = vunpack.c.l.b16 %v197
  %v815 = vunpack.c.l.b16 %v198
  %v816 = vunpack.c.l.b16 %v199
  %v817 = vunpack.c.l.b16 %v200
  %v818 = vunpack.c.l.b16 %v201
  %v819 = vunpack.c.l.b16 %v202
  %v820 = vunpack.c.l.b16 %v203
  %v821 = vunpack.c.l.b16 %v204
  %v822 = vunpack.c.l.b16 %v205
  %v823 = vunpack.c.l.b16 %v206
  %v824 = vunpack.c.l.b16 %v207
  %v825 = vunpack.c.l.b16 %v208
  %v826 = vunpack.c.l.b16 %v209
  %v827 = vunpack.c.l.b16 %v210
  %v828 = vunpack.c.l.b16 %v211
  %v829 = vunpack.c.l.b16 %v212
  %v830 = vunpack.c.l.b16 %v213
  %v831 = vunpack.c.l.b16 %v214
  %v832 = vunpack.c.l.b16 %v215
  %v833 = vunpack.c.l.b16 %v216
  %v834 = vunpack.c.l.b16 %v217
  %v835 = vunpack.c.l.b16 %v218
  %v836 = vunpack.c.l.b16 %v219
  %v837 = vunpack.c.l.b16 %v220
  %v838 = vunpack.c.l.b16 %v221
  %v839 = vunpack.c.l.b16 %v222
  %v840 = vunpack.c.l.b16 %v223
  %v841 = vunpack.c.l.b16 %v224
  %v842 = vunpack.c.l.b16 %v225
  %v843 = vunpack.c.l.b16 %v226
  %v844 = vunpack.c.l.b16 %v227
  %v845 = vunpack.c.l.b16 %v228
  %v846 = vpack.c.b16 %v703, %v702
  %v847 = vpack.c.b16 %v705, %v704
  %v848 = vpack.c.b16 %v707, %v706
  %v849 = vpack.c.b16 %v709, %v708
  %v850 = vpack.c.b16 %v711, %v710
  %v851 = vpack.c.b16 %v713, %v712
  %v852 = vpack.c.b16 %v715, %v714
  %v853 = vpack.c.b16 %v717, %v716
  %v854 = vpack.c.b16 %v719, %v718
  %v855 = vpack.c.b16 %v721, %v720
  %v856 = vpack.c.b16 %v723, %v722
  %v857 = vpack.c.b16 %v725, %v724
  %v858 = vpack.c.b16 %v727, %v726
  %v859 = vpack.c.b16 %v729, %v728
  %v860 = vpack.c.b16 %v731, %v730
  %v861 = vpack.c.b16 %v733, %v732
  %v862 = vpack.c.b16 %v735, %v734
  %v863 = vpack.c.b16 %v737, %v736
  %v864 = vpack.c.b16 %v739, %v738
  %v865 = vpack.c.b16 %v741, %v740
  %v866 = vpack.c.b16 %v743, %v742
  %v867 = vpack.c.b16 %v745, %v744
  %v868 = vpack.c.b16 %v747, %v746
  %v869 = vpack.c.b16 %v749, %v748
  %v870 = vpack.c.b16 %v751, %v750
  %v871 = vpack.c.b16 %v753, %v752
  %v872 = vpack.c.b16 %v755, %v754
  %v873 = vpack.c.b16 %v757, %v756
  %v874 = vpack.c.b16 %v759, %v758
  %v875 = vpack.c.b16 %v761, %v760
  %v876 = vpack.c.b16 %v763, %v762
  %v877 = vpack.c.b16 %v765, %v764
  %v878 = vpack.c.b16 %v767, %v766
  %v879 = vpack.c.b16 %v769, %v768
  %v880 = vpack.c.b16 %v771, %v770
  %v881 = vpack.c.b16 %v773, %v772
  %v882 = vpack.c.b16 %v775, %v774
  %v883 = vpack.c.b16 %v777, %v776
  %v884 = vpack.c.b16 %v779, %v778
  %v885 = vpack.c.b16 %v781, %v780
  %v886 = vpack.c.b16 %v783, %v782
  %v887 = vpack.c.b16 %v785, %v784
  %v888 = vpack.c.b16 %v787, %v786
  %v889 = vpack.c.b16 %v789, %v788
  %v890 = vpack.c.b16 %v791, %v790
  %v891 = vpack.c.b16 %v793, %v792
  %v892 = vpack.c.b16 %v795, %v794
  %v893 = vpack.c.b16 %v797, %v796
  %v894 = vpack.c.b16 %v799, %v798
  %v895 = vpack.c.b16 %v801, %v800
  %v896 = vpack.c.b16 %v803, %v802
  %v897 = vpack.c.b16 %v805, %v804
  %v898 = vpack.c.b16 %v807, %v806
  %v899 = vpack.c.b16 %v809, %v808
  %v900 = vpack.c.b16 %v811, %v810
  %v901 = vpack.c.b16 %v813, %v812
  %v902 = vpack.c.b16 %v815, %v814
  %v903 = vpack.c.b16 %v817, %v816
  %v904 = vpack.c.b16 %v819, %v818
  %v905 = vpack.c.b16 %v821, %v820
  %v906 = vpack.c.b16 %v823, %v822
  %v907 = vpack.c.b16 %v825, %v824
  %v908 = vpack.c.b16 %v827, %v826
  %v909 = vpack.c.b16 %v829, %v828
  %v910 = vpack.c.b16 %v831, %v830
  %v911 = vpack.c.b16 %v833, %v832
  %v912 = vpack.c.b16 %v835, %v834
  %v913 = vpack.c.b16 %v837, %v836
  %v914 = vpack.c.b16 %v839, %v838
  %v915 = vpack.c.b16 %v841, %v840
  %v916 = vpack.c.b16 %v843, %v842
  %v917 = vpack.c.b16 %v845, %v844
  %990 = vmatprep.subr.bf16.mxu0 0
  %991 = vmatpush1.bf16.msra.mxu0 %v846
  %992 = vmatprep.subr.bf16.mxu0 0
  %993 = vmatpush1.bf16.msra.mxu0 %v847
  %994 = vmatprep.subr.bf16.mxu0 0
  %995 = vmatpush1.bf16.msra.mxu0 %v848
  %996 = vmatprep.subr.bf16.mxu0 0
  %997 = vmatpush1.bf16.msra.mxu0 %v849
  %998 = vmatprep.subr.bf16.mxu0 0
  %999 = vmatpush1.bf16.msra.mxu0 %v850
  %1000 = vmatprep.subr.bf16.mxu0 0
  %1001 = vmatpush1.bf16.msra.mxu0 %v851
  %1002 = vmatprep.subr.bf16.mxu0 0
  %1003 = vmatpush1.bf16.msra.mxu0 %v852
  %1004 = vmatprep.subr.bf16.mxu0 0
  %1005 = vmatpush1.bf16.msra.mxu0 %v853
  %1006 = vmatprep.subr.bf16.mxu0 0
  %1007 = vmatpush1.bf16.msra.mxu0 %v854
  %1008 = vmatprep.subr.bf16.mxu0 0
  %1009 = vmatpush1.bf16.msra.mxu0 %v855
  %1010 = vmatprep.subr.bf16.mxu0 0
  %1011 = vmatpush1.bf16.msra.mxu0 %v856
  %1012 = vmatprep.subr.bf16.mxu0 0
  %1013 = vmatpush1.bf16.msra.mxu0 %v857
  %1014 = vmatprep.subr.bf16.mxu0 0
  %1015 = vmatpush1.bf16.msra.mxu0 %v858
  %1016 = vmatprep.subr.bf16.mxu0 0
  %1017 = vmatpush1.bf16.msra.mxu0 %v859
  %1018 = vmatprep.subr.bf16.mxu0 0
  %1019 = vmatpush1.bf16.msra.mxu0 %v860
  %1020 = vmatprep.subr.bf16.mxu0 0
  %1021 = vmatpush1.bf16.msra.mxu0 %v861
  %1022 = vmatprep.mubr.bf16.mxu0 %v433
  %1023 = vmatmul.mubr.bf16.gmra.mrb[0].mxu0 %v432
  %v1024 = vpop.f32.mrb[0].mxu0
  %v1025 = vadd.f32 %v234, %v1024
  %v1026 = vpop.f32.mrb[0].mxu0
  %v1027 = vpop.f32.mrb[0].mxu0
  %v1028 = vadd.f32 %v234, %v1027
  %v1029 = vpop.f32.mrb[0].mxu0
  %1030 = vmatprep.mubr.bf16.mxu0 %v442
  %1031 = vmatmul.mubr.bf16.gmra.mrb[0].mxu0 %v441
  %v1032 = vpop.f32.mrb[0].mxu0
  %v1033 = vadd.f32 %v234, %v1032
  %v1034 = vpop.f32.mrb[0].mxu0
  %v1035 = vpop.f32.mrb[0].mxu0
  %v1036 = vadd.f32 %v234, %v1035
  %v1037 = vpop.f32.mrb[0].mxu0
  %1038 = vmatprep.mubr.bf16.mxu0 %v451
  %1039 = vmatmul.mubr.bf16.gmra.mrb[0].mxu0 %v450
  %v1040 = vpop.f32.mrb[0].mxu0
  %v1041 = vadd.f32 %v234, %v1040
  %v1042 = vpop.f32.mrb[0].mxu0
  %v1043 = vpop.f32.mrb[0].mxu0
  %v1044 = vadd.f32 %v234, %v1043
  %v1045 = vpop.f32.mrb[0].mxu0
  %1046 = vmatprep.mubr.bf16.mxu0 %v460
  %1047 = vmatmul.mubr.bf16.gmra.mrb[0].mxu0 %v459
  %v1048 = vpop.f32.mrb[0].mxu0
  %v1049 = vadd.f32 %v234, %v1048
  %v1050 = vpop.f32.mrb[0].mxu0
  %v1051 = vpop.f32.mrb[0].mxu0
  %v1052 = vadd.f32 %v234, %v1051
  %v1053 = vpop.f32.mrb[0].mxu0
  %1054 = vmatprep.mubr.bf16.mxu0 %v469
  %1055 = vmatmul.mubr.bf16.gmra.mrb[0].mxu0 %v468
  %v1056 = vpop.f32.mrb[0].mxu0
  %v1057 = vadd.f32 %v234, %v1056
  %v1058 = vpop.f32.mrb[0].mxu0
  %v1059 = vpop.f32.mrb[0].mxu0
  %v1060 = vadd.f32 %v234, %v1059
  %v1061 = vpop.f32.mrb[0].mxu0
  %1062 = vmatprep.mubr.bf16.mxu0 %v478
  %1063 = vmatmul.mubr.bf16.gmra.mrb[0].mxu0 %v477
  %v1064 = vpop.f32.mrb[0].mxu0
  %v1065 = vadd.f32 %v234, %v1064
  %v1066 = vpop.f32.mrb[0].mxu0
  %v1067 = vpop.f32.mrb[0].mxu0
  %v1068 = vadd.f32 %v234, %v1067
  %v1069 = vpop.f32.mrb[0].mxu0
  %1070 = vmatprep.mubr.bf16.mxu0 %v487
  %1071 = vmatmul.mubr.bf16.gmra.mrb[0].mxu0 %v486
  %v1072 = vpop.f32.mrb[0].mxu0
  %v1073 = vadd.f32 %v234, %v1072
  %v1074 = vpop.f32.mrb[0].mxu0
  %v1075 = vpop.f32.mrb[0].mxu0
  %v1076 = vadd.f32 %v234, %v1075
  %v1077 = vpop.f32.mrb[0].mxu0
  %1078 = vdwg.mxu0
  %1079 = vmatprep.subr.bf16.mxu0 0
  %1080 = vmatpush1.bf16.msra.mxu0 %v862
  %1081 = vmatprep.subr.bf16.mxu0 0
  %1082 = vmatpush1.bf16.msra.mxu0 %v863
  %1083 = vmatprep.subr.bf16.mxu0 0
  %1084 = vmatpush1.bf16.msra.mxu0 %v864
  %1085 = vmatprep.subr.bf16.mxu0 0
  %1086 = vmatpush1.bf16.msra.mxu0 %v865
  %1087 = vmatprep.subr.bf16.mxu0 0
  %1088 = vmatpush1.bf16.msra.mxu0 %v866
  %1089 = vmatprep.subr.bf16.mxu0 0
  %1090 = vmatpush1.bf16.msra.mxu0 %v867
  %1091 = vmatprep.subr.bf16.mxu0 0
  %1092 = vmatpush1.bf16.msra.mxu0 %v868
  %1093 = vmatprep.subr.bf16.mxu0 0
  %1094 = vmatpush1.bf16.msra.mxu0 %v869
  %1095 = vmatprep.subr.bf16.mxu0 0
  %1096 = vmatpush1.bf16.msra.mxu0 %v870
  %1097 = vmatprep.subr.bf16.mxu0 0
  %1098 = vmatpush1.bf16.msra.mxu0 %v871
  %1099 = vmatprep.subr.bf16.mxu0 0
  %1100 = vmatpush1.bf16.msra.mxu0 %v872
  %1101 = vmatprep.subr.bf16.mxu0 0
  %1102 = vmatpush1.bf16.msra.mxu0 %v873
  %1103 = vmatprep.subr.bf16.mxu0 0
  %1104 = vmatpush1.bf16.msra.mxu0 %v874
  %1105 = vmatprep.subr.bf16.mxu0 0
  %1106 = vmatpush1.bf16.msra.mxu0 %v875
  %1107 = vmatprep.subr.bf16.mxu0 0
  %1108 = vmatpush1.bf16.msra.mxu0 %v876
  %1109 = vmatprep.subr.bf16.mxu0 0
  %1110 = vmatpush1.bf16.msra.mxu0 %v877
  %1111 = vmatprep.mubr.bf16.mxu0 %v435
  %1112 = vmatmul.mubr.bf16.gmra.mrb[0].mxu0 %v434
  %v1113 = vpop.f32.mrb[0].mxu0
  %v1114 = vadd.f32 %v1025, %v1113
  %v1115 = vpop.f32.mrb[0].mxu0
  %v1116 = vpop.f32.mrb[0].mxu0
  %v1117 = vadd.f32 %v1028, %v1116
  %v1118 = vpop.f32.mrb[0].mxu0
  %1119 = vmatprep.mubr.bf16.mxu0 %v444
  %1120 = vmatmul.mubr.bf16.gmra.mrb[0].mxu0 %v443
  %v1121 = vpop.f32.mrb[0].mxu0
  %v1122 = vadd.f32 %v1033, %v1121
  %v1123 = vpop.f32.mrb[0].mxu0
  %v1124 = vpop.f32.mrb[0].mxu0
  %v1125 = vadd.f32 %v1036, %v1124
  %v1126 = vpop.f32.mrb[0].mxu0
  %1127 = vmatprep.mubr.bf16.mxu0 %v453
  %1128 = vmatmul.mubr.bf16.gmra.mrb[0].mxu0 %v452
  %v1129 = vpop.f32.mrb[0].mxu0
  %v1130 = vadd.f32 %v1041, %v1129
  %v1131 = vpop.f32.mrb[0].mxu0
  %v1132 = vpop.f32.mrb[0].mxu0
  %v1133 = vadd.f32 %v1044, %v1132
  %v1134 = vpop.f32.mrb[0].mxu0
  %1135 = vmatprep.mubr.bf16.mxu0 %v462
  %1136 = vmatmul.mubr.bf16.gmra.mrb[0].mxu0 %v461
  %v1137 = vpop.f32.mrb[0].mxu0
  %v1138 = vadd.f32 %v1049, %v1137
  %v1139 = vpop.f32.mrb[0].mxu0
  %v1140 = vpop.f32.mrb[0].mxu0
  %v1141 = vadd.f32 %v1052, %v1140
  %v1142 = vpop.f32.mrb[0].mxu0
  %1143 = vmatprep.mubr.bf16.mxu0 %v471
  %1144 = vmatmul.mubr.bf16.gmra.mrb[0].mxu0 %v470
  %v1145 = vpop.f32.mrb[0].mxu0
  %v1146 = vadd.f32 %v1057, %v1145
  %v1147 = vpop.f32.mrb[0].mxu0
  %v1148 = vpop.f32.mrb[0].mxu0
  %v1149 = vadd.f32 %v1060, %v1148
  %v1150 = vpop.f32.mrb[0].mxu0
  %1151 = vmatprep.mubr.bf16.mxu0 %v480
  %1152 = vmatmul.mubr.bf16.gmra.mrb[0].mxu0 %v479
  %v1153 = vpop.f32.mrb[0].mxu0
  %v1154 = vadd.f32 %v1065, %v1153
  %v1155 = vpop.f32.mrb[0].mxu0
  %v1156 = vpop.f32.mrb[0].mxu0
  %v1157 = vadd.f32 %v1068, %v1156
  %v1158 = vpop.f32.mrb[0].mxu0
  %1159 = vmatprep.mubr.bf16.mxu0 %v489
  %1160 = vmatmul.mubr.bf16.gmra.mrb[0].mxu0 %v488
  %v1161 = vpop.f32.mrb[0].mxu0
  %v1162 = vadd.f32 %v1073, %v1161
  %v1163 = vpop.f32.mrb[0].mxu0
  %v1164 = vpop.f32.mrb[0].mxu0
  %v1165 = vadd.f32 %v1076, %v1164
  %v1166 = vpop.f32.mrb[0].mxu0
  %1167 = vdwg.mxu0
  %1168 = vmatprep.subr.bf16.mxu0 0
  %1169 = vmatpush1.bf16.msra.mxu0 %v878
  %1170 = vmatprep.subr.bf16.mxu0 0
  %1171 = vmatpush1.bf16.msra.mxu0 %v879
  %1172 = vmatprep.subr.bf16.mxu0 0
  %1173 = vmatpush1.bf16.msra.mxu0 %v880
  %1174 = vmatprep.subr.bf16.mxu0 0
  %1175 = vmatpush1.bf16.msra.mxu0 %v881
  %1176 = vmatprep.subr.bf16.mxu0 0
  %1177 = vmatpush1.bf16.msra.mxu0 %v882
  %1178 = vmatprep.subr.bf16.mxu0 0
  %1179 = vmatpush1.bf16.msra.mxu0 %v883
  %1180 = vmatprep.subr.bf16.mxu0 0
  %1181 = vmatpush1.bf16.msra.mxu0 %v884
  %1182 = vmatprep.subr.bf16.mxu0 0
  %1183 = vmatpush1.bf16.msra.mxu0 %v885
  %1184 = vmatprep.subr.bf16.mxu0 0
  %1185 = vmatpush1.bf16.msra.mxu0 %v886
  %1186 = vmatprep.subr.bf16.mxu0 0
  %1187 = vmatpush1.bf16.msra.mxu0 %v887
  %1188 = vmatprep.subr.bf16.mxu0 0
  %1189 = vmatpush1.bf16.msra.mxu0 %v888
  %1190 = vmatprep.subr.bf16.mxu0 0
  %1191 = vmatpush1.bf16.msra.mxu0 %v889
  %1192 = vmatprep.subr.bf16.mxu0 0
  %1193 = vmatpush1.bf16.msra.mxu0 %v890
  %1194 = vmatprep.subr.bf16.mxu0 0
  %1195 = vmatpush1.bf16.msra.mxu0 %v891
  %1196 = vmatprep.subr.bf16.mxu0 0
  %1197 = vmatpush1.bf16.msra.mxu0 %v892
  %1198 = vmatprep.subr.bf16.mxu0 0
  %1199 = vmatpush1.bf16.msra.mxu0 %v893
  %1200 = vmatprep.mubr.bf16.mxu0 %v437
  %1201 = vmatmul.mubr.bf16.gmra.mrb[0].mxu0 %v436
  %v1202 = vpop.f32.mrb[0].mxu0
  %v1203 = vadd.f32 %v1114, %v1202
  %v1204 = vpop.f32.mrb[0].mxu0
  %v1205 = vpop.f32.mrb[0].mxu0
  %v1206 = vadd.f32 %v1117, %v1205
  %v1207 = vpop.f32.mrb[0].mxu0
  %1208 = vmatprep.mubr.bf16.mxu0 %v446
  %1209 = vmatmul.mubr.bf16.gmra.mrb[0].mxu0 %v445
  %v1210 = vpop.f32.mrb[0].mxu0
  %v1211 = vadd.f32 %v1122, %v1210
  %v1212 = vpop.f32.mrb[0].mxu0
  %v1213 = vpop.f32.mrb[0].mxu0
  %v1214 = vadd.f32 %v1125, %v1213
  %v1215 = vpop.f32.mrb[0].mxu0
  %1216 = vmatprep.mubr.bf16.mxu0 %v455
  %1217 = vmatmul.mubr.bf16.gmra.mrb[0].mxu0 %v454
  %v1218 = vpop.f32.mrb[0].mxu0
  %v1219 = vadd.f32 %v1130, %v1218
  %v1220 = vpop.f32.mrb[0].mxu0
  %v1221 = vpop.f32.mrb[0].mxu0
  %v1222 = vadd.f32 %v1133, %v1221
  %v1223 = vpop.f32.mrb[0].mxu0
  %1224 = vmatprep.mubr.bf16.mxu0 %v464
  %1225 = vmatmul.mubr.bf16.gmra.mrb[0].mxu0 %v463
  %v1226 = vpop.f32.mrb[0].mxu0
  %v1227 = vadd.f32 %v1138, %v1226
  %v1228 = vpop.f32.mrb[0].mxu0
  %v1229 = vpop.f32.mrb[0].mxu0
  %v1230 = vadd.f32 %v1141, %v1229
  %v1231 = vpop.f32.mrb[0].mxu0
  %1232 = vmatprep.mubr.bf16.mxu0 %v473
  %1233 = vmatmul.mubr.bf16.gmra.mrb[0].mxu0 %v472
  %v1234 = vpop.f32.mrb[0].mxu0
  %v1235 = vadd.f32 %v1146, %v1234
  %v1236 = vpop.f32.mrb[0].mxu0
  %v1237 = vpop.f32.mrb[0].mxu0
  %v1238 = vadd.f32 %v1149, %v1237
  %v1239 = vpop.f32.mrb[0].mxu0
  %1240 = vmatprep.mubr.bf16.mxu0 %v482
  %1241 = vmatmul.mubr.bf16.gmra.mrb[0].mxu0 %v481
  %v1242 = vpop.f32.mrb[0].mxu0
  %v1243 = vadd.f32 %v1154, %v1242
  %v1244 = vpop.f32.mrb[0].mxu0
  %v1245 = vpop.f32.mrb[0].mxu0
  %v1246 = vadd.f32 %v1157, %v1245
  %v1247 = vpop.f32.mrb[0].mxu0
  %1248 = vmatprep.mubr.bf16.mxu0 %v491
  %1249 = vmatmul.mubr.bf16.gmra.mrb[0].mxu0 %v490
  %v1250 = vpop.f32.mrb[0].mxu0
  %v1251 = vadd.f32 %v1162, %v1250
  %v1252 = vpop.f32.mrb[0].mxu0
  %v1253 = vpop.f32.mrb[0].mxu0
  %v1254 = vadd.f32 %v1165, %v1253
  %v1255 = vpop.f32.mrb[0].mxu0
  %1256 = vdwg.mxu0
  %1257 = vmatprep.subr.bf16.mxu0 0
  %1258 = vmatpush1.bf16.msra.mxu0 %v894
  %1259 = vmatprep.subr.bf16.mxu0 0
  %1260 = vmatpush1.bf16.msra.mxu0 %v895
  %1261 = vmatprep.subr.bf16.mxu0 0
  %1262 = vmatpush1.bf16.msra.mxu0 %v896
  %1263 = vmatprep.subr.bf16.mxu0 0
  %1264 = vmatpush1.bf16.msra.mxu0 %v897
  %1265 = vmatprep.subr.bf16.mxu0 0
  %1266 = vmatpush1.bf16.msra.mxu0 %v898
  %1267 = vmatprep.subr.bf16.mxu0 0
  %1268 = vmatpush1.bf16.msra.mxu0 %v899
  %1269 = vmatprep.subr.bf16.mxu0 0
  %1270 = vmatpush1.bf16.msra.mxu0 %v900
  %1271 = vmatprep.subr.bf16.mxu0 0
  %1272 = vmatpush1.bf16.msra.mxu0 %v901
  %1273 = vmatprep.subr.bf16.mxu0 0
  %1274 = vmatpush1.bf16.msra.mxu0 %v902
  %1275 = vmatprep.subr.bf16.mxu0 0
  %1276 = vmatpush1.bf16.msra.mxu0 %v903
  %1277 = vmatprep.subr.bf16.mxu0 0
  %1278 = vmatpush1.bf16.msra.mxu0 %v904
  %1279 = vmatprep.subr.bf16.mxu0 0
  %1280 = vmatpush1.bf16.msra.mxu0 %v905
  %1281 = vmatprep.subr.bf16.mxu0 0
  %1282 = vmatpush1.bf16.msra.mxu0 %v906
  %1283 = vmatprep.subr.bf16.mxu0 0
  %1284 = vmatpush1.bf16.msra.mxu0 %v907
  %1285 = vmatprep.subr.bf16.mxu0 0
  %1286 = vmatpush1.bf16.msra.mxu0 %v908
  %1287 = vmatprep.subr.bf16.mxu0 0
  %1288 = vmatpush1.bf16.msra.mxu0 %v909
  %1289 = vmatprep.mubr.bf16.mxu0 %v439
  %1290 = vmatmul.mubr.bf16.gmra.mrb[0].mxu0 %v438
  %v1291 = vpop.f32.mrb[0].mxu0
  %v1292 = vadd.f32 %v1203, %v1291
  %v1293 = vpop.f32.mrb[0].mxu0
  %v1294 = vpop.f32.mrb[0].mxu0
  %v1295 = vadd.f32 %v1206, %v1294
  %v1296 = vpop.f32.mrb[0].mxu0
  %1297 = vmatprep.mubr.bf16.mxu0 %v448
  %1298 = vmatmul.mubr.bf16.gmra.mrb[0].mxu0 %v447
  %v1299 = vpop.f32.mrb[0].mxu0
  %v1300 = vadd.f32 %v1211, %v1299
  %v1301 = vpop.f32.mrb[0].mxu0
  %v1302 = vpop.f32.mrb[0].mxu0
  %v1303 = vadd.f32 %v1214, %v1302
  %v1304 = vpop.f32.mrb[0].mxu0
  %1305 = vmatprep.mubr.bf16.mxu0 %v457
  %1306 = vmatmul.mubr.bf16.gmra.mrb[0].mxu0 %v456
  %v1307 = vpop.f32.mrb[0].mxu0
  %v1308 = vadd.f32 %v1219, %v1307
  %v1309 = vpop.f32.mrb[0].mxu0
  %v1310 = vpop.f32.mrb[0].mxu0
  %v1311 = vadd.f32 %v1222, %v1310
  %v1312 = vpop.f32.mrb[0].mxu0
  %1313 = vmatprep.mubr.bf16.mxu0 %v466
  %1314 = vmatmul.mubr.bf16.gmra.mrb[0].mxu0 %v465
  %v1315 = vpop.f32.mrb[0].mxu0
  %v1316 = vadd.f32 %v1227, %v1315
  %v1317 = vpop.f32.mrb[0].mxu0
  %v1318 = vpop.f32.mrb[0].mxu0
  %v1319 = vadd.f32 %v1230, %v1318
  %v1320 = vpop.f32.mrb[0].mxu0
  %1321 = vmatprep.mubr.bf16.mxu0 %v475
  %1322 = vmatmul.mubr.bf16.gmra.mrb[0].mxu0 %v474
  %v1323 = vpop.f32.mrb[0].mxu0
  %v1324 = vadd.f32 %v1235, %v1323
  %v1325 = vpop.f32.mrb[0].mxu0
  %v1326 = vpop.f32.mrb[0].mxu0
  %v1327 = vadd.f32 %v1238, %v1326
  %v1328 = vpop.f32.mrb[0].mxu0
  %1329 = vmatprep.mubr.bf16.mxu0 %v484
  %1330 = vmatmul.mubr.bf16.gmra.mrb[0].mxu0 %v483
  %v1331 = vpop.f32.mrb[0].mxu0
  %v1332 = vadd.f32 %v1243, %v1331
  %v1333 = vpop.f32.mrb[0].mxu0
  %v1334 = vpop.f32.mrb[0].mxu0
  %v1335 = vadd.f32 %v1246, %v1334
  %v1336 = vpop.f32.mrb[0].mxu0
  %1337 = vmatprep.mubr.bf16.mxu0 %v493
  %1338 = vmatmul.mubr.bf16.gmra.mrb[0].mxu0 %v492
  %v1339 = vpop.f32.mrb[0].mxu0
  %v1340 = vadd.f32 %v1251, %v1339
  %v1341 = vpop.f32.mrb[0].mxu0
  %v1342 = vpop.f32.mrb[0].mxu0
  %v1343 = vadd.f32 %v1254, %v1342
  %v1344 = vpop.f32.mrb[0].mxu0
  %1345 = vdwg.mxu0
  %1346 = vmatprep.subr.bf16.mxu0 0
  %1347 = vmatpush1.bf16.msra.mxu0 %v910
  %1348 = vmatprep.subr.bf16.mxu0 0
  %1349 = vmatpush1.bf16.msra.mxu0 %v911
  %1350 = vmatprep.subr.bf16.mxu0 0
  %1351 = vmatpush1.bf16.msra.mxu0 %v912
  %1352 = vmatprep.subr.bf16.mxu0 0
  %1353 = vmatpush1.bf16.msra.mxu0 %v913
  %1354 = vmatprep.subr.bf16.mxu0 0
  %1355 = vmatpush1.bf16.msra.mxu0 %v914
  %1356 = vmatprep.subr.bf16.mxu0 0
  %1357 = vmatpush1.bf16.msra.mxu0 %v915
  %1358 = vmatprep.subr.bf16.mxu0 0
  %1359 = vmatpush1.bf16.msra.mxu0 %v916
  %1360 = vmatprep.subr.bf16.mxu0 0
  %1361 = vmatpush1.bf16.msra.mxu0 %v917
  %1362 = vmatprep.subr.bf16.mxu0 0
  %1363 = vmatpush1.bf16.msra.mxu0 0
  %1364 = vmatprep.subr.bf16.mxu0 0
  %1365 = vmatpush1.bf16.msra.mxu0 0
  %1366 = vmatprep.subr.bf16.mxu0 0
  %1367 = vmatpush1.bf16.msra.mxu0 0
  %1368 = vmatprep.subr.bf16.mxu0 0
  %1369 = vmatpush1.bf16.msra.mxu0 0
  %1370 = vmatprep.subr.bf16.mxu0 0
  %1371 = vmatpush1.bf16.msra.mxu0 0
  %1372 = vmatprep.subr.bf16.mxu0 0
  %1373 = vmatpush1.bf16.msra.mxu0 0
  %1374 = vmatprep.subr.bf16.mxu0 0
  %1375 = vmatpush1.bf16.msra.mxu0 0
  %1376 = vmatprep.subr.bf16.mxu0 0
  %1377 = vmatpush1.bf16.msra.mxu0 0
  %1378 = vmatprep.mubr.bf16.mxu0 0
  %1379 = vmatmul.mubr.bf16.gmra.mrb[0].mxu0 %v440
  %v1380 = vpop.f32.mrb[0].mxu0
  %v1381 = vadd.f32 %v1292, %v1380
  %v1382 = vpop.f32.mrb[0].mxu0
  %v1383 = vpop.f32.mrb[0].mxu0
  %v1384 = vadd.f32 %v1295, %v1383
  %v1385 = vpop.f32.mrb[0].mxu0
  %1386 = vmatprep.mubr.bf16.mxu0 0
  %1387 = vmatmul.mubr.bf16.gmra.mrb[0].mxu0 %v449
  %v1388 = vpop.f32.mrb[0].mxu0
  %v1389 = vadd.f32 %v1300, %v1388
  %v1390 = vpop.f32.mrb[0].mxu0
  %v1391 = vpop.f32.mrb[0].mxu0
  %v1392 = vadd.f32 %v1303, %v1391
  %v1393 = vpop.f32.mrb[0].mxu0
  %1394 = vmatprep.mubr.bf16.mxu0 0
  %1395 = vmatmul.mubr.bf16.gmra.mrb[0].mxu0 %v458
  %v1396 = vpop.f32.mrb[0].mxu0
  %v1397 = vadd.f32 %v1308, %v1396
  %v1398 = vpop.f32.mrb[0].mxu0
  %v1399 = vpop.f32.mrb[0].mxu0
  %v1400 = vadd.f32 %v1311, %v1399
  %v1401 = vpop.f32.mrb[0].mxu0
  %1402 = vmatprep.mubr.bf16.mxu0 0
  %1403 = vmatmul.mubr.bf16.gmra.mrb[0].mxu0 %v467
  %v1404 = vpop.f32.mrb[0].mxu0
  %v1405 = vadd.f32 %v1316, %v1404
  %v1406 = vpop.f32.mrb[0].mxu0
  %v1407 = vpop.f32.mrb[0].mxu0
  %v1408 = vadd.f32 %v1319, %v1407
  %v1409 = vpop.f32.mrb[0].mxu0
  %1410 = vmatprep.mubr.bf16.mxu0 0
  %1411 = vmatmul.mubr.bf16.gmra.mrb[0].mxu0 %v476
  %v1412 = vpop.f32.mrb[0].mxu0
  %v1413 = vadd.f32 %v1324, %v1412
  %v1414 = vpop.f32.mrb[0].mxu0
  %v1415 = vpop.f32.mrb[0].mxu0
  %v1416 = vadd.f32 %v1327, %v1415
  %v1417 = vpop.f32.mrb[0].mxu0
  %1418 = vmatprep.mubr.bf16.mxu0 0
  %1419 = vmatmul.mubr.bf16.gmra.mrb[0].mxu0 %v485
  %v1420 = vpop.f32.mrb[0].mxu0
  %v1421 = vadd.f32 %v1332, %v1420
  %v1422 = vpop.f32.mrb[0].mxu0
  %v1423 = vpop.f32.mrb[0].mxu0
  %v1424 = vadd.f32 %v1335, %v1423
  %v1425 = vpop.f32.mrb[0].mxu0
  %1426 = vmatprep.mubr.bf16.mxu0 0
  %1427 = vmatmul.mubr.bf16.gmra.mrb[0].mxu0 %v494
  %v1428 = vpop.f32.mrb[0].mxu0
  %v1429 = vadd.f32 %v1340, %v1428
  %v1430 = vpop.f32.mrb[0].mxu0
  %v1431 = vpop.f32.mrb[0].mxu0
  %v1432 = vadd.f32 %v1343, %v1431
  %v1433 = vpop.f32.mrb[0].mxu0
  %1434 = vdwg.mxu0
  %v1435 = vmax.f32 %v1381, 0.0
  %v1436 = vmax.f32 %v1384, 0.0
  %v1437 = vmax.f32 %v1389, 0.0
  %v1438 = vmax.f32 %v1392, 0.0
  %v1439 = vmax.f32 %v1397, 0.0
  %v1440 = vmax.f32 %v1400, 0.0
  %v1441 = vmax.f32 %v1405, 0.0
  %v1442 = vmax.f32 %v1408, 0.0
  %v1443 = vmax.f32 %v1413, 0.0
  %v1444 = vmax.f32 %v1416, 0.0
  %v1445 = vmax.f32 %v1421, 0.0
  %v1446 = vmax.f32 %v1424, 0.0
  %v1447 = vmax.f32 %v1429, 0.0
  %v1448 = vmax.f32 %v1432, 0.0
  %v1449 = vpack.c.bf16 %v1436, %v1435
  %v1450 = vpack.c.bf16 %v1438, %v1437
  %v1451 = vpack.c.bf16 %v1440, %v1439
  %v1452 = vpack.c.bf16 %v1442, %v1441
  %v1453 = vpack.c.bf16 %v1444, %v1443
  %v1454 = vpack.c.bf16 %v1446, %v1445
  %v1455 = vpack.c.bf16 %v1448, %v1447
  %v1463 = vunpack.c.l.b16 %v1449
  %v1464 = vunpack.c.h.b16 %v1449
  %v1465 = vunpack.c.l.b16 %v1450
  %v1466 = vunpack.c.h.b16 %v1450
  %v1467 = vunpack.c.l.b16 %v1451
  %v1468 = vunpack.c.h.b16 %v1451
  %v1469 = vunpack.c.l.b16 %v1452
  %v1470 = vunpack.c.h.b16 %v1452
  %v1471 = vunpack.c.l.b16 %v1453
  %v1472 = vunpack.c.h.b16 %v1453
  %v1473 = vunpack.c.l.b16 %v1454
  %v1474 = vunpack.c.h.b16 %v1454
  %v1475 = vunpack.c.l.b16 %v1455
  %v1476 = vunpack.c.h.b16 %v1455
  %v1477 = vpack.c.b16 %v1463, %v1463
  %v1478 = vpack.c.b16 %v1464, %v1464
  %v1479 = vpack.c.b16 %v1465, %v1465
  %v1480 = vpack.c.b16 %v1466, %v1466
  %v1481 = vpack.c.b16 %v1467, %v1467
  %v1482 = vpack.c.b16 %v1468, %v1468
  %v1483 = vpack.c.b16 %v1469, %v1469
  %v1484 = vpack.c.b16 %v1470, %v1470
  %v1485 = vpack.c.b16 %v1471, %v1471
  %v1486 = vpack.c.b16 %v1472, %v1472
  %v1487 = vpack.c.b16 %v1473, %v1473
  %v1488 = vpack.c.b16 %v1474, %v1474
  %v1489 = vpack.c.b16 %v1475, %v1475
  %v1490 = vpack.c.b16 %v1476, %v1476
  %1505 = vst [vmem:[%s3] sm:$0xf] %v1477
  %1506 = vst [vmem:[%s3 + $0x4] sm:$0xf] %v1478
  %1507 = vst [vmem:[%s3 + $0x8] sm:$0xf] %v1479
  %1508 = vst [vmem:[%s3 + $0xc] sm:$0xf] %v1480
  %1509 = vst [vmem:[%s3 + $0x10] sm:$0xf] %v1481
  %1510 = vst [vmem:[%s3 + $0x14] sm:$0xf] %v1482
  %1511 = vst [vmem:[%s3 + $0x18] sm:$0xf] %v1483
  %1512 = vst [vmem:[%s3 + $0x1c] sm:$0xf] %v1484
  %1513 = vst [vmem:[%s3 + $0x20] sm:$0xf] %v1485
  %1514 = vst [vmem:[%s3 + $0x24] sm:$0xf] %v1486
  %1515 = vst [vmem:[%s3 + $0x28] sm:$0xf] %v1487
  %1516 = vst [vmem:[%s3 + $0x2c] sm:$0xf] %v1488
  %1517 = vst [vmem:[%s3 + $0x30] sm:$0xf] %v1489
  %1518 = vst [vmem:[%s3 + $0x34] sm:$0xf] %v1490
  // Predicated region
  $region14: #{dqn_forward.6} parent=0 // pred_check
    _
  $region15: #{dqn_forward.6} parent=0 // pred_check_branch
    %1520 = sbr.rel (0) target = $region17
  $region16: #{dqn_forward.6} parent=0 // pred_region
    _
  $region17: #{dqn_forward.6} parent=0 // pred_fallthru
    _
  // Predicated region
  $region18: #{dqn_forward.6} parent=0 // pred_check
    _
  $region19: #{dqn_forward.6} parent=0 // pred_check_branch
    %1522 = sbr.rel (0) target = $region21
  $region20: #{dqn_forward.6} parent=0 // pred_region
    _
  $region21: #{dqn_forward.6} parent=0 // pred_fallthru
    _

// kernel: dqn_forward.7
$region0: #{dqn_forward.7}
  #allocation0 [shape = 'u32[]', space=smem, size = 0x4, offset = 0x4, fixed_abs, tag = 'smem constant byte address 0x4 - core index']
  #allocation1 [shape = 'u32[144,128]{1,0:T(1,128)}', space=vmem, size = 0x12000, scoped, tag = 'internal scratch']
  #allocation2 [shape = 'f32[8,512]{1,0:T(8,128)}', space=vmem, size = 0x4000, scoped, tag = 'scratch operand']
  %s0 = inlined_call_operand.vmem [shape: bf16[8,7168], index: 0, kind: input, shape index: {}]
  %s1 = inlined_call_operand.vmem [shape: bf16[7168,512], index: 1, kind: input, shape index: {}]
  %s2 = inlined_call_operand.vmem [shape: f32[1,512], index: 2, kind: input, shape index: {}]
  %s3 = inlined_call_operand.vmem [shape: bf16[512,128], index: 3, kind: input, shape index: {}]
  %s4 = inlined_call_operand.vmem [shape: f32[1,128], index: 4, kind: input, shape index: {}]
  %s5 = inlined_call_operand.vmem [shape: f32[8,128], index: 5, kind: output, shape index: {}]
  %s6 = sld [smem:[#allocation0]]
  $region61: #{dqn_forward.7} parent=0
    _
  %s8 = ssub.s32 1, %s6
  %s9 = scalar_select 0, %s8, %s6
  loop: start=0, step=1, limit=4
  $region2: #{dqn_forward.7} parent=0 // loop_pre_header
    _
  $region3: #{dqn_forward.7} parent=0 // loop_header
    %s11 = sphi 0, %s15
    %p12 = scmp.ge.s32.totalorder %s11, 4
    %s21 = sphi 0, %s23
    %s24 = sphi 0, %s21
    %s25 = sphi 0, %s24
    %s41 = sphi 0, %s25
    %s47 = sphi 0, %s49
    %s50 = sphi 0, %s47
    %s51 = sphi 0, %s50
    %s67 = sphi 0, %s51
    %s71 = sphi 0, %s71
    %s73 = sphi 0, %s71
    %s74 = sphi 0, %s73
    %s88 = sphi 0, %s74
    %s92 = sphi 0, %s92
    %s94 = sphi 0, %s92
    %s95 = sphi 0, %s94
    %s109 = sphi 0, %s95
    %s113 = sphi 0, %s113
    %s115 = sphi 0, %s113
    %s116 = sphi 0, %s115
    %s130 = sphi 0, %s116
    %s134 = sphi 0, %s134
    %s136 = sphi 0, %s134
    %s137 = sphi 0, %s136
    %s151 = sphi 0, %s137
  $region4: #{dqn_forward.7} parent=0 // loop_header_branch
    %14 = sbr.rel (%p12) target = $region8
  $region5: #{dqn_forward.7} parent=0 // loop_body
    %s16 = ssub.s32 %s11, 1
    %s17 = ssub.s32 %s11, 2
    %s18 = sadd.s32 %s11, 1
    %s19 = ssub.s32 %s11, %s18
    %p20 = scmp.eq.s32.totalorder %s19, 0
    %s22 = sadd.s32 %s21, 1
    %s23 = scalar_select %p20, %s21, %s22
    %p26 = pneg %p20
    %p27 = scmp.eq.s32.totalorder %s11, 1
    %p28 = por %p26, %p27
    %p29 = scmp.ne.s32.totalorder %s21, %s24
    %p30 = scmp.eq.s32.totalorder %s11, 0
    %p31 = por %p29, %p30
    %p32 = scmp.ne.s32.totalorder %s21, %s24
    %p33 = scmp.eq.s32.totalorder %s16, 1
    %p34 = por %p32, %p33
    %p35 = scmp.ne.s32.totalorder %s24, %s25
    %p36 = scmp.eq.s32.totalorder %s16, 0
    %p37 = por %p35, %p36
    %p38 = scmp.ne.s32.totalorder %s24, %s25
    %p39 = scmp.eq.s32.totalorder %s17, 1
    %p40 = por %p38, %p39
    %p42 = scmp.ne.s32.totalorder %s25, %s41
    %p43 = scmp.eq.s32.totalorder %s17, 0
    %p44 = por %p42, %p43
    %s45 = ssub.s32 %s11, %s18
    %p46 = scmp.eq.s32.totalorder %s45, 0
    %s48 = sadd.s32 %s47, 1
    %s49 = scalar_select %p46, %s47, %s48
    %p52 = pneg %p46
    %p53 = scmp.eq.s32.totalorder %s11, 1
    %p54 = por %p52, %p53
    %p55 = scmp.ne.s32.totalorder %s47, %s50
    %p56 = scmp.eq.s32.totalorder %s11, 0
    %p57 = por %p55, %p56
    %p58 = scmp.ne.s32.totalorder %s47, %s50
    %p59 = scmp.eq.s32.totalorder %s16, 1
    %p60 = por %p58, %p59
    %p61 = scmp.ne.s32.totalorder %s50, %s51
    %p62 = scmp.eq.s32.totalorder %s16, 0
    %p63 = por %p61, %p62
    %p64 = scmp.ne.s32.totalorder %s50, %s51
    %p65 = scmp.eq.s32.totalorder %s17, 1
    %p66 = por %p64, %p65
    %p68 = scmp.ne.s32.totalorder %s51, %s67
    %p69 = scmp.eq.s32.totalorder %s17, 0
    %p70 = por %p68, %p69
    %s72 = sadd.s32 %s71, 1
    %p75 = scmp.eq.s32.totalorder %s11, 1
    %p76 = scmp.ne.s32.totalorder %s71, %s73
    %p77 = scmp.eq.s32.totalorder %s11, 0
    %p78 = por %p76, %p77
    %p79 = scmp.ne.s32.totalorder %s71, %s73
    %p80 = scmp.eq.s32.totalorder %s16, 1
    %p81 = por %p79, %p80
    %p82 = scmp.ne.s32.totalorder %s73, %s74
    %p83 = scmp.eq.s32.totalorder %s16, 0
    %p84 = por %p82, %p83
    %p85 = scmp.ne.s32.totalorder %s73, %s74
    %p86 = scmp.eq.s32.totalorder %s17, 1
    %p87 = por %p85, %p86
    %p89 = scmp.ne.s32.totalorder %s74, %s88
    %p90 = scmp.eq.s32.totalorder %s17, 0
    %p91 = por %p89, %p90
    %s93 = sadd.s32 %s92, 1
    %p96 = scmp.eq.s32.totalorder %s11, 1
    %p97 = scmp.ne.s32.totalorder %s92, %s94
    %p98 = scmp.eq.s32.totalorder %s11, 0
    %p99 = por %p97, %p98
    %p100 = scmp.ne.s32.totalorder %s92, %s94
    %p101 = scmp.eq.s32.totalorder %s16, 1
    %p102 = por %p100, %p101
    %p103 = scmp.ne.s32.totalorder %s94, %s95
    %p104 = scmp.eq.s32.totalorder %s16, 0
    %p105 = por %p103, %p104
    %p106 = scmp.ne.s32.totalorder %s94, %s95
    %p107 = scmp.eq.s32.totalorder %s17, 1
    %p108 = por %p106, %p107
    %p110 = scmp.ne.s32.totalorder %s95, %s109
    %p111 = scmp.eq.s32.totalorder %s17, 0
    %p112 = por %p110, %p111
    %s114 = sadd.s32 %s113, 1
    %p117 = scmp.eq.s32.totalorder %s11, 1
    %p118 = scmp.ne.s32.totalorder %s113, %s115
    %p119 = scmp.eq.s32.totalorder %s11, 0
    %p120 = por %p118, %p119
    %p121 = scmp.ne.s32.totalorder %s113, %s115
    %p122 = scmp.eq.s32.totalorder %s16, 1
    %p123 = por %p121, %p122
    %p124 = scmp.ne.s32.totalorder %s115, %s116
    %p125 = scmp.eq.s32.totalorder %s16, 0
    %p126 = por %p124, %p125
    %p127 = scmp.ne.s32.totalorder %s115, %s116
    %p128 = scmp.eq.s32.totalorder %s17, 1
    %p129 = por %p127, %p128
    %p131 = scmp.ne.s32.totalorder %s116, %s130
    %p132 = scmp.eq.s32.totalorder %s17, 0
    %p133 = por %p131, %p132
    %s135 = sadd.s32 %s134, 1
    %p138 = scmp.eq.s32.totalorder %s11, 1
    %p139 = scmp.ne.s32.totalorder %s134, %s136
    %p140 = scmp.eq.s32.totalorder %s11, 0
    %p141 = por %p139, %p140
    %p142 = scmp.ne.s32.totalorder %s134, %s136
    %p143 = scmp.eq.s32.totalorder %s16, 1
    %p144 = por %p142, %p143
    %p145 = scmp.ne.s32.totalorder %s136, %s137
    %p146 = scmp.eq.s32.totalorder %s16, 0
    %p147 = por %p145, %p146
    %p148 = scmp.ne.s32.totalorder %s136, %s137
    %p149 = scmp.eq.s32.totalorder %s17, 1
    %p150 = por %p148, %p149
    %p152 = scmp.ne.s32.totalorder %s137, %s151
    %p153 = scmp.eq.s32.totalorder %s17, 0
    %p154 = por %p152, %p153
    %p155 = scmp.le.s32.totalorder 1, %s11
    %p156 = scmp.lt.s32.totalorder %s11, 3
    %p157 = pnand %p155, %p156
    %p158 = pneg %p157
    // Predicated region
    $region9: #{dqn_forward.7} parent=5 // pred_check
      _
    $region10: #{dqn_forward.7} parent=5 // pred_check_branch
      %160 = sbr.rel (%p157) target = $region12
    $region11: #{dqn_forward.7} parent=5 // pred_region
      %s161 = ssub.s32 %s11, 1
      // Predicated region
      $region13: #{dqn_forward.7} parent=11 // pred_check
        %p162 = pneg %p84
      $region14: #{dqn_forward.7} parent=11 // pred_check_branch
        %164 = sbr.rel (%p162) target = $region16
      $region15: #{dqn_forward.7} parent=11 // pred_region
        _
      $region16: #{dqn_forward.7} parent=11 // pred_fallthru
        _
      // Predicated region
      $region17: #{dqn_forward.7} parent=11 // pred_check
        %p165 = pneg %p105
      $region18: #{dqn_forward.7} parent=11 // pred_check_branch
        %167 = sbr.rel (%p165) target = $region20
      $region19: #{dqn_forward.7} parent=11 // pred_region
        _
      $region20: #{dqn_forward.7} parent=11 // pred_fallthru
        _
      // Predicated region
      $region21: #{dqn_forward.7} parent=11 // pred_check
        %p168 = pneg %p126
      $region22: #{dqn_forward.7} parent=11 // pred_check_branch
        %170 = sbr.rel (%p168) target = $region24
      $region23: #{dqn_forward.7} parent=11 // pred_region
        _
      $region24: #{dqn_forward.7} parent=11 // pred_fallthru
        _
    $region12: #{dqn_forward.7} parent=5 // pred_fallthru
      _
    %p171 = scmp.lt.s32.totalorder %s11, 2
    // Predicated region
    $region25: #{dqn_forward.7} parent=5 // pred_check
      %p172 = pneg %p171
    $region26: #{dqn_forward.7} parent=5 // pred_check_branch
      %174 = sbr.rel (%p172) target = $region28
    $region27: #{dqn_forward.7} parent=5 // pred_region
      // Predicated region
      $region29: #{dqn_forward.7} parent=27 // pred_check
        %p175 = pneg %p31
      $region30: #{dqn_forward.7} parent=27 // pred_check_branch
        %177 = sbr.rel (%p175) target = $region32
      $region31: #{dqn_forward.7} parent=27 // pred_region
        %s178 = smul.u32 28, %s11
        %p179 = scmp.lt.s32.totalorder %s178, 55
        %s180 = scalar_select %p179, %s178, 55
        %s181 = smul.addr %s180, 4
        %s182 = scalar_lea.vmem %s0, %s181
        %s183 = smul.u32 28, %s11
      $region32: #{dqn_forward.7} parent=27 // pred_fallthru
        _
      // Predicated region
      $region33: #{dqn_forward.7} parent=27 // pred_check
        %p184 = pneg %p57
      $region34: #{dqn_forward.7} parent=27 // pred_check_branch
        %186 = sbr.rel (%p184) target = $region36
      $region35: #{dqn_forward.7} parent=27 // pred_region
        %s187 = smul.u32 448, %s11
        %p188 = scmp.lt.s32.totalorder %s187, 895
        %s189 = scalar_select %p188, %s187, 895
        %s190 = smul.addr %s189, 4
        %s191 = smul.addr %s190, 4
        %s192 = scalar_lea.vmem %s1, %s191
        %s193 = smul.u32 448, %s11
      $region36: #{dqn_forward.7} parent=27 // pred_fallthru
        _
    $region28: #{dqn_forward.7} parent=5 // pred_fallthru
      _
    %p194 = scmp.le.s32.totalorder 1, %s11
    %p195 = scmp.lt.s32.totalorder %s11, 3
    %p196 = pnand %p194, %p195
    %p197 = pneg %p196
    // Predicated region
    $region37: #{dqn_forward.7} parent=5 // pred_check
      _
    $region38: #{dqn_forward.7} parent=5 // pred_check_branch
      %199 = sbr.rel (%p196) target = $region40
    $region39: #{dqn_forward.7} parent=5 // pred_region
      %s200 = ssub.s32 %s11, 1
      %s201 = smul.u32 28, %s16
      %p202 = scmp.lt.s32.totalorder %s201, 55
      %s203 = scalar_select %p202, %s201, 55
      %s204 = smul.addr %s203, 4
      %s205 = scalar_lea.vmem %s0, %s204
      %p206 = pneg %p37
      %p207 = pneg %p34
      %s208 = smul.u32 448, %s16
      %p209 = scmp.lt.s32.totalorder %s208, 895
      %s210 = scalar_select %p209, %s208, 895
      %s211 = smul.addr %s210, 4
      %s212 = smul.addr %s211, 4
      %s213 = scalar_lea.vmem %s1, %s212
      %p214 = pneg %p63
      %p215 = pneg %p60
      %p216 = pneg %p84
      %p217 = pneg %p81
      %p218 = pneg %p105
      %p219 = pneg %p102
      %p220 = pneg %p126
      %p221 = pneg %p123
      %p222 = pneg %p147
      %p223 = pneg %p144
      %s224 = smul.u32 28, %s16
      %p225 = scmp.lt.s32.totalorder %s224, 55
      %s226 = scalar_select %p225, %s224, 55
      %s227 = smul.addr %s226, 4
      %s228 = scalar_lea.vmem %s0, %s227
      %s229 = smul.u32 28, %s16
      %s230 = smul.u32 448, %s16
      %p231 = scmp.lt.s32.totalorder %s230, 895
      %s232 = scalar_select %p231, %s230, 895
      %s233 = smul.addr %s232, 4
      %s234 = smul.addr %s233, 4
      %s235 = scalar_lea.vmem %s1, %s234
      %s236 = smul.u32 448, %s16
      %p238 = scmp.eq.s32.totalorder %s16, 0
      // Predicated region
      $region41: #{dqn_forward.7} parent=39 // pred_check
        %p239 = pneg %p238
      $region42: #{dqn_forward.7} parent=39 // pred_check_branch
        %241 = sbr.rel (%p239) target = $region44
      $region43: #{dqn_forward.7} parent=39 // pred_region
        %242 = vst [vmem:[#allocation2] sm:$0xff] 0.0
        %243 = vst [vmem:[#allocation2 + $0x8] sm:$0xff] 0.0
        %244 = vst [vmem:[#allocation2 + $0x10] sm:$0xff] 0.0
        %245 = vst [vmem:[#allocation2 + $0x18] sm:$0xff] 0.0
      $region44: #{dqn_forward.7} parent=39 // pred_fallthru
        _
      %v246 = vld [vmem:[#allocation2] sm:$0xff]
      %v247 = vld [vmem:[#allocation2 + $0x8] sm:$0xff]
      %v248 = vld [vmem:[#allocation2 + $0x10] sm:$0xff]
      %v249 = vld [vmem:[#allocation2 + $0x18] sm:$0xff]
      %v250 = vld [vmem:[%s228] sm:$0xff]
      %v251 = vld [vmem:[%s228 + $0x8] sm:$0xff]
      %v252 = vld [vmem:[%s228 + $0x10] sm:$0xff]
      %v253 = vld [vmem:[%s228 + $0x18] sm:$0xff]
      %v254 = vld [vmem:[%s228 + $0x20] sm:$0xff]
      %v255 = vld [vmem:[%s228 + $0x28] sm:$0xff]
      %v256 = vld [vmem:[%s228 + $0x30] sm:$0xff]
      %v257 = vld [vmem:[%s228 + $0x38] sm:$0xff]
      %v258 = vld [vmem:[%s228 + $0x40] sm:$0xff]
      %v259 = vld [vmem:[%s228 + $0x48] sm:$0xff]
      %v260 = vld [vmem:[%s228 + $0x50] sm:$0xff]
      %v261 = vld [vmem:[%s228 + $0x58] sm:$0xff]
      %v262 = vld [vmem:[%s228 + $0x60] sm:$0xff]
      %v263 = vld [vmem:[%s228 + $0x68] sm:$0xff]
      %v264 = vld [vmem:[%s235] sm:$0xff]
      %v265 = vld [vmem:[%s235 + $0x8] sm:$0xff]
      %v266 = vld [vmem:[%s235 + $0x10] sm:$0xff]
      %v267 = vld [vmem:[%s235 + $0x18] sm:$0xff]
      %v268 = vld [vmem:[%s235 + $0x20] sm:$0xff]
      %v269 = vld [vmem:[%s235 + $0x28] sm:$0xff]
      %v270 = vld [vmem:[%s235 + $0x30] sm:$0xff]
      %v271 = vld [vmem:[%s235 + $0x38] sm:$0xff]
      %v272 = vld [vmem:[%s235 + $0x40] sm:$0xff]
      %v273 = vld [vmem:[%s235 + $0x48] sm:$0xff]
      %v274 = vld [vmem:[%s235 + $0x50] sm:$0xff]
      %v275 = vld [vmem:[%s235 + $0x58] sm:$0xff]
      %v276 = vld [vmem:[%s235 + $0x60] sm:$0xff]
      %v277 = vld [vmem:[%s235 + $0x68] sm:$0xff]
      %v278 = vld [vmem:[%s235 + $0x70] sm:$0xff]
      %v279 = vld [vmem:[%s235 + $0x78] sm:$0xff]
      %v280 = vld [vmem:[%s235 + $0x80] sm:$0xff]
      %v281 = vld [vmem:[%s235 + $0x88] sm:$0xff]
      %v282 = vld [vmem:[%s235 + $0x90] sm:$0xff]
      %v283 = vld [vmem:[%s235 + $0x98] sm:$0xff]
      %v284 = vld [vmem:[%s235 + $0xa0] sm:$0xff]
      %v285 = vld [vmem:[%s235 + $0xa8] sm:$0xff]
      %v286 = vld [vmem:[%s235 + $0xb0] sm:$0xff]
      %v287 = vld [vmem:[%s235 + $0xb8] sm:$0xff]
      %v288 = vld [vmem:[%s235 + $0xc0] sm:$0xff]
      %v289 = vld [vmem:[%s235 + $0xc8] sm:$0xff]
      %v290 = vld [vmem:[%s235 + $0xd0] sm:$0xff]
      %v291 = vld [vmem:[%s235 + $0xd8] sm:$0xff]
      %v292 = vld [vmem:[%s235 + $0xe0] sm:$0xff]
      %v293 = vld [vmem:[%s235 + $0xe8] sm:$0xff]
      %v294 = vld [vmem:[%s235 + $0xf0] sm:$0xff]
      %v295 = vld [vmem:[%s235 + $0xf8] sm:$0xff]
      %v296 = vld [vmem:[%s235 + $0x100] sm:$0xff]
      %v297 = vld [vmem:[%s235 + $0x108] sm:$0xff]
      %v298 = vld [vmem:[%s235 + $0x110] sm:$0xff]
      %v299 = vld [vmem:[%s235 + $0x118] sm:$0xff]
      %v300 = vld [vmem:[%s235 + $0x120] sm:$0xff]
      %v301 = vld [vmem:[%s235 + $0x128] sm:$0xff]
      %v302 = vld [vmem:[%s235 + $0x130] sm:$0xff]
      %v303 = vld [vmem:[%s235 + $0x138] sm:$0xff]
      %v304 = vld [vmem:[%s235 + $0x140] sm:$0xff]
      %v305 = vld [vmem:[%s235 + $0x148] sm:$0xff]
      %v306 = vld [vmem:[%s235 + $0x150] sm:$0xff]
      %v307 = vld [vmem:[%s235 + $0x158] sm:$0xff]
      %v308 = vld [vmem:[%s235 + $0x160] sm:$0xff]
      %v309 = vld [vmem:[%s235 + $0x168] sm:$0xff]
      %v310 = vld [vmem:[%s235 + $0x170] sm:$0xff]
      %v311 = vld [vmem:[%s235 + $0x178] sm:$0xff]
      %v312 = vld [vmem:[%s235 + $0x180] sm:$0xff]
      %v313 = vld [vmem:[%s235 + $0x188] sm:$0xff]
      %v314 = vld [vmem:[%s235 + $0x190] sm:$0xff]
      %v315 = vld [vmem:[%s235 + $0x198] sm:$0xff]
      %v316 = vld [vmem:[%s235 + $0x1a0] sm:$0xff]
      %v317 = vld [vmem:[%s235 + $0x1a8] sm:$0xff]
      %v318 = vld [vmem:[%s235 + $0x1b0] sm:$0xff]
      %v319 = vld [vmem:[%s235 + $0x1b8] sm:$0xff]
      %v320 = vld [vmem:[%s235 + $0x1c0] sm:$0xff]
      %v321 = vld [vmem:[%s235 + $0x1c8] sm:$0xff]
      %v322 = vld [vmem:[%s235 + $0x1d0] sm:$0xff]
      %v323 = vld [vmem:[%s235 + $0x1d8] sm:$0xff]
      %v324 = vld [vmem:[%s235 + $0x1e0] sm:$0xff]
      %v325 = vld [vmem:[%s235 + $0x1e8] sm:$0xff]
      %v326 = vld [vmem:[%s235 + $0x1f0] sm:$0xff]
      %v327 = vld [vmem:[%s235 + $0x1f8] sm:$0xff]
      %v328 = vld [vmem:[%s235 + $0x200] sm:$0xff]
      %v329 = vld [vmem:[%s235 + $0x208] sm:$0xff]
      %v330 = vld [vmem:[%s235 + $0x210] sm:$0xff]
      %v331 = vld [vmem:[%s235 + $0x218] sm:$0xff]
      %v332 = vld [vmem:[%s235 + $0x220] sm:$0xff]
      %v333 = vld [vmem:[%s235 + $0x228] sm:$0xff]
      %v334 = vld [vmem:[%s235 + $0x230] sm:$0xff]
      %v335 = vld [vmem:[%s235 + $0x238] sm:$0xff]
      %v336 = vld [vmem:[%s235 + $0x240] sm:$0xff]
      %v337 = vld [vmem:[%s235 + $0x248] sm:$0xff]
      %v338 = vld [vmem:[%s235 + $0x250] sm:$0xff]
      %v339 = vld [vmem:[%s235 + $0x258] sm:$0xff]
      %v340 = vld [vmem:[%s235 + $0x260] sm:$0xff]
      %v341 = vld [vmem:[%s235 + $0x268] sm:$0xff]
      %v342 = vld [vmem:[%s235 + $0x270] sm:$0xff]
      %v343 = vld [vmem:[%s235 + $0x278] sm:$0xff]
      %v344 = vld [vmem:[%s235 + $0x280] sm:$0xff]
      %v345 = vld [vmem:[%s235 + $0x288] sm:$0xff]
      %v346 = vld [vmem:[%s235 + $0x290] sm:$0xff]
      %v347 = vld [vmem:[%s235 + $0x298] sm:$0xff]
      %v348 = vld [vmem:[%s235 + $0x2a0] sm:$0xff]
      %v349 = vld [vmem:[%s235 + $0x2a8] sm:$0xff]
      %v350 = vld [vmem:[%s235 + $0x2b0] sm:$0xff]
      %v351 = vld [vmem:[%s235 + $0x2b8] sm:$0xff]
      %v352 = vld [vmem:[%s235 + $0x2c0] sm:$0xff]
      %v353 = vld [vmem:[%s235 + $0x2c8] sm:$0xff]
      %v354 = vld [vmem:[%s235 + $0x2d0] sm:$0xff]
      %v355 = vld [vmem:[%s235 + $0x2d8] sm:$0xff]
      %v356 = vld [vmem:[%s235 + $0x2e0] sm:$0xff]
      %v357 = vld [vmem:[%s235 + $0x2e8] sm:$0xff]
      %v358 = vld [vmem:[%s235 + $0x2f0] sm:$0xff]
      %v359 = vld [vmem:[%s235 + $0x2f8] sm:$0xff]
      %v360 = vld [vmem:[%s235 + $0x300] sm:$0xff]
      %v361 = vld [vmem:[%s235 + $0x308] sm:$0xff]
      %v362 = vld [vmem:[%s235 + $0x310] sm:$0xff]
      %v363 = vld [vmem:[%s235 + $0x318] sm:$0xff]
      %v364 = vld [vmem:[%s235 + $0x320] sm:$0xff]
      %v365 = vld [vmem:[%s235 + $0x328] sm:$0xff]
      %v366 = vld [vmem:[%s235 + $0x330] sm:$0xff]
      %v367 = vld [vmem:[%s235 + $0x338] sm:$0xff]
      %v368 = vld [vmem:[%s235 + $0x340] sm:$0xff]
      %v369 = vld [vmem:[%s235 + $0x348] sm:$0xff]
      %v370 = vld [vmem:[%s235 + $0x350] sm:$0xff]
      %v371 = vld [vmem:[%s235 + $0x358] sm:$0xff]
      %v372 = vld [vmem:[%s235 + $0x360] sm:$0xff]
      %v373 = vld [vmem:[%s235 + $0x368] sm:$0xff]
      %v374 = vld [vmem:[%s235 + $0x370] sm:$0xff]
      %v375 = vld [vmem:[%s235 + $0x378] sm:$0xff]
      %v376 = vld [vmem:[%s235 + $0x380] sm:$0xff]
      %v377 = vld [vmem:[%s235 + $0x388] sm:$0xff]
      %v378 = vld [vmem:[%s235 + $0x390] sm:$0xff]
      %v379 = vld [vmem:[%s235 + $0x398] sm:$0xff]
      %v380 = vld [vmem:[%s235 + $0x3a0] sm:$0xff]
      %v381 = vld [vmem:[%s235 + $0x3a8] sm:$0xff]
      %v382 = vld [vmem:[%s235 + $0x3b0] sm:$0xff]
      %v383 = vld [vmem:[%s235 + $0x3b8] sm:$0xff]
      %v384 = vld [vmem:[%s235 + $0x3c0] sm:$0xff]
      %v385 = vld [vmem:[%s235 + $0x3c8] sm:$0xff]
      %v386 = vld [vmem:[%s235 + $0x3d0] sm:$0xff]
      %v387 = vld [vmem:[%s235 + $0x3d8] sm:$0xff]
      %v388 = vld [vmem:[%s235 + $0x3e0] sm:$0xff]
      %v389 = vld [vmem:[%s235 + $0x3e8] sm:$0xff]
      %v390 = vld [vmem:[%s235 + $0x3f0] sm:$0xff]
      %v391 = vld [vmem:[%s235 + $0x3f8] sm:$0xff]
      %v392 = vld [vmem:[%s235 + $0x400] sm:$0xff]
      %v393 = vld [vmem:[%s235 + $0x408] sm:$0xff]
      %v394 = vld [vmem:[%s235 + $0x410] sm:$0xff]
      %v395 = vld [vmem:[%s235 + $0x418] sm:$0xff]
      %v396 = vld [vmem:[%s235 + $0x420] sm:$0xff]
      %v397 = vld [vmem:[%s235 + $0x428] sm:$0xff]
      %v398 = vld [vmem:[%s235 + $0x430] sm:$0xff]
      %v399 = vld [vmem:[%s235 + $0x438] sm:$0xff]
      %v400 = vld [vmem:[%s235 + $0x440] sm:$0xff]
      %v401 = vld [vmem:[%s235 + $0x448] sm:$0xff]
      %v402 = vld [vmem:[%s235 + $0x450] sm:$0xff]
      %v403 = vld [vmem:[%s235 + $0x458] sm:$0xff]
      %v404 = vld [vmem:[%s235 + $0x460] sm:$0xff]
      %v405 = vld [vmem:[%s235 + $0x468] sm:$0xff]
      %v406 = vld [vmem:[%s235 + $0x470] sm:$0xff]
      %v407 = vld [vmem:[%s235 + $0x478] sm:$0xff]
      %v408 = vld [vmem:[%s235 + $0x480] sm:$0xff]
      %v409 = vld [vmem:[%s235 + $0x488] sm:$0xff]
      %v410 = vld [vmem:[%s235 + $0x490] sm:$0xff]
      %v411 = vld [vmem:[%s235 + $0x498] sm:$0xff]
      %v412 = vld [vmem:[%s235 + $0x4a0] sm:$0xff]
      %v413 = vld [vmem:[%s235 + $0x4a8] sm:$0xff]
      %v414 = vld [vmem:[%s235 + $0x4b0] sm:$0xff]
      %v415 = vld [vmem:[%s235 + $0x4b8] sm:$0xff]
      %v416 = vld [vmem:[%s235 + $0x4c0] sm:$0xff]
      %v417 = vld [vmem:[%s235 + $0x4c8] sm:$0xff]
      %v418 = vld [vmem:[%s235 + $0x4d0] sm:$0xff]
      %v419 = vld [vmem:[%s235 + $0x4d8] sm:$0xff]
      %v420 = vld [vmem:[%s235 + $0x4e0] sm:$0xff]
      %v421 = vld [vmem:[%s235 + $0x4e8] sm:$0xff]
      %v422 = vld [vmem:[%s235 + $0x4f0] sm:$0xff]
      %v423 = vld [vmem:[%s235 + $0x4f8] sm:$0xff]
      %v424 = vld [vmem:[%s235 + $0x500] sm:$0xff]
      %v425 = vld [vmem:[%s235 + $0x508] sm:$0xff]
      %v426 = vld [vmem:[%s235 + $0x510] sm:$0xff]
      %v427 = vld [vmem:[%s235 + $0x518] sm:$0xff]
      %v428 = vld [vmem:[%s235 + $0x520] sm:$0xff]
      %v429 = vld [vmem:[%s235 + $0x528] sm:$0xff]
      %v430 = vld [vmem:[%s235 + $0x530] sm:$0xff]
      %v431 = vld [vmem:[%s235 + $0x538] sm:$0xff]
      %v432 = vld [vmem:[%s235 + $0x540] sm:$0xff]
      %v433 = vld [vmem:[%s235 + $0x548] sm:$0xff]
      %v434 = vld [vmem:[%s235 + $0x550] sm:$0xff]
      %v435 = vld [vmem:[%s235 + $0x558] sm:$0xff]
      %v436 = vld [vmem:[%s235 + $0x560] sm:$0xff]
      %v437 = vld [vmem:[%s235 + $0x568] sm:$0xff]
      %v438 = vld [vmem:[%s235 + $0x570] sm:$0xff]
      %v439 = vld [vmem:[%s235 + $0x578] sm:$0xff]
      %v440 = vld [vmem:[%s235 + $0x580] sm:$0xff]
      %v441 = vld [vmem:[%s235 + $0x588] sm:$0xff]
      %v442 = vld [vmem:[%s235 + $0x590] sm:$0xff]
      %v443 = vld [vmem:[%s235 + $0x598] sm:$0xff]
      %v444 = vld [vmem:[%s235 + $0x5a0] sm:$0xff]
      %v445 = vld [vmem:[%s235 + $0x5a8] sm:$0xff]
      %v446 = vld [vmem:[%s235 + $0x5b0] sm:$0xff]
      %v447 = vld [vmem:[%s235 + $0x5b8] sm:$0xff]
      %v448 = vld [vmem:[%s235 + $0x5c0] sm:$0xff]
      %v449 = vld [vmem:[%s235 + $0x5c8] sm:$0xff]
      %v450 = vld [vmem:[%s235 + $0x5d0] sm:$0xff]
      %v451 = vld [vmem:[%s235 + $0x5d8] sm:$0xff]
      %v452 = vld [vmem:[%s235 + $0x5e0] sm:$0xff]
      %v453 = vld [vmem:[%s235 + $0x5e8] sm:$0xff]
      %v454 = vld [vmem:[%s235 + $0x5f0] sm:$0xff]
      %v455 = vld [vmem:[%s235 + $0x5f8] sm:$0xff]
      %v456 = vld [vmem:[%s235 + $0x600] sm:$0xff]
      %v457 = vld [vmem:[%s235 + $0x608] sm:$0xff]
      %v458 = vld [vmem:[%s235 + $0x610] sm:$0xff]
      %v459 = vld [vmem:[%s235 + $0x618] sm:$0xff]
      %v460 = vld [vmem:[%s235 + $0x620] sm:$0xff]
      %v461 = vld [vmem:[%s235 + $0x628] sm:$0xff]
      %v462 = vld [vmem:[%s235 + $0x630] sm:$0xff]
      %v463 = vld [vmem:[%s235 + $0x638] sm:$0xff]
      %v464 = vld [vmem:[%s235 + $0x640] sm:$0xff]
      %v465 = vld [vmem:[%s235 + $0x648] sm:$0xff]
      %v466 = vld [vmem:[%s235 + $0x650] sm:$0xff]
      %v467 = vld [vmem:[%s235 + $0x658] sm:$0xff]
      %v468 = vld [vmem:[%s235 + $0x660] sm:$0xff]
      %v469 = vld [vmem:[%s235 + $0x668] sm:$0xff]
      %v470 = vld [vmem:[%s235 + $0x670] sm:$0xff]
      %v471 = vld [vmem:[%s235 + $0x678] sm:$0xff]
      %v472 = vld [vmem:[%s235 + $0x680] sm:$0xff]
      %v473 = vld [vmem:[%s235 + $0x688] sm:$0xff]
      %v474 = vld [vmem:[%s235 + $0x690] sm:$0xff]
      %v475 = vld [vmem:[%s235 + $0x698] sm:$0xff]
      %v476 = vld [vmem:[%s235 + $0x6a0] sm:$0xff]
      %v477 = vld [vmem:[%s235 + $0x6a8] sm:$0xff]
      %v478 = vld [vmem:[%s235 + $0x6b0] sm:$0xff]
      %v479 = vld [vmem:[%s235 + $0x6b8] sm:$0xff]
      %v480 = vld [vmem:[%s235 + $0x6c0] sm:$0xff]
      %v481 = vld [vmem:[%s235 + $0x6c8] sm:$0xff]
      %v482 = vld [vmem:[%s235 + $0x6d0] sm:$0xff]
      %v483 = vld [vmem:[%s235 + $0x6d8] sm:$0xff]
      %v484 = vld [vmem:[%s235 + $0x6e0] sm:$0xff]
      %v485 = vld [vmem:[%s235 + $0x6e8] sm:$0xff]
      %v486 = vld [vmem:[%s235 + $0x6f0] sm:$0xff]
      %v487 = vld [vmem:[%s235 + $0x6f8] sm:$0xff]
      %v488 = vld [vmem:[%s235 + $0x700] sm:$0xff]
      %v489 = vld [vmem:[%s235 + $0x708] sm:$0xff]
      %v490 = vld [vmem:[%s235 + $0x710] sm:$0xff]
      %v491 = vld [vmem:[%s235 + $0x718] sm:$0xff]
      %v492 = vld [vmem:[%s235 + $0x720] sm:$0xff]
      %v493 = vld [vmem:[%s235 + $0x728] sm:$0xff]
      %v494 = vld [vmem:[%s235 + $0x730] sm:$0xff]
      %v495 = vld [vmem:[%s235 + $0x738] sm:$0xff]
      %v496 = vld [vmem:[%s235 + $0x740] sm:$0xff]
      %v497 = vld [vmem:[%s235 + $0x748] sm:$0xff]
      %v498 = vld [vmem:[%s235 + $0x750] sm:$0xff]
      %v499 = vld [vmem:[%s235 + $0x758] sm:$0xff]
      %v500 = vld [vmem:[%s235 + $0x760] sm:$0xff]
      %v501 = vld [vmem:[%s235 + $0x768] sm:$0xff]
      %v502 = vld [vmem:[%s235 + $0x770] sm:$0xff]
      %v503 = vld [vmem:[%s235 + $0x778] sm:$0xff]
      %v504 = vld [vmem:[%s235 + $0x780] sm:$0xff]
      %v505 = vld [vmem:[%s235 + $0x788] sm:$0xff]
      %v506 = vld [vmem:[%s235 + $0x790] sm:$0xff]
      %v507 = vld [vmem:[%s235 + $0x798] sm:$0xff]
      %v508 = vld [vmem:[%s235 + $0x7a0] sm:$0xff]
      %v509 = vld [vmem:[%s235 + $0x7a8] sm:$0xff]
      %v510 = vld [vmem:[%s235 + $0x7b0] sm:$0xff]
      %v511 = vld [vmem:[%s235 + $0x7b8] sm:$0xff]
      %v512 = vld [vmem:[%s235 + $0x7c0] sm:$0xff]
      %v513 = vld [vmem:[%s235 + $0x7c8] sm:$0xff]
      %v514 = vld [vmem:[%s235 + $0x7d0] sm:$0xff]
      %v515 = vld [vmem:[%s235 + $0x7d8] sm:$0xff]
      %v516 = vld [vmem:[%s235 + $0x7e0] sm:$0xff]
      %v517 = vld [vmem:[%s235 + $0x7e8] sm:$0xff]
      %v518 = vld [vmem:[%s235 + $0x7f0] sm:$0xff]
      %v519 = vld [vmem:[%s235 + $0x7f8] sm:$0xff]
      %v520 = vld [vmem:[%s235 + $0x800] sm:$0xff]
      %v521 = vld [vmem:[%s235 + $0x808] sm:$0xff]
      %v522 = vld [vmem:[%s235 + $0x810] sm:$0xff]
      %v523 = vld [vmem:[%s235 + $0x818] sm:$0xff]
      %v524 = vld [vmem:[%s235 + $0x820] sm:$0xff]
      %v525 = vld [vmem:[%s235 + $0x828] sm:$0xff]
      %v526 = vld [vmem:[%s235 + $0x830] sm:$0xff]
      %v527 = vld [vmem:[%s235 + $0x838] sm:$0xff]
      %v528 = vld [vmem:[%s235 + $0x840] sm:$0xff]
      %v529 = vld [vmem:[%s235 + $0x848] sm:$0xff]
      %v530 = vld [vmem:[%s235 + $0x850] sm:$0xff]
      %v531 = vld [vmem:[%s235 + $0x858] sm:$0xff]
      %v532 = vld [vmem:[%s235 + $0x860] sm:$0xff]
      %v533 = vld [vmem:[%s235 + $0x868] sm:$0xff]
      %v534 = vld [vmem:[%s235 + $0x870] sm:$0xff]
      %v535 = vld [vmem:[%s235 + $0x878] sm:$0xff]
      %v536 = vld [vmem:[%s235 + $0x880] sm:$0xff]
      %v537 = vld [vmem:[%s235 + $0x888] sm:$0xff]
      %v538 = vld [vmem:[%s235 + $0x890] sm:$0xff]
      %v539 = vld [vmem:[%s235 + $0x898] sm:$0xff]
      %v540 = vld [vmem:[%s235 + $0x8a0] sm:$0xff]
      %v541 = vld [vmem:[%s235 + $0x8a8] sm:$0xff]
      %v542 = vld [vmem:[%s235 + $0x8b0] sm:$0xff]
      %v543 = vld [vmem:[%s235 + $0x8b8] sm:$0xff]
      %v544 = vld [vmem:[%s235 + $0x8c0] sm:$0xff]
      %v545 = vld [vmem:[%s235 + $0x8c8] sm:$0xff]
      %v546 = vld [vmem:[%s235 + $0x8d0] sm:$0xff]
      %v547 = vld [vmem:[%s235 + $0x8d8] sm:$0xff]
      %v548 = vld [vmem:[%s235 + $0x8e0] sm:$0xff]
      %v549 = vld [vmem:[%s235 + $0x8e8] sm:$0xff]
      %v550 = vld [vmem:[%s235 + $0x8f0] sm:$0xff]
      %v551 = vld [vmem:[%s235 + $0x8f8] sm:$0xff]
      %v552 = vld [vmem:[%s235 + $0x900] sm:$0xff]
      %v553 = vld [vmem:[%s235 + $0x908] sm:$0xff]
      %v554 = vld [vmem:[%s235 + $0x910] sm:$0xff]
      %v555 = vld [vmem:[%s235 + $0x918] sm:$0xff]
      %v556 = vld [vmem:[%s235 + $0x920] sm:$0xff]
      %v557 = vld [vmem:[%s235 + $0x928] sm:$0xff]
      %v558 = vld [vmem:[%s235 + $0x930] sm:$0xff]
      %v559 = vld [vmem:[%s235 + $0x938] sm:$0xff]
      %v560 = vld [vmem:[%s235 + $0x940] sm:$0xff]
      %v561 = vld [vmem:[%s235 + $0x948] sm:$0xff]
      %v562 = vld [vmem:[%s235 + $0x950] sm:$0xff]
      %v563 = vld [vmem:[%s235 + $0x958] sm:$0xff]
      %v564 = vld [vmem:[%s235 + $0x960] sm:$0xff]
      %v565 = vld [vmem:[%s235 + $0x968] sm:$0xff]
      %v566 = vld [vmem:[%s235 + $0x970] sm:$0xff]
      %v567 = vld [vmem:[%s235 + $0x978] sm:$0xff]
      %v568 = vld [vmem:[%s235 + $0x980] sm:$0xff]
      %v569 = vld [vmem:[%s235 + $0x988] sm:$0xff]
      %v570 = vld [vmem:[%s235 + $0x990] sm:$0xff]
      %v571 = vld [vmem:[%s235 + $0x998] sm:$0xff]
      %v572 = vld [vmem:[%s235 + $0x9a0] sm:$0xff]
      %v573 = vld [vmem:[%s235 + $0x9a8] sm:$0xff]
      %v574 = vld [vmem:[%s235 + $0x9b0] sm:$0xff]
      %v575 = vld [vmem:[%s235 + $0x9b8] sm:$0xff]
      %v576 = vld [vmem:[%s235 + $0x9c0] sm:$0xff]
      %v577 = vld [vmem:[%s235 + $0x9c8] sm:$0xff]
      %v578 = vld [vmem:[%s235 + $0x9d0] sm:$0xff]
      %v579 = vld [vmem:[%s235 + $0x9d8] sm:$0xff]
      %v580 = vld [vmem:[%s235 + $0x9e0] sm:$0xff]
      %v581 = vld [vmem:[%s235 + $0x9e8] sm:$0xff]
      %v582 = vld [vmem:[%s235 + $0x9f0] sm:$0xff]
      %v583 = vld [vmem:[%s235 + $0x9f8] sm:$0xff]
      %v584 = vld [vmem:[%s235 + $0xa00] sm:$0xff]
      %v585 = vld [vmem:[%s235 + $0xa08] sm:$0xff]
      %v586 = vld [vmem:[%s235 + $0xa10] sm:$0xff]
      %v587 = vld [vmem:[%s235 + $0xa18] sm:$0xff]
      %v588 = vld [vmem:[%s235 + $0xa20] sm:$0xff]
      %v589 = vld [vmem:[%s235 + $0xa28] sm:$0xff]
      %v590 = vld [vmem:[%s235 + $0xa30] sm:$0xff]
      %v591 = vld [vmem:[%s235 + $0xa38] sm:$0xff]
      %v592 = vld [vmem:[%s235 + $0xa40] sm:$0xff]
      %v593 = vld [vmem:[%s235 + $0xa48] sm:$0xff]
      %v594 = vld [vmem:[%s235 + $0xa50] sm:$0xff]
      %v595 = vld [vmem:[%s235 + $0xa58] sm:$0xff]
      %v596 = vld [vmem:[%s235 + $0xa60] sm:$0xff]
      %v597 = vld [vmem:[%s235 + $0xa68] sm:$0xff]
      %v598 = vld [vmem:[%s235 + $0xa70] sm:$0xff]
      %v599 = vld [vmem:[%s235 + $0xa78] sm:$0xff]
      %v600 = vld [vmem:[%s235 + $0xa80] sm:$0xff]
      %v601 = vld [vmem:[%s235 + $0xa88] sm:$0xff]
      %v602 = vld [vmem:[%s235 + $0xa90] sm:$0xff]
      %v603 = vld [vmem:[%s235 + $0xa98] sm:$0xff]
      %v604 = vld [vmem:[%s235 + $0xaa0] sm:$0xff]
      %v605 = vld [vmem:[%s235 + $0xaa8] sm:$0xff]
      %v606 = vld [vmem:[%s235 + $0xab0] sm:$0xff]
      %v607 = vld [vmem:[%s235 + $0xab8] sm:$0xff]
      %v608 = vld [vmem:[%s235 + $0xac0] sm:$0xff]
      %v609 = vld [vmem:[%s235 + $0xac8] sm:$0xff]
      %v610 = vld [vmem:[%s235 + $0xad0] sm:$0xff]
      %v611 = vld [vmem:[%s235 + $0xad8] sm:$0xff]
      %v612 = vld [vmem:[%s235 + $0xae0] sm:$0xff]
      %v613 = vld [vmem:[%s235 + $0xae8] sm:$0xff]
      %v614 = vld [vmem:[%s235 + $0xaf0] sm:$0xff]
      %v615 = vld [vmem:[%s235 + $0xaf8] sm:$0xff]
      %v616 = vld [vmem:[%s235 + $0xb00] sm:$0xff]
      %v617 = vld [vmem:[%s235 + $0xb08] sm:$0xff]
      %v618 = vld [vmem:[%s235 + $0xb10] sm:$0xff]
      %v619 = vld [vmem:[%s235 + $0xb18] sm:$0xff]
      %v620 = vld [vmem:[%s235 + $0xb20] sm:$0xff]
      %v621 = vld [vmem:[%s235 + $0xb28] sm:$0xff]
      %v622 = vld [vmem:[%s235 + $0xb30] sm:$0xff]
      %v623 = vld [vmem:[%s235 + $0xb38] sm:$0xff]
      %v624 = vld [vmem:[%s235 + $0xb40] sm:$0xff]
      %v625 = vld [vmem:[%s235 + $0xb48] sm:$0xff]
      %v626 = vld [vmem:[%s235 + $0xb50] sm:$0xff]
      %v627 = vld [vmem:[%s235 + $0xb58] sm:$0xff]
      %v628 = vld [vmem:[%s235 + $0xb60] sm:$0xff]
      %v629 = vld [vmem:[%s235 + $0xb68] sm:$0xff]
      %v630 = vld [vmem:[%s235 + $0xb70] sm:$0xff]
      %v631 = vld [vmem:[%s235 + $0xb78] sm:$0xff]
      %v632 = vld [vmem:[%s235 + $0xb80] sm:$0xff]
      %v633 = vld [vmem:[%s235 + $0xb88] sm:$0xff]
      %v634 = vld [vmem:[%s235 + $0xb90] sm:$0xff]
      %v635 = vld [vmem:[%s235 + $0xb98] sm:$0xff]
      %v636 = vld [vmem:[%s235 + $0xba0] sm:$0xff]
      %v637 = vld [vmem:[%s235 + $0xba8] sm:$0xff]
      %v638 = vld [vmem:[%s235 + $0xbb0] sm:$0xff]
      %v639 = vld [vmem:[%s235 + $0xbb8] sm:$0xff]
      %v640 = vld [vmem:[%s235 + $0xbc0] sm:$0xff]
      %v641 = vld [vmem:[%s235 + $0xbc8] sm:$0xff]
      %v642 = vld [vmem:[%s235 + $0xbd0] sm:$0xff]
      %v643 = vld [vmem:[%s235 + $0xbd8] sm:$0xff]
      %v644 = vld [vmem:[%s235 + $0xbe0] sm:$0xff]
      %v645 = vld [vmem:[%s235 + $0xbe8] sm:$0xff]
      %v646 = vld [vmem:[%s235 + $0xbf0] sm:$0xff]
      %v647 = vld [vmem:[%s235 + $0xbf8] sm:$0xff]
      %v648 = vld [vmem:[%s235 + $0xc00] sm:$0xff]
      %v649 = vld [vmem:[%s235 + $0xc08] sm:$0xff]
      %v650 = vld [vmem:[%s235 + $0xc10] sm:$0xff]
      %v651 = vld [vmem:[%s235 + $0xc18] sm:$0xff]
      %v652 = vld [vmem:[%s235 + $0xc20] sm:$0xff]
      %v653 = vld [vmem:[%s235 + $0xc28] sm:$0xff]
      %v654 = vld [vmem:[%s235 + $0xc30] sm:$0xff]
      %v655 = vld [vmem:[%s235 + $0xc38] sm:$0xff]
      %v656 = vld [vmem:[%s235 + $0xc40] sm:$0xff]
      %v657 = vld [vmem:[%s235 + $0xc48] sm:$0xff]
      %v658 = vld [vmem:[%s235 + $0xc50] sm:$0xff]
      %v659 = vld [vmem:[%s235 + $0xc58] sm:$0xff]
      %v660 = vld [vmem:[%s235 + $0xc60] sm:$0xff]
      %v661 = vld [vmem:[%s235 + $0xc68] sm:$0xff]
      %v662 = vld [vmem:[%s235 + $0xc70] sm:$0xff]
      %v663 = vld [vmem:[%s235 + $0xc78] sm:$0xff]
      %v664 = vld [vmem:[%s235 + $0xc80] sm:$0xff]
      %v665 = vld [vmem:[%s235 + $0xc88] sm:$0xff]
      %v666 = vld [vmem:[%s235 + $0xc90] sm:$0xff]
      %v667 = vld [vmem:[%s235 + $0xc98] sm:$0xff]
      %v668 = vld [vmem:[%s235 + $0xca0] sm:$0xff]
      %v669 = vld [vmem:[%s235 + $0xca8] sm:$0xff]
      %v670 = vld [vmem:[%s235 + $0xcb0] sm:$0xff]
      %v671 = vld [vmem:[%s235 + $0xcb8] sm:$0xff]
      %v672 = vld [vmem:[%s235 + $0xcc0] sm:$0xff]
      %v673 = vld [vmem:[%s235 + $0xcc8] sm:$0xff]
      %v674 = vld [vmem:[%s235 + $0xcd0] sm:$0xff]
      %v675 = vld [vmem:[%s235 + $0xcd8] sm:$0xff]
      %v676 = vld [vmem:[%s235 + $0xce0] sm:$0xff]
      %v677 = vld [vmem:[%s235 + $0xce8] sm:$0xff]
      %v678 = vld [vmem:[%s235 + $0xcf0] sm:$0xff]
      %v679 = vld [vmem:[%s235 + $0xcf8] sm:$0xff]
      %v680 = vld [vmem:[%s235 + $0xd00] sm:$0xff]
      %v681 = vld [vmem:[%s235 + $0xd08] sm:$0xff]
      %v682 = vld [vmem:[%s235 + $0xd10] sm:$0xff]
      %v683 = vld [vmem:[%s235 + $0xd18] sm:$0xff]
      %v684 = vld [vmem:[%s235 + $0xd20] sm:$0xff]
      %v685 = vld [vmem:[%s235 + $0xd28] sm:$0xff]
      %v686 = vld [vmem:[%s235 + $0xd30] sm:$0xff]
      %v687 = vld [vmem:[%s235 + $0xd38] sm:$0xff]
      %v688 = vld [vmem:[%s235 + $0xd40] sm:$0xff]
      %v689 = vld [vmem:[%s235 + $0xd48] sm:$0xff]
      %v690 = vld [vmem:[%s235 + $0xd50] sm:$0xff]
      %v691 = vld [vmem:[%s235 + $0xd58] sm:$0xff]
      %v692 = vld [vmem:[%s235 + $0xd60] sm:$0xff]
      %v693 = vld [vmem:[%s235 + $0xd68] sm:$0xff]
      %v694 = vld [vmem:[%s235 + $0xd70] sm:$0xff]
      %v695 = vld [vmem:[%s235 + $0xd78] sm:$0xff]
      %v696 = vld [vmem:[%s235 + $0xd80] sm:$0xff]
      %v697 = vld [vmem:[%s235 + $0xd88] sm:$0xff]
      %v698 = vld [vmem:[%s235 + $0xd90] sm:$0xff]
      %v699 = vld [vmem:[%s235 + $0xd98] sm:$0xff]
      %v700 = vld [vmem:[%s235 + $0xda0] sm:$0xff]
      %v701 = vld [vmem:[%s235 + $0xda8] sm:$0xff]
      %v702 = vld [vmem:[%s235 + $0xdb0] sm:$0xff]
      %v703 = vld [vmem:[%s235 + $0xdb8] sm:$0xff]
      %v704 = vld [vmem:[%s235 + $0xdc0] sm:$0xff]
      %v705 = vld [vmem:[%s235 + $0xdc8] sm:$0xff]
      %v706 = vld [vmem:[%s235 + $0xdd0] sm:$0xff]
      %v707 = vld [vmem:[%s235 + $0xdd8] sm:$0xff]
      %v708 = vld [vmem:[%s235 + $0xde0] sm:$0xff]
      %v709 = vld [vmem:[%s235 + $0xde8] sm:$0xff]
      %v710 = vld [vmem:[%s235 + $0xdf0] sm:$0xff]
      %v711 = vld [vmem:[%s235 + $0xdf8] sm:$0xff]
      %v712 = vld [vmem:[%s235 + $0xe00] sm:$0xff]
      %v713 = vld [vmem:[%s235 + $0xe08] sm:$0xff]
      %v714 = vld [vmem:[%s235 + $0xe10] sm:$0xff]
      %v715 = vld [vmem:[%s235 + $0xe18] sm:$0xff]
      %v716 = vld [vmem:[%s235 + $0xe20] sm:$0xff]
      %v717 = vld [vmem:[%s235 + $0xe28] sm:$0xff]
      %v718 = vld [vmem:[%s235 + $0xe30] sm:$0xff]
      %v719 = vld [vmem:[%s235 + $0xe38] sm:$0xff]
      %v720 = vld [vmem:[%s235 + $0xe40] sm:$0xff]
      %v721 = vld [vmem:[%s235 + $0xe48] sm:$0xff]
      %v722 = vld [vmem:[%s235 + $0xe50] sm:$0xff]
      %v723 = vld [vmem:[%s235 + $0xe58] sm:$0xff]
      %v724 = vld [vmem:[%s235 + $0xe60] sm:$0xff]
      %v725 = vld [vmem:[%s235 + $0xe68] sm:$0xff]
      %v726 = vld [vmem:[%s235 + $0xe70] sm:$0xff]
      %v727 = vld [vmem:[%s235 + $0xe78] sm:$0xff]
      %v728 = vld [vmem:[%s235 + $0xe80] sm:$0xff]
      %v729 = vld [vmem:[%s235 + $0xe88] sm:$0xff]
      %v730 = vld [vmem:[%s235 + $0xe90] sm:$0xff]
      %v731 = vld [vmem:[%s235 + $0xe98] sm:$0xff]
      %v732 = vld [vmem:[%s235 + $0xea0] sm:$0xff]
      %v733 = vld [vmem:[%s235 + $0xea8] sm:$0xff]
      %v734 = vld [vmem:[%s235 + $0xeb0] sm:$0xff]
      %v735 = vld [vmem:[%s235 + $0xeb8] sm:$0xff]
      %v736 = vld [vmem:[%s235 + $0xec0] sm:$0xff]
      %v737 = vld [vmem:[%s235 + $0xec8] sm:$0xff]
      %v738 = vld [vmem:[%s235 + $0xed0] sm:$0xff]
      %v739 = vld [vmem:[%s235 + $0xed8] sm:$0xff]
      %v740 = vld [vmem:[%s235 + $0xee0] sm:$0xff]
      %v741 = vld [vmem:[%s235 + $0xee8] sm:$0xff]
      %v742 = vld [vmem:[%s235 + $0xef0] sm:$0xff]
      %v743 = vld [vmem:[%s235 + $0xef8] sm:$0xff]
      %v744 = vld [vmem:[%s235 + $0xf00] sm:$0xff]
      %v745 = vld [vmem:[%s235 + $0xf08] sm:$0xff]
      %v746 = vld [vmem:[%s235 + $0xf10] sm:$0xff]
      %v747 = vld [vmem:[%s235 + $0xf18] sm:$0xff]
      %v748 = vld [vmem:[%s235 + $0xf20] sm:$0xff]
      %v749 = vld [vmem:[%s235 + $0xf28] sm:$0xff]
      %v750 = vld [vmem:[%s235 + $0xf30] sm:$0xff]
      %v751 = vld [vmem:[%s235 + $0xf38] sm:$0xff]
      %v752 = vld [vmem:[%s235 + $0xf40] sm:$0xff]
      %v753 = vld [vmem:[%s235 + $0xf48] sm:$0xff]
      %v754 = vld [vmem:[%s235 + $0xf50] sm:$0xff]
      %v755 = vld [vmem:[%s235 + $0xf58] sm:$0xff]
      %v756 = vld [vmem:[%s235 + $0xf60] sm:$0xff]
      %v757 = vld [vmem:[%s235 + $0xf68] sm:$0xff]
      %v758 = vld [vmem:[%s235 + $0xf70] sm:$0xff]
      %v759 = vld [vmem:[%s235 + $0xf78] sm:$0xff]
      %v760 = vld [vmem:[%s235 + $0xf80] sm:$0xff]
      %v761 = vld [vmem:[%s235 + $0xf88] sm:$0xff]
      %v762 = vld [vmem:[%s235 + $0xf90] sm:$0xff]
      %v763 = vld [vmem:[%s235 + $0xf98] sm:$0xff]
      %v764 = vld [vmem:[%s235 + $0xfa0] sm:$0xff]
      %v765 = vld [vmem:[%s235 + $0xfa8] sm:$0xff]
      %v766 = vld [vmem:[%s235 + $0xfb0] sm:$0xff]
      %v767 = vld [vmem:[%s235 + $0xfb8] sm:$0xff]
      %v768 = vld [vmem:[%s235 + $0xfc0] sm:$0xff]
      %v769 = vld [vmem:[%s235 + $0xfc8] sm:$0xff]
      %v770 = vld [vmem:[%s235 + $0xfd0] sm:$0xff]
      %v771 = vld [vmem:[%s235 + $0xfd8] sm:$0xff]
      %v772 = vld [vmem:[%s235 + $0xfe0] sm:$0xff]
      %v773 = vld [vmem:[%s235 + $0xfe8] sm:$0xff]
      %v774 = vld [vmem:[%s235 + $0xff0] sm:$0xff]
      %v775 = vld [vmem:[%s235 + $0xff8] sm:$0xff]
      %v776 = vld [vmem:[%s235 + $0x1000] sm:$0xff]
      %v777 = vld [vmem:[%s235 + $0x1008] sm:$0xff]
      %v778 = vld [vmem:[%s235 + $0x1010] sm:$0xff]
      %v779 = vld [vmem:[%s235 + $0x1018] sm:$0xff]
      %v780 = vld [vmem:[%s235 + $0x1020] sm:$0xff]
      %v781 = vld [vmem:[%s235 + $0x1028] sm:$0xff]
      %v782 = vld [vmem:[%s235 + $0x1030] sm:$0xff]
      %v783 = vld [vmem:[%s235 + $0x1038] sm:$0xff]
      %v784 = vld [vmem:[%s235 + $0x1040] sm:$0xff]
      %v785 = vld [vmem:[%s235 + $0x1048] sm:$0xff]
      %v786 = vld [vmem:[%s235 + $0x1050] sm:$0xff]
      %v787 = vld [vmem:[%s235 + $0x1058] sm:$0xff]
      %v788 = vld [vmem:[%s235 + $0x1060] sm:$0xff]
      %v789 = vld [vmem:[%s235 + $0x1068] sm:$0xff]
      %v790 = vld [vmem:[%s235 + $0x1070] sm:$0xff]
      %v791 = vld [vmem:[%s235 + $0x1078] sm:$0xff]
      %v792 = vld [vmem:[%s235 + $0x1080] sm:$0xff]
      %v793 = vld [vmem:[%s235 + $0x1088] sm:$0xff]
      %v794 = vld [vmem:[%s235 + $0x1090] sm:$0xff]
      %v795 = vld [vmem:[%s235 + $0x1098] sm:$0xff]
      %v796 = vld [vmem:[%s235 + $0x10a0] sm:$0xff]
      %v797 = vld [vmem:[%s235 + $0x10a8] sm:$0xff]
      %v798 = vld [vmem:[%s235 + $0x10b0] sm:$0xff]
      %v799 = vld [vmem:[%s235 + $0x10b8] sm:$0xff]
      %v800 = vld [vmem:[%s235 + $0x10c0] sm:$0xff]
      %v801 = vld [vmem:[%s235 + $0x10c8] sm:$0xff]
      %v802 = vld [vmem:[%s235 + $0x10d0] sm:$0xff]
      %v803 = vld [vmem:[%s235 + $0x10d8] sm:$0xff]
      %v804 = vld [vmem:[%s235 + $0x10e0] sm:$0xff]
      %v805 = vld [vmem:[%s235 + $0x10e8] sm:$0xff]
      %v806 = vld [vmem:[%s235 + $0x10f0] sm:$0xff]
      %v807 = vld [vmem:[%s235 + $0x10f8] sm:$0xff]
      %v808 = vld [vmem:[%s235 + $0x1100] sm:$0xff]
      %v809 = vld [vmem:[%s235 + $0x1108] sm:$0xff]
      %v810 = vld [vmem:[%s235 + $0x1110] sm:$0xff]
      %v811 = vld [vmem:[%s235 + $0x1118] sm:$0xff]
      %v812 = vld [vmem:[%s235 + $0x1120] sm:$0xff]
      %v813 = vld [vmem:[%s235 + $0x1128] sm:$0xff]
      %v814 = vld [vmem:[%s235 + $0x1130] sm:$0xff]
      %v815 = vld [vmem:[%s235 + $0x1138] sm:$0xff]
      %v816 = vld [vmem:[%s235 + $0x1140] sm:$0xff]
      %v817 = vld [vmem:[%s235 + $0x1148] sm:$0xff]
      %v818 = vld [vmem:[%s235 + $0x1150] sm:$0xff]
      %v819 = vld [vmem:[%s235 + $0x1158] sm:$0xff]
      %v820 = vld [vmem:[%s235 + $0x1160] sm:$0xff]
      %v821 = vld [vmem:[%s235 + $0x1168] sm:$0xff]
      %v822 = vld [vmem:[%s235 + $0x1170] sm:$0xff]
      %v823 = vld [vmem:[%s235 + $0x1178] sm:$0xff]
      %v824 = vld [vmem:[%s235 + $0x1180] sm:$0xff]
      %v825 = vld [vmem:[%s235 + $0x1188] sm:$0xff]
      %v826 = vld [vmem:[%s235 + $0x1190] sm:$0xff]
      %v827 = vld [vmem:[%s235 + $0x1198] sm:$0xff]
      %v828 = vld [vmem:[%s235 + $0x11a0] sm:$0xff]
      %v829 = vld [vmem:[%s235 + $0x11a8] sm:$0xff]
      %v830 = vld [vmem:[%s235 + $0x11b0] sm:$0xff]
      %v831 = vld [vmem:[%s235 + $0x11b8] sm:$0xff]
      %v832 = vld [vmem:[%s235 + $0x11c0] sm:$0xff]
      %v833 = vld [vmem:[%s235 + $0x11c8] sm:$0xff]
      %v834 = vld [vmem:[%s235 + $0x11d0] sm:$0xff]
      %v835 = vld [vmem:[%s235 + $0x11d8] sm:$0xff]
      %v836 = vld [vmem:[%s235 + $0x11e0] sm:$0xff]
      %v837 = vld [vmem:[%s235 + $0x11e8] sm:$0xff]
      %v838 = vld [vmem:[%s235 + $0x11f0] sm:$0xff]
      %v839 = vld [vmem:[%s235 + $0x11f8] sm:$0xff]
      %v840 = vld [vmem:[%s235 + $0x1200] sm:$0xff]
      %v841 = vld [vmem:[%s235 + $0x1208] sm:$0xff]
      %v842 = vld [vmem:[%s235 + $0x1210] sm:$0xff]
      %v843 = vld [vmem:[%s235 + $0x1218] sm:$0xff]
      %v844 = vld [vmem:[%s235 + $0x1220] sm:$0xff]
      %v845 = vld [vmem:[%s235 + $0x1228] sm:$0xff]
      %v846 = vld [vmem:[%s235 + $0x1230] sm:$0xff]
      %v847 = vld [vmem:[%s235 + $0x1238] sm:$0xff]
      %v848 = vld [vmem:[%s235 + $0x1240] sm:$0xff]
      %v849 = vld [vmem:[%s235 + $0x1248] sm:$0xff]
      %v850 = vld [vmem:[%s235 + $0x1250] sm:$0xff]
      %v851 = vld [vmem:[%s235 + $0x1258] sm:$0xff]
      %v852 = vld [vmem:[%s235 + $0x1260] sm:$0xff]
      %v853 = vld [vmem:[%s235 + $0x1268] sm:$0xff]
      %v854 = vld [vmem:[%s235 + $0x1270] sm:$0xff]
      %v855 = vld [vmem:[%s235 + $0x1278] sm:$0xff]
      %v856 = vld [vmem:[%s235 + $0x1280] sm:$0xff]
      %v857 = vld [vmem:[%s235 + $0x1288] sm:$0xff]
      %v858 = vld [vmem:[%s235 + $0x1290] sm:$0xff]
      %v859 = vld [vmem:[%s235 + $0x1298] sm:$0xff]
      %v860 = vld [vmem:[%s235 + $0x12a0] sm:$0xff]
      %v861 = vld [vmem:[%s235 + $0x12a8] sm:$0xff]
      %v862 = vld [vmem:[%s235 + $0x12b0] sm:$0xff]
      %v863 = vld [vmem:[%s235 + $0x12b8] sm:$0xff]
      %v864 = vld [vmem:[%s235 + $0x12c0] sm:$0xff]
      %v865 = vld [vmem:[%s235 + $0x12c8] sm:$0xff]
      %v866 = vld [vmem:[%s235 + $0x12d0] sm:$0xff]
      %v867 = vld [vmem:[%s235 + $0x12d8] sm:$0xff]
      %v868 = vld [vmem:[%s235 + $0x12e0] sm:$0xff]
      %v869 = vld [vmem:[%s235 + $0x12e8] sm:$0xff]
      %v870 = vld [vmem:[%s235 + $0x12f0] sm:$0xff]
      %v871 = vld [vmem:[%s235 + $0x12f8] sm:$0xff]
      %v872 = vld [vmem:[%s235 + $0x1300] sm:$0xff]
      %v873 = vld [vmem:[%s235 + $0x1308] sm:$0xff]
      %v874 = vld [vmem:[%s235 + $0x1310] sm:$0xff]
      %v875 = vld [vmem:[%s235 + $0x1318] sm:$0xff]
      %v876 = vld [vmem:[%s235 + $0x1320] sm:$0xff]
      %v877 = vld [vmem:[%s235 + $0x1328] sm:$0xff]
      %v878 = vld [vmem:[%s235 + $0x1330] sm:$0xff]
      %v879 = vld [vmem:[%s235 + $0x1338] sm:$0xff]
      %v880 = vld [vmem:[%s235 + $0x1340] sm:$0xff]
      %v881 = vld [vmem:[%s235 + $0x1348] sm:$0xff]
      %v882 = vld [vmem:[%s235 + $0x1350] sm:$0xff]
      %v883 = vld [vmem:[%s235 + $0x1358] sm:$0xff]
      %v884 = vld [vmem:[%s235 + $0x1360] sm:$0xff]
      %v885 = vld [vmem:[%s235 + $0x1368] sm:$0xff]
      %v886 = vld [vmem:[%s235 + $0x1370] sm:$0xff]
      %v887 = vld [vmem:[%s235 + $0x1378] sm:$0xff]
      %v888 = vld [vmem:[%s235 + $0x1380] sm:$0xff]
      %v889 = vld [vmem:[%s235 + $0x1388] sm:$0xff]
      %v890 = vld [vmem:[%s235 + $0x1390] sm:$0xff]
      %v891 = vld [vmem:[%s235 + $0x1398] sm:$0xff]
      %v892 = vld [vmem:[%s235 + $0x13a0] sm:$0xff]
      %v893 = vld [vmem:[%s235 + $0x13a8] sm:$0xff]
      %v894 = vld [vmem:[%s235 + $0x13b0] sm:$0xff]
      %v895 = vld [vmem:[%s235 + $0x13b8] sm:$0xff]
      %v896 = vld [vmem:[%s235 + $0x13c0] sm:$0xff]
      %v897 = vld [vmem:[%s235 + $0x13c8] sm:$0xff]
      %v898 = vld [vmem:[%s235 + $0x13d0] sm:$0xff]
      %v899 = vld [vmem:[%s235 + $0x13d8] sm:$0xff]
      %v900 = vld [vmem:[%s235 + $0x13e0] sm:$0xff]
      %v901 = vld [vmem:[%s235 + $0x13e8] sm:$0xff]
      %v902 = vld [vmem:[%s235 + $0x13f0] sm:$0xff]
      %v903 = vld [vmem:[%s235 + $0x13f8] sm:$0xff]
      %v904 = vld [vmem:[%s235 + $0x1400] sm:$0xff]
      %v905 = vld [vmem:[%s235 + $0x1408] sm:$0xff]
      %v906 = vld [vmem:[%s235 + $0x1410] sm:$0xff]
      %v907 = vld [vmem:[%s235 + $0x1418] sm:$0xff]
      %v908 = vld [vmem:[%s235 + $0x1420] sm:$0xff]
      %v909 = vld [vmem:[%s235 + $0x1428] sm:$0xff]
      %v910 = vld [vmem:[%s235 + $0x1430] sm:$0xff]
      %v911 = vld [vmem:[%s235 + $0x1438] sm:$0xff]
      %v912 = vld [vmem:[%s235 + $0x1440] sm:$0xff]
      %v913 = vld [vmem:[%s235 + $0x1448] sm:$0xff]
      %v914 = vld [vmem:[%s235 + $0x1450] sm:$0xff]
      %v915 = vld [vmem:[%s235 + $0x1458] sm:$0xff]
      %v916 = vld [vmem:[%s235 + $0x1460] sm:$0xff]
      %v917 = vld [vmem:[%s235 + $0x1468] sm:$0xff]
      %v918 = vld [vmem:[%s235 + $0x1470] sm:$0xff]
      %v919 = vld [vmem:[%s235 + $0x1478] sm:$0xff]
      %v920 = vld [vmem:[%s235 + $0x1480] sm:$0xff]
      %v921 = vld [vmem:[%s235 + $0x1488] sm:$0xff]
      %v922 = vld [vmem:[%s235 + $0x1490] sm:$0xff]
      %v923 = vld [vmem:[%s235 + $0x1498] sm:$0xff]
      %v924 = vld [vmem:[%s235 + $0x14a0] sm:$0xff]
      %v925 = vld [vmem:[%s235 + $0x14a8] sm:$0xff]
      %v926 = vld [vmem:[%s235 + $0x14b0] sm:$0xff]
      %v927 = vld [vmem:[%s235 + $0x14b8] sm:$0xff]
      %v928 = vld [vmem:[%s235 + $0x14c0] sm:$0xff]
      %v929 = vld [vmem:[%s235 + $0x14c8] sm:$0xff]
      %v930 = vld [vmem:[%s235 + $0x14d0] sm:$0xff]
      %v931 = vld [vmem:[%s235 + $0x14d8] sm:$0xff]
      %v932 = vld [vmem:[%s235 + $0x14e0] sm:$0xff]
      %v933 = vld [vmem:[%s235 + $0x14e8] sm:$0xff]
      %v934 = vld [vmem:[%s235 + $0x14f0] sm:$0xff]
      %v935 = vld [vmem:[%s235 + $0x14f8] sm:$0xff]
      %v936 = vld [vmem:[%s235 + $0x1500] sm:$0xff]
      %v937 = vld [vmem:[%s235 + $0x1508] sm:$0xff]
      %v938 = vld [vmem:[%s235 + $0x1510] sm:$0xff]
      %v939 = vld [vmem:[%s235 + $0x1518] sm:$0xff]
      %v940 = vld [vmem:[%s235 + $0x1520] sm:$0xff]
      %v941 = vld [vmem:[%s235 + $0x1528] sm:$0xff]
      %v942 = vld [vmem:[%s235 + $0x1530] sm:$0xff]
      %v943 = vld [vmem:[%s235 + $0x1538] sm:$0xff]
      %v944 = vld [vmem:[%s235 + $0x1540] sm:$0xff]
      %v945 = vld [vmem:[%s235 + $0x1548] sm:$0xff]
      %v946 = vld [vmem:[%s235 + $0x1550] sm:$0xff]
      %v947 = vld [vmem:[%s235 + $0x1558] sm:$0xff]
      %v948 = vld [vmem:[%s235 + $0x1560] sm:$0xff]
      %v949 = vld [vmem:[%s235 + $0x1568] sm:$0xff]
      %v950 = vld [vmem:[%s235 + $0x1570] sm:$0xff]
      %v951 = vld [vmem:[%s235 + $0x1578] sm:$0xff]
      %v952 = vld [vmem:[%s235 + $0x1580] sm:$0xff]
      %v953 = vld [vmem:[%s235 + $0x1588] sm:$0xff]
      %v954 = vld [vmem:[%s235 + $0x1590] sm:$0xff]
      %v955 = vld [vmem:[%s235 + $0x1598] sm:$0xff]
      %v956 = vld [vmem:[%s235 + $0x15a0] sm:$0xff]
      %v957 = vld [vmem:[%s235 + $0x15a8] sm:$0xff]
      %v958 = vld [vmem:[%s235 + $0x15b0] sm:$0xff]
      %v959 = vld [vmem:[%s235 + $0x15b8] sm:$0xff]
      %v960 = vld [vmem:[%s235 + $0x15c0] sm:$0xff]
      %v961 = vld [vmem:[%s235 + $0x15c8] sm:$0xff]
      %v962 = vld [vmem:[%s235 + $0x15d0] sm:$0xff]
      %v963 = vld [vmem:[%s235 + $0x15d8] sm:$0xff]
      %v964 = vld [vmem:[%s235 + $0x15e0] sm:$0xff]
      %v965 = vld [vmem:[%s235 + $0x15e8] sm:$0xff]
      %v966 = vld [vmem:[%s235 + $0x15f0] sm:$0xff]
      %v967 = vld [vmem:[%s235 + $0x15f8] sm:$0xff]
      %v968 = vld [vmem:[%s235 + $0x1600] sm:$0xff]
      %v969 = vld [vmem:[%s235 + $0x1608] sm:$0xff]
      %v970 = vld [vmem:[%s235 + $0x1610] sm:$0xff]
      %v971 = vld [vmem:[%s235 + $0x1618] sm:$0xff]
      %v972 = vld [vmem:[%s235 + $0x1620] sm:$0xff]
      %v973 = vld [vmem:[%s235 + $0x1628] sm:$0xff]
      %v974 = vld [vmem:[%s235 + $0x1630] sm:$0xff]
      %v975 = vld [vmem:[%s235 + $0x1638] sm:$0xff]
      %v976 = vld [vmem:[%s235 + $0x1640] sm:$0xff]
      %v977 = vld [vmem:[%s235 + $0x1648] sm:$0xff]
      %v978 = vld [vmem:[%s235 + $0x1650] sm:$0xff]
      %v979 = vld [vmem:[%s235 + $0x1658] sm:$0xff]
      %v980 = vld [vmem:[%s235 + $0x1660] sm:$0xff]
      %v981 = vld [vmem:[%s235 + $0x1668] sm:$0xff]
      %v982 = vld [vmem:[%s235 + $0x1670] sm:$0xff]
      %v983 = vld [vmem:[%s235 + $0x1678] sm:$0xff]
      %v984 = vld [vmem:[%s235 + $0x1680] sm:$0xff]
      %v985 = vld [vmem:[%s235 + $0x1688] sm:$0xff]
      %v986 = vld [vmem:[%s235 + $0x1690] sm:$0xff]
      %v987 = vld [vmem:[%s235 + $0x1698] sm:$0xff]
      %v988 = vld [vmem:[%s235 + $0x16a0] sm:$0xff]
      %v989 = vld [vmem:[%s235 + $0x16a8] sm:$0xff]
      %v990 = vld [vmem:[%s235 + $0x16b0] sm:$0xff]
      %v991 = vld [vmem:[%s235 + $0x16b8] sm:$0xff]
      %v992 = vld [vmem:[%s235 + $0x16c0] sm:$0xff]
      %v993 = vld [vmem:[%s235 + $0x16c8] sm:$0xff]
      %v994 = vld [vmem:[%s235 + $0x16d0] sm:$0xff]
      %v995 = vld [vmem:[%s235 + $0x16d8] sm:$0xff]
      %v996 = vld [vmem:[%s235 + $0x16e0] sm:$0xff]
      %v997 = vld [vmem:[%s235 + $0x16e8] sm:$0xff]
      %v998 = vld [vmem:[%s235 + $0x16f0] sm:$0xff]
      %v999 = vld [vmem:[%s235 + $0x16f8] sm:$0xff]
      %v1000 = vld [vmem:[%s235 + $0x1700] sm:$0xff]
      %v1001 = vld [vmem:[%s235 + $0x1708] sm:$0xff]
      %v1002 = vld [vmem:[%s235 + $0x1710] sm:$0xff]
      %v1003 = vld [vmem:[%s235 + $0x1718] sm:$0xff]
      %v1004 = vld [vmem:[%s235 + $0x1720] sm:$0xff]
      %v1005 = vld [vmem:[%s235 + $0x1728] sm:$0xff]
      %v1006 = vld [vmem:[%s235 + $0x1730] sm:$0xff]
      %v1007 = vld [vmem:[%s235 + $0x1738] sm:$0xff]
      %v1008 = vld [vmem:[%s235 + $0x1740] sm:$0xff]
      %v1009 = vld [vmem:[%s235 + $0x1748] sm:$0xff]
      %v1010 = vld [vmem:[%s235 + $0x1750] sm:$0xff]
      %v1011 = vld [vmem:[%s235 + $0x1758] sm:$0xff]
      %v1012 = vld [vmem:[%s235 + $0x1760] sm:$0xff]
      %v1013 = vld [vmem:[%s235 + $0x1768] sm:$0xff]
      %v1014 = vld [vmem:[%s235 + $0x1770] sm:$0xff]
      %v1015 = vld [vmem:[%s235 + $0x1778] sm:$0xff]
      %v1016 = vld [vmem:[%s235 + $0x1780] sm:$0xff]
      %v1017 = vld [vmem:[%s235 + $0x1788] sm:$0xff]
      %v1018 = vld [vmem:[%s235 + $0x1790] sm:$0xff]
      %v1019 = vld [vmem:[%s235 + $0x1798] sm:$0xff]
      %v1020 = vld [vmem:[%s235 + $0x17a0] sm:$0xff]
      %v1021 = vld [vmem:[%s235 + $0x17a8] sm:$0xff]
      %v1022 = vld [vmem:[%s235 + $0x17b0] sm:$0xff]
      %v1023 = vld [vmem:[%s235 + $0x17b8] sm:$0xff]
      %v1024 = vld [vmem:[%s235 + $0x17c0] sm:$0xff]
      %v1025 = vld [vmem:[%s235 + $0x17c8] sm:$0xff]
      %v1026 = vld [vmem:[%s235 + $0x17d0] sm:$0xff]
      %v1027 = vld [vmem:[%s235 + $0x17d8] sm:$0xff]
      %v1028 = vld [vmem:[%s235 + $0x17e0] sm:$0xff]
      %v1029 = vld [vmem:[%s235 + $0x17e8] sm:$0xff]
      %v1030 = vld [vmem:[%s235 + $0x17f0] sm:$0xff]
      %v1031 = vld [vmem:[%s235 + $0x17f8] sm:$0xff]
      %v1032 = vld [vmem:[%s235 + $0x1800] sm:$0xff]
      %v1033 = vld [vmem:[%s235 + $0x1808] sm:$0xff]
      %v1034 = vld [vmem:[%s235 + $0x1810] sm:$0xff]
      %v1035 = vld [vmem:[%s235 + $0x1818] sm:$0xff]
      %v1036 = vld [vmem:[%s235 + $0x1820] sm:$0xff]
      %v1037 = vld [vmem:[%s235 + $0x1828] sm:$0xff]
      %v1038 = vld [vmem:[%s235 + $0x1830] sm:$0xff]
      %v1039 = vld [vmem:[%s235 + $0x1838] sm:$0xff]
      %v1040 = vld [vmem:[%s235 + $0x1840] sm:$0xff]
      %v1041 = vld [vmem:[%s235 + $0x1848] sm:$0xff]
      %v1042 = vld [vmem:[%s235 + $0x1850] sm:$0xff]
      %v1043 = vld [vmem:[%s235 + $0x1858] sm:$0xff]
      %v1044 = vld [vmem:[%s235 + $0x1860] sm:$0xff]
      %v1045 = vld [vmem:[%s235 + $0x1868] sm:$0xff]
      %v1046 = vld [vmem:[%s235 + $0x1870] sm:$0xff]
      %v1047 = vld [vmem:[%s235 + $0x1878] sm:$0xff]
      %v1048 = vld [vmem:[%s235 + $0x1880] sm:$0xff]
      %v1049 = vld [vmem:[%s235 + $0x1888] sm:$0xff]
      %v1050 = vld [vmem:[%s235 + $0x1890] sm:$0xff]
      %v1051 = vld [vmem:[%s235 + $0x1898] sm:$0xff]
      %v1052 = vld [vmem:[%s235 + $0x18a0] sm:$0xff]
      %v1053 = vld [vmem:[%s235 + $0x18a8] sm:$0xff]
      %v1054 = vld [vmem:[%s235 + $0x18b0] sm:$0xff]
      %v1055 = vld [vmem:[%s235 + $0x18b8] sm:$0xff]
      %v1056 = vld [vmem:[%s235 + $0x18c0] sm:$0xff]
      %v1057 = vld [vmem:[%s235 + $0x18c8] sm:$0xff]
      %v1058 = vld [vmem:[%s235 + $0x18d0] sm:$0xff]
      %v1059 = vld [vmem:[%s235 + $0x18d8] sm:$0xff]
      %v1060 = vld [vmem:[%s235 + $0x18e0] sm:$0xff]
      %v1061 = vld [vmem:[%s235 + $0x18e8] sm:$0xff]
      %v1062 = vld [vmem:[%s235 + $0x18f0] sm:$0xff]
      %v1063 = vld [vmem:[%s235 + $0x18f8] sm:$0xff]
      %v1064 = vld [vmem:[%s235 + $0x1900] sm:$0xff]
      %v1065 = vld [vmem:[%s235 + $0x1908] sm:$0xff]
      %v1066 = vld [vmem:[%s235 + $0x1910] sm:$0xff]
      %v1067 = vld [vmem:[%s235 + $0x1918] sm:$0xff]
      %v1068 = vld [vmem:[%s235 + $0x1920] sm:$0xff]
      %v1069 = vld [vmem:[%s235 + $0x1928] sm:$0xff]
      %v1070 = vld [vmem:[%s235 + $0x1930] sm:$0xff]
      %v1071 = vld [vmem:[%s235 + $0x1938] sm:$0xff]
      %v1072 = vld [vmem:[%s235 + $0x1940] sm:$0xff]
      %v1073 = vld [vmem:[%s235 + $0x1948] sm:$0xff]
      %v1074 = vld [vmem:[%s235 + $0x1950] sm:$0xff]
      %v1075 = vld [vmem:[%s235 + $0x1958] sm:$0xff]
      %v1076 = vld [vmem:[%s235 + $0x1960] sm:$0xff]
      %v1077 = vld [vmem:[%s235 + $0x1968] sm:$0xff]
      %v1078 = vld [vmem:[%s235 + $0x1970] sm:$0xff]
      %v1079 = vld [vmem:[%s235 + $0x1978] sm:$0xff]
      %v1080 = vld [vmem:[%s235 + $0x1980] sm:$0xff]
      %v1081 = vld [vmem:[%s235 + $0x1988] sm:$0xff]
      %v1082 = vld [vmem:[%s235 + $0x1990] sm:$0xff]
      %v1083 = vld [vmem:[%s235 + $0x1998] sm:$0xff]
      %v1084 = vld [vmem:[%s235 + $0x19a0] sm:$0xff]
      %v1085 = vld [vmem:[%s235 + $0x19a8] sm:$0xff]
      %v1086 = vld [vmem:[%s235 + $0x19b0] sm:$0xff]
      %v1087 = vld [vmem:[%s235 + $0x19b8] sm:$0xff]
      %v1088 = vld [vmem:[%s235 + $0x19c0] sm:$0xff]
      %v1089 = vld [vmem:[%s235 + $0x19c8] sm:$0xff]
      %v1090 = vld [vmem:[%s235 + $0x19d0] sm:$0xff]
      %v1091 = vld [vmem:[%s235 + $0x19d8] sm:$0xff]
      %v1092 = vld [vmem:[%s235 + $0x19e0] sm:$0xff]
      %v1093 = vld [vmem:[%s235 + $0x19e8] sm:$0xff]
      %v1094 = vld [vmem:[%s235 + $0x19f0] sm:$0xff]
      %v1095 = vld [vmem:[%s235 + $0x19f8] sm:$0xff]
      %v1096 = vld [vmem:[%s235 + $0x1a00] sm:$0xff]
      %v1097 = vld [vmem:[%s235 + $0x1a08] sm:$0xff]
      %v1098 = vld [vmem:[%s235 + $0x1a10] sm:$0xff]
      %v1099 = vld [vmem:[%s235 + $0x1a18] sm:$0xff]
      %v1100 = vld [vmem:[%s235 + $0x1a20] sm:$0xff]
      %v1101 = vld [vmem:[%s235 + $0x1a28] sm:$0xff]
      %v1102 = vld [vmem:[%s235 + $0x1a30] sm:$0xff]
      %v1103 = vld [vmem:[%s235 + $0x1a38] sm:$0xff]
      %v1104 = vld [vmem:[%s235 + $0x1a40] sm:$0xff]
      %v1105 = vld [vmem:[%s235 + $0x1a48] sm:$0xff]
      %v1106 = vld [vmem:[%s235 + $0x1a50] sm:$0xff]
      %v1107 = vld [vmem:[%s235 + $0x1a58] sm:$0xff]
      %v1108 = vld [vmem:[%s235 + $0x1a60] sm:$0xff]
      %v1109 = vld [vmem:[%s235 + $0x1a68] sm:$0xff]
      %v1110 = vld [vmem:[%s235 + $0x1a70] sm:$0xff]
      %v1111 = vld [vmem:[%s235 + $0x1a78] sm:$0xff]
      %v1112 = vld [vmem:[%s235 + $0x1a80] sm:$0xff]
      %v1113 = vld [vmem:[%s235 + $0x1a88] sm:$0xff]
      %v1114 = vld [vmem:[%s235 + $0x1a90] sm:$0xff]
      %v1115 = vld [vmem:[%s235 + $0x1a98] sm:$0xff]
      %v1116 = vld [vmem:[%s235 + $0x1aa0] sm:$0xff]
      %v1117 = vld [vmem:[%s235 + $0x1aa8] sm:$0xff]
      %v1118 = vld [vmem:[%s235 + $0x1ab0] sm:$0xff]
      %v1119 = vld [vmem:[%s235 + $0x1ab8] sm:$0xff]
      %v1120 = vld [vmem:[%s235 + $0x1ac0] sm:$0xff]
      %v1121 = vld [vmem:[%s235 + $0x1ac8] sm:$0xff]
      %v1122 = vld [vmem:[%s235 + $0x1ad0] sm:$0xff]
      %v1123 = vld [vmem:[%s235 + $0x1ad8] sm:$0xff]
      %v1124 = vld [vmem:[%s235 + $0x1ae0] sm:$0xff]
      %v1125 = vld [vmem:[%s235 + $0x1ae8] sm:$0xff]
      %v1126 = vld [vmem:[%s235 + $0x1af0] sm:$0xff]
      %v1127 = vld [vmem:[%s235 + $0x1af8] sm:$0xff]
      %v1128 = vld [vmem:[%s235 + $0x1b00] sm:$0xff]
      %v1129 = vld [vmem:[%s235 + $0x1b08] sm:$0xff]
      %v1130 = vld [vmem:[%s235 + $0x1b10] sm:$0xff]
      %v1131 = vld [vmem:[%s235 + $0x1b18] sm:$0xff]
      %v1132 = vld [vmem:[%s235 + $0x1b20] sm:$0xff]
      %v1133 = vld [vmem:[%s235 + $0x1b28] sm:$0xff]
      %v1134 = vld [vmem:[%s235 + $0x1b30] sm:$0xff]
      %v1135 = vld [vmem:[%s235 + $0x1b38] sm:$0xff]
      %v1136 = vld [vmem:[%s235 + $0x1b40] sm:$0xff]
      %v1137 = vld [vmem:[%s235 + $0x1b48] sm:$0xff]
      %v1138 = vld [vmem:[%s235 + $0x1b50] sm:$0xff]
      %v1139 = vld [vmem:[%s235 + $0x1b58] sm:$0xff]
      %v1140 = vld [vmem:[%s235 + $0x1b60] sm:$0xff]
      %v1141 = vld [vmem:[%s235 + $0x1b68] sm:$0xff]
      %v1142 = vld [vmem:[%s235 + $0x1b70] sm:$0xff]
      %v1143 = vld [vmem:[%s235 + $0x1b78] sm:$0xff]
      %v1144 = vld [vmem:[%s235 + $0x1b80] sm:$0xff]
      %v1145 = vld [vmem:[%s235 + $0x1b88] sm:$0xff]
      %v1146 = vld [vmem:[%s235 + $0x1b90] sm:$0xff]
      %v1147 = vld [vmem:[%s235 + $0x1b98] sm:$0xff]
      %v1148 = vld [vmem:[%s235 + $0x1ba0] sm:$0xff]
      %v1149 = vld [vmem:[%s235 + $0x1ba8] sm:$0xff]
      %v1150 = vld [vmem:[%s235 + $0x1bb0] sm:$0xff]
      %v1151 = vld [vmem:[%s235 + $0x1bb8] sm:$0xff]
      %v1152 = vld [vmem:[%s235 + $0x1bc0] sm:$0xff]
      %v1153 = vld [vmem:[%s235 + $0x1bc8] sm:$0xff]
      %v1154 = vld [vmem:[%s235 + $0x1bd0] sm:$0xff]
      %v1155 = vld [vmem:[%s235 + $0x1bd8] sm:$0xff]
      %v1156 = vld [vmem:[%s235 + $0x1be0] sm:$0xff]
      %v1157 = vld [vmem:[%s235 + $0x1be8] sm:$0xff]
      %v1158 = vld [vmem:[%s235 + $0x1bf0] sm:$0xff]
      %v1159 = vld [vmem:[%s235 + $0x1bf8] sm:$0xff]
      %v1174 = vunpack.c.l.b16 %v250
      %v1175 = vunpack.c.h.b16 %v250
      %v1176 = vunpack.c.l.b16 %v251
      %v1177 = vunpack.c.h.b16 %v251
      %v1178 = vunpack.c.l.b16 %v252
      %v1179 = vunpack.c.h.b16 %v252
      %v1180 = vunpack.c.l.b16 %v253
      %v1181 = vunpack.c.h.b16 %v253
      %v1182 = vunpack.c.l.b16 %v254
      %v1183 = vunpack.c.h.b16 %v254
      %v1184 = vunpack.c.l.b16 %v255
      %v1185 = vunpack.c.h.b16 %v255
      %v1186 = vunpack.c.l.b16 %v256
      %v1187 = vunpack.c.h.b16 %v256
      %v1188 = vunpack.c.l.b16 %v257
      %v1189 = vunpack.c.h.b16 %v257
      %v1190 = vunpack.c.l.b16 %v258
      %v1191 = vunpack.c.h.b16 %v258
      %v1192 = vunpack.c.l.b16 %v259
      %v1193 = vunpack.c.h.b16 %v259
      %v1194 = vunpack.c.l.b16 %v260
      %v1195 = vunpack.c.h.b16 %v260
      %v1196 = vunpack.c.l.b16 %v261
      %v1197 = vunpack.c.h.b16 %v261
      %v1198 = vunpack.c.l.b16 %v262
      %v1199 = vunpack.c.h.b16 %v262
      %v1200 = vunpack.c.l.b16 %v263
      %v1201 = vunpack.c.h.b16 %v263
      %v1202 = vpack.c.b16 %v1174, %v1174
      %v1203 = vpack.c.b16 %v1175, %v1175
      %v1204 = vpack.c.b16 %v1176, %v1176
      %v1205 = vpack.c.b16 %v1177, %v1177
      %v1206 = vpack.c.b16 %v1178, %v1178
      %v1207 = vpack.c.b16 %v1179, %v1179
      %v1208 = vpack.c.b16 %v1180, %v1180
      %v1209 = vpack.c.b16 %v1181, %v1181
      %v1210 = vpack.c.b16 %v1182, %v1182
      %v1211 = vpack.c.b16 %v1183, %v1183
      %v1212 = vpack.c.b16 %v1184, %v1184
      %v1213 = vpack.c.b16 %v1185, %v1185
      %v1214 = vpack.c.b16 %v1186, %v1186
      %v1215 = vpack.c.b16 %v1187, %v1187
      %v1216 = vpack.c.b16 %v1188, %v1188
      %v1217 = vpack.c.b16 %v1189, %v1189
      %v1218 = vpack.c.b16 %v1190, %v1190
      %v1219 = vpack.c.b16 %v1191, %v1191
      %v1220 = vpack.c.b16 %v1192, %v1192
      %v1221 = vpack.c.b16 %v1193, %v1193
      %v1222 = vpack.c.b16 %v1194, %v1194
      %v1223 = vpack.c.b16 %v1195, %v1195
      %v1224 = vpack.c.b16 %v1196, %v1196
      %v1225 = vpack.c.b16 %v1197, %v1197
      %v1226 = vpack.c.b16 %v1198, %v1198
      %v1227 = vpack.c.b16 %v1199, %v1199
      %v1228 = vpack.c.b16 %v1200, %v1200
      %v1229 = vpack.c.b16 %v1201, %v1201
      %v2154 = vunpack.c.l.b16 %v264
      %v2155 = vunpack.c.h.b16 %v264
      %v2156 = vunpack.c.l.b16 %v265
      %v2157 = vunpack.c.h.b16 %v265
      %v2158 = vunpack.c.l.b16 %v266
      %v2159 = vunpack.c.h.b16 %v266
      %v2160 = vunpack.c.l.b16 %v267
      %v2161 = vunpack.c.h.b16 %v267
      %v2162 = vunpack.c.l.b16 %v268
      %v2163 = vunpack.c.h.b16 %v268
      %v2164 = vunpack.c.l.b16 %v269
      %v2165 = vunpack.c.h.b16 %v269
      %v2166 = vunpack.c.l.b16 %v270
      %v2167 = vunpack.c.h.b16 %v270
      %v2168 = vunpack.c.l.b16 %v271
      %v2169 = vunpack.c.h.b16 %v271
      %v2170 = vunpack.c.l.b16 %v272
      %v2171 = vunpack.c.h.b16 %v272
      %v2172 = vunpack.c.l.b16 %v273
      %v2173 = vunpack.c.h.b16 %v273
      %v2174 = vunpack.c.l.b16 %v274
      %v2175 = vunpack.c.h.b16 %v274
      %v2176 = vunpack.c.l.b16 %v275
      %v2177 = vunpack.c.h.b16 %v275
      %v2178 = vunpack.c.l.b16 %v276
      %v2179 = vunpack.c.h.b16 %v276
      %v2180 = vunpack.c.l.b16 %v277
      %v2181 = vunpack.c.h.b16 %v277
      %v2182 = vunpack.c.l.b16 %v278
      %v2183 = vunpack.c.h.b16 %v278
      %v2184 = vunpack.c.l.b16 %v279
      %v2185 = vunpack.c.h.b16 %v279
      %v2186 = vunpack.c.l.b16 %v280
      %v2187 = vunpack.c.h.b16 %v280
      %v2188 = vunpack.c.l.b16 %v281
      %v2189 = vunpack.c.h.b16 %v281
      %v2190 = vunpack.c.l.b16 %v282
      %v2191 = vunpack.c.h.b16 %v282
      %v2192 = vunpack.c.l.b16 %v283
      %v2193 = vunpack.c.h.b16 %v283
      %v2194 = vunpack.c.l.b16 %v284
      %v2195 = vunpack.c.h.b16 %v284
      %v2196 = vunpack.c.l.b16 %v285
      %v2197 = vunpack.c.h.b16 %v285
      %v2198 = vunpack.c.l.b16 %v286
      %v2199 = vunpack.c.h.b16 %v286
      %v2200 = vunpack.c.l.b16 %v287
      %v2201 = vunpack.c.h.b16 %v287
      %v2202 = vunpack.c.l.b16 %v288
      %v2203 = vunpack.c.h.b16 %v288
      %v2204 = vunpack.c.l.b16 %v289
      %v2205 = vunpack.c.h.b16 %v289
      %v2206 = vunpack.c.l.b16 %v290
      %v2207 = vunpack.c.h.b16 %v290
      %v2208 = vunpack.c.l.b16 %v291
      %v2209 = vunpack.c.h.b16 %v291
      %v2210 = vunpack.c.l.b16 %v292
      %v2211 = vunpack.c.h.b16 %v292
      %v2212 = vunpack.c.l.b16 %v293
      %v2213 = vunpack.c.h.b16 %v293
      %v2214 = vunpack.c.l.b16 %v294
      %v2215 = vunpack.c.h.b16 %v294
      %v2216 = vunpack.c.l.b16 %v295
      %v2217 = vunpack.c.h.b16 %v295
      %v2218 = vunpack.c.l.b16 %v296
      %v2219 = vunpack.c.h.b16 %v296
      %v2220 = vunpack.c.l.b16 %v297
      %v2221 = vunpack.c.h.b16 %v297
      %v2222 = vunpack.c.l.b16 %v298
      %v2223 = vunpack.c.h.b16 %v298
      %v2224 = vunpack.c.l.b16 %v299
      %v2225 = vunpack.c.h.b16 %v299
      %v2226 = vunpack.c.l.b16 %v300
      %v2227 = vunpack.c.h.b16 %v300
      %v2228 = vunpack.c.l.b16 %v301
      %v2229 = vunpack.c.h.b16 %v301
      %v2230 = vunpack.c.l.b16 %v302
      %v2231 = vunpack.c.h.b16 %v302
      %v2232 = vunpack.c.l.b16 %v303
      %v2233 = vunpack.c.h.b16 %v303
      %v2234 = vunpack.c.l.b16 %v304
      %v2235 = vunpack.c.h.b16 %v304
      %v2236 = vunpack.c.l.b16 %v305
      %v2237 = vunpack.c.h.b16 %v305
      %v2238 = vunpack.c.l.b16 %v306
      %v2239 = vunpack.c.h.b16 %v306
      %v2240 = vunpack.c.l.b16 %v307
      %v2241 = vunpack.c.h.b16 %v307
      %v2242 = vunpack.c.l.b16 %v308
      %v2243 = vunpack.c.h.b16 %v308
      %v2244 = vunpack.c.l.b16 %v309
      %v2245 = vunpack.c.h.b16 %v309
      %v2246 = vunpack.c.l.b16 %v310
      %v2247 = vunpack.c.h.b16 %v310
      %v2248 = vunpack.c.l.b16 %v311
      %v2249 = vunpack.c.h.b16 %v311
      %v2250 = vunpack.c.l.b16 %v312
      %v2251 = vunpack.c.h.b16 %v312
      %v2252 = vunpack.c.l.b16 %v313
      %v2253 = vunpack.c.h.b16 %v313
      %v2254 = vunpack.c.l.b16 %v314
      %v2255 = vunpack.c.h.b16 %v314
      %v2256 = vunpack.c.l.b16 %v315
      %v2257 = vunpack.c.h.b16 %v315
      %v2258 = vunpack.c.l.b16 %v316
      %v2259 = vunpack.c.h.b16 %v316
      %v2260 = vunpack.c.l.b16 %v317
      %v2261 = vunpack.c.h.b16 %v317
      %v2262 = vunpack.c.l.b16 %v318
      %v2263 = vunpack.c.h.b16 %v318
      %v2264 = vunpack.c.l.b16 %v319
      %v2265 = vunpack.c.h.b16 %v319
      %v2266 = vunpack.c.l.b16 %v320
      %v2267 = vunpack.c.h.b16 %v320
      %v2268 = vunpack.c.l.b16 %v321
      %v2269 = vunpack.c.h.b16 %v321
      %v2270 = vunpack.c.l.b16 %v322
      %v2271 = vunpack.c.h.b16 %v322
      %v2272 = vunpack.c.l.b16 %v323
      %v2273 = vunpack.c.h.b16 %v323
      %v2274 = vunpack.c.l.b16 %v324
      %v2275 = vunpack.c.h.b16 %v324
      %v2276 = vunpack.c.l.b16 %v325
      %v2277 = vunpack.c.h.b16 %v325
      %v2278 = vunpack.c.l.b16 %v326
      %v2279 = vunpack.c.h.b16 %v326
      %v2280 = vunpack.c.l.b16 %v327
      %v2281 = vunpack.c.h.b16 %v327
      %v2282 = vunpack.c.l.b16 %v328
      %v2283 = vunpack.c.h.b16 %v328
      %v2284 = vunpack.c.l.b16 %v329
      %v2285 = vunpack.c.h.b16 %v329
      %v2286 = vunpack.c.l.b16 %v330
      %v2287 = vunpack.c.h.b16 %v330
      %v2288 = vunpack.c.l.b16 %v331
      %v2289 = vunpack.c.h.b16 %v331
      %v2290 = vunpack.c.l.b16 %v332
      %v2291 = vunpack.c.h.b16 %v332
      %v2292 = vunpack.c.l.b16 %v333
      %v2293 = vunpack.c.h.b16 %v333
      %v2294 = vunpack.c.l.b16 %v334
      %v2295 = vunpack.c.h.b16 %v334
      %v2296 = vunpack.c.l.b16 %v335
      %v2297 = vunpack.c.h.b16 %v335
      %v2298 = vunpack.c.l.b16 %v336
      %v2299 = vunpack.c.h.b16 %v336
      %v2300 = vunpack.c.l.b16 %v337
      %v2301 = vunpack.c.h.b16 %v337
      %v2302 = vunpack.c.l.b16 %v338
      %v2303 = vunpack.c.h.b16 %v338
      %v2304 = vunpack.c.l.b16 %v339
      %v2305 = vunpack.c.h.b16 %v339
      %v2306 = vunpack.c.l.b16 %v340
      %v2307 = vunpack.c.h.b16 %v340
      %v2308 = vunpack.c.l.b16 %v341
      %v2309 = vunpack.c.h.b16 %v341
      %v2310 = vunpack.c.l.b16 %v342
      %v2311 = vunpack.c.h.b16 %v342
      %v2312 = vunpack.c.l.b16 %v343
      %v2313 = vunpack.c.h.b16 %v343
      %v2314 = vunpack.c.l.b16 %v344
      %v2315 = vunpack.c.h.b16 %v344
      %v2316 = vunpack.c.l.b16 %v345
      %v2317 = vunpack.c.h.b16 %v345
      %v2318 = vunpack.c.l.b16 %v346
      %v2319 = vunpack.c.h.b16 %v346
      %v2320 = vunpack.c.l.b16 %v347
      %v2321 = vunpack.c.h.b16 %v347
      %v2322 = vunpack.c.l.b16 %v348
      %v2323 = vunpack.c.h.b16 %v348
      %v2324 = vunpack.c.l.b16 %v349
      %v2325 = vunpack.c.h.b16 %v349
      %v2326 = vunpack.c.l.b16 %v350
      %v2327 = vunpack.c.h.b16 %v350
      %v2328 = vunpack.c.l.b16 %v351
      %v2329 = vunpack.c.h.b16 %v351
      %v2330 = vunpack.c.l.b16 %v352
      %v2331 = vunpack.c.h.b16 %v352
      %v2332 = vunpack.c.l.b16 %v353
      %v2333 = vunpack.c.h.b16 %v353
      %v2334 = vunpack.c.l.b16 %v354
      %v2335 = vunpack.c.h.b16 %v354
      %v2336 = vunpack.c.l.b16 %v355
      %v2337 = vunpack.c.h.b16 %v355
      %v2338 = vunpack.c.l.b16 %v356
      %v2339 = vunpack.c.h.b16 %v356
      %v2340 = vunpack.c.l.b16 %v357
      %v2341 = vunpack.c.h.b16 %v357
      %v2342 = vunpack.c.l.b16 %v358
      %v2343 = vunpack.c.h.b16 %v358
      %v2344 = vunpack.c.l.b16 %v359
      %v2345 = vunpack.c.h.b16 %v359
      %v2346 = vunpack.c.l.b16 %v360
      %v2347 = vunpack.c.h.b16 %v360
      %v2348 = vunpack.c.l.b16 %v361
      %v2349 = vunpack.c.h.b16 %v361
      %v2350 = vunpack.c.l.b16 %v362
      %v2351 = vunpack.c.h.b16 %v362
      %v2352 = vunpack.c.l.b16 %v363
      %v2353 = vunpack.c.h.b16 %v363
      %v2354 = vunpack.c.l.b16 %v364
      %v2355 = vunpack.c.h.b16 %v364
      %v2356 = vunpack.c.l.b16 %v365
      %v2357 = vunpack.c.h.b16 %v365
      %v2358 = vunpack.c.l.b16 %v366
      %v2359 = vunpack.c.h.b16 %v366
      %v2360 = vunpack.c.l.b16 %v367
      %v2361 = vunpack.c.h.b16 %v367
      %v2362 = vunpack.c.l.b16 %v368
      %v2363 = vunpack.c.h.b16 %v368
      %v2364 = vunpack.c.l.b16 %v369
      %v2365 = vunpack.c.h.b16 %v369
      %v2366 = vunpack.c.l.b16 %v370
      %v2367 = vunpack.c.h.b16 %v370
      %v2368 = vunpack.c.l.b16 %v371
      %v2369 = vunpack.c.h.b16 %v371
      %v2370 = vunpack.c.l.b16 %v372
      %v2371 = vunpack.c.h.b16 %v372
      %v2372 = vunpack.c.l.b16 %v373
      %v2373 = vunpack.c.h.b16 %v373
      %v2374 = vunpack.c.l.b16 %v374
      %v2375 = vunpack.c.h.b16 %v374
      %v2376 = vunpack.c.l.b16 %v375
      %v2377 = vunpack.c.h.b16 %v375
      %v2378 = vunpack.c.l.b16 %v376
      %v2379 = vunpack.c.h.b16 %v376
      %v2380 = vunpack.c.l.b16 %v377
      %v2381 = vunpack.c.h.b16 %v377
      %v2382 = vunpack.c.l.b16 %v378
      %v2383 = vunpack.c.h.b16 %v378
      %v2384 = vunpack.c.l.b16 %v379
      %v2385 = vunpack.c.h.b16 %v379
      %v2386 = vunpack.c.l.b16 %v380
      %v2387 = vunpack.c.h.b16 %v380
      %v2388 = vunpack.c.l.b16 %v381
      %v2389 = vunpack.c.h.b16 %v381
      %v2390 = vunpack.c.l.b16 %v382
      %v2391 = vunpack.c.h.b16 %v382
      %v2392 = vunpack.c.l.b16 %v383
      %v2393 = vunpack.c.h.b16 %v383
      %v2394 = vunpack.c.l.b16 %v384
      %v2395 = vunpack.c.h.b16 %v384
      %v2396 = vunpack.c.l.b16 %v385
      %v2397 = vunpack.c.h.b16 %v385
      %v2398 = vunpack.c.l.b16 %v386
      %v2399 = vunpack.c.h.b16 %v386
      %v2400 = vunpack.c.l.b16 %v387
      %v2401 = vunpack.c.h.b16 %v387
      %v2402 = vunpack.c.l.b16 %v388
      %v2403 = vunpack.c.h.b16 %v388
      %v2404 = vunpack.c.l.b16 %v389
      %v2405 = vunpack.c.h.b16 %v389
      %v2406 = vunpack.c.l.b16 %v390
      %v2407 = vunpack.c.h.b16 %v390
      %v2408 = vunpack.c.l.b16 %v391
      %v2409 = vunpack.c.h.b16 %v391
      %v2410 = vunpack.c.l.b16 %v392
      %v2411 = vunpack.c.h.b16 %v392
      %v2412 = vunpack.c.l.b16 %v393
      %v2413 = vunpack.c.h.b16 %v393
      %v2414 = vunpack.c.l.b16 %v394
      %v2415 = vunpack.c.h.b16 %v394
      %v2416 = vunpack.c.l.b16 %v395
      %v2417 = vunpack.c.h.b16 %v395
      %v2418 = vunpack.c.l.b16 %v396
      %v2419 = vunpack.c.h.b16 %v396
      %v2420 = vunpack.c.l.b16 %v397
      %v2421 = vunpack.c.h.b16 %v397
      %v2422 = vunpack.c.l.b16 %v398
      %v2423 = vunpack.c.h.b16 %v398
      %v2424 = vunpack.c.l.b16 %v399
      %v2425 = vunpack.c.h.b16 %v399
      %v2426 = vunpack.c.l.b16 %v400
      %v2427 = vunpack.c.h.b16 %v400
      %v2428 = vunpack.c.l.b16 %v401
      %v2429 = vunpack.c.h.b16 %v401
      %v2430 = vunpack.c.l.b16 %v402
      %v2431 = vunpack.c.h.b16 %v402
      %v2432 = vunpack.c.l.b16 %v403
      %v2433 = vunpack.c.h.b16 %v403
      %v2434 = vunpack.c.l.b16 %v404
      %v2435 = vunpack.c.h.b16 %v404
      %v2436 = vunpack.c.l.b16 %v405
      %v2437 = vunpack.c.h.b16 %v405
      %v2438 = vunpack.c.l.b16 %v406
      %v2439 = vunpack.c.h.b16 %v406
      %v2440 = vunpack.c.l.b16 %v407
      %v2441 = vunpack.c.h.b16 %v407
      %v2442 = vunpack.c.l.b16 %v408
      %v2443 = vunpack.c.h.b16 %v408
      %v2444 = vunpack.c.l.b16 %v409
      %v2445 = vunpack.c.h.b16 %v409
      %v2446 = vunpack.c.l.b16 %v410
      %v2447 = vunpack.c.h.b16 %v410
      %v2448 = vunpack.c.l.b16 %v411
      %v2449 = vunpack.c.h.b16 %v411
      %v2450 = vunpack.c.l.b16 %v412
      %v2451 = vunpack.c.h.b16 %v412
      %v2452 = vunpack.c.l.b16 %v413
      %v2453 = vunpack.c.h.b16 %v413
      %v2454 = vunpack.c.l.b16 %v414
      %v2455 = vunpack.c.h.b16 %v414
      %v2456 = vunpack.c.l.b16 %v415
      %v2457 = vunpack.c.h.b16 %v415
      %v2458 = vunpack.c.l.b16 %v416
      %v2459 = vunpack.c.h.b16 %v416
      %v2460 = vunpack.c.l.b16 %v417
      %v2461 = vunpack.c.h.b16 %v417
      %v2462 = vunpack.c.l.b16 %v418
      %v2463 = vunpack.c.h.b16 %v418
      %v2464 = vunpack.c.l.b16 %v419
      %v2465 = vunpack.c.h.b16 %v419
      %v2466 = vunpack.c.l.b16 %v420
      %v2467 = vunpack.c.h.b16 %v420
      %v2468 = vunpack.c.l.b16 %v421
      %v2469 = vunpack.c.h.b16 %v421
      %v2470 = vunpack.c.l.b16 %v422
      %v2471 = vunpack.c.h.b16 %v422
      %v2472 = vunpack.c.l.b16 %v423
      %v2473 = vunpack.c.h.b16 %v423
      %v2474 = vunpack.c.l.b16 %v424
      %v2475 = vunpack.c.h.b16 %v424
      %v2476 = vunpack.c.l.b16 %v425
      %v2477 = vunpack.c.h.b16 %v425
      %v2478 = vunpack.c.l.b16 %v426
      %v2479 = vunpack.c.h.b16 %v426
      %v2480 = vunpack.c.l.b16 %v427
      %v2481 = vunpack.c.h.b16 %v427
      %v2482 = vunpack.c.l.b16 %v428
      %v2483 = vunpack.c.h.b16 %v428
      %v2484 = vunpack.c.l.b16 %v429
      %v2485 = vunpack.c.h.b16 %v429
      %v2486 = vunpack.c.l.b16 %v430
      %v2487 = vunpack.c.h.b16 %v430
      %v2488 = vunpack.c.l.b16 %v431
      %v2489 = vunpack.c.h.b16 %v431
      %v2490 = vunpack.c.l.b16 %v432
      %v2491 = vunpack.c.h.b16 %v432
      %v2492 = vunpack.c.l.b16 %v433
      %v2493 = vunpack.c.h.b16 %v433
      %v2494 = vunpack.c.l.b16 %v434
      %v2495 = vunpack.c.h.b16 %v434
      %v2496 = vunpack.c.l.b16 %v435
      %v2497 = vunpack.c.h.b16 %v435
      %v2498 = vunpack.c.l.b16 %v436
      %v2499 = vunpack.c.h.b16 %v436
      %v2500 = vunpack.c.l.b16 %v437
      %v2501 = vunpack.c.h.b16 %v437
      %v2502 = vunpack.c.l.b16 %v438
      %v2503 = vunpack.c.h.b16 %v438
      %v2504 = vunpack.c.l.b16 %v439
      %v2505 = vunpack.c.h.b16 %v439
      %v2506 = vunpack.c.l.b16 %v440
      %v2507 = vunpack.c.h.b16 %v440
      %v2508 = vunpack.c.l.b16 %v441
      %v2509 = vunpack.c.h.b16 %v441
      %v2510 = vunpack.c.l.b16 %v442
      %v2511 = vunpack.c.h.b16 %v442
      %v2512 = vunpack.c.l.b16 %v443
      %v2513 = vunpack.c.h.b16 %v443
      %v2514 = vunpack.c.l.b16 %v444
      %v2515 = vunpack.c.h.b16 %v444
      %v2516 = vunpack.c.l.b16 %v445
      %v2517 = vunpack.c.h.b16 %v445
      %v2518 = vunpack.c.l.b16 %v446
      %v2519 = vunpack.c.h.b16 %v446
      %v2520 = vunpack.c.l.b16 %v447
      %v2521 = vunpack.c.h.b16 %v447
      %v2522 = vunpack.c.l.b16 %v448
      %v2523 = vunpack.c.h.b16 %v448
      %v2524 = vunpack.c.l.b16 %v449
      %v2525 = vunpack.c.h.b16 %v449
      %v2526 = vunpack.c.l.b16 %v450
      %v2527 = vunpack.c.h.b16 %v450
      %v2528 = vunpack.c.l.b16 %v451
      %v2529 = vunpack.c.h.b16 %v451
      %v2530 = vunpack.c.l.b16 %v452
      %v2531 = vunpack.c.h.b16 %v452
      %v2532 = vunpack.c.l.b16 %v453
      %v2533 = vunpack.c.h.b16 %v453
      %v2534 = vunpack.c.l.b16 %v454
      %v2535 = vunpack.c.h.b16 %v454
      %v2536 = vunpack.c.l.b16 %v455
      %v2537 = vunpack.c.h.b16 %v455
      %v2538 = vunpack.c.l.b16 %v456
      %v2539 = vunpack.c.h.b16 %v456
      %v2540 = vunpack.c.l.b16 %v457
      %v2541 = vunpack.c.h.b16 %v457
      %v2542 = vunpack.c.l.b16 %v458
      %v2543 = vunpack.c.h.b16 %v458
      %v2544 = vunpack.c.l.b16 %v459
      %v2545 = vunpack.c.h.b16 %v459
      %v2546 = vunpack.c.l.b16 %v460
      %v2547 = vunpack.c.h.b16 %v460
      %v2548 = vunpack.c.l.b16 %v461
      %v2549 = vunpack.c.h.b16 %v461
      %v2550 = vunpack.c.l.b16 %v462
      %v2551 = vunpack.c.h.b16 %v462
      %v2552 = vunpack.c.l.b16 %v463
      %v2553 = vunpack.c.h.b16 %v463
      %v2554 = vunpack.c.l.b16 %v464
      %v2555 = vunpack.c.h.b16 %v464
      %v2556 = vunpack.c.l.b16 %v465
      %v2557 = vunpack.c.h.b16 %v465
      %v2558 = vunpack.c.l.b16 %v466
      %v2559 = vunpack.c.h.b16 %v466
      %v2560 = vunpack.c.l.b16 %v467
      %v2561 = vunpack.c.h.b16 %v467
      %v2562 = vunpack.c.l.b16 %v468
      %v2563 = vunpack.c.h.b16 %v468
      %v2564 = vunpack.c.l.b16 %v469
      %v2565 = vunpack.c.h.b16 %v469
      %v2566 = vunpack.c.l.b16 %v470
      %v2567 = vunpack.c.h.b16 %v470
      %v2568 = vunpack.c.l.b16 %v471
      %v2569 = vunpack.c.h.b16 %v471
      %v2570 = vunpack.c.l.b16 %v472
      %v2571 = vunpack.c.h.b16 %v472
      %v2572 = vunpack.c.l.b16 %v473
      %v2573 = vunpack.c.h.b16 %v473
      %v2574 = vunpack.c.l.b16 %v474
      %v2575 = vunpack.c.h.b16 %v474
      %v2576 = vunpack.c.l.b16 %v475
      %v2577 = vunpack.c.h.b16 %v475
      %v2578 = vunpack.c.l.b16 %v476
      %v2579 = vunpack.c.h.b16 %v476
      %v2580 = vunpack.c.l.b16 %v477
      %v2581 = vunpack.c.h.b16 %v477
      %v2582 = vunpack.c.l.b16 %v478
      %v2583 = vunpack.c.h.b16 %v478
      %v2584 = vunpack.c.l.b16 %v479
      %v2585 = vunpack.c.h.b16 %v479
      %v2586 = vunpack.c.l.b16 %v480
      %v2587 = vunpack.c.h.b16 %v480
      %v2588 = vunpack.c.l.b16 %v481
      %v2589 = vunpack.c.h.b16 %v481
      %v2590 = vunpack.c.l.b16 %v482
      %v2591 = vunpack.c.h.b16 %v482
      %v2592 = vunpack.c.l.b16 %v483
      %v2593 = vunpack.c.h.b16 %v483
      %v2594 = vunpack.c.l.b16 %v484
      %v2595 = vunpack.c.h.b16 %v484
      %v2596 = vunpack.c.l.b16 %v485
      %v2597 = vunpack.c.h.b16 %v485
      %v2598 = vunpack.c.l.b16 %v486
      %v2599 = vunpack.c.h.b16 %v486
      %v2600 = vunpack.c.l.b16 %v487
      %v2601 = vunpack.c.h.b16 %v487
      %v2602 = vunpack.c.l.b16 %v488
      %v2603 = vunpack.c.h.b16 %v488
      %v2604 = vunpack.c.l.b16 %v489
      %v2605 = vunpack.c.h.b16 %v489
      %v2606 = vunpack.c.l.b16 %v490
      %v2607 = vunpack.c.h.b16 %v490
      %v2608 = vunpack.c.l.b16 %v491
      %v2609 = vunpack.c.h.b16 %v491
      %v2610 = vunpack.c.l.b16 %v492
      %v2611 = vunpack.c.h.b16 %v492
      %v2612 = vunpack.c.l.b16 %v493
      %v2613 = vunpack.c.h.b16 %v493
      %v2614 = vunpack.c.l.b16 %v494
      %v2615 = vunpack.c.h.b16 %v494
      %v2616 = vunpack.c.l.b16 %v495
      %v2617 = vunpack.c.h.b16 %v495
      %v2618 = vunpack.c.l.b16 %v496
      %v2619 = vunpack.c.h.b16 %v496
      %v2620 = vunpack.c.l.b16 %v497
      %v2621 = vunpack.c.h.b16 %v497
      %v2622 = vunpack.c.l.b16 %v498
      %v2623 = vunpack.c.h.b16 %v498
      %v2624 = vunpack.c.l.b16 %v499
      %v2625 = vunpack.c.h.b16 %v499
      %v2626 = vunpack.c.l.b16 %v500
      %v2627 = vunpack.c.h.b16 %v500
      %v2628 = vunpack.c.l.b16 %v501
      %v2629 = vunpack.c.h.b16 %v501
      %v2630 = vunpack.c.l.b16 %v502
      %v2631 = vunpack.c.h.b16 %v502
      %v2632 = vunpack.c.l.b16 %v503
      %v2633 = vunpack.c.h.b16 %v503
      %v2634 = vunpack.c.l.b16 %v504
      %v2635 = vunpack.c.h.b16 %v504
      %v2636 = vunpack.c.l.b16 %v505
      %v2637 = vunpack.c.h.b16 %v505
      %v2638 = vunpack.c.l.b16 %v506
      %v2639 = vunpack.c.h.b16 %v506
      %v2640 = vunpack.c.l.b16 %v507
      %v2641 = vunpack.c.h.b16 %v507
      %v2642 = vunpack.c.l.b16 %v508
      %v2643 = vunpack.c.h.b16 %v508
      %v2644 = vunpack.c.l.b16 %v509
      %v2645 = vunpack.c.h.b16 %v509
      %v2646 = vunpack.c.l.b16 %v510
      %v2647 = vunpack.c.h.b16 %v510
      %v2648 = vunpack.c.l.b16 %v511
      %v2649 = vunpack.c.h.b16 %v511
      %v2650 = vunpack.c.l.b16 %v512
      %v2651 = vunpack.c.h.b16 %v512
      %v2652 = vunpack.c.l.b16 %v513
      %v2653 = vunpack.c.h.b16 %v513
      %v2654 = vunpack.c.l.b16 %v514
      %v2655 = vunpack.c.h.b16 %v514
      %v2656 = vunpack.c.l.b16 %v515
      %v2657 = vunpack.c.h.b16 %v515
      %v2658 = vunpack.c.l.b16 %v516
      %v2659 = vunpack.c.h.b16 %v516
      %v2660 = vunpack.c.l.b16 %v517
      %v2661 = vunpack.c.h.b16 %v517
      %v2662 = vunpack.c.l.b16 %v518
      %v2663 = vunpack.c.h.b16 %v518
      %v2664 = vunpack.c.l.b16 %v519
      %v2665 = vunpack.c.h.b16 %v519
      %v2666 = vunpack.c.l.b16 %v520
      %v2667 = vunpack.c.h.b16 %v520
      %v2668 = vunpack.c.l.b16 %v521
      %v2669 = vunpack.c.h.b16 %v521
      %v2670 = vunpack.c.l.b16 %v522
      %v2671 = vunpack.c.h.b16 %v522
      %v2672 = vunpack.c.l.b16 %v523
      %v2673 = vunpack.c.h.b16 %v523
      %v2674 = vunpack.c.l.b16 %v524
      %v2675 = vunpack.c.h.b16 %v524
      %v2676 = vunpack.c.l.b16 %v525
      %v2677 = vunpack.c.h.b16 %v525
      %v2678 = vunpack.c.l.b16 %v526
      %v2679 = vunpack.c.h.b16 %v526
      %v2680 = vunpack.c.l.b16 %v527
      %v2681 = vunpack.c.h.b16 %v527
      %v2682 = vunpack.c.l.b16 %v528
      %v2683 = vunpack.c.h.b16 %v528
      %v2684 = vunpack.c.l.b16 %v529
      %v2685 = vunpack.c.h.b16 %v529
      %v2686 = vunpack.c.l.b16 %v530
      %v2687 = vunpack.c.h.b16 %v530
      %v2688 = vunpack.c.l.b16 %v531
      %v2689 = vunpack.c.h.b16 %v531
      %v2690 = vunpack.c.l.b16 %v532
      %v2691 = vunpack.c.h.b16 %v532
      %v2692 = vunpack.c.l.b16 %v533
      %v2693 = vunpack.c.h.b16 %v533
      %v2694 = vunpack.c.l.b16 %v534
      %v2695 = vunpack.c.h.b16 %v534
      %v2696 = vunpack.c.l.b16 %v535
      %v2697 = vunpack.c.h.b16 %v535
      %v2698 = vunpack.c.l.b16 %v536
      %v2699 = vunpack.c.h.b16 %v536
      %v2700 = vunpack.c.l.b16 %v537
      %v2701 = vunpack.c.h.b16 %v537
      %v2702 = vunpack.c.l.b16 %v538
      %v2703 = vunpack.c.h.b16 %v538
      %v2704 = vunpack.c.l.b16 %v539
      %v2705 = vunpack.c.h.b16 %v539
      %v2706 = vunpack.c.l.b16 %v540
      %v2707 = vunpack.c.h.b16 %v540
      %v2708 = vunpack.c.l.b16 %v541
      %v2709 = vunpack.c.h.b16 %v541
      %v2710 = vunpack.c.l.b16 %v542
      %v2711 = vunpack.c.h.b16 %v542
      %v2712 = vunpack.c.l.b16 %v543
      %v2713 = vunpack.c.h.b16 %v543
      %v2714 = vunpack.c.l.b16 %v544
      %v2715 = vunpack.c.h.b16 %v544
      %v2716 = vunpack.c.l.b16 %v545
      %v2717 = vunpack.c.h.b16 %v545
      %v2718 = vunpack.c.l.b16 %v546
      %v2719 = vunpack.c.h.b16 %v546
      %v2720 = vunpack.c.l.b16 %v547
      %v2721 = vunpack.c.h.b16 %v547
      %v2722 = vunpack.c.l.b16 %v548
      %v2723 = vunpack.c.h.b16 %v548
      %v2724 = vunpack.c.l.b16 %v549
      %v2725 = vunpack.c.h.b16 %v549
      %v2726 = vunpack.c.l.b16 %v550
      %v2727 = vunpack.c.h.b16 %v550
      %v2728 = vunpack.c.l.b16 %v551
      %v2729 = vunpack.c.h.b16 %v551
      %v2730 = vunpack.c.l.b16 %v552
      %v2731 = vunpack.c.h.b16 %v552
      %v2732 = vunpack.c.l.b16 %v553
      %v2733 = vunpack.c.h.b16 %v553
      %v2734 = vunpack.c.l.b16 %v554
      %v2735 = vunpack.c.h.b16 %v554
      %v2736 = vunpack.c.l.b16 %v555
      %v2737 = vunpack.c.h.b16 %v555
      %v2738 = vunpack.c.l.b16 %v556
      %v2739 = vunpack.c.h.b16 %v556
      %v2740 = vunpack.c.l.b16 %v557
      %v2741 = vunpack.c.h.b16 %v557
      %v2742 = vunpack.c.l.b16 %v558
      %v2743 = vunpack.c.h.b16 %v558
      %v2744 = vunpack.c.l.b16 %v559
      %v2745 = vunpack.c.h.b16 %v559
      %v2746 = vunpack.c.l.b16 %v560
      %v2747 = vunpack.c.h.b16 %v560
      %v2748 = vunpack.c.l.b16 %v561
      %v2749 = vunpack.c.h.b16 %v561
      %v2750 = vunpack.c.l.b16 %v562
      %v2751 = vunpack.c.h.b16 %v562
      %v2752 = vunpack.c.l.b16 %v563
      %v2753 = vunpack.c.h.b16 %v563
      %v2754 = vunpack.c.l.b16 %v564
      %v2755 = vunpack.c.h.b16 %v564
      %v2756 = vunpack.c.l.b16 %v565
      %v2757 = vunpack.c.h.b16 %v565
      %v2758 = vunpack.c.l.b16 %v566
      %v2759 = vunpack.c.h.b16 %v566
      %v2760 = vunpack.c.l.b16 %v567
      %v2761 = vunpack.c.h.b16 %v567
      %v2762 = vunpack.c.l.b16 %v568
      %v2763 = vunpack.c.h.b16 %v568
      %v2764 = vunpack.c.l.b16 %v569
      %v2765 = vunpack.c.h.b16 %v569
      %v2766 = vunpack.c.l.b16 %v570
      %v2767 = vunpack.c.h.b16 %v570
      %v2768 = vunpack.c.l.b16 %v571
      %v2769 = vunpack.c.h.b16 %v571
      %v2770 = vunpack.c.l.b16 %v572
      %v2771 = vunpack.c.h.b16 %v572
      %v2772 = vunpack.c.l.b16 %v573
      %v2773 = vunpack.c.h.b16 %v573
      %v2774 = vunpack.c.l.b16 %v574
      %v2775 = vunpack.c.h.b16 %v574
      %v2776 = vunpack.c.l.b16 %v575
      %v2777 = vunpack.c.h.b16 %v575
      %v2778 = vunpack.c.l.b16 %v576
      %v2779 = vunpack.c.h.b16 %v576
      %v2780 = vunpack.c.l.b16 %v577
      %v2781 = vunpack.c.h.b16 %v577
      %v2782 = vunpack.c.l.b16 %v578
      %v2783 = vunpack.c.h.b16 %v578
      %v2784 = vunpack.c.l.b16 %v579
      %v2785 = vunpack.c.h.b16 %v579
      %v2786 = vunpack.c.l.b16 %v580
      %v2787 = vunpack.c.h.b16 %v580
      %v2788 = vunpack.c.l.b16 %v581
      %v2789 = vunpack.c.h.b16 %v581
      %v2790 = vunpack.c.l.b16 %v582
      %v2791 = vunpack.c.h.b16 %v582
      %v2792 = vunpack.c.l.b16 %v583
      %v2793 = vunpack.c.h.b16 %v583
      %v2794 = vunpack.c.l.b16 %v584
      %v2795 = vunpack.c.h.b16 %v584
      %v2796 = vunpack.c.l.b16 %v585
      %v2797 = vunpack.c.h.b16 %v585
      %v2798 = vunpack.c.l.b16 %v586
      %v2799 = vunpack.c.h.b16 %v586
      %v2800 = vunpack.c.l.b16 %v587
      %v2801 = vunpack.c.h.b16 %v587
      %v2802 = vunpack.c.l.b16 %v588
      %v2803 = vunpack.c.h.b16 %v588
      %v2804 = vunpack.c.l.b16 %v589
      %v2805 = vunpack.c.h.b16 %v589
      %v2806 = vunpack.c.l.b16 %v590
      %v2807 = vunpack.c.h.b16 %v590
      %v2808 = vunpack.c.l.b16 %v591
      %v2809 = vunpack.c.h.b16 %v591
      %v2810 = vunpack.c.l.b16 %v592
      %v2811 = vunpack.c.h.b16 %v592
      %v2812 = vunpack.c.l.b16 %v593
      %v2813 = vunpack.c.h.b16 %v593
      %v2814 = vunpack.c.l.b16 %v594
      %v2815 = vunpack.c.h.b16 %v594
      %v2816 = vunpack.c.l.b16 %v595
      %v2817 = vunpack.c.h.b16 %v595
      %v2818 = vunpack.c.l.b16 %v596
      %v2819 = vunpack.c.h.b16 %v596
      %v2820 = vunpack.c.l.b16 %v597
      %v2821 = vunpack.c.h.b16 %v597
      %v2822 = vunpack.c.l.b16 %v598
      %v2823 = vunpack.c.h.b16 %v598
      %v2824 = vunpack.c.l.b16 %v599
      %v2825 = vunpack.c.h.b16 %v599
      %v2826 = vunpack.c.l.b16 %v600
      %v2827 = vunpack.c.h.b16 %v600
      %v2828 = vunpack.c.l.b16 %v601
      %v2829 = vunpack.c.h.b16 %v601
      %v2830 = vunpack.c.l.b16 %v602
      %v2831 = vunpack.c.h.b16 %v602
      %v2832 = vunpack.c.l.b16 %v603
      %v2833 = vunpack.c.h.b16 %v603
      %v2834 = vunpack.c.l.b16 %v604
      %v2835 = vunpack.c.h.b16 %v604
      %v2836 = vunpack.c.l.b16 %v605
      %v2837 = vunpack.c.h.b16 %v605
      %v2838 = vunpack.c.l.b16 %v606
      %v2839 = vunpack.c.h.b16 %v606
      %v2840 = vunpack.c.l.b16 %v607
      %v2841 = vunpack.c.h.b16 %v607
      %v2842 = vunpack.c.l.b16 %v608
      %v2843 = vunpack.c.h.b16 %v608
      %v2844 = vunpack.c.l.b16 %v609
      %v2845 = vunpack.c.h.b16 %v609
      %v2846 = vunpack.c.l.b16 %v610
      %v2847 = vunpack.c.h.b16 %v610
      %v2848 = vunpack.c.l.b16 %v611
      %v2849 = vunpack.c.h.b16 %v611
      %v2850 = vunpack.c.l.b16 %v612
      %v2851 = vunpack.c.h.b16 %v612
      %v2852 = vunpack.c.l.b16 %v613
      %v2853 = vunpack.c.h.b16 %v613
      %v2854 = vunpack.c.l.b16 %v614
      %v2855 = vunpack.c.h.b16 %v614
      %v2856 = vunpack.c.l.b16 %v615
      %v2857 = vunpack.c.h.b16 %v615
      %v2858 = vunpack.c.l.b16 %v616
      %v2859 = vunpack.c.h.b16 %v616
      %v2860 = vunpack.c.l.b16 %v617
      %v2861 = vunpack.c.h.b16 %v617
      %v2862 = vunpack.c.l.b16 %v618
      %v2863 = vunpack.c.h.b16 %v618
      %v2864 = vunpack.c.l.b16 %v619
      %v2865 = vunpack.c.h.b16 %v619
      %v2866 = vunpack.c.l.b16 %v620
      %v2867 = vunpack.c.h.b16 %v620
      %v2868 = vunpack.c.l.b16 %v621
      %v2869 = vunpack.c.h.b16 %v621
      %v2870 = vunpack.c.l.b16 %v622
      %v2871 = vunpack.c.h.b16 %v622
      %v2872 = vunpack.c.l.b16 %v623
      %v2873 = vunpack.c.h.b16 %v623
      %v2874 = vunpack.c.l.b16 %v624
      %v2875 = vunpack.c.h.b16 %v624
      %v2876 = vunpack.c.l.b16 %v625
      %v2877 = vunpack.c.h.b16 %v625
      %v2878 = vunpack.c.l.b16 %v626
      %v2879 = vunpack.c.h.b16 %v626
      %v2880 = vunpack.c.l.b16 %v627
      %v2881 = vunpack.c.h.b16 %v627
      %v2882 = vunpack.c.l.b16 %v628
      %v2883 = vunpack.c.h.b16 %v628
      %v2884 = vunpack.c.l.b16 %v629
      %v2885 = vunpack.c.h.b16 %v629
      %v2886 = vunpack.c.l.b16 %v630
      %v2887 = vunpack.c.h.b16 %v630
      %v2888 = vunpack.c.l.b16 %v631
      %v2889 = vunpack.c.h.b16 %v631
      %v2890 = vunpack.c.l.b16 %v632
      %v2891 = vunpack.c.h.b16 %v632
      %v2892 = vunpack.c.l.b16 %v633
      %v2893 = vunpack.c.h.b16 %v633
      %v2894 = vunpack.c.l.b16 %v634
      %v2895 = vunpack.c.h.b16 %v634
      %v2896 = vunpack.c.l.b16 %v635
      %v2897 = vunpack.c.h.b16 %v635
      %v2898 = vunpack.c.l.b16 %v636
      %v2899 = vunpack.c.h.b16 %v636
      %v2900 = vunpack.c.l.b16 %v637
      %v2901 = vunpack.c.h.b16 %v637
      %v2902 = vunpack.c.l.b16 %v638
      %v2903 = vunpack.c.h.b16 %v638
      %v2904 = vunpack.c.l.b16 %v639
      %v2905 = vunpack.c.h.b16 %v639
      %v2906 = vunpack.c.l.b16 %v640
      %v2907 = vunpack.c.h.b16 %v640
      %v2908 = vunpack.c.l.b16 %v641
      %v2909 = vunpack.c.h.b16 %v641
      %v2910 = vunpack.c.l.b16 %v642
      %v2911 = vunpack.c.h.b16 %v642
      %v2912 = vunpack.c.l.b16 %v643
      %v2913 = vunpack.c.h.b16 %v643
      %v2914 = vunpack.c.l.b16 %v644
      %v2915 = vunpack.c.h.b16 %v644
      %v2916 = vunpack.c.l.b16 %v645
      %v2917 = vunpack.c.h.b16 %v645
      %v2918 = vunpack.c.l.b16 %v646
      %v2919 = vunpack.c.h.b16 %v646
      %v2920 = vunpack.c.l.b16 %v647
      %v2921 = vunpack.c.h.b16 %v647
      %v2922 = vunpack.c.l.b16 %v648
      %v2923 = vunpack.c.h.b16 %v648
      %v2924 = vunpack.c.l.b16 %v649
      %v2925 = vunpack.c.h.b16 %v649
      %v2926 = vunpack.c.l.b16 %v650
      %v2927 = vunpack.c.h.b16 %v650
      %v2928 = vunpack.c.l.b16 %v651
      %v2929 = vunpack.c.h.b16 %v651
      %v2930 = vunpack.c.l.b16 %v652
      %v2931 = vunpack.c.h.b16 %v652
      %v2932 = vunpack.c.l.b16 %v653
      %v2933 = vunpack.c.h.b16 %v653
      %v2934 = vunpack.c.l.b16 %v654
      %v2935 = vunpack.c.h.b16 %v654
      %v2936 = vunpack.c.l.b16 %v655
      %v2937 = vunpack.c.h.b16 %v655
      %v2938 = vunpack.c.l.b16 %v656
      %v2939 = vunpack.c.h.b16 %v656
      %v2940 = vunpack.c.l.b16 %v657
      %v2941 = vunpack.c.h.b16 %v657
      %v2942 = vunpack.c.l.b16 %v658
      %v2943 = vunpack.c.h.b16 %v658
      %v2944 = vunpack.c.l.b16 %v659
      %v2945 = vunpack.c.h.b16 %v659
      %v2946 = vunpack.c.l.b16 %v660
      %v2947 = vunpack.c.h.b16 %v660
      %v2948 = vunpack.c.l.b16 %v661
      %v2949 = vunpack.c.h.b16 %v661
      %v2950 = vunpack.c.l.b16 %v662
      %v2951 = vunpack.c.h.b16 %v662
      %v2952 = vunpack.c.l.b16 %v663
      %v2953 = vunpack.c.h.b16 %v663
      %v2954 = vunpack.c.l.b16 %v664
      %v2955 = vunpack.c.h.b16 %v664
      %v2956 = vunpack.c.l.b16 %v665
      %v2957 = vunpack.c.h.b16 %v665
      %v2958 = vunpack.c.l.b16 %v666
      %v2959 = vunpack.c.h.b16 %v666
      %v2960 = vunpack.c.l.b16 %v667
      %v2961 = vunpack.c.h.b16 %v667
      %v2962 = vunpack.c.l.b16 %v668
      %v2963 = vunpack.c.h.b16 %v668
      %v2964 = vunpack.c.l.b16 %v669
      %v2965 = vunpack.c.h.b16 %v669
      %v2966 = vunpack.c.l.b16 %v670
      %v2967 = vunpack.c.h.b16 %v670
      %v2968 = vunpack.c.l.b16 %v671
      %v2969 = vunpack.c.h.b16 %v671
      %v2970 = vunpack.c.l.b16 %v672
      %v2971 = vunpack.c.h.b16 %v672
      %v2972 = vunpack.c.l.b16 %v673
      %v2973 = vunpack.c.h.b16 %v673
      %v2974 = vunpack.c.l.b16 %v674
      %v2975 = vunpack.c.h.b16 %v674
      %v2976 = vunpack.c.l.b16 %v675
      %v2977 = vunpack.c.h.b16 %v675
      %v2978 = vunpack.c.l.b16 %v676
      %v2979 = vunpack.c.h.b16 %v676
      %v2980 = vunpack.c.l.b16 %v677
      %v2981 = vunpack.c.h.b16 %v677
      %v2982 = vunpack.c.l.b16 %v678
      %v2983 = vunpack.c.h.b16 %v678
      %v2984 = vunpack.c.l.b16 %v679
      %v2985 = vunpack.c.h.b16 %v679
      %v2986 = vunpack.c.l.b16 %v680
      %v2987 = vunpack.c.h.b16 %v680
      %v2988 = vunpack.c.l.b16 %v681
      %v2989 = vunpack.c.h.b16 %v681
      %v2990 = vunpack.c.l.b16 %v682
      %v2991 = vunpack.c.h.b16 %v682
      %v2992 = vunpack.c.l.b16 %v683
      %v2993 = vunpack.c.h.b16 %v683
      %v2994 = vunpack.c.l.b16 %v684
      %v2995 = vunpack.c.h.b16 %v684
      %v2996 = vunpack.c.l.b16 %v685
      %v2997 = vunpack.c.h.b16 %v685
      %v2998 = vunpack.c.l.b16 %v686
      %v2999 = vunpack.c.h.b16 %v686
      %v3000 = vunpack.c.l.b16 %v687
      %v3001 = vunpack.c.h.b16 %v687
      %v3002 = vunpack.c.l.b16 %v688
      %v3003 = vunpack.c.h.b16 %v688
      %v3004 = vunpack.c.l.b16 %v689
      %v3005 = vunpack.c.h.b16 %v689
      %v3006 = vunpack.c.l.b16 %v690
      %v3007 = vunpack.c.h.b16 %v690
      %v3008 = vunpack.c.l.b16 %v691
      %v3009 = vunpack.c.h.b16 %v691
      %v3010 = vunpack.c.l.b16 %v692
      %v3011 = vunpack.c.h.b16 %v692
      %v3012 = vunpack.c.l.b16 %v693
      %v3013 = vunpack.c.h.b16 %v693
      %v3014 = vunpack.c.l.b16 %v694
      %v3015 = vunpack.c.h.b16 %v694
      %v3016 = vunpack.c.l.b16 %v695
      %v3017 = vunpack.c.h.b16 %v695
      %v3018 = vunpack.c.l.b16 %v696
      %v3019 = vunpack.c.h.b16 %v696
      %v3020 = vunpack.c.l.b16 %v697
      %v3021 = vunpack.c.h.b16 %v697
      %v3022 = vunpack.c.l.b16 %v698
      %v3023 = vunpack.c.h.b16 %v698
      %v3024 = vunpack.c.l.b16 %v699
      %v3025 = vunpack.c.h.b16 %v699
      %v3026 = vunpack.c.l.b16 %v700
      %v3027 = vunpack.c.h.b16 %v700
      %v3028 = vunpack.c.l.b16 %v701
      %v3029 = vunpack.c.h.b16 %v701
      %v3030 = vunpack.c.l.b16 %v702
      %v3031 = vunpack.c.h.b16 %v702
      %v3032 = vunpack.c.l.b16 %v703
      %v3033 = vunpack.c.h.b16 %v703
      %v3034 = vunpack.c.l.b16 %v704
      %v3035 = vunpack.c.h.b16 %v704
      %v3036 = vunpack.c.l.b16 %v705
      %v3037 = vunpack.c.h.b16 %v705
      %v3038 = vunpack.c.l.b16 %v706
      %v3039 = vunpack.c.h.b16 %v706
      %v3040 = vunpack.c.l.b16 %v707
      %v3041 = vunpack.c.h.b16 %v707
      %v3042 = vunpack.c.l.b16 %v708
      %v3043 = vunpack.c.h.b16 %v708
      %v3044 = vunpack.c.l.b16 %v709
      %v3045 = vunpack.c.h.b16 %v709
      %v3046 = vunpack.c.l.b16 %v710
      %v3047 = vunpack.c.h.b16 %v710
      %v3048 = vunpack.c.l.b16 %v711
      %v3049 = vunpack.c.h.b16 %v711
      %v3050 = vunpack.c.l.b16 %v712
      %v3051 = vunpack.c.h.b16 %v712
      %v3052 = vunpack.c.l.b16 %v713
      %v3053 = vunpack.c.h.b16 %v713
      %v3054 = vunpack.c.l.b16 %v714
      %v3055 = vunpack.c.h.b16 %v714
      %v3056 = vunpack.c.l.b16 %v715
      %v3057 = vunpack.c.h.b16 %v715
      %v3058 = vunpack.c.l.b16 %v716
      %v3059 = vunpack.c.h.b16 %v716
      %v3060 = vunpack.c.l.b16 %v717
      %v3061 = vunpack.c.h.b16 %v717
      %v3062 = vunpack.c.l.b16 %v718
      %v3063 = vunpack.c.h.b16 %v718
      %v3064 = vunpack.c.l.b16 %v719
      %v3065 = vunpack.c.h.b16 %v719
      %v3066 = vunpack.c.l.b16 %v720
      %v3067 = vunpack.c.h.b16 %v720
      %v3068 = vunpack.c.l.b16 %v721
      %v3069 = vunpack.c.h.b16 %v721
      %v3070 = vunpack.c.l.b16 %v722
      %v3071 = vunpack.c.h.b16 %v722
      %v3072 = vunpack.c.l.b16 %v723
      %v3073 = vunpack.c.h.b16 %v723
      %v3074 = vunpack.c.l.b16 %v724
      %v3075 = vunpack.c.h.b16 %v724
      %v3076 = vunpack.c.l.b16 %v725
      %v3077 = vunpack.c.h.b16 %v725
      %v3078 = vunpack.c.l.b16 %v726
      %v3079 = vunpack.c.h.b16 %v726
      %v3080 = vunpack.c.l.b16 %v727
      %v3081 = vunpack.c.h.b16 %v727
      %v3082 = vunpack.c.l.b16 %v728
      %v3083 = vunpack.c.h.b16 %v728
      %v3084 = vunpack.c.l.b16 %v729
      %v3085 = vunpack.c.h.b16 %v729
      %v3086 = vunpack.c.l.b16 %v730
      %v3087 = vunpack.c.h.b16 %v730
      %v3088 = vunpack.c.l.b16 %v731
      %v3089 = vunpack.c.h.b16 %v731
      %v3090 = vunpack.c.l.b16 %v732
      %v3091 = vunpack.c.h.b16 %v732
      %v3092 = vunpack.c.l.b16 %v733
      %v3093 = vunpack.c.h.b16 %v733
      %v3094 = vunpack.c.l.b16 %v734
      %v3095 = vunpack.c.h.b16 %v734
      %v3096 = vunpack.c.l.b16 %v735
      %v3097 = vunpack.c.h.b16 %v735
      %v3098 = vunpack.c.l.b16 %v736
      %v3099 = vunpack.c.h.b16 %v736
      %v3100 = vunpack.c.l.b16 %v737
      %v3101 = vunpack.c.h.b16 %v737
      %v3102 = vunpack.c.l.b16 %v738
      %v3103 = vunpack.c.h.b16 %v738
      %v3104 = vunpack.c.l.b16 %v739
      %v3105 = vunpack.c.h.b16 %v739
      %v3106 = vunpack.c.l.b16 %v740
      %v3107 = vunpack.c.h.b16 %v740
      %v3108 = vunpack.c.l.b16 %v741
      %v3109 = vunpack.c.h.b16 %v741
      %v3110 = vunpack.c.l.b16 %v742
      %v3111 = vunpack.c.h.b16 %v742
      %v3112 = vunpack.c.l.b16 %v743
      %v3113 = vunpack.c.h.b16 %v743
      %v3114 = vunpack.c.l.b16 %v744
      %v3115 = vunpack.c.h.b16 %v744
      %v3116 = vunpack.c.l.b16 %v745
      %v3117 = vunpack.c.h.b16 %v745
      %v3118 = vunpack.c.l.b16 %v746
      %v3119 = vunpack.c.h.b16 %v746
      %v3120 = vunpack.c.l.b16 %v747
      %v3121 = vunpack.c.h.b16 %v747
      %v3122 = vunpack.c.l.b16 %v748
      %v3123 = vunpack.c.h.b16 %v748
      %v3124 = vunpack.c.l.b16 %v749
      %v3125 = vunpack.c.h.b16 %v749
      %v3126 = vunpack.c.l.b16 %v750
      %v3127 = vunpack.c.h.b16 %v750
      %v3128 = vunpack.c.l.b16 %v751
      %v3129 = vunpack.c.h.b16 %v751
      %v3130 = vunpack.c.l.b16 %v752
      %v3131 = vunpack.c.h.b16 %v752
      %v3132 = vunpack.c.l.b16 %v753
      %v3133 = vunpack.c.h.b16 %v753
      %v3134 = vunpack.c.l.b16 %v754
      %v3135 = vunpack.c.h.b16 %v754
      %v3136 = vunpack.c.l.b16 %v755
      %v3137 = vunpack.c.h.b16 %v755
      %v3138 = vunpack.c.l.b16 %v756
      %v3139 = vunpack.c.h.b16 %v756
      %v3140 = vunpack.c.l.b16 %v757
      %v3141 = vunpack.c.h.b16 %v757
      %v3142 = vunpack.c.l.b16 %v758
      %v3143 = vunpack.c.h.b16 %v758
      %v3144 = vunpack.c.l.b16 %v759
      %v3145 = vunpack.c.h.b16 %v759
      %v3146 = vunpack.c.l.b16 %v760
      %v3147 = vunpack.c.h.b16 %v760
      %v3148 = vunpack.c.l.b16 %v761
      %v3149 = vunpack.c.h.b16 %v761
      %v3150 = vunpack.c.l.b16 %v762
      %v3151 = vunpack.c.h.b16 %v762
      %v3152 = vunpack.c.l.b16 %v763
      %v3153 = vunpack.c.h.b16 %v763
      %v3154 = vunpack.c.l.b16 %v764
      %v3155 = vunpack.c.h.b16 %v764
      %v3156 = vunpack.c.l.b16 %v765
      %v3157 = vunpack.c.h.b16 %v765
      %v3158 = vunpack.c.l.b16 %v766
      %v3159 = vunpack.c.h.b16 %v766
      %v3160 = vunpack.c.l.b16 %v767
      %v3161 = vunpack.c.h.b16 %v767
      %v3162 = vunpack.c.l.b16 %v768
      %v3163 = vunpack.c.h.b16 %v768
      %v3164 = vunpack.c.l.b16 %v769
      %v3165 = vunpack.c.h.b16 %v769
      %v3166 = vunpack.c.l.b16 %v770
      %v3167 = vunpack.c.h.b16 %v770
      %v3168 = vunpack.c.l.b16 %v771
      %v3169 = vunpack.c.h.b16 %v771
      %v3170 = vunpack.c.l.b16 %v772
      %v3171 = vunpack.c.h.b16 %v772
      %v3172 = vunpack.c.l.b16 %v773
      %v3173 = vunpack.c.h.b16 %v773
      %v3174 = vunpack.c.l.b16 %v774
      %v3175 = vunpack.c.h.b16 %v774
      %v3176 = vunpack.c.l.b16 %v775
      %v3177 = vunpack.c.h.b16 %v775
      %v3178 = vunpack.c.l.b16 %v776
      %v3179 = vunpack.c.h.b16 %v776
      %v3180 = vunpack.c.l.b16 %v777
      %v3181 = vunpack.c.h.b16 %v777
      %v3182 = vunpack.c.l.b16 %v778
      %v3183 = vunpack.c.h.b16 %v778
      %v3184 = vunpack.c.l.b16 %v779
      %v3185 = vunpack.c.h.b16 %v779
      %v3186 = vunpack.c.l.b16 %v780
      %v3187 = vunpack.c.h.b16 %v780
      %v3188 = vunpack.c.l.b16 %v781
      %v3189 = vunpack.c.h.b16 %v781
      %v3190 = vunpack.c.l.b16 %v782
      %v3191 = vunpack.c.h.b16 %v782
      %v3192 = vunpack.c.l.b16 %v783
      %v3193 = vunpack.c.h.b16 %v783
      %v3194 = vunpack.c.l.b16 %v784
      %v3195 = vunpack.c.h.b16 %v784
      %v3196 = vunpack.c.l.b16 %v785
      %v3197 = vunpack.c.h.b16 %v785
      %v3198 = vunpack.c.l.b16 %v786
      %v3199 = vunpack.c.h.b16 %v786
      %v3200 = vunpack.c.l.b16 %v787
      %v3201 = vunpack.c.h.b16 %v787
      %v3202 = vunpack.c.l.b16 %v788
      %v3203 = vunpack.c.h.b16 %v788
      %v3204 = vunpack.c.l.b16 %v789
      %v3205 = vunpack.c.h.b16 %v789
      %v3206 = vunpack.c.l.b16 %v790
      %v3207 = vunpack.c.h.b16 %v790
      %v3208 = vunpack.c.l.b16 %v791
      %v3209 = vunpack.c.h.b16 %v791
      %v3210 = vunpack.c.l.b16 %v792
      %v3211 = vunpack.c.h.b16 %v792
      %v3212 = vunpack.c.l.b16 %v793
      %v3213 = vunpack.c.h.b16 %v793
      %v3214 = vunpack.c.l.b16 %v794
      %v3215 = vunpack.c.h.b16 %v794
      %v3216 = vunpack.c.l.b16 %v795
      %v3217 = vunpack.c.h.b16 %v795
      %v3218 = vunpack.c.l.b16 %v796
      %v3219 = vunpack.c.h.b16 %v796
      %v3220 = vunpack.c.l.b16 %v797
      %v3221 = vunpack.c.h.b16 %v797
      %v3222 = vunpack.c.l.b16 %v798
      %v3223 = vunpack.c.h.b16 %v798
      %v3224 = vunpack.c.l.b16 %v799
      %v3225 = vunpack.c.h.b16 %v799
      %v3226 = vunpack.c.l.b16 %v800
      %v3227 = vunpack.c.h.b16 %v800
      %v3228 = vunpack.c.l.b16 %v801
      %v3229 = vunpack.c.h.b16 %v801
      %v3230 = vunpack.c.l.b16 %v802
      %v3231 = vunpack.c.h.b16 %v802
      %v3232 = vunpack.c.l.b16 %v803
      %v3233 = vunpack.c.h.b16 %v803
      %v3234 = vunpack.c.l.b16 %v804
      %v3235 = vunpack.c.h.b16 %v804
      %v3236 = vunpack.c.l.b16 %v805
      %v3237 = vunpack.c.h.b16 %v805
      %v3238 = vunpack.c.l.b16 %v806
      %v3239 = vunpack.c.h.b16 %v806
      %v3240 = vunpack.c.l.b16 %v807
      %v3241 = vunpack.c.h.b16 %v807
      %v3242 = vunpack.c.l.b16 %v808
      %v3243 = vunpack.c.h.b16 %v808
      %v3244 = vunpack.c.l.b16 %v809
      %v3245 = vunpack.c.h.b16 %v809
      %v3246 = vunpack.c.l.b16 %v810
      %v3247 = vunpack.c.h.b16 %v810
      %v3248 = vunpack.c.l.b16 %v811
      %v3249 = vunpack.c.h.b16 %v811
      %v3250 = vunpack.c.l.b16 %v812
      %v3251 = vunpack.c.h.b16 %v812
      %v3252 = vunpack.c.l.b16 %v813
      %v3253 = vunpack.c.h.b16 %v813
      %v3254 = vunpack.c.l.b16 %v814
      %v3255 = vunpack.c.h.b16 %v814
      %v3256 = vunpack.c.l.b16 %v815
      %v3257 = vunpack.c.h.b16 %v815
      %v3258 = vunpack.c.l.b16 %v816
      %v3259 = vunpack.c.h.b16 %v816
      %v3260 = vunpack.c.l.b16 %v817
      %v3261 = vunpack.c.h.b16 %v817
      %v3262 = vunpack.c.l.b16 %v818
      %v3263 = vunpack.c.h.b16 %v818
      %v3264 = vunpack.c.l.b16 %v819
      %v3265 = vunpack.c.h.b16 %v819
      %v3266 = vunpack.c.l.b16 %v820
      %v3267 = vunpack.c.h.b16 %v820
      %v3268 = vunpack.c.l.b16 %v821
      %v3269 = vunpack.c.h.b16 %v821
      %v3270 = vunpack.c.l.b16 %v822
      %v3271 = vunpack.c.h.b16 %v822
      %v3272 = vunpack.c.l.b16 %v823
      %v3273 = vunpack.c.h.b16 %v823
      %v3274 = vunpack.c.l.b16 %v824
      %v3275 = vunpack.c.h.b16 %v824
      %v3276 = vunpack.c.l.b16 %v825
      %v3277 = vunpack.c.h.b16 %v825
      %v3278 = vunpack.c.l.b16 %v826
      %v3279 = vunpack.c.h.b16 %v826
      %v3280 = vunpack.c.l.b16 %v827
      %v3281 = vunpack.c.h.b16 %v827
      %v3282 = vunpack.c.l.b16 %v828
      %v3283 = vunpack.c.h.b16 %v828
      %v3284 = vunpack.c.l.b16 %v829
      %v3285 = vunpack.c.h.b16 %v829
      %v3286 = vunpack.c.l.b16 %v830
      %v3287 = vunpack.c.h.b16 %v830
      %v3288 = vunpack.c.l.b16 %v831
      %v3289 = vunpack.c.h.b16 %v831
      %v3290 = vunpack.c.l.b16 %v832
      %v3291 = vunpack.c.h.b16 %v832
      %v3292 = vunpack.c.l.b16 %v833
      %v3293 = vunpack.c.h.b16 %v833
      %v3294 = vunpack.c.l.b16 %v834
      %v3295 = vunpack.c.h.b16 %v834
      %v3296 = vunpack.c.l.b16 %v835
      %v3297 = vunpack.c.h.b16 %v835
      %v3298 = vunpack.c.l.b16 %v836
      %v3299 = vunpack.c.h.b16 %v836
      %v3300 = vunpack.c.l.b16 %v837
      %v3301 = vunpack.c.h.b16 %v837
      %v3302 = vunpack.c.l.b16 %v838
      %v3303 = vunpack.c.h.b16 %v838
      %v3304 = vunpack.c.l.b16 %v839
      %v3305 = vunpack.c.h.b16 %v839
      %v3306 = vunpack.c.l.b16 %v840
      %v3307 = vunpack.c.h.b16 %v840
      %v3308 = vunpack.c.l.b16 %v841
      %v3309 = vunpack.c.h.b16 %v841
      %v3310 = vunpack.c.l.b16 %v842
      %v3311 = vunpack.c.h.b16 %v842
      %v3312 = vunpack.c.l.b16 %v843
      %v3313 = vunpack.c.h.b16 %v843
      %v3314 = vunpack.c.l.b16 %v844
      %v3315 = vunpack.c.h.b16 %v844
      %v3316 = vunpack.c.l.b16 %v845
      %v3317 = vunpack.c.h.b16 %v845
      %v3318 = vunpack.c.l.b16 %v846
      %v3319 = vunpack.c.h.b16 %v846
      %v3320 = vunpack.c.l.b16 %v847
      %v3321 = vunpack.c.h.b16 %v847
      %v3322 = vunpack.c.l.b16 %v848
      %v3323 = vunpack.c.h.b16 %v848
      %v3324 = vunpack.c.l.b16 %v849
      %v3325 = vunpack.c.h.b16 %v849
      %v3326 = vunpack.c.l.b16 %v850
      %v3327 = vunpack.c.h.b16 %v850
      %v3328 = vunpack.c.l.b16 %v851
      %v3329 = vunpack.c.h.b16 %v851
      %v3330 = vunpack.c.l.b16 %v852
      %v3331 = vunpack.c.h.b16 %v852
      %v3332 = vunpack.c.l.b16 %v853
      %v3333 = vunpack.c.h.b16 %v853
      %v3334 = vunpack.c.l.b16 %v854
      %v3335 = vunpack.c.h.b16 %v854
      %v3336 = vunpack.c.l.b16 %v855
      %v3337 = vunpack.c.h.b16 %v855
      %v3338 = vunpack.c.l.b16 %v856
      %v3339 = vunpack.c.h.b16 %v856
      %v3340 = vunpack.c.l.b16 %v857
      %v3341 = vunpack.c.h.b16 %v857
      %v3342 = vunpack.c.l.b16 %v858
      %v3343 = vunpack.c.h.b16 %v858
      %v3344 = vunpack.c.l.b16 %v859
      %v3345 = vunpack.c.h.b16 %v859
      %v3346 = vunpack.c.l.b16 %v860
      %v3347 = vunpack.c.h.b16 %v860
      %v3348 = vunpack.c.l.b16 %v861
      %v3349 = vunpack.c.h.b16 %v861
      %v3350 = vunpack.c.l.b16 %v862
      %v3351 = vunpack.c.h.b16 %v862
      %v3352 = vunpack.c.l.b16 %v863
      %v3353 = vunpack.c.h.b16 %v863
      %v3354 = vunpack.c.l.b16 %v864
      %v3355 = vunpack.c.h.b16 %v864
      %v3356 = vunpack.c.l.b16 %v865
      %v3357 = vunpack.c.h.b16 %v865
      %v3358 = vunpack.c.l.b16 %v866
      %v3359 = vunpack.c.h.b16 %v866
      %v3360 = vunpack.c.l.b16 %v867
      %v3361 = vunpack.c.h.b16 %v867
      %v3362 = vunpack.c.l.b16 %v868
      %v3363 = vunpack.c.h.b16 %v868
      %v3364 = vunpack.c.l.b16 %v869
      %v3365 = vunpack.c.h.b16 %v869
      %v3366 = vunpack.c.l.b16 %v870
      %v3367 = vunpack.c.h.b16 %v870
      %v3368 = vunpack.c.l.b16 %v871
      %v3369 = vunpack.c.h.b16 %v871
      %v3370 = vunpack.c.l.b16 %v872
      %v3371 = vunpack.c.h.b16 %v872
      %v3372 = vunpack.c.l.b16 %v873
      %v3373 = vunpack.c.h.b16 %v873
      %v3374 = vunpack.c.l.b16 %v874
      %v3375 = vunpack.c.h.b16 %v874
      %v3376 = vunpack.c.l.b16 %v875
      %v3377 = vunpack.c.h.b16 %v875
      %v3378 = vunpack.c.l.b16 %v876
      %v3379 = vunpack.c.h.b16 %v876
      %v3380 = vunpack.c.l.b16 %v877
      %v3381 = vunpack.c.h.b16 %v877
      %v3382 = vunpack.c.l.b16 %v878
      %v3383 = vunpack.c.h.b16 %v878
      %v3384 = vunpack.c.l.b16 %v879
      %v3385 = vunpack.c.h.b16 %v879
      %v3386 = vunpack.c.l.b16 %v880
      %v3387 = vunpack.c.h.b16 %v880
      %v3388 = vunpack.c.l.b16 %v881
      %v3389 = vunpack.c.h.b16 %v881
      %v3390 = vunpack.c.l.b16 %v882
      %v3391 = vunpack.c.h.b16 %v882
      %v3392 = vunpack.c.l.b16 %v883
      %v3393 = vunpack.c.h.b16 %v883
      %v3394 = vunpack.c.l.b16 %v884
      %v3395 = vunpack.c.h.b16 %v884
      %v3396 = vunpack.c.l.b16 %v885
      %v3397 = vunpack.c.h.b16 %v885
      %v3398 = vunpack.c.l.b16 %v886
      %v3399 = vunpack.c.h.b16 %v886
      %v3400 = vunpack.c.l.b16 %v887
      %v3401 = vunpack.c.h.b16 %v887
      %v3402 = vunpack.c.l.b16 %v888
      %v3403 = vunpack.c.h.b16 %v888
      %v3404 = vunpack.c.l.b16 %v889
      %v3405 = vunpack.c.h.b16 %v889
      %v3406 = vunpack.c.l.b16 %v890
      %v3407 = vunpack.c.h.b16 %v890
      %v3408 = vunpack.c.l.b16 %v891
      %v3409 = vunpack.c.h.b16 %v891
      %v3410 = vunpack.c.l.b16 %v892
      %v3411 = vunpack.c.h.b16 %v892
      %v3412 = vunpack.c.l.b16 %v893
      %v3413 = vunpack.c.h.b16 %v893
      %v3414 = vunpack.c.l.b16 %v894
      %v3415 = vunpack.c.h.b16 %v894
      %v3416 = vunpack.c.l.b16 %v895
      %v3417 = vunpack.c.h.b16 %v895
      %v3418 = vunpack.c.l.b16 %v896
      %v3419 = vunpack.c.h.b16 %v896
      %v3420 = vunpack.c.l.b16 %v897
      %v3421 = vunpack.c.h.b16 %v897
      %v3422 = vunpack.c.l.b16 %v898
      %v3423 = vunpack.c.h.b16 %v898
      %v3424 = vunpack.c.l.b16 %v899
      %v3425 = vunpack.c.h.b16 %v899
      %v3426 = vunpack.c.l.b16 %v900
      %v3427 = vunpack.c.h.b16 %v900
      %v3428 = vunpack.c.l.b16 %v901
      %v3429 = vunpack.c.h.b16 %v901
      %v3430 = vunpack.c.l.b16 %v902
      %v3431 = vunpack.c.h.b16 %v902
      %v3432 = vunpack.c.l.b16 %v903
      %v3433 = vunpack.c.h.b16 %v903
      %v3434 = vunpack.c.l.b16 %v904
      %v3435 = vunpack.c.h.b16 %v904
      %v3436 = vunpack.c.l.b16 %v905
      %v3437 = vunpack.c.h.b16 %v905
      %v3438 = vunpack.c.l.b16 %v906
      %v3439 = vunpack.c.h.b16 %v906
      %v3440 = vunpack.c.l.b16 %v907
      %v3441 = vunpack.c.h.b16 %v907
      %v3442 = vunpack.c.l.b16 %v908
      %v3443 = vunpack.c.h.b16 %v908
      %v3444 = vunpack.c.l.b16 %v909
      %v3445 = vunpack.c.h.b16 %v909
      %v3446 = vunpack.c.l.b16 %v910
      %v3447 = vunpack.c.h.b16 %v910
      %v3448 = vunpack.c.l.b16 %v911
      %v3449 = vunpack.c.h.b16 %v911
      %v3450 = vunpack.c.l.b16 %v912
      %v3451 = vunpack.c.h.b16 %v912
      %v3452 = vunpack.c.l.b16 %v913
      %v3453 = vunpack.c.h.b16 %v913
      %v3454 = vunpack.c.l.b16 %v914
      %v3455 = vunpack.c.h.b16 %v914
      %v3456 = vunpack.c.l.b16 %v915
      %v3457 = vunpack.c.h.b16 %v915
      %v3458 = vunpack.c.l.b16 %v916
      %v3459 = vunpack.c.h.b16 %v916
      %v3460 = vunpack.c.l.b16 %v917
      %v3461 = vunpack.c.h.b16 %v917
      %v3462 = vunpack.c.l.b16 %v918
      %v3463 = vunpack.c.h.b16 %v918
      %v3464 = vunpack.c.l.b16 %v919
      %v3465 = vunpack.c.h.b16 %v919
      %v3466 = vunpack.c.l.b16 %v920
      %v3467 = vunpack.c.h.b16 %v920
      %v3468 = vunpack.c.l.b16 %v921
      %v3469 = vunpack.c.h.b16 %v921
      %v3470 = vunpack.c.l.b16 %v922
      %v3471 = vunpack.c.h.b16 %v922
      %v3472 = vunpack.c.l.b16 %v923
      %v3473 = vunpack.c.h.b16 %v923
      %v3474 = vunpack.c.l.b16 %v924
      %v3475 = vunpack.c.h.b16 %v924
      %v3476 = vunpack.c.l.b16 %v925
      %v3477 = vunpack.c.h.b16 %v925
      %v3478 = vunpack.c.l.b16 %v926
      %v3479 = vunpack.c.h.b16 %v926
      %v3480 = vunpack.c.l.b16 %v927
      %v3481 = vunpack.c.h.b16 %v927
      %v3482 = vunpack.c.l.b16 %v928
      %v3483 = vunpack.c.h.b16 %v928
      %v3484 = vunpack.c.l.b16 %v929
      %v3485 = vunpack.c.h.b16 %v929
      %v3486 = vunpack.c.l.b16 %v930
      %v3487 = vunpack.c.h.b16 %v930
      %v3488 = vunpack.c.l.b16 %v931
      %v3489 = vunpack.c.h.b16 %v931
      %v3490 = vunpack.c.l.b16 %v932
      %v3491 = vunpack.c.h.b16 %v932
      %v3492 = vunpack.c.l.b16 %v933
      %v3493 = vunpack.c.h.b16 %v933
      %v3494 = vunpack.c.l.b16 %v934
      %v3495 = vunpack.c.h.b16 %v934
      %v3496 = vunpack.c.l.b16 %v935
      %v3497 = vunpack.c.h.b16 %v935
      %v3498 = vunpack.c.l.b16 %v936
      %v3499 = vunpack.c.h.b16 %v936
      %v3500 = vunpack.c.l.b16 %v937
      %v3501 = vunpack.c.h.b16 %v937
      %v3502 = vunpack.c.l.b16 %v938
      %v3503 = vunpack.c.h.b16 %v938
      %v3504 = vunpack.c.l.b16 %v939
      %v3505 = vunpack.c.h.b16 %v939
      %v3506 = vunpack.c.l.b16 %v940
      %v3507 = vunpack.c.h.b16 %v940
      %v3508 = vunpack.c.l.b16 %v941
      %v3509 = vunpack.c.h.b16 %v941
      %v3510 = vunpack.c.l.b16 %v942
      %v3511 = vunpack.c.h.b16 %v942
      %v3512 = vunpack.c.l.b16 %v943
      %v3513 = vunpack.c.h.b16 %v943
      %v3514 = vunpack.c.l.b16 %v944
      %v3515 = vunpack.c.h.b16 %v944
      %v3516 = vunpack.c.l.b16 %v945
      %v3517 = vunpack.c.h.b16 %v945
      %v3518 = vunpack.c.l.b16 %v946
      %v3519 = vunpack.c.h.b16 %v946
      %v3520 = vunpack.c.l.b16 %v947
      %v3521 = vunpack.c.h.b16 %v947
      %v3522 = vunpack.c.l.b16 %v948
      %v3523 = vunpack.c.h.b16 %v948
      %v3524 = vunpack.c.l.b16 %v949
      %v3525 = vunpack.c.h.b16 %v949
      %v3526 = vunpack.c.l.b16 %v950
      %v3527 = vunpack.c.h.b16 %v950
      %v3528 = vunpack.c.l.b16 %v951
      %v3529 = vunpack.c.h.b16 %v951
      %v3530 = vunpack.c.l.b16 %v952
      %v3531 = vunpack.c.h.b16 %v952
      %v3532 = vunpack.c.l.b16 %v953
      %v3533 = vunpack.c.h.b16 %v953
      %v3534 = vunpack.c.l.b16 %v954
      %v3535 = vunpack.c.h.b16 %v954
      %v3536 = vunpack.c.l.b16 %v955
      %v3537 = vunpack.c.h.b16 %v955
      %v3538 = vunpack.c.l.b16 %v956
      %v3539 = vunpack.c.h.b16 %v956
      %v3540 = vunpack.c.l.b16 %v957
      %v3541 = vunpack.c.h.b16 %v957
      %v3542 = vunpack.c.l.b16 %v958
      %v3543 = vunpack.c.h.b16 %v958
      %v3544 = vunpack.c.l.b16 %v959
      %v3545 = vunpack.c.h.b16 %v959
      %v3546 = vunpack.c.l.b16 %v960
      %v3547 = vunpack.c.h.b16 %v960
      %v3548 = vunpack.c.l.b16 %v961
      %v3549 = vunpack.c.h.b16 %v961
      %v3550 = vunpack.c.l.b16 %v962
      %v3551 = vunpack.c.h.b16 %v962
      %v3552 = vunpack.c.l.b16 %v963
      %v3553 = vunpack.c.h.b16 %v963
      %v3554 = vunpack.c.l.b16 %v964
      %v3555 = vunpack.c.h.b16 %v964
      %v3556 = vunpack.c.l.b16 %v965
      %v3557 = vunpack.c.h.b16 %v965
      %v3558 = vunpack.c.l.b16 %v966
      %v3559 = vunpack.c.h.b16 %v966
      %v3560 = vunpack.c.l.b16 %v967
      %v3561 = vunpack.c.h.b16 %v967
      %v3562 = vunpack.c.l.b16 %v968
      %v3563 = vunpack.c.h.b16 %v968
      %v3564 = vunpack.c.l.b16 %v969
      %v3565 = vunpack.c.h.b16 %v969
      %v3566 = vunpack.c.l.b16 %v970
      %v3567 = vunpack.c.h.b16 %v970
      %v3568 = vunpack.c.l.b16 %v971
      %v3569 = vunpack.c.h.b16 %v971
      %v3570 = vunpack.c.l.b16 %v972
      %v3571 = vunpack.c.h.b16 %v972
      %v3572 = vunpack.c.l.b16 %v973
      %v3573 = vunpack.c.h.b16 %v973
      %v3574 = vunpack.c.l.b16 %v974
      %v3575 = vunpack.c.h.b16 %v974
      %v3576 = vunpack.c.l.b16 %v975
      %v3577 = vunpack.c.h.b16 %v975
      %v3578 = vunpack.c.l.b16 %v976
      %v3579 = vunpack.c.h.b16 %v976
      %v3580 = vunpack.c.l.b16 %v977
      %v3581 = vunpack.c.h.b16 %v977
      %v3582 = vunpack.c.l.b16 %v978
      %v3583 = vunpack.c.h.b16 %v978
      %v3584 = vunpack.c.l.b16 %v979
      %v3585 = vunpack.c.h.b16 %v979
      %v3586 = vunpack.c.l.b16 %v980
      %v3587 = vunpack.c.h.b16 %v980
      %v3588 = vunpack.c.l.b16 %v981
      %v3589 = vunpack.c.h.b16 %v981
      %v3590 = vunpack.c.l.b16 %v982
      %v3591 = vunpack.c.h.b16 %v982
      %v3592 = vunpack.c.l.b16 %v983
      %v3593 = vunpack.c.h.b16 %v983
      %v3594 = vunpack.c.l.b16 %v984
      %v3595 = vunpack.c.h.b16 %v984
      %v3596 = vunpack.c.l.b16 %v985
      %v3597 = vunpack.c.h.b16 %v985
      %v3598 = vunpack.c.l.b16 %v986
      %v3599 = vunpack.c.h.b16 %v986
      %v3600 = vunpack.c.l.b16 %v987
      %v3601 = vunpack.c.h.b16 %v987
      %v3602 = vunpack.c.l.b16 %v988
      %v3603 = vunpack.c.h.b16 %v988
      %v3604 = vunpack.c.l.b16 %v989
      %v3605 = vunpack.c.h.b16 %v989
      %v3606 = vunpack.c.l.b16 %v990
      %v3607 = vunpack.c.h.b16 %v990
      %v3608 = vunpack.c.l.b16 %v991
      %v3609 = vunpack.c.h.b16 %v991
      %v3610 = vunpack.c.l.b16 %v992
      %v3611 = vunpack.c.h.b16 %v992
      %v3612 = vunpack.c.l.b16 %v993
      %v3613 = vunpack.c.h.b16 %v993
      %v3614 = vunpack.c.l.b16 %v994
      %v3615 = vunpack.c.h.b16 %v994
      %v3616 = vunpack.c.l.b16 %v995
      %v3617 = vunpack.c.h.b16 %v995
      %v3618 = vunpack.c.l.b16 %v996
      %v3619 = vunpack.c.h.b16 %v996
      %v3620 = vunpack.c.l.b16 %v997
      %v3621 = vunpack.c.h.b16 %v997
      %v3622 = vunpack.c.l.b16 %v998
      %v3623 = vunpack.c.h.b16 %v998
      %v3624 = vunpack.c.l.b16 %v999
      %v3625 = vunpack.c.h.b16 %v999
      %v3626 = vunpack.c.l.b16 %v1000
      %v3627 = vunpack.c.h.b16 %v1000
      %v3628 = vunpack.c.l.b16 %v1001
      %v3629 = vunpack.c.h.b16 %v1001
      %v3630 = vunpack.c.l.b16 %v1002
      %v3631 = vunpack.c.h.b16 %v1002
      %v3632 = vunpack.c.l.b16 %v1003
      %v3633 = vunpack.c.h.b16 %v1003
      %v3634 = vunpack.c.l.b16 %v1004
      %v3635 = vunpack.c.h.b16 %v1004
      %v3636 = vunpack.c.l.b16 %v1005
      %v3637 = vunpack.c.h.b16 %v1005
      %v3638 = vunpack.c.l.b16 %v1006
      %v3639 = vunpack.c.h.b16 %v1006
      %v3640 = vunpack.c.l.b16 %v1007
      %v3641 = vunpack.c.h.b16 %v1007
      %v3642 = vunpack.c.l.b16 %v1008
      %v3643 = vunpack.c.h.b16 %v1008
      %v3644 = vunpack.c.l.b16 %v1009
      %v3645 = vunpack.c.h.b16 %v1009
      %v3646 = vunpack.c.l.b16 %v1010
      %v3647 = vunpack.c.h.b16 %v1010
      %v3648 = vunpack.c.l.b16 %v1011
      %v3649 = vunpack.c.h.b16 %v1011
      %v3650 = vunpack.c.l.b16 %v1012
      %v3651 = vunpack.c.h.b16 %v1012
      %v3652 = vunpack.c.l.b16 %v1013
      %v3653 = vunpack.c.h.b16 %v1013
      %v3654 = vunpack.c.l.b16 %v1014
      %v3655 = vunpack.c.h.b16 %v1014
      %v3656 = vunpack.c.l.b16 %v1015
      %v3657 = vunpack.c.h.b16 %v1015
      %v3658 = vunpack.c.l.b16 %v1016
      %v3659 = vunpack.c.h.b16 %v1016
      %v3660 = vunpack.c.l.b16 %v1017
      %v3661 = vunpack.c.h.b16 %v1017
      %v3662 = vunpack.c.l.b16 %v1018
      %v3663 = vunpack.c.h.b16 %v1018
      %v3664 = vunpack.c.l.b16 %v1019
      %v3665 = vunpack.c.h.b16 %v1019
      %v3666 = vunpack.c.l.b16 %v1020
      %v3667 = vunpack.c.h.b16 %v1020
      %v3668 = vunpack.c.l.b16 %v1021
      %v3669 = vunpack.c.h.b16 %v1021
      %v3670 = vunpack.c.l.b16 %v1022
      %v3671 = vunpack.c.h.b16 %v1022
      %v3672 = vunpack.c.l.b16 %v1023
      %v3673 = vunpack.c.h.b16 %v1023
      %v3674 = vunpack.c.l.b16 %v1024
      %v3675 = vunpack.c.h.b16 %v1024
      %v3676 = vunpack.c.l.b16 %v1025
      %v3677 = vunpack.c.h.b16 %v1025
      %v3678 = vunpack.c.l.b16 %v1026
      %v3679 = vunpack.c.h.b16 %v1026
      %v3680 = vunpack.c.l.b16 %v1027
      %v3681 = vunpack.c.h.b16 %v1027
      %v3682 = vunpack.c.l.b16 %v1028
      %v3683 = vunpack.c.h.b16 %v1028
      %v3684 = vunpack.c.l.b16 %v1029
      %v3685 = vunpack.c.h.b16 %v1029
      %v3686 = vunpack.c.l.b16 %v1030
      %v3687 = vunpack.c.h.b16 %v1030
      %v3688 = vunpack.c.l.b16 %v1031
      %v3689 = vunpack.c.h.b16 %v1031
      %v3690 = vunpack.c.l.b16 %v1032
      %v3691 = vunpack.c.h.b16 %v1032
      %v3692 = vunpack.c.l.b16 %v1033
      %v3693 = vunpack.c.h.b16 %v1033
      %v3694 = vunpack.c.l.b16 %v1034
      %v3695 = vunpack.c.h.b16 %v1034
      %v3696 = vunpack.c.l.b16 %v1035
      %v3697 = vunpack.c.h.b16 %v1035
      %v3698 = vunpack.c.l.b16 %v1036
      %v3699 = vunpack.c.h.b16 %v1036
      %v3700 = vunpack.c.l.b16 %v1037
      %v3701 = vunpack.c.h.b16 %v1037
      %v3702 = vunpack.c.l.b16 %v1038
      %v3703 = vunpack.c.h.b16 %v1038
      %v3704 = vunpack.c.l.b16 %v1039
      %v3705 = vunpack.c.h.b16 %v1039
      %v3706 = vunpack.c.l.b16 %v1040
      %v3707 = vunpack.c.h.b16 %v1040
      %v3708 = vunpack.c.l.b16 %v1041
      %v3709 = vunpack.c.h.b16 %v1041
      %v3710 = vunpack.c.l.b16 %v1042
      %v3711 = vunpack.c.h.b16 %v1042
      %v3712 = vunpack.c.l.b16 %v1043
      %v3713 = vunpack.c.h.b16 %v1043
      %v3714 = vunpack.c.l.b16 %v1044
      %v3715 = vunpack.c.h.b16 %v1044
      %v3716 = vunpack.c.l.b16 %v1045
      %v3717 = vunpack.c.h.b16 %v1045
      %v3718 = vunpack.c.l.b16 %v1046
      %v3719 = vunpack.c.h.b16 %v1046
      %v3720 = vunpack.c.l.b16 %v1047
      %v3721 = vunpack.c.h.b16 %v1047
      %v3722 = vunpack.c.l.b16 %v1048
      %v3723 = vunpack.c.h.b16 %v1048
      %v3724 = vunpack.c.l.b16 %v1049
      %v3725 = vunpack.c.h.b16 %v1049
      %v3726 = vunpack.c.l.b16 %v1050
      %v3727 = vunpack.c.h.b16 %v1050
      %v3728 = vunpack.c.l.b16 %v1051
      %v3729 = vunpack.c.h.b16 %v1051
      %v3730 = vunpack.c.l.b16 %v1052
      %v3731 = vunpack.c.h.b16 %v1052
      %v3732 = vunpack.c.l.b16 %v1053
      %v3733 = vunpack.c.h.b16 %v1053
      %v3734 = vunpack.c.l.b16 %v1054
      %v3735 = vunpack.c.h.b16 %v1054
      %v3736 = vunpack.c.l.b16 %v1055
      %v3737 = vunpack.c.h.b16 %v1055
      %v3738 = vunpack.c.l.b16 %v1056
      %v3739 = vunpack.c.h.b16 %v1056
      %v3740 = vunpack.c.l.b16 %v1057
      %v3741 = vunpack.c.h.b16 %v1057
      %v3742 = vunpack.c.l.b16 %v1058
      %v3743 = vunpack.c.h.b16 %v1058
      %v3744 = vunpack.c.l.b16 %v1059
      %v3745 = vunpack.c.h.b16 %v1059
      %v3746 = vunpack.c.l.b16 %v1060
      %v3747 = vunpack.c.h.b16 %v1060
      %v3748 = vunpack.c.l.b16 %v1061
      %v3749 = vunpack.c.h.b16 %v1061
      %v3750 = vunpack.c.l.b16 %v1062
      %v3751 = vunpack.c.h.b16 %v1062
      %v3752 = vunpack.c.l.b16 %v1063
      %v3753 = vunpack.c.h.b16 %v1063
      %v3754 = vunpack.c.l.b16 %v1064
      %v3755 = vunpack.c.h.b16 %v1064
      %v3756 = vunpack.c.l.b16 %v1065
      %v3757 = vunpack.c.h.b16 %v1065
      %v3758 = vunpack.c.l.b16 %v1066
      %v3759 = vunpack.c.h.b16 %v1066
      %v3760 = vunpack.c.l.b16 %v1067
      %v3761 = vunpack.c.h.b16 %v1067
      %v3762 = vunpack.c.l.b16 %v1068
      %v3763 = vunpack.c.h.b16 %v1068
      %v3764 = vunpack.c.l.b16 %v1069
      %v3765 = vunpack.c.h.b16 %v1069
      %v3766 = vunpack.c.l.b16 %v1070
      %v3767 = vunpack.c.h.b16 %v1070
      %v3768 = vunpack.c.l.b16 %v1071
      %v3769 = vunpack.c.h.b16 %v1071
      %v3770 = vunpack.c.l.b16 %v1072
      %v3771 = vunpack.c.h.b16 %v1072
      %v3772 = vunpack.c.l.b16 %v1073
      %v3773 = vunpack.c.h.b16 %v1073
      %v3774 = vunpack.c.l.b16 %v1074
      %v3775 = vunpack.c.h.b16 %v1074
      %v3776 = vunpack.c.l.b16 %v1075
      %v3777 = vunpack.c.h.b16 %v1075
      %v3778 = vunpack.c.l.b16 %v1076
      %v3779 = vunpack.c.h.b16 %v1076
      %v3780 = vunpack.c.l.b16 %v1077
      %v3781 = vunpack.c.h.b16 %v1077
      %v3782 = vunpack.c.l.b16 %v1078
      %v3783 = vunpack.c.h.b16 %v1078
      %v3784 = vunpack.c.l.b16 %v1079
      %v3785 = vunpack.c.h.b16 %v1079
      %v3786 = vunpack.c.l.b16 %v1080
      %v3787 = vunpack.c.h.b16 %v1080
      %v3788 = vunpack.c.l.b16 %v1081
      %v3789 = vunpack.c.h.b16 %v1081
      %v3790 = vunpack.c.l.b16 %v1082
      %v3791 = vunpack.c.h.b16 %v1082
      %v3792 = vunpack.c.l.b16 %v1083
      %v3793 = vunpack.c.h.b16 %v1083
      %v3794 = vunpack.c.l.b16 %v1084
      %v3795 = vunpack.c.h.b16 %v1084
      %v3796 = vunpack.c.l.b16 %v1085
      %v3797 = vunpack.c.h.b16 %v1085
      %v3798 = vunpack.c.l.b16 %v1086
      %v3799 = vunpack.c.h.b16 %v1086
      %v3800 = vunpack.c.l.b16 %v1087
      %v3801 = vunpack.c.h.b16 %v1087
      %v3802 = vunpack.c.l.b16 %v1088
      %v3803 = vunpack.c.h.b16 %v1088
      %v3804 = vunpack.c.l.b16 %v1089
      %v3805 = vunpack.c.h.b16 %v1089
      %v3806 = vunpack.c.l.b16 %v1090
      %v3807 = vunpack.c.h.b16 %v1090
      %v3808 = vunpack.c.l.b16 %v1091
      %v3809 = vunpack.c.h.b16 %v1091
      %v3810 = vunpack.c.l.b16 %v1092
      %v3811 = vunpack.c.h.b16 %v1092
      %v3812 = vunpack.c.l.b16 %v1093
      %v3813 = vunpack.c.h.b16 %v1093
      %v3814 = vunpack.c.l.b16 %v1094
      %v3815 = vunpack.c.h.b16 %v1094
      %v3816 = vunpack.c.l.b16 %v1095
      %v3817 = vunpack.c.h.b16 %v1095
      %v3818 = vunpack.c.l.b16 %v1096
      %v3819 = vunpack.c.h.b16 %v1096
      %v3820 = vunpack.c.l.b16 %v1097
      %v3821 = vunpack.c.h.b16 %v1097
      %v3822 = vunpack.c.l.b16 %v1098
      %v3823 = vunpack.c.h.b16 %v1098
      %v3824 = vunpack.c.l.b16 %v1099
      %v3825 = vunpack.c.h.b16 %v1099
      %v3826 = vunpack.c.l.b16 %v1100
      %v3827 = vunpack.c.h.b16 %v1100
      %v3828 = vunpack.c.l.b16 %v1101
      %v3829 = vunpack.c.h.b16 %v1101
      %v3830 = vunpack.c.l.b16 %v1102
      %v3831 = vunpack.c.h.b16 %v1102
      %v3832 = vunpack.c.l.b16 %v1103
      %v3833 = vunpack.c.h.b16 %v1103
      %v3834 = vunpack.c.l.b16 %v1104
      %v3835 = vunpack.c.h.b16 %v1104
      %v3836 = vunpack.c.l.b16 %v1105
      %v3837 = vunpack.c.h.b16 %v1105
      %v3838 = vunpack.c.l.b16 %v1106
      %v3839 = vunpack.c.h.b16 %v1106
      %v3840 = vunpack.c.l.b16 %v1107
      %v3841 = vunpack.c.h.b16 %v1107
      %v3842 = vunpack.c.l.b16 %v1108
      %v3843 = vunpack.c.h.b16 %v1108
      %v3844 = vunpack.c.l.b16 %v1109
      %v3845 = vunpack.c.h.b16 %v1109
      %v3846 = vunpack.c.l.b16 %v1110
      %v3847 = vunpack.c.h.b16 %v1110
      %v3848 = vunpack.c.l.b16 %v1111
      %v3849 = vunpack.c.h.b16 %v1111
      %v3850 = vunpack.c.l.b16 %v1112
      %v3851 = vunpack.c.h.b16 %v1112
      %v3852 = vunpack.c.l.b16 %v1113
      %v3853 = vunpack.c.h.b16 %v1113
      %v3854 = vunpack.c.l.b16 %v1114
      %v3855 = vunpack.c.h.b16 %v1114
      %v3856 = vunpack.c.l.b16 %v1115
      %v3857 = vunpack.c.h.b16 %v1115
      %v3858 = vunpack.c.l.b16 %v1116
      %v3859 = vunpack.c.h.b16 %v1116
      %v3860 = vunpack.c.l.b16 %v1117
      %v3861 = vunpack.c.h.b16 %v1117
      %v3862 = vunpack.c.l.b16 %v1118
      %v3863 = vunpack.c.h.b16 %v1118
      %v3864 = vunpack.c.l.b16 %v1119
      %v3865 = vunpack.c.h.b16 %v1119
      %v3866 = vunpack.c.l.b16 %v1120
      %v3867 = vunpack.c.h.b16 %v1120
      %v3868 = vunpack.c.l.b16 %v1121
      %v3869 = vunpack.c.h.b16 %v1121
      %v3870 = vunpack.c.l.b16 %v1122
      %v3871 = vunpack.c.h.b16 %v1122
      %v3872 = vunpack.c.l.b16 %v1123
      %v3873 = vunpack.c.h.b16 %v1123
      %v3874 = vunpack.c.l.b16 %v1124
      %v3875 = vunpack.c.h.b16 %v1124
      %v3876 = vunpack.c.l.b16 %v1125
      %v3877 = vunpack.c.h.b16 %v1125
      %v3878 = vunpack.c.l.b16 %v1126
      %v3879 = vunpack.c.h.b16 %v1126
      %v3880 = vunpack.c.l.b16 %v1127
      %v3881 = vunpack.c.h.b16 %v1127
      %v3882 = vunpack.c.l.b16 %v1128
      %v3883 = vunpack.c.h.b16 %v1128
      %v3884 = vunpack.c.l.b16 %v1129
      %v3885 = vunpack.c.h.b16 %v1129
      %v3886 = vunpack.c.l.b16 %v1130
      %v3887 = vunpack.c.h.b16 %v1130
      %v3888 = vunpack.c.l.b16 %v1131
      %v3889 = vunpack.c.h.b16 %v1131
      %v3890 = vunpack.c.l.b16 %v1132
      %v3891 = vunpack.c.h.b16 %v1132
      %v3892 = vunpack.c.l.b16 %v1133
      %v3893 = vunpack.c.h.b16 %v1133
      %v3894 = vunpack.c.l.b16 %v1134
      %v3895 = vunpack.c.h.b16 %v1134
      %v3896 = vunpack.c.l.b16 %v1135
      %v3897 = vunpack.c.h.b16 %v1135
      %v3898 = vunpack.c.l.b16 %v1136
      %v3899 = vunpack.c.h.b16 %v1136
      %v3900 = vunpack.c.l.b16 %v1137
      %v3901 = vunpack.c.h.b16 %v1137
      %v3902 = vunpack.c.l.b16 %v1138
      %v3903 = vunpack.c.h.b16 %v1138
      %v3904 = vunpack.c.l.b16 %v1139
      %v3905 = vunpack.c.h.b16 %v1139
      %v3906 = vunpack.c.l.b16 %v1140
      %v3907 = vunpack.c.h.b16 %v1140
      %v3908 = vunpack.c.l.b16 %v1141
      %v3909 = vunpack.c.h.b16 %v1141
      %v3910 = vunpack.c.l.b16 %v1142
      %v3911 = vunpack.c.h.b16 %v1142
      %v3912 = vunpack.c.l.b16 %v1143
      %v3913 = vunpack.c.h.b16 %v1143
      %v3914 = vunpack.c.l.b16 %v1144
      %v3915 = vunpack.c.h.b16 %v1144
      %v3916 = vunpack.c.l.b16 %v1145
      %v3917 = vunpack.c.h.b16 %v1145
      %v3918 = vunpack.c.l.b16 %v1146
      %v3919 = vunpack.c.h.b16 %v1146
      %v3920 = vunpack.c.l.b16 %v1147
      %v3921 = vunpack.c.h.b16 %v1147
      %v3922 = vunpack.c.l.b16 %v1148
      %v3923 = vunpack.c.h.b16 %v1148
      %v3924 = vunpack.c.l.b16 %v1149
      %v3925 = vunpack.c.h.b16 %v1149
      %v3926 = vunpack.c.l.b16 %v1150
      %v3927 = vunpack.c.h.b16 %v1150
      %v3928 = vunpack.c.l.b16 %v1151
      %v3929 = vunpack.c.h.b16 %v1151
      %v3930 = vunpack.c.l.b16 %v1152
      %v3931 = vunpack.c.h.b16 %v1152
      %v3932 = vunpack.c.l.b16 %v1153
      %v3933 = vunpack.c.h.b16 %v1153
      %v3934 = vunpack.c.l.b16 %v1154
      %v3935 = vunpack.c.h.b16 %v1154
      %v3936 = vunpack.c.l.b16 %v1155
      %v3937 = vunpack.c.h.b16 %v1155
      %v3938 = vunpack.c.l.b16 %v1156
      %v3939 = vunpack.c.h.b16 %v1156
      %v3940 = vunpack.c.l.b16 %v1157
      %v3941 = vunpack.c.h.b16 %v1157
      %v3942 = vunpack.c.l.b16 %v1158
      %v3943 = vunpack.c.h.b16 %v1158
      %v3944 = vunpack.c.l.b16 %v1159
      %v3945 = vunpack.c.h.b16 %v1159
      %v3946 = vpack.c.b16 %v2158, %v2154
      %v3947 = vpack.c.b16 %v2159, %v2155
      %v3948 = vpack.c.b16 %v2160, %v2156
      %v3949 = vpack.c.b16 %v2161, %v2157
      %v3950 = vpack.c.b16 %v2166, %v2162
      %v3951 = vpack.c.b16 %v2167, %v2163
      %v3952 = vpack.c.b16 %v2168, %v2164
      %v3953 = vpack.c.b16 %v2169, %v2165
      %v3954 = vpack.c.b16 %v2174, %v2170
      %v3955 = vpack.c.b16 %v2175, %v2171
      %v3956 = vpack.c.b16 %v2176, %v2172
      %v3957 = vpack.c.b16 %v2177, %v2173
      %v3958 = vpack.c.b16 %v2182, %v2178
      %v3959 = vpack.c.b16 %v2183, %v2179
      %v3960 = vpack.c.b16 %v2184, %v2180
      %v3961 = vpack.c.b16 %v2185, %v2181
      %v3962 = vpack.c.b16 %v2190, %v2186
      %v3963 = vpack.c.b16 %v2191, %v2187
      %v3964 = vpack.c.b16 %v2192, %v2188
      %v3965 = vpack.c.b16 %v2193, %v2189
      %v3966 = vpack.c.b16 %v2198, %v2194
      %v3967 = vpack.c.b16 %v2199, %v2195
      %v3968 = vpack.c.b16 %v2200, %v2196
      %v3969 = vpack.c.b16 %v2201, %v2197
      %v3970 = vpack.c.b16 %v2206, %v2202
      %v3971 = vpack.c.b16 %v2207, %v2203
      %v3972 = vpack.c.b16 %v2208, %v2204
      %v3973 = vpack.c.b16 %v2209, %v2205
      %v3974 = vpack.c.b16 %v2214, %v2210
      %v3975 = vpack.c.b16 %v2215, %v2211
      %v3976 = vpack.c.b16 %v2216, %v2212
      %v3977 = vpack.c.b16 %v2217, %v2213
      %v3978 = vpack.c.b16 %v2222, %v2218
      %v3979 = vpack.c.b16 %v2223, %v2219
      %v3980 = vpack.c.b16 %v2224, %v2220
      %v3981 = vpack.c.b16 %v2225, %v2221
      %v3982 = vpack.c.b16 %v2230, %v2226
      %v3983 = vpack.c.b16 %v2231, %v2227
      %v3984 = vpack.c.b16 %v2232, %v2228
      %v3985 = vpack.c.b16 %v2233, %v2229
      %v3986 = vpack.c.b16 %v2238, %v2234
      %v3987 = vpack.c.b16 %v2239, %v2235
      %v3988 = vpack.c.b16 %v2240, %v2236
      %v3989 = vpack.c.b16 %v2241, %v2237
      %v3990 = vpack.c.b16 %v2246, %v2242
      %v3991 = vpack.c.b16 %v2247, %v2243
      %v3992 = vpack.c.b16 %v2248, %v2244
      %v3993 = vpack.c.b16 %v2249, %v2245
      %v3994 = vpack.c.b16 %v2254, %v2250
      %v3995 = vpack.c.b16 %v2255, %v2251
      %v3996 = vpack.c.b16 %v2256, %v2252
      %v3997 = vpack.c.b16 %v2257, %v2253
      %v3998 = vpack.c.b16 %v2262, %v2258
      %v3999 = vpack.c.b16 %v2263, %v2259
      %v4000 = vpack.c.b16 %v2264, %v2260
      %v4001 = vpack.c.b16 %v2265, %v2261
      %v4002 = vpack.c.b16 %v2270, %v2266
      %v4003 = vpack.c.b16 %v2271, %v2267
      %v4004 = vpack.c.b16 %v2272, %v2268
      %v4005 = vpack.c.b16 %v2273, %v2269
      %v4006 = vpack.c.b16 %v2278, %v2274
      %v4007 = vpack.c.b16 %v2279, %v2275
      %v4008 = vpack.c.b16 %v2280, %v2276
      %v4009 = vpack.c.b16 %v2281, %v2277
      %v4010 = vpack.c.b16 %v2286, %v2282
      %v4011 = vpack.c.b16 %v2287, %v2283
      %v4012 = vpack.c.b16 %v2288, %v2284
      %v4013 = vpack.c.b16 %v2289, %v2285
      %v4014 = vpack.c.b16 %v2294, %v2290
      %v4015 = vpack.c.b16 %v2295, %v2291
      %v4016 = vpack.c.b16 %v2296, %v2292
      %v4017 = vpack.c.b16 %v2297, %v2293
      %v4018 = vpack.c.b16 %v2302, %v2298
      %v4019 = vpack.c.b16 %v2303, %v2299
      %v4020 = vpack.c.b16 %v2304, %v2300
      %v4021 = vpack.c.b16 %v2305, %v2301
      %v4022 = vpack.c.b16 %v2310, %v2306
      %v4023 = vpack.c.b16 %v2311, %v2307
      %v4024 = vpack.c.b16 %v2312, %v2308
      %v4025 = vpack.c.b16 %v2313, %v2309
      %v4026 = vpack.c.b16 %v2318, %v2314
      %v4027 = vpack.c.b16 %v2319, %v2315
      %v4028 = vpack.c.b16 %v2320, %v2316
      %v4029 = vpack.c.b16 %v2321, %v2317
      %v4030 = vpack.c.b16 %v2326, %v2322
      %v4031 = vpack.c.b16 %v2327, %v2323
      %v4032 = vpack.c.b16 %v2328, %v2324
      %v4033 = vpack.c.b16 %v2329, %v2325
      %v4034 = vpack.c.b16 %v2334, %v2330
      %v4035 = vpack.c.b16 %v2335, %v2331
      %v4036 = vpack.c.b16 %v2336, %v2332
      %v4037 = vpack.c.b16 %v2337, %v2333
      %v4038 = vpack.c.b16 %v2342, %v2338
      %v4039 = vpack.c.b16 %v2343, %v2339
      %v4040 = vpack.c.b16 %v2344, %v2340
      %v4041 = vpack.c.b16 %v2345, %v2341
      %v4042 = vpack.c.b16 %v2350, %v2346
      %v4043 = vpack.c.b16 %v2351, %v2347
      %v4044 = vpack.c.b16 %v2352, %v2348
      %v4045 = vpack.c.b16 %v2353, %v2349
      %v4046 = vpack.c.b16 %v2358, %v2354
      %v4047 = vpack.c.b16 %v2359, %v2355
      %v4048 = vpack.c.b16 %v2360, %v2356
      %v4049 = vpack.c.b16 %v2361, %v2357
      %v4050 = vpack.c.b16 %v2366, %v2362
      %v4051 = vpack.c.b16 %v2367, %v2363
      %v4052 = vpack.c.b16 %v2368, %v2364
      %v4053 = vpack.c.b16 %v2369, %v2365
      %v4054 = vpack.c.b16 %v2374, %v2370
      %v4055 = vpack.c.b16 %v2375, %v2371
      %v4056 = vpack.c.b16 %v2376, %v2372
      %v4057 = vpack.c.b16 %v2377, %v2373
      %v4058 = vpack.c.b16 %v2382, %v2378
      %v4059 = vpack.c.b16 %v2383, %v2379
      %v4060 = vpack.c.b16 %v2384, %v2380
      %v4061 = vpack.c.b16 %v2385, %v2381
      %v4062 = vpack.c.b16 %v2390, %v2386
      %v4063 = vpack.c.b16 %v2391, %v2387
      %v4064 = vpack.c.b16 %v2392, %v2388
      %v4065 = vpack.c.b16 %v2393, %v2389
      %v4066 = vpack.c.b16 %v2398, %v2394
      %v4067 = vpack.c.b16 %v2399, %v2395
      %v4068 = vpack.c.b16 %v2400, %v2396
      %v4069 = vpack.c.b16 %v2401, %v2397
      %v4070 = vpack.c.b16 %v2406, %v2402
      %v4071 = vpack.c.b16 %v2407, %v2403
      %v4072 = vpack.c.b16 %v2408, %v2404
      %v4073 = vpack.c.b16 %v2409, %v2405
      %v4074 = vpack.c.b16 %v2414, %v2410
      %v4075 = vpack.c.b16 %v2415, %v2411
      %v4076 = vpack.c.b16 %v2416, %v2412
      %v4077 = vpack.c.b16 %v2417, %v2413
      %v4078 = vpack.c.b16 %v2422, %v2418
      %v4079 = vpack.c.b16 %v2423, %v2419
      %v4080 = vpack.c.b16 %v2424, %v2420
      %v4081 = vpack.c.b16 %v2425, %v2421
      %v4082 = vpack.c.b16 %v2430, %v2426
      %v4083 = vpack.c.b16 %v2431, %v2427
      %v4084 = vpack.c.b16 %v2432, %v2428
      %v4085 = vpack.c.b16 %v2433, %v2429
      %v4086 = vpack.c.b16 %v2438, %v2434
      %v4087 = vpack.c.b16 %v2439, %v2435
      %v4088 = vpack.c.b16 %v2440, %v2436
      %v4089 = vpack.c.b16 %v2441, %v2437
      %v4090 = vpack.c.b16 %v2446, %v2442
      %v4091 = vpack.c.b16 %v2447, %v2443
      %v4092 = vpack.c.b16 %v2448, %v2444
      %v4093 = vpack.c.b16 %v2449, %v2445
      %v4094 = vpack.c.b16 %v2454, %v2450
      %v4095 = vpack.c.b16 %v2455, %v2451
      %v4096 = vpack.c.b16 %v2456, %v2452
      %v4097 = vpack.c.b16 %v2457, %v2453
      %v4098 = vpack.c.b16 %v2462, %v2458
      %v4099 = vpack.c.b16 %v2463, %v2459
      %v4100 = vpack.c.b16 %v2464, %v2460
      %v4101 = vpack.c.b16 %v2465, %v2461
      %v4102 = vpack.c.b16 %v2470, %v2466
      %v4103 = vpack.c.b16 %v2471, %v2467
      %v4104 = vpack.c.b16 %v2472, %v2468
      %v4105 = vpack.c.b16 %v2473, %v2469
      %v4106 = vpack.c.b16 %v2478, %v2474
      %v4107 = vpack.c.b16 %v2479, %v2475
      %v4108 = vpack.c.b16 %v2480, %v2476
      %v4109 = vpack.c.b16 %v2481, %v2477
      %v4110 = vpack.c.b16 %v2486, %v2482
      %v4111 = vpack.c.b16 %v2487, %v2483
      %v4112 = vpack.c.b16 %v2488, %v2484
      %v4113 = vpack.c.b16 %v2489, %v2485
      %v4114 = vpack.c.b16 %v2494, %v2490
      %v4115 = vpack.c.b16 %v2495, %v2491
      %v4116 = vpack.c.b16 %v2496, %v2492
      %v4117 = vpack.c.b16 %v2497, %v2493
      %v4118 = vpack.c.b16 %v2502, %v2498
      %v4119 = vpack.c.b16 %v2503, %v2499
      %v4120 = vpack.c.b16 %v2504, %v2500
      %v4121 = vpack.c.b16 %v2505, %v2501
      %v4122 = vpack.c.b16 %v2510, %v2506
      %v4123 = vpack.c.b16 %v2511, %v2507
      %v4124 = vpack.c.b16 %v2512, %v2508
      %v4125 = vpack.c.b16 %v2513, %v2509
      %v4126 = vpack.c.b16 %v2518, %v2514
      %v4127 = vpack.c.b16 %v2519, %v2515
      %v4128 = vpack.c.b16 %v2520, %v2516
      %v4129 = vpack.c.b16 %v2521, %v2517
      %v4130 = vpack.c.b16 %v2526, %v2522
      %v4131 = vpack.c.b16 %v2527, %v2523
      %v4132 = vpack.c.b16 %v2528, %v2524
      %v4133 = vpack.c.b16 %v2529, %v2525
      %v4134 = vpack.c.b16 %v2534, %v2530
      %v4135 = vpack.c.b16 %v2535, %v2531
      %v4136 = vpack.c.b16 %v2536, %v2532
      %v4137 = vpack.c.b16 %v2537, %v2533
      %v4138 = vpack.c.b16 %v2542, %v2538
      %v4139 = vpack.c.b16 %v2543, %v2539
      %v4140 = vpack.c.b16 %v2544, %v2540
      %v4141 = vpack.c.b16 %v2545, %v2541
      %v4142 = vpack.c.b16 %v2550, %v2546
      %v4143 = vpack.c.b16 %v2551, %v2547
      %v4144 = vpack.c.b16 %v2552, %v2548
      %v4145 = vpack.c.b16 %v2553, %v2549
      %v4146 = vpack.c.b16 %v2558, %v2554
      %v4147 = vpack.c.b16 %v2559, %v2555
      %v4148 = vpack.c.b16 %v2560, %v2556
      %v4149 = vpack.c.b16 %v2561, %v2557
      %v4150 = vpack.c.b16 %v2566, %v2562
      %v4151 = vpack.c.b16 %v2567, %v2563
      %v4152 = vpack.c.b16 %v2568, %v2564
      %v4153 = vpack.c.b16 %v2569, %v2565
      %v4154 = vpack.c.b16 %v2574, %v2570
      %v4155 = vpack.c.b16 %v2575, %v2571
      %v4156 = vpack.c.b16 %v2576, %v2572
      %v4157 = vpack.c.b16 %v2577, %v2573
      %v4158 = vpack.c.b16 %v2582, %v2578
      %v4159 = vpack.c.b16 %v2583, %v2579
      %v4160 = vpack.c.b16 %v2584, %v2580
      %v4161 = vpack.c.b16 %v2585, %v2581
      %v4162 = vpack.c.b16 %v2590, %v2586
      %v4163 = vpack.c.b16 %v2591, %v2587
      %v4164 = vpack.c.b16 %v2592, %v2588
      %v4165 = vpack.c.b16 %v2593, %v2589
      %v4166 = vpack.c.b16 %v2598, %v2594
      %v4167 = vpack.c.b16 %v2599, %v2595
      %v4168 = vpack.c.b16 %v2600, %v2596
      %v4169 = vpack.c.b16 %v2601, %v2597
      %v4170 = vpack.c.b16 %v2606, %v2602
      %v4171 = vpack.c.b16 %v2607, %v2603
      %v4172 = vpack.c.b16 %v2608, %v2604
      %v4173 = vpack.c.b16 %v2609, %v2605
      %v4174 = vpack.c.b16 %v2614, %v2610
      %v4175 = vpack.c.b16 %v2615, %v2611
      %v4176 = vpack.c.b16 %v2616, %v2612
      %v4177 = vpack.c.b16 %v2617, %v2613
      %v4178 = vpack.c.b16 %v2622, %v2618
      %v4179 = vpack.c.b16 %v2623, %v2619
      %v4180 = vpack.c.b16 %v2624, %v2620
      %v4181 = vpack.c.b16 %v2625, %v2621
      %v4182 = vpack.c.b16 %v2630, %v2626
      %v4183 = vpack.c.b16 %v2631, %v2627
      %v4184 = vpack.c.b16 %v2632, %v2628
      %v4185 = vpack.c.b16 %v2633, %v2629
      %v4186 = vpack.c.b16 %v2638, %v2634
      %v4187 = vpack.c.b16 %v2639, %v2635
      %v4188 = vpack.c.b16 %v2640, %v2636
      %v4189 = vpack.c.b16 %v2641, %v2637
      %v4190 = vpack.c.b16 %v2646, %v2642
      %v4191 = vpack.c.b16 %v2647, %v2643
      %v4192 = vpack.c.b16 %v2648, %v2644
      %v4193 = vpack.c.b16 %v2649, %v2645
      %v4194 = vpack.c.b16 %v2654, %v2650
      %v4195 = vpack.c.b16 %v2655, %v2651
      %v4196 = vpack.c.b16 %v2656, %v2652
      %v4197 = vpack.c.b16 %v2657, %v2653
      %v4198 = vpack.c.b16 %v2662, %v2658
      %v4199 = vpack.c.b16 %v2663, %v2659
      %v4200 = vpack.c.b16 %v2664, %v2660
      %v4201 = vpack.c.b16 %v2665, %v2661
      %v4202 = vpack.c.b16 %v2670, %v2666
      %v4203 = vpack.c.b16 %v2671, %v2667
      %v4204 = vpack.c.b16 %v2672, %v2668
      %v4205 = vpack.c.b16 %v2673, %v2669
      %v4206 = vpack.c.b16 %v2678, %v2674
      %v4207 = vpack.c.b16 %v2679, %v2675
      %v4208 = vpack.c.b16 %v2680, %v2676
      %v4209 = vpack.c.b16 %v2681, %v2677
      %v4210 = vpack.c.b16 %v2686, %v2682
      %v4211 = vpack.c.b16 %v2687, %v2683
      %v4212 = vpack.c.b16 %v2688, %v2684
      %v4213 = vpack.c.b16 %v2689, %v2685
      %v4214 = vpack.c.b16 %v2694, %v2690
      %v4215 = vpack.c.b16 %v2695, %v2691
      %v4216 = vpack.c.b16 %v2696, %v2692
      %v4217 = vpack.c.b16 %v2697, %v2693
      %v4218 = vpack.c.b16 %v2702, %v2698
      %v4219 = vpack.c.b16 %v2703, %v2699
      %v4220 = vpack.c.b16 %v2704, %v2700
      %v4221 = vpack.c.b16 %v2705, %v2701
      %v4222 = vpack.c.b16 %v2710, %v2706
      %v4223 = vpack.c.b16 %v2711, %v2707
      %v4224 = vpack.c.b16 %v2712, %v2708
      %v4225 = vpack.c.b16 %v2713, %v2709
      %v4226 = vpack.c.b16 %v2718, %v2714
      %v4227 = vpack.c.b16 %v2719, %v2715
      %v4228 = vpack.c.b16 %v2720, %v2716
      %v4229 = vpack.c.b16 %v2721, %v2717
      %v4230 = vpack.c.b16 %v2726, %v2722
      %v4231 = vpack.c.b16 %v2727, %v2723
      %v4232 = vpack.c.b16 %v2728, %v2724
      %v4233 = vpack.c.b16 %v2729, %v2725
      %v4234 = vpack.c.b16 %v2734, %v2730
      %v4235 = vpack.c.b16 %v2735, %v2731
      %v4236 = vpack.c.b16 %v2736, %v2732
      %v4237 = vpack.c.b16 %v2737, %v2733
      %v4238 = vpack.c.b16 %v2742, %v2738
      %v4239 = vpack.c.b16 %v2743, %v2739
      %v4240 = vpack.c.b16 %v2744, %v2740
      %v4241 = vpack.c.b16 %v2745, %v2741
      %v4242 = vpack.c.b16 %v2750, %v2746
      %v4243 = vpack.c.b16 %v2751, %v2747
      %v4244 = vpack.c.b16 %v2752, %v2748
      %v4245 = vpack.c.b16 %v2753, %v2749
      %v4246 = vpack.c.b16 %v2758, %v2754
      %v4247 = vpack.c.b16 %v2759, %v2755
      %v4248 = vpack.c.b16 %v2760, %v2756
      %v4249 = vpack.c.b16 %v2761, %v2757
      %v4250 = vpack.c.b16 %v2766, %v2762
      %v4251 = vpack.c.b16 %v2767, %v2763
      %v4252 = vpack.c.b16 %v2768, %v2764
      %v4253 = vpack.c.b16 %v2769, %v2765
      %v4254 = vpack.c.b16 %v2774, %v2770
      %v4255 = vpack.c.b16 %v2775, %v2771
      %v4256 = vpack.c.b16 %v2776, %v2772
      %v4257 = vpack.c.b16 %v2777, %v2773
      %v4258 = vpack.c.b16 %v2782, %v2778
      %v4259 = vpack.c.b16 %v2783, %v2779
      %v4260 = vpack.c.b16 %v2784, %v2780
      %v4261 = vpack.c.b16 %v2785, %v2781
      %v4262 = vpack.c.b16 %v2790, %v2786
      %v4263 = vpack.c.b16 %v2791, %v2787
      %v4264 = vpack.c.b16 %v2792, %v2788
      %v4265 = vpack.c.b16 %v2793, %v2789
      %v4266 = vpack.c.b16 %v2798, %v2794
      %v4267 = vpack.c.b16 %v2799, %v2795
      %v4268 = vpack.c.b16 %v2800, %v2796
      %v4269 = vpack.c.b16 %v2801, %v2797
      %v4270 = vpack.c.b16 %v2806, %v2802
      %v4271 = vpack.c.b16 %v2807, %v2803
      %v4272 = vpack.c.b16 %v2808, %v2804
      %v4273 = vpack.c.b16 %v2809, %v2805
      %v4274 = vpack.c.b16 %v2814, %v2810
      %v4275 = vpack.c.b16 %v2815, %v2811
      %v4276 = vpack.c.b16 %v2816, %v2812
      %v4277 = vpack.c.b16 %v2817, %v2813
      %v4278 = vpack.c.b16 %v2822, %v2818
      %v4279 = vpack.c.b16 %v2823, %v2819
      %v4280 = vpack.c.b16 %v2824, %v2820
      %v4281 = vpack.c.b16 %v2825, %v2821
      %v4282 = vpack.c.b16 %v2830, %v2826
      %v4283 = vpack.c.b16 %v2831, %v2827
      %v4284 = vpack.c.b16 %v2832, %v2828
      %v4285 = vpack.c.b16 %v2833, %v2829
      %v4286 = vpack.c.b16 %v2838, %v2834
      %v4287 = vpack.c.b16 %v2839, %v2835
      %v4288 = vpack.c.b16 %v2840, %v2836
      %v4289 = vpack.c.b16 %v2841, %v2837
      %v4290 = vpack.c.b16 %v2846, %v2842
      %v4291 = vpack.c.b16 %v2847, %v2843
      %v4292 = vpack.c.b16 %v2848, %v2844
      %v4293 = vpack.c.b16 %v2849, %v2845
      %v4294 = vpack.c.b16 %v2854, %v2850
      %v4295 = vpack.c.b16 %v2855, %v2851
      %v4296 = vpack.c.b16 %v2856, %v2852
      %v4297 = vpack.c.b16 %v2857, %v2853
      %v4298 = vpack.c.b16 %v2862, %v2858
      %v4299 = vpack.c.b16 %v2863, %v2859
      %v4300 = vpack.c.b16 %v2864, %v2860
      %v4301 = vpack.c.b16 %v2865, %v2861
      %v4302 = vpack.c.b16 %v2870, %v2866
      %v4303 = vpack.c.b16 %v2871, %v2867
      %v4304 = vpack.c.b16 %v2872, %v2868
      %v4305 = vpack.c.b16 %v2873, %v2869
      %v4306 = vpack.c.b16 %v2878, %v2874
      %v4307 = vpack.c.b16 %v2879, %v2875
      %v4308 = vpack.c.b16 %v2880, %v2876
      %v4309 = vpack.c.b16 %v2881, %v2877
      %v4310 = vpack.c.b16 %v2886, %v2882
      %v4311 = vpack.c.b16 %v2887, %v2883
      %v4312 = vpack.c.b16 %v2888, %v2884
      %v4313 = vpack.c.b16 %v2889, %v2885
      %v4314 = vpack.c.b16 %v2894, %v2890
      %v4315 = vpack.c.b16 %v2895, %v2891
      %v4316 = vpack.c.b16 %v2896, %v2892
      %v4317 = vpack.c.b16 %v2897, %v2893
      %v4318 = vpack.c.b16 %v2902, %v2898
      %v4319 = vpack.c.b16 %v2903, %v2899
      %v4320 = vpack.c.b16 %v2904, %v2900
      %v4321 = vpack.c.b16 %v2905, %v2901
      %v4322 = vpack.c.b16 %v2910, %v2906
      %v4323 = vpack.c.b16 %v2911, %v2907
      %v4324 = vpack.c.b16 %v2912, %v2908
      %v4325 = vpack.c.b16 %v2913, %v2909
      %v4326 = vpack.c.b16 %v2918, %v2914
      %v4327 = vpack.c.b16 %v2919, %v2915
      %v4328 = vpack.c.b16 %v2920, %v2916
      %v4329 = vpack.c.b16 %v2921, %v2917
      %v4330 = vpack.c.b16 %v2926, %v2922
      %v4331 = vpack.c.b16 %v2927, %v2923
      %v4332 = vpack.c.b16 %v2928, %v2924
      %v4333 = vpack.c.b16 %v2929, %v2925
      %v4334 = vpack.c.b16 %v2934, %v2930
      %v4335 = vpack.c.b16 %v2935, %v2931
      %v4336 = vpack.c.b16 %v2936, %v2932
      %v4337 = vpack.c.b16 %v2937, %v2933
      %v4338 = vpack.c.b16 %v2942, %v2938
      %v4339 = vpack.c.b16 %v2943, %v2939
      %v4340 = vpack.c.b16 %v2944, %v2940
      %v4341 = vpack.c.b16 %v2945, %v2941
      %v4342 = vpack.c.b16 %v2950, %v2946
      %v4343 = vpack.c.b16 %v2951, %v2947
      %v4344 = vpack.c.b16 %v2952, %v2948
      %v4345 = vpack.c.b16 %v2953, %v2949
      %v4346 = vpack.c.b16 %v2958, %v2954
      %v4347 = vpack.c.b16 %v2959, %v2955
      %v4348 = vpack.c.b16 %v2960, %v2956
      %v4349 = vpack.c.b16 %v2961, %v2957
      %v4350 = vpack.c.b16 %v2966, %v2962
      %v4351 = vpack.c.b16 %v2967, %v2963
      %v4352 = vpack.c.b16 %v2968, %v2964
      %v4353 = vpack.c.b16 %v2969, %v2965
      %v4354 = vpack.c.b16 %v2974, %v2970
      %v4355 = vpack.c.b16 %v2975, %v2971
      %v4356 = vpack.c.b16 %v2976, %v2972
      %v4357 = vpack.c.b16 %v2977, %v2973
      %v4358 = vpack.c.b16 %v2982, %v2978
      %v4359 = vpack.c.b16 %v2983, %v2979
      %v4360 = vpack.c.b16 %v2984, %v2980
      %v4361 = vpack.c.b16 %v2985, %v2981
      %v4362 = vpack.c.b16 %v2990, %v2986
      %v4363 = vpack.c.b16 %v2991, %v2987
      %v4364 = vpack.c.b16 %v2992, %v2988
      %v4365 = vpack.c.b16 %v2993, %v2989
      %v4366 = vpack.c.b16 %v2998, %v2994
      %v4367 = vpack.c.b16 %v2999, %v2995
      %v4368 = vpack.c.b16 %v3000, %v2996
      %v4369 = vpack.c.b16 %v3001, %v2997
      %v4370 = vpack.c.b16 %v3006, %v3002
      %v4371 = vpack.c.b16 %v3007, %v3003
      %v4372 = vpack.c.b16 %v3008, %v3004
      %v4373 = vpack.c.b16 %v3009, %v3005
      %v4374 = vpack.c.b16 %v3014, %v3010
      %v4375 = vpack.c.b16 %v3015, %v3011
      %v4376 = vpack.c.b16 %v3016, %v3012
      %v4377 = vpack.c.b16 %v3017, %v3013
      %v4378 = vpack.c.b16 %v3022, %v3018
      %v4379 = vpack.c.b16 %v3023, %v3019
      %v4380 = vpack.c.b16 %v3024, %v3020
      %v4381 = vpack.c.b16 %v3025, %v3021
      %v4382 = vpack.c.b16 %v3030, %v3026
      %v4383 = vpack.c.b16 %v3031, %v3027
      %v4384 = vpack.c.b16 %v3032, %v3028
      %v4385 = vpack.c.b16 %v3033, %v3029
      %v4386 = vpack.c.b16 %v3038, %v3034
      %v4387 = vpack.c.b16 %v3039, %v3035
      %v4388 = vpack.c.b16 %v3040, %v3036
      %v4389 = vpack.c.b16 %v3041, %v3037
      %v4390 = vpack.c.b16 %v3046, %v3042
      %v4391 = vpack.c.b16 %v3047, %v3043
      %v4392 = vpack.c.b16 %v3048, %v3044
      %v4393 = vpack.c.b16 %v3049, %v3045
      %v4394 = vpack.c.b16 %v3054, %v3050
      %v4395 = vpack.c.b16 %v3055, %v3051
      %v4396 = vpack.c.b16 %v3056, %v3052
      %v4397 = vpack.c.b16 %v3057, %v3053
      %v4398 = vpack.c.b16 %v3062, %v3058
      %v4399 = vpack.c.b16 %v3063, %v3059
      %v4400 = vpack.c.b16 %v3064, %v3060
      %v4401 = vpack.c.b16 %v3065, %v3061
      %v4402 = vpack.c.b16 %v3070, %v3066
      %v4403 = vpack.c.b16 %v3071, %v3067
      %v4404 = vpack.c.b16 %v3072, %v3068
      %v4405 = vpack.c.b16 %v3073, %v3069
      %v4406 = vpack.c.b16 %v3078, %v3074
      %v4407 = vpack.c.b16 %v3079, %v3075
      %v4408 = vpack.c.b16 %v3080, %v3076
      %v4409 = vpack.c.b16 %v3081, %v3077
      %v4410 = vpack.c.b16 %v3086, %v3082
      %v4411 = vpack.c.b16 %v3087, %v3083
      %v4412 = vpack.c.b16 %v3088, %v3084
      %v4413 = vpack.c.b16 %v3089, %v3085
      %v4414 = vpack.c.b16 %v3094, %v3090
      %v4415 = vpack.c.b16 %v3095, %v3091
      %v4416 = vpack.c.b16 %v3096, %v3092
      %v4417 = vpack.c.b16 %v3097, %v3093
      %v4418 = vpack.c.b16 %v3102, %v3098
      %v4419 = vpack.c.b16 %v3103, %v3099
      %v4420 = vpack.c.b16 %v3104, %v3100
      %v4421 = vpack.c.b16 %v3105, %v3101
      %v4422 = vpack.c.b16 %v3110, %v3106
      %v4423 = vpack.c.b16 %v3111, %v3107
      %v4424 = vpack.c.b16 %v3112, %v3108
      %v4425 = vpack.c.b16 %v3113, %v3109
      %v4426 = vpack.c.b16 %v3118, %v3114
      %v4427 = vpack.c.b16 %v3119, %v3115
      %v4428 = vpack.c.b16 %v3120, %v3116
      %v4429 = vpack.c.b16 %v3121, %v3117
      %v4430 = vpack.c.b16 %v3126, %v3122
      %v4431 = vpack.c.b16 %v3127, %v3123
      %v4432 = vpack.c.b16 %v3128, %v3124
      %v4433 = vpack.c.b16 %v3129, %v3125
      %v4434 = vpack.c.b16 %v3134, %v3130
      %v4435 = vpack.c.b16 %v3135, %v3131
      %v4436 = vpack.c.b16 %v3136, %v3132
      %v4437 = vpack.c.b16 %v3137, %v3133
      %v4438 = vpack.c.b16 %v3142, %v3138
      %v4439 = vpack.c.b16 %v3143, %v3139
      %v4440 = vpack.c.b16 %v3144, %v3140
      %v4441 = vpack.c.b16 %v3145, %v3141
      %v4442 = vpack.c.b16 %v3150, %v3146
      %v4443 = vpack.c.b16 %v3151, %v3147
      %v4444 = vpack.c.b16 %v3152, %v3148
      %v4445 = vpack.c.b16 %v3153, %v3149
      %v4446 = vpack.c.b16 %v3158, %v3154
      %v4447 = vpack.c.b16 %v3159, %v3155
      %v4448 = vpack.c.b16 %v3160, %v3156
      %v4449 = vpack.c.b16 %v3161, %v3157
      %v4450 = vpack.c.b16 %v3166, %v3162
      %v4451 = vpack.c.b16 %v3167, %v3163
      %v4452 = vpack.c.b16 %v3168, %v3164
      %v4453 = vpack.c.b16 %v3169, %v3165
      %v4454 = vpack.c.b16 %v3174, %v3170
      %v4455 = vpack.c.b16 %v3175, %v3171
      %v4456 = vpack.c.b16 %v3176, %v3172
      %v4457 = vpack.c.b16 %v3177, %v3173
      %v4458 = vpack.c.b16 %v3182, %v3178
      %v4459 = vpack.c.b16 %v3183, %v3179
      %v4460 = vpack.c.b16 %v3184, %v3180
      %v4461 = vpack.c.b16 %v3185, %v3181
      %v4462 = vpack.c.b16 %v3190, %v3186
      %v4463 = vpack.c.b16 %v3191, %v3187
      %v4464 = vpack.c.b16 %v3192, %v3188
      %v4465 = vpack.c.b16 %v3193, %v3189
      %v4466 = vpack.c.b16 %v3198, %v3194
      %v4467 = vpack.c.b16 %v3199, %v3195
      %v4468 = vpack.c.b16 %v3200, %v3196
      %v4469 = vpack.c.b16 %v3201, %v3197
      %v4470 = vpack.c.b16 %v3206, %v3202
      %v4471 = vpack.c.b16 %v3207, %v3203
      %v4472 = vpack.c.b16 %v3208, %v3204
      %v4473 = vpack.c.b16 %v3209, %v3205
      %v4474 = vpack.c.b16 %v3214, %v3210
      %v4475 = vpack.c.b16 %v3215, %v3211
      %v4476 = vpack.c.b16 %v3216, %v3212
      %v4477 = vpack.c.b16 %v3217, %v3213
      %v4478 = vpack.c.b16 %v3222, %v3218
      %v4479 = vpack.c.b16 %v3223, %v3219
      %v4480 = vpack.c.b16 %v3224, %v3220
      %v4481 = vpack.c.b16 %v3225, %v3221
      %v4482 = vpack.c.b16 %v3230, %v3226
      %v4483 = vpack.c.b16 %v3231, %v3227
      %v4484 = vpack.c.b16 %v3232, %v3228
      %v4485 = vpack.c.b16 %v3233, %v3229
      %v4486 = vpack.c.b16 %v3238, %v3234
      %v4487 = vpack.c.b16 %v3239, %v3235
      %v4488 = vpack.c.b16 %v3240, %v3236
      %v4489 = vpack.c.b16 %v3241, %v3237
      %v4490 = vpack.c.b16 %v3246, %v3242
      %v4491 = vpack.c.b16 %v3247, %v3243
      %v4492 = vpack.c.b16 %v3248, %v3244
      %v4493 = vpack.c.b16 %v3249, %v3245
      %v4494 = vpack.c.b16 %v3254, %v3250
      %v4495 = vpack.c.b16 %v3255, %v3251
      %v4496 = vpack.c.b16 %v3256, %v3252
      %v4497 = vpack.c.b16 %v3257, %v3253
      %v4498 = vpack.c.b16 %v3262, %v3258
      %v4499 = vpack.c.b16 %v3263, %v3259
      %v4500 = vpack.c.b16 %v3264, %v3260
      %v4501 = vpack.c.b16 %v3265, %v3261
      %v4502 = vpack.c.b16 %v3270, %v3266
      %v4503 = vpack.c.b16 %v3271, %v3267
      %v4504 = vpack.c.b16 %v3272, %v3268
      %v4505 = vpack.c.b16 %v3273, %v3269
      %v4506 = vpack.c.b16 %v3278, %v3274
      %v4507 = vpack.c.b16 %v3279, %v3275
      %v4508 = vpack.c.b16 %v3280, %v3276
      %v4509 = vpack.c.b16 %v3281, %v3277
      %v4510 = vpack.c.b16 %v3286, %v3282
      %v4511 = vpack.c.b16 %v3287, %v3283
      %v4512 = vpack.c.b16 %v3288, %v3284
      %v4513 = vpack.c.b16 %v3289, %v3285
      %v4514 = vpack.c.b16 %v3294, %v3290
      %v4515 = vpack.c.b16 %v3295, %v3291
      %v4516 = vpack.c.b16 %v3296, %v3292
      %v4517 = vpack.c.b16 %v3297, %v3293
      %v4518 = vpack.c.b16 %v3302, %v3298
      %v4519 = vpack.c.b16 %v3303, %v3299
      %v4520 = vpack.c.b16 %v3304, %v3300
      %v4521 = vpack.c.b16 %v3305, %v3301
      %v4522 = vpack.c.b16 %v3310, %v3306
      %v4523 = vpack.c.b16 %v3311, %v3307
      %v4524 = vpack.c.b16 %v3312, %v3308
      %v4525 = vpack.c.b16 %v3313, %v3309
      %v4526 = vpack.c.b16 %v3318, %v3314
      %v4527 = vpack.c.b16 %v3319, %v3315
      %v4528 = vpack.c.b16 %v3320, %v3316
      %v4529 = vpack.c.b16 %v3321, %v3317
      %v4530 = vpack.c.b16 %v3326, %v3322
      %v4531 = vpack.c.b16 %v3327, %v3323
      %v4532 = vpack.c.b16 %v3328, %v3324
      %v4533 = vpack.c.b16 %v3329, %v3325
      %v4534 = vpack.c.b16 %v3334, %v3330
      %v4535 = vpack.c.b16 %v3335, %v3331
      %v4536 = vpack.c.b16 %v3336, %v3332
      %v4537 = vpack.c.b16 %v3337, %v3333
      %v4538 = vpack.c.b16 %v3342, %v3338
      %v4539 = vpack.c.b16 %v3343, %v3339
      %v4540 = vpack.c.b16 %v3344, %v3340
      %v4541 = vpack.c.b16 %v3345, %v3341
      %v4542 = vpack.c.b16 %v3350, %v3346
      %v4543 = vpack.c.b16 %v3351, %v3347
      %v4544 = vpack.c.b16 %v3352, %v3348
      %v4545 = vpack.c.b16 %v3353, %v3349
      %v4546 = vpack.c.b16 %v3358, %v3354
      %v4547 = vpack.c.b16 %v3359, %v3355
      %v4548 = vpack.c.b16 %v3360, %v3356
      %v4549 = vpack.c.b16 %v3361, %v3357
      %v4550 = vpack.c.b16 %v3366, %v3362
      %v4551 = vpack.c.b16 %v3367, %v3363
      %v4552 = vpack.c.b16 %v3368, %v3364
      %v4553 = vpack.c.b16 %v3369, %v3365
      %v4554 = vpack.c.b16 %v3374, %v3370
      %v4555 = vpack.c.b16 %v3375, %v3371
      %v4556 = vpack.c.b16 %v3376, %v3372
      %v4557 = vpack.c.b16 %v3377, %v3373
      %v4558 = vpack.c.b16 %v3382, %v3378
      %v4559 = vpack.c.b16 %v3383, %v3379
      %v4560 = vpack.c.b16 %v3384, %v3380
      %v4561 = vpack.c.b16 %v3385, %v3381
      %v4562 = vpack.c.b16 %v3390, %v3386
      %v4563 = vpack.c.b16 %v3391, %v3387
      %v4564 = vpack.c.b16 %v3392, %v3388
      %v4565 = vpack.c.b16 %v3393, %v3389
      %v4566 = vpack.c.b16 %v3398, %v3394
      %v4567 = vpack.c.b16 %v3399, %v3395
      %v4568 = vpack.c.b16 %v3400, %v3396
      %v4569 = vpack.c.b16 %v3401, %v3397
      %v4570 = vpack.c.b16 %v3406, %v3402
      %v4571 = vpack.c.b16 %v3407, %v3403
      %v4572 = vpack.c.b16 %v3408, %v3404
      %v4573 = vpack.c.b16 %v3409, %v3405
      %v4574 = vpack.c.b16 %v3414, %v3410
      %v4575 = vpack.c.b16 %v3415, %v3411
      %v4576 = vpack.c.b16 %v3416, %v3412
      %v4577 = vpack.c.b16 %v3417, %v3413
      %v4578 = vpack.c.b16 %v3422, %v3418
      %v4579 = vpack.c.b16 %v3423, %v3419
      %v4580 = vpack.c.b16 %v3424, %v3420
      %v4581 = vpack.c.b16 %v3425, %v3421
      %v4582 = vpack.c.b16 %v3430, %v3426
      %v4583 = vpack.c.b16 %v3431, %v3427
      %v4584 = vpack.c.b16 %v3432, %v3428
      %v4585 = vpack.c.b16 %v3433, %v3429
      %v4586 = vpack.c.b16 %v3438, %v3434
      %v4587 = vpack.c.b16 %v3439, %v3435
      %v4588 = vpack.c.b16 %v3440, %v3436
      %v4589 = vpack.c.b16 %v3441, %v3437
      %v4590 = vpack.c.b16 %v3446, %v3442
      %v4591 = vpack.c.b16 %v3447, %v3443
      %v4592 = vpack.c.b16 %v3448, %v3444
      %v4593 = vpack.c.b16 %v3449, %v3445
      %v4594 = vpack.c.b16 %v3454, %v3450
      %v4595 = vpack.c.b16 %v3455, %v3451
      %v4596 = vpack.c.b16 %v3456, %v3452
      %v4597 = vpack.c.b16 %v3457, %v3453
      %v4598 = vpack.c.b16 %v3462, %v3458
      %v4599 = vpack.c.b16 %v3463, %v3459
      %v4600 = vpack.c.b16 %v3464, %v3460
      %v4601 = vpack.c.b16 %v3465, %v3461
      %v4602 = vpack.c.b16 %v3470, %v3466
      %v4603 = vpack.c.b16 %v3471, %v3467
      %v4604 = vpack.c.b16 %v3472, %v3468
      %v4605 = vpack.c.b16 %v3473, %v3469
      %v4606 = vpack.c.b16 %v3478, %v3474
      %v4607 = vpack.c.b16 %v3479, %v3475
      %v4608 = vpack.c.b16 %v3480, %v3476
      %v4609 = vpack.c.b16 %v3481, %v3477
      %v4610 = vpack.c.b16 %v3486, %v3482
      %v4611 = vpack.c.b16 %v3487, %v3483
      %v4612 = vpack.c.b16 %v3488, %v3484
      %v4613 = vpack.c.b16 %v3489, %v3485
      %v4614 = vpack.c.b16 %v3494, %v3490
      %v4615 = vpack.c.b16 %v3495, %v3491
      %v4616 = vpack.c.b16 %v3496, %v3492
      %v4617 = vpack.c.b16 %v3497, %v3493
      %v4618 = vpack.c.b16 %v3502, %v3498
      %v4619 = vpack.c.b16 %v3503, %v3499
      %v4620 = vpack.c.b16 %v3504, %v3500
      %v4621 = vpack.c.b16 %v3505, %v3501
      %v4622 = vpack.c.b16 %v3510, %v3506
      %v4623 = vpack.c.b16 %v3511, %v3507
      %v4624 = vpack.c.b16 %v3512, %v3508
      %v4625 = vpack.c.b16 %v3513, %v3509
      %v4626 = vpack.c.b16 %v3518, %v3514
      %v4627 = vpack.c.b16 %v3519, %v3515
      %v4628 = vpack.c.b16 %v3520, %v3516
      %v4629 = vpack.c.b16 %v3521, %v3517
      %v4630 = vpack.c.b16 %v3526, %v3522
      %v4631 = vpack.c.b16 %v3527, %v3523
      %v4632 = vpack.c.b16 %v3528, %v3524
      %v4633 = vpack.c.b16 %v3529, %v3525
      %v4634 = vpack.c.b16 %v3534, %v3530
      %v4635 = vpack.c.b16 %v3535, %v3531
      %v4636 = vpack.c.b16 %v3536, %v3532
      %v4637 = vpack.c.b16 %v3537, %v3533
      %v4638 = vpack.c.b16 %v3542, %v3538
      %v4639 = vpack.c.b16 %v3543, %v3539
      %v4640 = vpack.c.b16 %v3544, %v3540
      %v4641 = vpack.c.b16 %v3545, %v3541
      %v4642 = vpack.c.b16 %v3550, %v3546
      %v4643 = vpack.c.b16 %v3551, %v3547
      %v4644 = vpack.c.b16 %v3552, %v3548
      %v4645 = vpack.c.b16 %v3553, %v3549
      %v4646 = vpack.c.b16 %v3558, %v3554
      %v4647 = vpack.c.b16 %v3559, %v3555
      %v4648 = vpack.c.b16 %v3560, %v3556
      %v4649 = vpack.c.b16 %v3561, %v3557
      %v4650 = vpack.c.b16 %v3566, %v3562
      %v4651 = vpack.c.b16 %v3567, %v3563
      %v4652 = vpack.c.b16 %v3568, %v3564
      %v4653 = vpack.c.b16 %v3569, %v3565
      %v4654 = vpack.c.b16 %v3574, %v3570
      %v4655 = vpack.c.b16 %v3575, %v3571
      %v4656 = vpack.c.b16 %v3576, %v3572
      %v4657 = vpack.c.b16 %v3577, %v3573
      %v4658 = vpack.c.b16 %v3582, %v3578
      %v4659 = vpack.c.b16 %v3583, %v3579
      %v4660 = vpack.c.b16 %v3584, %v3580
      %v4661 = vpack.c.b16 %v3585, %v3581
      %v4662 = vpack.c.b16 %v3590, %v3586
      %v4663 = vpack.c.b16 %v3591, %v3587
      %v4664 = vpack.c.b16 %v3592, %v3588
      %v4665 = vpack.c.b16 %v3593, %v3589
      %v4666 = vpack.c.b16 %v3598, %v3594
      %v4667 = vpack.c.b16 %v3599, %v3595
      %v4668 = vpack.c.b16 %v3600, %v3596
      %v4669 = vpack.c.b16 %v3601, %v3597
      %v4670 = vpack.c.b16 %v3606, %v3602
      %v4671 = vpack.c.b16 %v3607, %v3603
      %v4672 = vpack.c.b16 %v3608, %v3604
      %v4673 = vpack.c.b16 %v3609, %v3605
      %v4674 = vpack.c.b16 %v3614, %v3610
      %v4675 = vpack.c.b16 %v3615, %v3611
      %v4676 = vpack.c.b16 %v3616, %v3612
      %v4677 = vpack.c.b16 %v3617, %v3613
      %v4678 = vpack.c.b16 %v3622, %v3618
      %v4679 = vpack.c.b16 %v3623, %v3619
      %v4680 = vpack.c.b16 %v3624, %v3620
      %v4681 = vpack.c.b16 %v3625, %v3621
      %v4682 = vpack.c.b16 %v3630, %v3626
      %v4683 = vpack.c.b16 %v3631, %v3627
      %v4684 = vpack.c.b16 %v3632, %v3628
      %v4685 = vpack.c.b16 %v3633, %v3629
      %v4686 = vpack.c.b16 %v3638, %v3634
      %v4687 = vpack.c.b16 %v3639, %v3635
      %v4688 = vpack.c.b16 %v3640, %v3636
      %v4689 = vpack.c.b16 %v3641, %v3637
      %v4690 = vpack.c.b16 %v3646, %v3642
      %v4691 = vpack.c.b16 %v3647, %v3643
      %v4692 = vpack.c.b16 %v3648, %v3644
      %v4693 = vpack.c.b16 %v3649, %v3645
      %v4694 = vpack.c.b16 %v3654, %v3650
      %v4695 = vpack.c.b16 %v3655, %v3651
      %v4696 = vpack.c.b16 %v3656, %v3652
      %v4697 = vpack.c.b16 %v3657, %v3653
      %v4698 = vpack.c.b16 %v3662, %v3658
      %v4699 = vpack.c.b16 %v3663, %v3659
      %v4700 = vpack.c.b16 %v3664, %v3660
      %v4701 = vpack.c.b16 %v3665, %v3661
      %v4702 = vpack.c.b16 %v3670, %v3666
      %v4703 = vpack.c.b16 %v3671, %v3667
      %v4704 = vpack.c.b16 %v3672, %v3668
      %v4705 = vpack.c.b16 %v3673, %v3669
      %v4706 = vpack.c.b16 %v3678, %v3674
      %v4707 = vpack.c.b16 %v3679, %v3675
      %v4708 = vpack.c.b16 %v3680, %v3676
      %v4709 = vpack.c.b16 %v3681, %v3677
      %v4710 = vpack.c.b16 %v3686, %v3682
      %v4711 = vpack.c.b16 %v3687, %v3683
      %v4712 = vpack.c.b16 %v3688, %v3684
      %v4713 = vpack.c.b16 %v3689, %v3685
      %v4714 = vpack.c.b16 %v3694, %v3690
      %v4715 = vpack.c.b16 %v3695, %v3691
      %v4716 = vpack.c.b16 %v3696, %v3692
      %v4717 = vpack.c.b16 %v3697, %v3693
      %v4718 = vpack.c.b16 %v3702, %v3698
      %v4719 = vpack.c.b16 %v3703, %v3699
      %v4720 = vpack.c.b16 %v3704, %v3700
      %v4721 = vpack.c.b16 %v3705, %v3701
      %v4722 = vpack.c.b16 %v3710, %v3706
      %v4723 = vpack.c.b16 %v3711, %v3707
      %v4724 = vpack.c.b16 %v3712, %v3708
      %v4725 = vpack.c.b16 %v3713, %v3709
      %v4726 = vpack.c.b16 %v3718, %v3714
      %v4727 = vpack.c.b16 %v3719, %v3715
      %v4728 = vpack.c.b16 %v3720, %v3716
      %v4729 = vpack.c.b16 %v3721, %v3717
      %v4730 = vpack.c.b16 %v3726, %v3722
      %v4731 = vpack.c.b16 %v3727, %v3723
      %v4732 = vpack.c.b16 %v3728, %v3724
      %v4733 = vpack.c.b16 %v3729, %v3725
      %v4734 = vpack.c.b16 %v3734, %v3730
      %v4735 = vpack.c.b16 %v3735, %v3731
      %v4736 = vpack.c.b16 %v3736, %v3732
      %v4737 = vpack.c.b16 %v3737, %v3733
      %v4738 = vpack.c.b16 %v3742, %v3738
      %v4739 = vpack.c.b16 %v3743, %v3739
      %v4740 = vpack.c.b16 %v3744, %v3740
      %v4741 = vpack.c.b16 %v3745, %v3741
      %v4742 = vpack.c.b16 %v3750, %v3746
      %v4743 = vpack.c.b16 %v3751, %v3747
      %v4744 = vpack.c.b16 %v3752, %v3748
      %v4745 = vpack.c.b16 %v3753, %v3749
      %v4746 = vpack.c.b16 %v3758, %v3754
      %v4747 = vpack.c.b16 %v3759, %v3755
      %v4748 = vpack.c.b16 %v3760, %v3756
      %v4749 = vpack.c.b16 %v3761, %v3757
      %v4750 = vpack.c.b16 %v3766, %v3762
      %v4751 = vpack.c.b16 %v3767, %v3763
      %v4752 = vpack.c.b16 %v3768, %v3764
      %v4753 = vpack.c.b16 %v3769, %v3765
      %v4754 = vpack.c.b16 %v3774, %v3770
      %v4755 = vpack.c.b16 %v3775, %v3771
      %v4756 = vpack.c.b16 %v3776, %v3772
      %v4757 = vpack.c.b16 %v3777, %v3773
      %v4758 = vpack.c.b16 %v3782, %v3778
      %v4759 = vpack.c.b16 %v3783, %v3779
      %v4760 = vpack.c.b16 %v3784, %v3780
      %v4761 = vpack.c.b16 %v3785, %v3781
      %v4762 = vpack.c.b16 %v3790, %v3786
      %v4763 = vpack.c.b16 %v3791, %v3787
      %v4764 = vpack.c.b16 %v3792, %v3788
      %v4765 = vpack.c.b16 %v3793, %v3789
      %v4766 = vpack.c.b16 %v3798, %v3794
      %v4767 = vpack.c.b16 %v3799, %v3795
      %v4768 = vpack.c.b16 %v3800, %v3796
      %v4769 = vpack.c.b16 %v3801, %v3797
      %v4770 = vpack.c.b16 %v3806, %v3802
      %v4771 = vpack.c.b16 %v3807, %v3803
      %v4772 = vpack.c.b16 %v3808, %v3804
      %v4773 = vpack.c.b16 %v3809, %v3805
      %v4774 = vpack.c.b16 %v3814, %v3810
      %v4775 = vpack.c.b16 %v3815, %v3811
      %v4776 = vpack.c.b16 %v3816, %v3812
      %v4777 = vpack.c.b16 %v3817, %v3813
      %v4778 = vpack.c.b16 %v3822, %v3818
      %v4779 = vpack.c.b16 %v3823, %v3819
      %v4780 = vpack.c.b16 %v3824, %v3820
      %v4781 = vpack.c.b16 %v3825, %v3821
      %v4782 = vpack.c.b16 %v3830, %v3826
      %v4783 = vpack.c.b16 %v3831, %v3827
      %v4784 = vpack.c.b16 %v3832, %v3828
      %v4785 = vpack.c.b16 %v3833, %v3829
      %v4786 = vpack.c.b16 %v3838, %v3834
      %v4787 = vpack.c.b16 %v3839, %v3835
      %v4788 = vpack.c.b16 %v3840, %v3836
      %v4789 = vpack.c.b16 %v3841, %v3837
      %v4790 = vpack.c.b16 %v3846, %v3842
      %v4791 = vpack.c.b16 %v3847, %v3843
      %v4792 = vpack.c.b16 %v3848, %v3844
      %v4793 = vpack.c.b16 %v3849, %v3845
      %v4794 = vpack.c.b16 %v3854, %v3850
      %v4795 = vpack.c.b16 %v3855, %v3851
      %v4796 = vpack.c.b16 %v3856, %v3852
      %v4797 = vpack.c.b16 %v3857, %v3853
      %v4798 = vpack.c.b16 %v3862, %v3858
      %v4799 = vpack.c.b16 %v3863, %v3859
      %v4800 = vpack.c.b16 %v3864, %v3860
      %v4801 = vpack.c.b16 %v3865, %v3861
      %v4802 = vpack.c.b16 %v3870, %v3866
      %v4803 = vpack.c.b16 %v3871, %v3867
      %v4804 = vpack.c.b16 %v3872, %v3868
      %v4805 = vpack.c.b16 %v3873, %v3869
      %v4806 = vpack.c.b16 %v3878, %v3874
      %v4807 = vpack.c.b16 %v3879, %v3875
      %v4808 = vpack.c.b16 %v3880, %v3876
      %v4809 = vpack.c.b16 %v3881, %v3877
      %v4810 = vpack.c.b16 %v3886, %v3882
      %v4811 = vpack.c.b16 %v3887, %v3883
      %v4812 = vpack.c.b16 %v3888, %v3884
      %v4813 = vpack.c.b16 %v3889, %v3885
      %v4814 = vpack.c.b16 %v3894, %v3890
      %v4815 = vpack.c.b16 %v3895, %v3891
      %v4816 = vpack.c.b16 %v3896, %v3892
      %v4817 = vpack.c.b16 %v3897, %v3893
      %v4818 = vpack.c.b16 %v3902, %v3898
      %v4819 = vpack.c.b16 %v3903, %v3899
      %v4820 = vpack.c.b16 %v3904, %v3900
      %v4821 = vpack.c.b16 %v3905, %v3901
      %v4822 = vpack.c.b16 %v3910, %v3906
      %v4823 = vpack.c.b16 %v3911, %v3907
      %v4824 = vpack.c.b16 %v3912, %v3908
      %v4825 = vpack.c.b16 %v3913, %v3909
      %v4826 = vpack.c.b16 %v3918, %v3914
      %v4827 = vpack.c.b16 %v3919, %v3915
      %v4828 = vpack.c.b16 %v3920, %v3916
      %v4829 = vpack.c.b16 %v3921, %v3917
      %v4830 = vpack.c.b16 %v3926, %v3922
      %v4831 = vpack.c.b16 %v3927, %v3923
      %v4832 = vpack.c.b16 %v3928, %v3924
      %v4833 = vpack.c.b16 %v3929, %v3925
      %v4834 = vpack.c.b16 %v3934, %v3930
      %v4835 = vpack.c.b16 %v3935, %v3931
      %v4836 = vpack.c.b16 %v3936, %v3932
      %v4837 = vpack.c.b16 %v3937, %v3933
      %v4838 = vpack.c.b16 %v3942, %v3938
      %v4839 = vpack.c.b16 %v3943, %v3939
      %v4840 = vpack.c.b16 %v3944, %v3940
      %v4841 = vpack.c.b16 %v3945, %v3941
      %5738 = vmatprep.subr.bf16.mxu0 %v3947
      %5739 = vmatpush1.bf16.msra.mxu0 %v3946
      %5740 = vmatprep.subr.bf16.mxu0 %v3951
      %5741 = vmatpush1.bf16.msra.mxu0 %v3950
      %5742 = vmatprep.subr.bf16.mxu0 %v3955
      %5743 = vmatpush1.bf16.msra.mxu0 %v3954
      %5744 = vmatprep.subr.bf16.mxu0 %v3959
      %5745 = vmatpush1.bf16.msra.mxu0 %v3958
      %5746 = vmatprep.subr.bf16.mxu0 %v3963
      %5747 = vmatpush1.bf16.msra.mxu0 %v3962
      %5748 = vmatprep.subr.bf16.mxu0 %v3967
      %5749 = vmatpush1.bf16.msra.mxu0 %v3966
      %5750 = vmatprep.subr.bf16.mxu0 %v3971
      %5751 = vmatpush1.bf16.msra.mxu0 %v3970
      %5752 = vmatprep.subr.bf16.mxu0 %v3975
      %5753 = vmatpush1.bf16.msra.mxu0 %v3974
      %5754 = vmatprep.subr.bf16.mxu0 %v3979
      %5755 = vmatpush1.bf16.msra.mxu0 %v3978
      %5756 = vmatprep.subr.bf16.mxu0 %v3983
      %5757 = vmatpush1.bf16.msra.mxu0 %v3982
      %5758 = vmatprep.subr.bf16.mxu0 %v3987
      %5759 = vmatpush1.bf16.msra.mxu0 %v3986
      %5760 = vmatprep.subr.bf16.mxu0 %v3991
      %5761 = vmatpush1.bf16.msra.mxu0 %v3990
      %5762 = vmatprep.subr.bf16.mxu0 %v3995
      %5763 = vmatpush1.bf16.msra.mxu0 %v3994
      %5764 = vmatprep.subr.bf16.mxu0 %v3999
      %5765 = vmatpush1.bf16.msra.mxu0 %v3998
      %5766 = vmatprep.subr.bf16.mxu0 %v4003
      %5767 = vmatpush1.bf16.msra.mxu0 %v4002
      %5768 = vmatprep.subr.bf16.mxu0 %v4007
      %5769 = vmatpush1.bf16.msra.mxu0 %v4006
      %5770 = vmatprep.mubr.bf16.mxu0 %v1203
      %5771 = vmatmul.mubr.bf16.gmra.mrb[0].mxu0 %v1202
      %v5772 = vpop.f32.mrb[0].mxu0
      %v5773 = vadd.f32 0.0, %v5772
      %v5774 = vpop.f32.mrb[0].mxu0
      %v5775 = vadd.f32 0.0, %v5774
      %v5776 = vpop.f32.mrb[0].mxu0
      %v5777 = vpop.f32.mrb[0].mxu0
      %5778 = vdwg.mxu0
      %5779 = vmatprep.subr.bf16.mxu0 %v4011
      %5780 = vmatpush1.bf16.msra.mxu0 %v4010
      %5781 = vmatprep.subr.bf16.mxu0 %v4015
      %5782 = vmatpush1.bf16.msra.mxu0 %v4014
      %5783 = vmatprep.subr.bf16.mxu0 %v4019
      %5784 = vmatpush1.bf16.msra.mxu0 %v4018
      %5785 = vmatprep.subr.bf16.mxu0 %v4023
      %5786 = vmatpush1.bf16.msra.mxu0 %v4022
      %5787 = vmatprep.subr.bf16.mxu0 %v4027
      %5788 = vmatpush1.bf16.msra.mxu0 %v4026
      %5789 = vmatprep.subr.bf16.mxu0 %v4031
      %5790 = vmatpush1.bf16.msra.mxu0 %v4030
      %5791 = vmatprep.subr.bf16.mxu0 %v4035
      %5792 = vmatpush1.bf16.msra.mxu0 %v4034
      %5793 = vmatprep.subr.bf16.mxu0 %v4039
      %5794 = vmatpush1.bf16.msra.mxu0 %v4038
      %5795 = vmatprep.subr.bf16.mxu0 %v4043
      %5796 = vmatpush1.bf16.msra.mxu0 %v4042
      %5797 = vmatprep.subr.bf16.mxu0 %v4047
      %5798 = vmatpush1.bf16.msra.mxu0 %v4046
      %5799 = vmatprep.subr.bf16.mxu0 %v4051
      %5800 = vmatpush1.bf16.msra.mxu0 %v4050
      %5801 = vmatprep.subr.bf16.mxu0 %v4055
      %5802 = vmatpush1.bf16.msra.mxu0 %v4054
      %5803 = vmatprep.subr.bf16.mxu0 %v4059
      %5804 = vmatpush1.bf16.msra.mxu0 %v4058
      %5805 = vmatprep.subr.bf16.mxu0 %v4063
      %5806 = vmatpush1.bf16.msra.mxu0 %v4062
      %5807 = vmatprep.subr.bf16.mxu0 %v4067
      %5808 = vmatpush1.bf16.msra.mxu0 %v4066
      %5809 = vmatprep.subr.bf16.mxu0 %v4071
      %5810 = vmatpush1.bf16.msra.mxu0 %v4070
      %5811 = vmatprep.mubr.bf16.mxu0 %v1205
      %5812 = vmatmul.mubr.bf16.gmra.mrb[0].mxu0 %v1204
      %v5813 = vpop.f32.mrb[0].mxu0
      %v5814 = vadd.f32 %v5773, %v5813
      %v5815 = vpop.f32.mrb[0].mxu0
      %v5816 = vadd.f32 %v5775, %v5815
      %v5817 = vpop.f32.mrb[0].mxu0
      %v5818 = vpop.f32.mrb[0].mxu0
      %5819 = vdwg.mxu0
      %5820 = vmatprep.subr.bf16.mxu0 %v4075
      %5821 = vmatpush1.bf16.msra.mxu0 %v4074
      %5822 = vmatprep.subr.bf16.mxu0 %v4079
      %5823 = vmatpush1.bf16.msra.mxu0 %v4078
      %5824 = vmatprep.subr.bf16.mxu0 %v4083
      %5825 = vmatpush1.bf16.msra.mxu0 %v4082
      %5826 = vmatprep.subr.bf16.mxu0 %v4087
      %5827 = vmatpush1.bf16.msra.mxu0 %v4086
      %5828 = vmatprep.subr.bf16.mxu0 %v4091
      %5829 = vmatpush1.bf16.msra.mxu0 %v4090
      %5830 = vmatprep.subr.bf16.mxu0 %v4095
      %5831 = vmatpush1.bf16.msra.mxu0 %v4094
      %5832 = vmatprep.subr.bf16.mxu0 %v4099
      %5833 = vmatpush1.bf16.msra.mxu0 %v4098
      %5834 = vmatprep.subr.bf16.mxu0 %v4103
      %5835 = vmatpush1.bf16.msra.mxu0 %v4102
      %5836 = vmatprep.subr.bf16.mxu0 %v4107
      %5837 = vmatpush1.bf16.msra.mxu0 %v4106
      %5838 = vmatprep.subr.bf16.mxu0 %v4111
      %5839 = vmatpush1.bf16.msra.mxu0 %v4110
      %5840 = vmatprep.subr.bf16.mxu0 %v4115
      %5841 = vmatpush1.bf16.msra.mxu0 %v4114
      %5842 = vmatprep.subr.bf16.mxu0 %v4119
      %5843 = vmatpush1.bf16.msra.mxu0 %v4118
      %5844 = vmatprep.subr.bf16.mxu0 %v4123
      %5845 = vmatpush1.bf16.msra.mxu0 %v4122
      %5846 = vmatprep.subr.bf16.mxu0 %v4127
      %5847 = vmatpush1.bf16.msra.mxu0 %v4126
      %5848 = vmatprep.subr.bf16.mxu0 %v4131
      %5849 = vmatpush1.bf16.msra.mxu0 %v4130
      %5850 = vmatprep.subr.bf16.mxu0 %v4135
      %5851 = vmatpush1.bf16.msra.mxu0 %v4134
      %5852 = vmatprep.mubr.bf16.mxu0 %v1207
      %5853 = vmatmul.mubr.bf16.gmra.mrb[0].mxu0 %v1206
      %v5854 = vpop.f32.mrb[0].mxu0
      %v5855 = vadd.f32 %v5814, %v5854
      %v5856 = vpop.f32.mrb[0].mxu0
      %v5857 = vadd.f32 %v5816, %v5856
      %v5858 = vpop.f32.mrb[0].mxu0
      %v5859 = vpop.f32.mrb[0].mxu0
      %5860 = vdwg.mxu0
      %5861 = vmatprep.subr.bf16.mxu0 %v4139
      %5862 = vmatpush1.bf16.msra.mxu0 %v4138
      %5863 = vmatprep.subr.bf16.mxu0 %v4143
      %5864 = vmatpush1.bf16.msra.mxu0 %v4142
      %5865 = vmatprep.subr.bf16.mxu0 %v4147
      %5866 = vmatpush1.bf16.msra.mxu0 %v4146
      %5867 = vmatprep.subr.bf16.mxu0 %v4151
      %5868 = vmatpush1.bf16.msra.mxu0 %v4150
      %5869 = vmatprep.subr.bf16.mxu0 %v4155
      %5870 = vmatpush1.bf16.msra.mxu0 %v4154
      %5871 = vmatprep.subr.bf16.mxu0 %v4159
      %5872 = vmatpush1.bf16.msra.mxu0 %v4158
      %5873 = vmatprep.subr.bf16.mxu0 %v4163
      %5874 = vmatpush1.bf16.msra.mxu0 %v4162
      %5875 = vmatprep.subr.bf16.mxu0 %v4167
      %5876 = vmatpush1.bf16.msra.mxu0 %v4166
      %5877 = vmatprep.subr.bf16.mxu0 %v4171
      %5878 = vmatpush1.bf16.msra.mxu0 %v4170
      %5879 = vmatprep.subr.bf16.mxu0 %v4175
      %5880 = vmatpush1.bf16.msra.mxu0 %v4174
      %5881 = vmatprep.subr.bf16.mxu0 %v4179
      %5882 = vmatpush1.bf16.msra.mxu0 %v4178
      %5883 = vmatprep.subr.bf16.mxu0 %v4183
      %5884 = vmatpush1.bf16.msra.mxu0 %v4182
      %5885 = vmatprep.subr.bf16.mxu0 %v4187
      %5886 = vmatpush1.bf16.msra.mxu0 %v4186
      %5887 = vmatprep.subr.bf16.mxu0 %v4191
      %5888 = vmatpush1.bf16.msra.mxu0 %v4190
      %5889 = vmatprep.subr.bf16.mxu0 %v4195
      %5890 = vmatpush1.bf16.msra.mxu0 %v4194
      %5891 = vmatprep.subr.bf16.mxu0 %v4199
      %5892 = vmatpush1.bf16.msra.mxu0 %v4198
      %5893 = vmatprep.mubr.bf16.mxu0 %v1209
      %5894 = vmatmul.mubr.bf16.gmra.mrb[0].mxu0 %v1208
      %v5895 = vpop.f32.mrb[0].mxu0
      %v5896 = vadd.f32 %v5855, %v5895
      %v5897 = vpop.f32.mrb[0].mxu0
      %v5898 = vadd.f32 %v5857, %v5897
      %v5899 = vpop.f32.mrb[0].mxu0
      %v5900 = vpop.f32.mrb[0].mxu0
      %5901 = vdwg.mxu0
      %5902 = vmatprep.subr.bf16.mxu0 %v4203
      %5903 = vmatpush1.bf16.msra.mxu0 %v4202
      %5904 = vmatprep.subr.bf16.mxu0 %v4207
      %5905 = vmatpush1.bf16.msra.mxu0 %v4206
      %5906 = vmatprep.subr.bf16.mxu0 %v4211
      %5907 = vmatpush1.bf16.msra.mxu0 %v4210
      %5908 = vmatprep.subr.bf16.mxu0 %v4215
      %5909 = vmatpush1.bf16.msra.mxu0 %v4214
      %5910 = vmatprep.subr.bf16.mxu0 %v4219
      %5911 = vmatpush1.bf16.msra.mxu0 %v4218
      %5912 = vmatprep.subr.bf16.mxu0 %v4223
      %5913 = vmatpush1.bf16.msra.mxu0 %v4222
      %5914 = vmatprep.subr.bf16.mxu0 %v4227
      %5915 = vmatpush1.bf16.msra.mxu0 %v4226
      %5916 = vmatprep.subr.bf16.mxu0 %v4231
      %5917 = vmatpush1.bf16.msra.mxu0 %v4230
      %5918 = vmatprep.subr.bf16.mxu0 %v4235
      %5919 = vmatpush1.bf16.msra.mxu0 %v4234
      %5920 = vmatprep.subr.bf16.mxu0 %v4239
      %5921 = vmatpush1.bf16.msra.mxu0 %v4238
      %5922 = vmatprep.subr.bf16.mxu0 %v4243
      %5923 = vmatpush1.bf16.msra.mxu0 %v4242
      %5924 = vmatprep.subr.bf16.mxu0 %v4247
      %5925 = vmatpush1.bf16.msra.mxu0 %v4246
      %5926 = vmatprep.subr.bf16.mxu0 %v4251
      %5927 = vmatpush1.bf16.msra.mxu0 %v4250
      %5928 = vmatprep.subr.bf16.mxu0 %v4255
      %5929 = vmatpush1.bf16.msra.mxu0 %v4254
      %5930 = vmatprep.subr.bf16.mxu0 %v4259
      %5931 = vmatpush1.bf16.msra.mxu0 %v4258
      %5932 = vmatprep.subr.bf16.mxu0 %v4263
      %5933 = vmatpush1.bf16.msra.mxu0 %v4262
      %5934 = vmatprep.mubr.bf16.mxu0 %v1211
      %5935 = vmatmul.mubr.bf16.gmra.mrb[0].mxu0 %v1210
      %v5936 = vpop.f32.mrb[0].mxu0
      %v5937 = vadd.f32 %v5896, %v5936
      %v5938 = vpop.f32.mrb[0].mxu0
      %v5939 = vadd.f32 %v5898, %v5938
      %v5940 = vpop.f32.mrb[0].mxu0
      %v5941 = vpop.f32.mrb[0].mxu0
      %5942 = vdwg.mxu0
      %5943 = vmatprep.subr.bf16.mxu0 %v4267
      %5944 = vmatpush1.bf16.msra.mxu0 %v4266
      %5945 = vmatprep.subr.bf16.mxu0 %v4271
      %5946 = vmatpush1.bf16.msra.mxu0 %v4270
      %5947 = vmatprep.subr.bf16.mxu0 %v4275
      %5948 = vmatpush1.bf16.msra.mxu0 %v4274
      %5949 = vmatprep.subr.bf16.mxu0 %v4279
      %5950 = vmatpush1.bf16.msra.mxu0 %v4278
      %5951 = vmatprep.subr.bf16.mxu0 %v4283
      %5952 = vmatpush1.bf16.msra.mxu0 %v4282
      %5953 = vmatprep.subr.bf16.mxu0 %v4287
      %5954 = vmatpush1.bf16.msra.mxu0 %v4286
      %5955 = vmatprep.subr.bf16.mxu0 %v4291
      %5956 = vmatpush1.bf16.msra.mxu0 %v4290
      %5957 = vmatprep.subr.bf16.mxu0 %v4295
      %5958 = vmatpush1.bf16.msra.mxu0 %v4294
      %5959 = vmatprep.subr.bf16.mxu0 %v4299
      %5960 = vmatpush1.bf16.msra.mxu0 %v4298
      %5961 = vmatprep.subr.bf16.mxu0 %v4303
      %5962 = vmatpush1.bf16.msra.mxu0 %v4302
      %5963 = vmatprep.subr.bf16.mxu0 %v4307
      %5964 = vmatpush1.bf16.msra.mxu0 %v4306
      %5965 = vmatprep.subr.bf16.mxu0 %v4311
      %5966 = vmatpush1.bf16.msra.mxu0 %v4310
      %5967 = vmatprep.subr.bf16.mxu0 %v4315
      %5968 = vmatpush1.bf16.msra.mxu0 %v4314
      %5969 = vmatprep.subr.bf16.mxu0 %v4319
      %5970 = vmatpush1.bf16.msra.mxu0 %v4318
      %5971 = vmatprep.subr.bf16.mxu0 %v4323
      %5972 = vmatpush1.bf16.msra.mxu0 %v4322
      %5973 = vmatprep.subr.bf16.mxu0 %v4327
      %5974 = vmatpush1.bf16.msra.mxu0 %v4326
      %5975 = vmatprep.mubr.bf16.mxu0 %v1213
      %5976 = vmatmul.mubr.bf16.gmra.mrb[0].mxu0 %v1212
      %v5977 = vpop.f32.mrb[0].mxu0
      %v5978 = vadd.f32 %v5937, %v5977
      %v5979 = vpop.f32.mrb[0].mxu0
      %v5980 = vadd.f32 %v5939, %v5979
      %v5981 = vpop.f32.mrb[0].mxu0
      %v5982 = vpop.f32.mrb[0].mxu0
      %5983 = vdwg.mxu0
      %5984 = vmatprep.subr.bf16.mxu0 %v4331
      %5985 = vmatpush1.bf16.msra.mxu0 %v4330
      %5986 = vmatprep.subr.bf16.mxu0 %v4335
      %5987 = vmatpush1.bf16.msra.mxu0 %v4334
      %5988 = vmatprep.subr.bf16.mxu0 %v4339
      %5989 = vmatpush1.bf16.msra.mxu0 %v4338
      %5990 = vmatprep.subr.bf16.mxu0 %v4343
      %5991 = vmatpush1.bf16.msra.mxu0 %v4342
      %5992 = vmatprep.subr.bf16.mxu0 %v4347
      %5993 = vmatpush1.bf16.msra.mxu0 %v4346
      %5994 = vmatprep.subr.bf16.mxu0 %v4351
      %5995 = vmatpush1.bf16.msra.mxu0 %v4350
      %5996 = vmatprep.subr.bf16.mxu0 %v4355
      %5997 = vmatpush1.bf16.msra.mxu0 %v4354
      %5998 = vmatprep.subr.bf16.mxu0 %v4359
      %5999 = vmatpush1.bf16.msra.mxu0 %v4358
      %6000 = vmatprep.subr.bf16.mxu0 %v4363
      %6001 = vmatpush1.bf16.msra.mxu0 %v4362
      %6002 = vmatprep.subr.bf16.mxu0 %v4367
      %6003 = vmatpush1.bf16.msra.mxu0 %v4366
      %6004 = vmatprep.subr.bf16.mxu0 %v4371
      %6005 = vmatpush1.bf16.msra.mxu0 %v4370
      %6006 = vmatprep.subr.bf16.mxu0 %v4375
      %6007 = vmatpush1.bf16.msra.mxu0 %v4374
      %6008 = vmatprep.subr.bf16.mxu0 %v4379
      %6009 = vmatpush1.bf16.msra.mxu0 %v4378
      %6010 = vmatprep.subr.bf16.mxu0 %v4383
      %6011 = vmatpush1.bf16.msra.mxu0 %v4382
      %6012 = vmatprep.subr.bf16.mxu0 %v4387
      %6013 = vmatpush1.bf16.msra.mxu0 %v4386
      %6014 = vmatprep.subr.bf16.mxu0 %v4391
      %6015 = vmatpush1.bf16.msra.mxu0 %v4390
      %6016 = vmatprep.mubr.bf16.mxu0 %v1215
      %6017 = vmatmul.mubr.bf16.gmra.mrb[0].mxu0 %v1214
      %v6018 = vpop.f32.mrb[0].mxu0
      %v6019 = vadd.f32 %v5978, %v6018
      %v6020 = vpop.f32.mrb[0].mxu0
      %v6021 = vadd.f32 %v5980, %v6020
      %v6022 = vpop.f32.mrb[0].mxu0
      %v6023 = vpop.f32.mrb[0].mxu0
      %6024 = vdwg.mxu0
      %6025 = vmatprep.subr.bf16.mxu0 %v4395
      %6026 = vmatpush1.bf16.msra.mxu0 %v4394
      %6027 = vmatprep.subr.bf16.mxu0 %v4399
      %6028 = vmatpush1.bf16.msra.mxu0 %v4398
      %6029 = vmatprep.subr.bf16.mxu0 %v4403
      %6030 = vmatpush1.bf16.msra.mxu0 %v4402
      %6031 = vmatprep.subr.bf16.mxu0 %v4407
      %6032 = vmatpush1.bf16.msra.mxu0 %v4406
      %6033 = vmatprep.subr.bf16.mxu0 %v4411
      %6034 = vmatpush1.bf16.msra.mxu0 %v4410
      %6035 = vmatprep.subr.bf16.mxu0 %v4415
      %6036 = vmatpush1.bf16.msra.mxu0 %v4414
      %6037 = vmatprep.subr.bf16.mxu0 %v4419
      %6038 = vmatpush1.bf16.msra.mxu0 %v4418
      %6039 = vmatprep.subr.bf16.mxu0 %v4423
      %6040 = vmatpush1.bf16.msra.mxu0 %v4422
      %6041 = vmatprep.subr.bf16.mxu0 %v4427
      %6042 = vmatpush1.bf16.msra.mxu0 %v4426
      %6043 = vmatprep.subr.bf16.mxu0 %v4431
      %6044 = vmatpush1.bf16.msra.mxu0 %v4430
      %6045 = vmatprep.subr.bf16.mxu0 %v4435
      %6046 = vmatpush1.bf16.msra.mxu0 %v4434
      %6047 = vmatprep.subr.bf16.mxu0 %v4439
      %6048 = vmatpush1.bf16.msra.mxu0 %v4438
      %6049 = vmatprep.subr.bf16.mxu0 %v4443
      %6050 = vmatpush1.bf16.msra.mxu0 %v4442
      %6051 = vmatprep.subr.bf16.mxu0 %v4447
      %6052 = vmatpush1.bf16.msra.mxu0 %v4446
      %6053 = vmatprep.subr.bf16.mxu0 %v4451
      %6054 = vmatpush1.bf16.msra.mxu0 %v4450
      %6055 = vmatprep.subr.bf16.mxu0 %v4455
      %6056 = vmatpush1.bf16.msra.mxu0 %v4454
      %6057 = vmatprep.mubr.bf16.mxu0 %v1217
      %6058 = vmatmul.mubr.bf16.gmra.mrb[0].mxu0 %v1216
      %v6059 = vpop.f32.mrb[0].mxu0
      %v6060 = vadd.f32 %v6019, %v6059
      %v6061 = vpop.f32.mrb[0].mxu0
      %v6062 = vadd.f32 %v6021, %v6061
      %v6063 = vpop.f32.mrb[0].mxu0
      %v6064 = vpop.f32.mrb[0].mxu0
      %6065 = vdwg.mxu0
      %6066 = vmatprep.subr.bf16.mxu0 %v4459
      %6067 = vmatpush1.bf16.msra.mxu0 %v4458
      %6068 = vmatprep.subr.bf16.mxu0 %v4463
      %6069 = vmatpush1.bf16.msra.mxu0 %v4462
      %6070 = vmatprep.subr.bf16.mxu0 %v4467
      %6071 = vmatpush1.bf16.msra.mxu0 %v4466
      %6072 = vmatprep.subr.bf16.mxu0 %v4471
      %6073 = vmatpush1.bf16.msra.mxu0 %v4470
      %6074 = vmatprep.subr.bf16.mxu0 %v4475
      %6075 = vmatpush1.bf16.msra.mxu0 %v4474
      %6076 = vmatprep.subr.bf16.mxu0 %v4479
      %6077 = vmatpush1.bf16.msra.mxu0 %v4478
      %6078 = vmatprep.subr.bf16.mxu0 %v4483
      %6079 = vmatpush1.bf16.msra.mxu0 %v4482
      %6080 = vmatprep.subr.bf16.mxu0 %v4487
      %6081 = vmatpush1.bf16.msra.mxu0 %v4486
      %6082 = vmatprep.subr.bf16.mxu0 %v4491
      %6083 = vmatpush1.bf16.msra.mxu0 %v4490
      %6084 = vmatprep.subr.bf16.mxu0 %v4495
      %6085 = vmatpush1.bf16.msra.mxu0 %v4494
      %6086 = vmatprep.subr.bf16.mxu0 %v4499
      %6087 = vmatpush1.bf16.msra.mxu0 %v4498
      %6088 = vmatprep.subr.bf16.mxu0 %v4503
      %6089 = vmatpush1.bf16.msra.mxu0 %v4502
      %6090 = vmatprep.subr.bf16.mxu0 %v4507
      %6091 = vmatpush1.bf16.msra.mxu0 %v4506
      %6092 = vmatprep.subr.bf16.mxu0 %v4511
      %6093 = vmatpush1.bf16.msra.mxu0 %v4510
      %6094 = vmatprep.subr.bf16.mxu0 %v4515
      %6095 = vmatpush1.bf16.msra.mxu0 %v4514
      %6096 = vmatprep.subr.bf16.mxu0 %v4519
      %6097 = vmatpush1.bf16.msra.mxu0 %v4518
      %6098 = vmatprep.mubr.bf16.mxu0 %v1219
      %6099 = vmatmul.mubr.bf16.gmra.mrb[0].mxu0 %v1218
      %v6100 = vpop.f32.mrb[0].mxu0
      %v6101 = vadd.f32 %v6060, %v6100
      %v6102 = vpop.f32.mrb[0].mxu0
      %v6103 = vadd.f32 %v6062, %v6102
      %v6104 = vpop.f32.mrb[0].mxu0
      %v6105 = vpop.f32.mrb[0].mxu0
      %6106 = vdwg.mxu0
      %6107 = vmatprep.subr.bf16.mxu0 %v4523
      %6108 = vmatpush1.bf16.msra.mxu0 %v4522
      %6109 = vmatprep.subr.bf16.mxu0 %v4527
      %6110 = vmatpush1.bf16.msra.mxu0 %v4526
      %6111 = vmatprep.subr.bf16.mxu0 %v4531
      %6112 = vmatpush1.bf16.msra.mxu0 %v4530
      %6113 = vmatprep.subr.bf16.mxu0 %v4535
      %6114 = vmatpush1.bf16.msra.mxu0 %v4534
      %6115 = vmatprep.subr.bf16.mxu0 %v4539
      %6116 = vmatpush1.bf16.msra.mxu0 %v4538
      %6117 = vmatprep.subr.bf16.mxu0 %v4543
      %6118 = vmatpush1.bf16.msra.mxu0 %v4542
      %6119 = vmatprep.subr.bf16.mxu0 %v4547
      %6120 = vmatpush1.bf16.msra.mxu0 %v4546
      %6121 = vmatprep.subr.bf16.mxu0 %v4551
      %6122 = vmatpush1.bf16.msra.mxu0 %v4550
      %6123 = vmatprep.subr.bf16.mxu0 %v4555
      %6124 = vmatpush1.bf16.msra.mxu0 %v4554
      %6125 = vmatprep.subr.bf16.mxu0 %v4559
      %6126 = vmatpush1.bf16.msra.mxu0 %v4558
      %6127 = vmatprep.subr.bf16.mxu0 %v4563
      %6128 = vmatpush1.bf16.msra.mxu0 %v4562
      %6129 = vmatprep.subr.bf16.mxu0 %v4567
      %6130 = vmatpush1.bf16.msra.mxu0 %v4566
      %6131 = vmatprep.subr.bf16.mxu0 %v4571
      %6132 = vmatpush1.bf16.msra.mxu0 %v4570
      %6133 = vmatprep.subr.bf16.mxu0 %v4575
      %6134 = vmatpush1.bf16.msra.mxu0 %v4574
      %6135 = vmatprep.subr.bf16.mxu0 %v4579
      %6136 = vmatpush1.bf16.msra.mxu0 %v4578
      %6137 = vmatprep.subr.bf16.mxu0 %v4583
      %6138 = vmatpush1.bf16.msra.mxu0 %v4582
      %6139 = vmatprep.mubr.bf16.mxu0 %v1221
      %6140 = vmatmul.mubr.bf16.gmra.mrb[0].mxu0 %v1220
      %v6141 = vpop.f32.mrb[0].mxu0
      %v6142 = vadd.f32 %v6101, %v6141
      %v6143 = vpop.f32.mrb[0].mxu0
      %v6144 = vadd.f32 %v6103, %v6143
      %v6145 = vpop.f32.mrb[0].mxu0
      %v6146 = vpop.f32.mrb[0].mxu0
      %6147 = vdwg.mxu0
      %6148 = vmatprep.subr.bf16.mxu0 %v4587
      %6149 = vmatpush1.bf16.msra.mxu0 %v4586
      %6150 = vmatprep.subr.bf16.mxu0 %v4591
      %6151 = vmatpush1.bf16.msra.mxu0 %v4590
      %6152 = vmatprep.subr.bf16.mxu0 %v4595
      %6153 = vmatpush1.bf16.msra.mxu0 %v4594
      %6154 = vmatprep.subr.bf16.mxu0 %v4599
      %6155 = vmatpush1.bf16.msra.mxu0 %v4598
      %6156 = vmatprep.subr.bf16.mxu0 %v4603
      %6157 = vmatpush1.bf16.msra.mxu0 %v4602
      %6158 = vmatprep.subr.bf16.mxu0 %v4607
      %6159 = vmatpush1.bf16.msra.mxu0 %v4606
      %6160 = vmatprep.subr.bf16.mxu0 %v4611
      %6161 = vmatpush1.bf16.msra.mxu0 %v4610
      %6162 = vmatprep.subr.bf16.mxu0 %v4615
      %6163 = vmatpush1.bf16.msra.mxu0 %v4614
      %6164 = vmatprep.subr.bf16.mxu0 %v4619
      %6165 = vmatpush1.bf16.msra.mxu0 %v4618
      %6166 = vmatprep.subr.bf16.mxu0 %v4623
      %6167 = vmatpush1.bf16.msra.mxu0 %v4622
      %6168 = vmatprep.subr.bf16.mxu0 %v4627
      %6169 = vmatpush1.bf16.msra.mxu0 %v4626
      %6170 = vmatprep.subr.bf16.mxu0 %v4631
      %6171 = vmatpush1.bf16.msra.mxu0 %v4630
      %6172 = vmatprep.subr.bf16.mxu0 %v4635
      %6173 = vmatpush1.bf16.msra.mxu0 %v4634
      %6174 = vmatprep.subr.bf16.mxu0 %v4639
      %6175 = vmatpush1.bf16.msra.mxu0 %v4638
      %6176 = vmatprep.subr.bf16.mxu0 %v4643
      %6177 = vmatpush1.bf16.msra.mxu0 %v4642
      %6178 = vmatprep.subr.bf16.mxu0 %v4647
      %6179 = vmatpush1.bf16.msra.mxu0 %v4646
      %6180 = vmatprep.mubr.bf16.mxu0 %v1223
      %6181 = vmatmul.mubr.bf16.gmra.mrb[0].mxu0 %v1222
      %v6182 = vpop.f32.mrb[0].mxu0
      %v6183 = vadd.f32 %v6142, %v6182
      %v6184 = vpop.f32.mrb[0].mxu0
      %v6185 = vadd.f32 %v6144, %v6184
      %v6186 = vpop.f32.mrb[0].mxu0
      %v6187 = vpop.f32.mrb[0].mxu0
      %6188 = vdwg.mxu0
      %6189 = vmatprep.subr.bf16.mxu0 %v4651
      %6190 = vmatpush1.bf16.msra.mxu0 %v4650
      %6191 = vmatprep.subr.bf16.mxu0 %v4655
      %6192 = vmatpush1.bf16.msra.mxu0 %v4654
      %6193 = vmatprep.subr.bf16.mxu0 %v4659
      %6194 = vmatpush1.bf16.msra.mxu0 %v4658
      %6195 = vmatprep.subr.bf16.mxu0 %v4663
      %6196 = vmatpush1.bf16.msra.mxu0 %v4662
      %6197 = vmatprep.subr.bf16.mxu0 %v4667
      %6198 = vmatpush1.bf16.msra.mxu0 %v4666
      %6199 = vmatprep.subr.bf16.mxu0 %v4671
      %6200 = vmatpush1.bf16.msra.mxu0 %v4670
      %6201 = vmatprep.subr.bf16.mxu0 %v4675
      %6202 = vmatpush1.bf16.msra.mxu0 %v4674
      %6203 = vmatprep.subr.bf16.mxu0 %v4679
      %6204 = vmatpush1.bf16.msra.mxu0 %v4678
      %6205 = vmatprep.subr.bf16.mxu0 %v4683
      %6206 = vmatpush1.bf16.msra.mxu0 %v4682
      %6207 = vmatprep.subr.bf16.mxu0 %v4687
      %6208 = vmatpush1.bf16.msra.mxu0 %v4686
      %6209 = vmatprep.subr.bf16.mxu0 %v4691
      %6210 = vmatpush1.bf16.msra.mxu0 %v4690
      %6211 = vmatprep.subr.bf16.mxu0 %v4695
      %6212 = vmatpush1.bf16.msra.mxu0 %v4694
      %6213 = vmatprep.subr.bf16.mxu0 %v4699
      %6214 = vmatpush1.bf16.msra.mxu0 %v4698
      %6215 = vmatprep.subr.bf16.mxu0 %v4703
      %6216 = vmatpush1.bf16.msra.mxu0 %v4702
      %6217 = vmatprep.subr.bf16.mxu0 %v4707
      %6218 = vmatpush1.bf16.msra.mxu0 %v4706
      %6219 = vmatprep.subr.bf16.mxu0 %v4711
      %6220 = vmatpush1.bf16.msra.mxu0 %v4710
      %6221 = vmatprep.mubr.bf16.mxu0 %v1225
      %6222 = vmatmul.mubr.bf16.gmra.mrb[0].mxu0 %v1224
      %v6223 = vpop.f32.mrb[0].mxu0
      %v6224 = vadd.f32 %v6183, %v6223
      %v6225 = vpop.f32.mrb[0].mxu0
      %v6226 = vadd.f32 %v6185, %v6225
      %v6227 = vpop.f32.mrb[0].mxu0
      %v6228 = vpop.f32.mrb[0].mxu0
      %6229 = vdwg.mxu0
      %6230 = vmatprep.subr.bf16.mxu0 %v4715
      %6231 = vmatpush1.bf16.msra.mxu0 %v4714
      %6232 = vmatprep.subr.bf16.mxu0 %v4719
      %6233 = vmatpush1.bf16.msra.mxu0 %v4718
      %6234 = vmatprep.subr.bf16.mxu0 %v4723
      %6235 = vmatpush1.bf16.msra.mxu0 %v4722
      %6236 = vmatprep.subr.bf16.mxu0 %v4727
      %6237 = vmatpush1.bf16.msra.mxu0 %v4726
      %6238 = vmatprep.subr.bf16.mxu0 %v4731
      %6239 = vmatpush1.bf16.msra.mxu0 %v4730
      %6240 = vmatprep.subr.bf16.mxu0 %v4735
      %6241 = vmatpush1.bf16.msra.mxu0 %v4734
      %6242 = vmatprep.subr.bf16.mxu0 %v4739
      %6243 = vmatpush1.bf16.msra.mxu0 %v4738
      %6244 = vmatprep.subr.bf16.mxu0 %v4743
      %6245 = vmatpush1.bf16.msra.mxu0 %v4742
      %6246 = vmatprep.subr.bf16.mxu0 %v4747
      %6247 = vmatpush1.bf16.msra.mxu0 %v4746
      %6248 = vmatprep.subr.bf16.mxu0 %v4751
      %6249 = vmatpush1.bf16.msra.mxu0 %v4750
      %6250 = vmatprep.subr.bf16.mxu0 %v4755
      %6251 = vmatpush1.bf16.msra.mxu0 %v4754
      %6252 = vmatprep.subr.bf16.mxu0 %v4759
      %6253 = vmatpush1.bf16.msra.mxu0 %v4758
      %6254 = vmatprep.subr.bf16.mxu0 %v4763
      %6255 = vmatpush1.bf16.msra.mxu0 %v4762
      %6256 = vmatprep.subr.bf16.mxu0 %v4767
      %6257 = vmatpush1.bf16.msra.mxu0 %v4766
      %6258 = vmatprep.subr.bf16.mxu0 %v4771
      %6259 = vmatpush1.bf16.msra.mxu0 %v4770
      %6260 = vmatprep.subr.bf16.mxu0 %v4775
      %6261 = vmatpush1.bf16.msra.mxu0 %v4774
      %6262 = vmatprep.mubr.bf16.mxu0 %v1227
      %6263 = vmatmul.mubr.bf16.gmra.mrb[0].mxu0 %v1226
      %v6264 = vpop.f32.mrb[0].mxu0
      %v6265 = vadd.f32 %v6224, %v6264
      %v6266 = vpop.f32.mrb[0].mxu0
      %v6267 = vadd.f32 %v6226, %v6266
      %v6268 = vpop.f32.mrb[0].mxu0
      %v6269 = vpop.f32.mrb[0].mxu0
      %6270 = vdwg.mxu0
      %6271 = vmatprep.subr.bf16.mxu0 %v4779
      %6272 = vmatpush1.bf16.msra.mxu0 %v4778
      %6273 = vmatprep.subr.bf16.mxu0 %v4783
      %6274 = vmatpush1.bf16.msra.mxu0 %v4782
      %6275 = vmatprep.subr.bf16.mxu0 %v4787
      %6276 = vmatpush1.bf16.msra.mxu0 %v4786
      %6277 = vmatprep.subr.bf16.mxu0 %v4791
      %6278 = vmatpush1.bf16.msra.mxu0 %v4790
      %6279 = vmatprep.subr.bf16.mxu0 %v4795
      %6280 = vmatpush1.bf16.msra.mxu0 %v4794
      %6281 = vmatprep.subr.bf16.mxu0 %v4799
      %6282 = vmatpush1.bf16.msra.mxu0 %v4798
      %6283 = vmatprep.subr.bf16.mxu0 %v4803
      %6284 = vmatpush1.bf16.msra.mxu0 %v4802
      %6285 = vmatprep.subr.bf16.mxu0 %v4807
      %6286 = vmatpush1.bf16.msra.mxu0 %v4806
      %6287 = vmatprep.subr.bf16.mxu0 %v4811
      %6288 = vmatpush1.bf16.msra.mxu0 %v4810
      %6289 = vmatprep.subr.bf16.mxu0 %v4815
      %6290 = vmatpush1.bf16.msra.mxu0 %v4814
      %6291 = vmatprep.subr.bf16.mxu0 %v4819
      %6292 = vmatpush1.bf16.msra.mxu0 %v4818
      %6293 = vmatprep.subr.bf16.mxu0 %v4823
      %6294 = vmatpush1.bf16.msra.mxu0 %v4822
      %6295 = vmatprep.subr.bf16.mxu0 %v4827
      %6296 = vmatpush1.bf16.msra.mxu0 %v4826
      %6297 = vmatprep.subr.bf16.mxu0 %v4831
      %6298 = vmatpush1.bf16.msra.mxu0 %v4830
      %6299 = vmatprep.subr.bf16.mxu0 %v4835
      %6300 = vmatpush1.bf16.msra.mxu0 %v4834
      %6301 = vmatprep.subr.bf16.mxu0 %v4839
      %6302 = vmatpush1.bf16.msra.mxu0 %v4838
      %6303 = vmatprep.mubr.bf16.mxu0 %v1229
      %6304 = vmatmul.mubr.bf16.gmra.mrb[0].mxu0 %v1228
      %v6305 = vpop.f32.mrb[0].mxu0
      %v6306 = vadd.f32 %v6265, %v6305
      %v6307 = vpop.f32.mrb[0].mxu0
      %v6308 = vadd.f32 %v6267, %v6307
      %v6309 = vpop.f32.mrb[0].mxu0
      %v6310 = vpop.f32.mrb[0].mxu0
      %6311 = vdwg.mxu0
      %6312 = vmatprep.subr.bf16.mxu0 %v3949
      %6313 = vmatpush1.bf16.msra.mxu0 %v3948
      %6314 = vmatprep.subr.bf16.mxu0 %v3953
      %6315 = vmatpush1.bf16.msra.mxu0 %v3952
      %6316 = vmatprep.subr.bf16.mxu0 %v3957
      %6317 = vmatpush1.bf16.msra.mxu0 %v3956
      %6318 = vmatprep.subr.bf16.mxu0 %v3961
      %6319 = vmatpush1.bf16.msra.mxu0 %v3960
      %6320 = vmatprep.subr.bf16.mxu0 %v3965
      %6321 = vmatpush1.bf16.msra.mxu0 %v3964
      %6322 = vmatprep.subr.bf16.mxu0 %v3969
      %6323 = vmatpush1.bf16.msra.mxu0 %v3968
      %6324 = vmatprep.subr.bf16.mxu0 %v3973
      %6325 = vmatpush1.bf16.msra.mxu0 %v3972
      %6326 = vmatprep.subr.bf16.mxu0 %v3977
      %6327 = vmatpush1.bf16.msra.mxu0 %v3976
      %6328 = vmatprep.subr.bf16.mxu0 %v3981
      %6329 = vmatpush1.bf16.msra.mxu0 %v3980
      %6330 = vmatprep.subr.bf16.mxu0 %v3985
      %6331 = vmatpush1.bf16.msra.mxu0 %v3984
      %6332 = vmatprep.subr.bf16.mxu0 %v3989
      %6333 = vmatpush1.bf16.msra.mxu0 %v3988
      %6334 = vmatprep.subr.bf16.mxu0 %v3993
      %6335 = vmatpush1.bf16.msra.mxu0 %v3992
      %6336 = vmatprep.subr.bf16.mxu0 %v3997
      %6337 = vmatpush1.bf16.msra.mxu0 %v3996
      %6338 = vmatprep.subr.bf16.mxu0 %v4001
      %6339 = vmatpush1.bf16.msra.mxu0 %v4000
      %6340 = vmatprep.subr.bf16.mxu0 %v4005
      %6341 = vmatpush1.bf16.msra.mxu0 %v4004
      %6342 = vmatprep.subr.bf16.mxu0 %v4009
      %6343 = vmatpush1.bf16.msra.mxu0 %v4008
      %6344 = vmatprep.mubr.bf16.mxu0 %v1203
      %6345 = vmatmul.mubr.bf16.gmra.mrb[0].mxu0 %v1202
      %v6346 = vpop.f32.mrb[0].mxu0
      %v6347 = vadd.f32 0.0, %v6346
      %v6348 = vpop.f32.mrb[0].mxu0
      %v6349 = vadd.f32 0.0, %v6348
      %v6350 = vpop.f32.mrb[0].mxu0
      %v6351 = vpop.f32.mrb[0].mxu0
      %6352 = vdwg.mxu0
      %6353 = vmatprep.subr.bf16.mxu0 %v4013
      %6354 = vmatpush1.bf16.msra.mxu0 %v4012
      %6355 = vmatprep.subr.bf16.mxu0 %v4017
      %6356 = vmatpush1.bf16.msra.mxu0 %v4016
      %6357 = vmatprep.subr.bf16.mxu0 %v4021
      %6358 = vmatpush1.bf16.msra.mxu0 %v4020
      %6359 = vmatprep.subr.bf16.mxu0 %v4025
      %6360 = vmatpush1.bf16.msra.mxu0 %v4024
      %6361 = vmatprep.subr.bf16.mxu0 %v4029
      %6362 = vmatpush1.bf16.msra.mxu0 %v4028
      %6363 = vmatprep.subr.bf16.mxu0 %v4033
      %6364 = vmatpush1.bf16.msra.mxu0 %v4032
      %6365 = vmatprep.subr.bf16.mxu0 %v4037
      %6366 = vmatpush1.bf16.msra.mxu0 %v4036
      %6367 = vmatprep.subr.bf16.mxu0 %v4041
      %6368 = vmatpush1.bf16.msra.mxu0 %v4040
      %6369 = vmatprep.subr.bf16.mxu0 %v4045
      %6370 = vmatpush1.bf16.msra.mxu0 %v4044
      %6371 = vmatprep.subr.bf16.mxu0 %v4049
      %6372 = vmatpush1.bf16.msra.mxu0 %v4048
      %6373 = vmatprep.subr.bf16.mxu0 %v4053
      %6374 = vmatpush1.bf16.msra.mxu0 %v4052
      %6375 = vmatprep.subr.bf16.mxu0 %v4057
      %6376 = vmatpush1.bf16.msra.mxu0 %v4056
      %6377 = vmatprep.subr.bf16.mxu0 %v4061
      %6378 = vmatpush1.bf16.msra.mxu0 %v4060
      %6379 = vmatprep.subr.bf16.mxu0 %v4065
      %6380 = vmatpush1.bf16.msra.mxu0 %v4064
      %6381 = vmatprep.subr.bf16.mxu0 %v4069
      %6382 = vmatpush1.bf16.msra.mxu0 %v4068
      %6383 = vmatprep.subr.bf16.mxu0 %v4073
      %6384 = vmatpush1.bf16.msra.mxu0 %v4072
      %6385 = vmatprep.mubr.bf16.mxu0 %v1205
      %6386 = vmatmul.mubr.bf16.gmra.mrb[0].mxu0 %v1204
      %v6387 = vpop.f32.mrb[0].mxu0
      %v6388 = vadd.f32 %v6347, %v6387
      %v6389 = vpop.f32.mrb[0].mxu0
      %v6390 = vadd.f32 %v6349, %v6389
      %v6391 = vpop.f32.mrb[0].mxu0
      %v6392 = vpop.f32.mrb[0].mxu0
      %6393 = vdwg.mxu0
      %6394 = vmatprep.subr.bf16.mxu0 %v4077
      %6395 = vmatpush1.bf16.msra.mxu0 %v4076
      %6396 = vmatprep.subr.bf16.mxu0 %v4081
      %6397 = vmatpush1.bf16.msra.mxu0 %v4080
      %6398 = vmatprep.subr.bf16.mxu0 %v4085
      %6399 = vmatpush1.bf16.msra.mxu0 %v4084
      %6400 = vmatprep.subr.bf16.mxu0 %v4089
      %6401 = vmatpush1.bf16.msra.mxu0 %v4088
      %6402 = vmatprep.subr.bf16.mxu0 %v4093
      %6403 = vmatpush1.bf16.msra.mxu0 %v4092
      %6404 = vmatprep.subr.bf16.mxu0 %v4097
      %6405 = vmatpush1.bf16.msra.mxu0 %v4096
      %6406 = vmatprep.subr.bf16.mxu0 %v4101
      %6407 = vmatpush1.bf16.msra.mxu0 %v4100
      %6408 = vmatprep.subr.bf16.mxu0 %v4105
      %6409 = vmatpush1.bf16.msra.mxu0 %v4104
      %6410 = vmatprep.subr.bf16.mxu0 %v4109
      %6411 = vmatpush1.bf16.msra.mxu0 %v4108
      %6412 = vmatprep.subr.bf16.mxu0 %v4113
      %6413 = vmatpush1.bf16.msra.mxu0 %v4112
      %6414 = vmatprep.subr.bf16.mxu0 %v4117
      %6415 = vmatpush1.bf16.msra.mxu0 %v4116
      %6416 = vmatprep.subr.bf16.mxu0 %v4121
      %6417 = vmatpush1.bf16.msra.mxu0 %v4120
      %6418 = vmatprep.subr.bf16.mxu0 %v4125
      %6419 = vmatpush1.bf16.msra.mxu0 %v4124
      %6420 = vmatprep.subr.bf16.mxu0 %v4129
      %6421 = vmatpush1.bf16.msra.mxu0 %v4128
      %6422 = vmatprep.subr.bf16.mxu0 %v4133
      %6423 = vmatpush1.bf16.msra.mxu0 %v4132
      %6424 = vmatprep.subr.bf16.mxu0 %v4137
      %6425 = vmatpush1.bf16.msra.mxu0 %v4136
      %6426 = vmatprep.mubr.bf16.mxu0 %v1207
      %6427 = vmatmul.mubr.bf16.gmra.mrb[0].mxu0 %v1206
      %v6428 = vpop.f32.mrb[0].mxu0
      %v6429 = vadd.f32 %v6388, %v6428
      %v6430 = vpop.f32.mrb[0].mxu0
      %v6431 = vadd.f32 %v6390, %v6430
      %v6432 = vpop.f32.mrb[0].mxu0
      %v6433 = vpop.f32.mrb[0].mxu0
      %6434 = vdwg.mxu0
      %6435 = vmatprep.subr.bf16.mxu0 %v4141
      %6436 = vmatpush1.bf16.msra.mxu0 %v4140
      %6437 = vmatprep.subr.bf16.mxu0 %v4145
      %6438 = vmatpush1.bf16.msra.mxu0 %v4144
      %6439 = vmatprep.subr.bf16.mxu0 %v4149
      %6440 = vmatpush1.bf16.msra.mxu0 %v4148
      %6441 = vmatprep.subr.bf16.mxu0 %v4153
      %6442 = vmatpush1.bf16.msra.mxu0 %v4152
      %6443 = vmatprep.subr.bf16.mxu0 %v4157
      %6444 = vmatpush1.bf16.msra.mxu0 %v4156
      %6445 = vmatprep.subr.bf16.mxu0 %v4161
      %6446 = vmatpush1.bf16.msra.mxu0 %v4160
      %6447 = vmatprep.subr.bf16.mxu0 %v4165
      %6448 = vmatpush1.bf16.msra.mxu0 %v4164
      %6449 = vmatprep.subr.bf16.mxu0 %v4169
      %6450 = vmatpush1.bf16.msra.mxu0 %v4168
      %6451 = vmatprep.subr.bf16.mxu0 %v4173
      %6452 = vmatpush1.bf16.msra.mxu0 %v4172
      %6453 = vmatprep.subr.bf16.mxu0 %v4177
      %6454 = vmatpush1.bf16.msra.mxu0 %v4176
      %6455 = vmatprep.subr.bf16.mxu0 %v4181
      %6456 = vmatpush1.bf16.msra.mxu0 %v4180
      %6457 = vmatprep.subr.bf16.mxu0 %v4185
      %6458 = vmatpush1.bf16.msra.mxu0 %v4184
      %6459 = vmatprep.subr.bf16.mxu0 %v4189
      %6460 = vmatpush1.bf16.msra.mxu0 %v4188
      %6461 = vmatprep.subr.bf16.mxu0 %v4193
      %6462 = vmatpush1.bf16.msra.mxu0 %v4192
      %6463 = vmatprep.subr.bf16.mxu0 %v4197
      %6464 = vmatpush1.bf16.msra.mxu0 %v4196
      %6465 = vmatprep.subr.bf16.mxu0 %v4201
      %6466 = vmatpush1.bf16.msra.mxu0 %v4200
      %6467 = vmatprep.mubr.bf16.mxu0 %v1209
      %6468 = vmatmul.mubr.bf16.gmra.mrb[0].mxu0 %v1208
      %v6469 = vpop.f32.mrb[0].mxu0
      %v6470 = vadd.f32 %v6429, %v6469
      %v6471 = vpop.f32.mrb[0].mxu0
      %v6472 = vadd.f32 %v6431, %v6471
      %v6473 = vpop.f32.mrb[0].mxu0
      %v6474 = vpop.f32.mrb[0].mxu0
      %6475 = vdwg.mxu0
      %6476 = vmatprep.subr.bf16.mxu0 %v4205
      %6477 = vmatpush1.bf16.msra.mxu0 %v4204
      %6478 = vmatprep.subr.bf16.mxu0 %v4209
      %6479 = vmatpush1.bf16.msra.mxu0 %v4208
      %6480 = vmatprep.subr.bf16.mxu0 %v4213
      %6481 = vmatpush1.bf16.msra.mxu0 %v4212
      %6482 = vmatprep.subr.bf16.mxu0 %v4217
      %6483 = vmatpush1.bf16.msra.mxu0 %v4216
      %6484 = vmatprep.subr.bf16.mxu0 %v4221
      %6485 = vmatpush1.bf16.msra.mxu0 %v4220
      %6486 = vmatprep.subr.bf16.mxu0 %v4225
      %6487 = vmatpush1.bf16.msra.mxu0 %v4224
      %6488 = vmatprep.subr.bf16.mxu0 %v4229
      %6489 = vmatpush1.bf16.msra.mxu0 %v4228
      %6490 = vmatprep.subr.bf16.mxu0 %v4233
      %6491 = vmatpush1.bf16.msra.mxu0 %v4232
      %6492 = vmatprep.subr.bf16.mxu0 %v4237
      %6493 = vmatpush1.bf16.msra.mxu0 %v4236
      %6494 = vmatprep.subr.bf16.mxu0 %v4241
      %6495 = vmatpush1.bf16.msra.mxu0 %v4240
      %6496 = vmatprep.subr.bf16.mxu0 %v4245
      %6497 = vmatpush1.bf16.msra.mxu0 %v4244
      %6498 = vmatprep.subr.bf16.mxu0 %v4249
      %6499 = vmatpush1.bf16.msra.mxu0 %v4248
      %6500 = vmatprep.subr.bf16.mxu0 %v4253
      %6501 = vmatpush1.bf16.msra.mxu0 %v4252
      %6502 = vmatprep.subr.bf16.mxu0 %v4257
      %6503 = vmatpush1.bf16.msra.mxu0 %v4256
      %6504 = vmatprep.subr.bf16.mxu0 %v4261
      %6505 = vmatpush1.bf16.msra.mxu0 %v4260
      %6506 = vmatprep.subr.bf16.mxu0 %v4265
      %6507 = vmatpush1.bf16.msra.mxu0 %v4264
      %6508 = vmatprep.mubr.bf16.mxu0 %v1211
      %6509 = vmatmul.mubr.bf16.gmra.mrb[0].mxu0 %v1210
      %v6510 = vpop.f32.mrb[0].mxu0
      %v6511 = vadd.f32 %v6470, %v6510
      %v6512 = vpop.f32.mrb[0].mxu0
      %v6513 = vadd.f32 %v6472, %v6512
      %v6514 = vpop.f32.mrb[0].mxu0
      %v6515 = vpop.f32.mrb[0].mxu0
      %6516 = vdwg.mxu0
      %6517 = vmatprep.subr.bf16.mxu0 %v4269
      %6518 = vmatpush1.bf16.msra.mxu0 %v4268
      %6519 = vmatprep.subr.bf16.mxu0 %v4273
      %6520 = vmatpush1.bf16.msra.mxu0 %v4272
      %6521 = vmatprep.subr.bf16.mxu0 %v4277
      %6522 = vmatpush1.bf16.msra.mxu0 %v4276
      %6523 = vmatprep.subr.bf16.mxu0 %v4281
      %6524 = vmatpush1.bf16.msra.mxu0 %v4280
      %6525 = vmatprep.subr.bf16.mxu0 %v4285
      %6526 = vmatpush1.bf16.msra.mxu0 %v4284
      %6527 = vmatprep.subr.bf16.mxu0 %v4289
      %6528 = vmatpush1.bf16.msra.mxu0 %v4288
      %6529 = vmatprep.subr.bf16.mxu0 %v4293
      %6530 = vmatpush1.bf16.msra.mxu0 %v4292
      %6531 = vmatprep.subr.bf16.mxu0 %v4297
      %6532 = vmatpush1.bf16.msra.mxu0 %v4296
      %6533 = vmatprep.subr.bf16.mxu0 %v4301
      %6534 = vmatpush1.bf16.msra.mxu0 %v4300
      %6535 = vmatprep.subr.bf16.mxu0 %v4305
      %6536 = vmatpush1.bf16.msra.mxu0 %v4304
      %6537 = vmatprep.subr.bf16.mxu0 %v4309
      %6538 = vmatpush1.bf16.msra.mxu0 %v4308
      %6539 = vmatprep.subr.bf16.mxu0 %v4313
      %6540 = vmatpush1.bf16.msra.mxu0 %v4312
      %6541 = vmatprep.subr.bf16.mxu0 %v4317
      %6542 = vmatpush1.bf16.msra.mxu0 %v4316
      %6543 = vmatprep.subr.bf16.mxu0 %v4321
      %6544 = vmatpush1.bf16.msra.mxu0 %v4320
      %6545 = vmatprep.subr.bf16.mxu0 %v4325
      %6546 = vmatpush1.bf16.msra.mxu0 %v4324
      %6547 = vmatprep.subr.bf16.mxu0 %v4329
      %6548 = vmatpush1.bf16.msra.mxu0 %v4328
      %6549 = vmatprep.mubr.bf16.mxu0 %v1213
      %6550 = vmatmul.mubr.bf16.gmra.mrb[0].mxu0 %v1212
      %v6551 = vpop.f32.mrb[0].mxu0
      %v6552 = vadd.f32 %v6511, %v6551
      %v6553 = vpop.f32.mrb[0].mxu0
      %v6554 = vadd.f32 %v6513, %v6553
      %v6555 = vpop.f32.mrb[0].mxu0
      %v6556 = vpop.f32.mrb[0].mxu0
      %6557 = vdwg.mxu0
      %6558 = vmatprep.subr.bf16.mxu0 %v4333
      %6559 = vmatpush1.bf16.msra.mxu0 %v4332
      %6560 = vmatprep.subr.bf16.mxu0 %v4337
      %6561 = vmatpush1.bf16.msra.mxu0 %v4336
      %6562 = vmatprep.subr.bf16.mxu0 %v4341
      %6563 = vmatpush1.bf16.msra.mxu0 %v4340
      %6564 = vmatprep.subr.bf16.mxu0 %v4345
      %6565 = vmatpush1.bf16.msra.mxu0 %v4344
      %6566 = vmatprep.subr.bf16.mxu0 %v4349
      %6567 = vmatpush1.bf16.msra.mxu0 %v4348
      %6568 = vmatprep.subr.bf16.mxu0 %v4353
      %6569 = vmatpush1.bf16.msra.mxu0 %v4352
      %6570 = vmatprep.subr.bf16.mxu0 %v4357
      %6571 = vmatpush1.bf16.msra.mxu0 %v4356
      %6572 = vmatprep.subr.bf16.mxu0 %v4361
      %6573 = vmatpush1.bf16.msra.mxu0 %v4360
      %6574 = vmatprep.subr.bf16.mxu0 %v4365
      %6575 = vmatpush1.bf16.msra.mxu0 %v4364
      %6576 = vmatprep.subr.bf16.mxu0 %v4369
      %6577 = vmatpush1.bf16.msra.mxu0 %v4368
      %6578 = vmatprep.subr.bf16.mxu0 %v4373
      %6579 = vmatpush1.bf16.msra.mxu0 %v4372
      %6580 = vmatprep.subr.bf16.mxu0 %v4377
      %6581 = vmatpush1.bf16.msra.mxu0 %v4376
      %6582 = vmatprep.subr.bf16.mxu0 %v4381
      %6583 = vmatpush1.bf16.msra.mxu0 %v4380
      %6584 = vmatprep.subr.bf16.mxu0 %v4385
      %6585 = vmatpush1.bf16.msra.mxu0 %v4384
      %6586 = vmatprep.subr.bf16.mxu0 %v4389
      %6587 = vmatpush1.bf16.msra.mxu0 %v4388
      %6588 = vmatprep.subr.bf16.mxu0 %v4393
      %6589 = vmatpush1.bf16.msra.mxu0 %v4392
      %6590 = vmatprep.mubr.bf16.mxu0 %v1215
      %6591 = vmatmul.mubr.bf16.gmra.mrb[0].mxu0 %v1214
      %v6592 = vpop.f32.mrb[0].mxu0
      %v6593 = vadd.f32 %v6552, %v6592
      %v6594 = vpop.f32.mrb[0].mxu0
      %v6595 = vadd.f32 %v6554, %v6594
      %v6596 = vpop.f32.mrb[0].mxu0
      %v6597 = vpop.f32.mrb[0].mxu0
      %6598 = vdwg.mxu0
      %6599 = vmatprep.subr.bf16.mxu0 %v4397
      %6600 = vmatpush1.bf16.msra.mxu0 %v4396
      %6601 = vmatprep.subr.bf16.mxu0 %v4401
      %6602 = vmatpush1.bf16.msra.mxu0 %v4400
      %6603 = vmatprep.subr.bf16.mxu0 %v4405
      %6604 = vmatpush1.bf16.msra.mxu0 %v4404
      %6605 = vmatprep.subr.bf16.mxu0 %v4409
      %6606 = vmatpush1.bf16.msra.mxu0 %v4408
      %6607 = vmatprep.subr.bf16.mxu0 %v4413
      %6608 = vmatpush1.bf16.msra.mxu0 %v4412
      %6609 = vmatprep.subr.bf16.mxu0 %v4417
      %6610 = vmatpush1.bf16.msra.mxu0 %v4416
      %6611 = vmatprep.subr.bf16.mxu0 %v4421
      %6612 = vmatpush1.bf16.msra.mxu0 %v4420
      %6613 = vmatprep.subr.bf16.mxu0 %v4425
      %6614 = vmatpush1.bf16.msra.mxu0 %v4424
      %6615 = vmatprep.subr.bf16.mxu0 %v4429
      %6616 = vmatpush1.bf16.msra.mxu0 %v4428
      %6617 = vmatprep.subr.bf16.mxu0 %v4433
      %6618 = vmatpush1.bf16.msra.mxu0 %v4432
      %6619 = vmatprep.subr.bf16.mxu0 %v4437
      %6620 = vmatpush1.bf16.msra.mxu0 %v4436
      %6621 = vmatprep.subr.bf16.mxu0 %v4441
      %6622 = vmatpush1.bf16.msra.mxu0 %v4440
      %6623 = vmatprep.subr.bf16.mxu0 %v4445
      %6624 = vmatpush1.bf16.msra.mxu0 %v4444
      %6625 = vmatprep.subr.bf16.mxu0 %v4449
      %6626 = vmatpush1.bf16.msra.mxu0 %v4448
      %6627 = vmatprep.subr.bf16.mxu0 %v4453
      %6628 = vmatpush1.bf16.msra.mxu0 %v4452
      %6629 = vmatprep.subr.bf16.mxu0 %v4457
      %6630 = vmatpush1.bf16.msra.mxu0 %v4456
      %6631 = vmatprep.mubr.bf16.mxu0 %v1217
      %6632 = vmatmul.mubr.bf16.gmra.mrb[0].mxu0 %v1216
      %v6633 = vpop.f32.mrb[0].mxu0
      %v6634 = vadd.f32 %v6593, %v6633
      %v6635 = vpop.f32.mrb[0].mxu0
      %v6636 = vadd.f32 %v6595, %v6635
      %v6637 = vpop.f32.mrb[0].mxu0
      %v6638 = vpop.f32.mrb[0].mxu0
      %6639 = vdwg.mxu0
      %6640 = vmatprep.subr.bf16.mxu0 %v4461
      %6641 = vmatpush1.bf16.msra.mxu0 %v4460
      %6642 = vmatprep.subr.bf16.mxu0 %v4465
      %6643 = vmatpush1.bf16.msra.mxu0 %v4464
      %6644 = vmatprep.subr.bf16.mxu0 %v4469
      %6645 = vmatpush1.bf16.msra.mxu0 %v4468
      %6646 = vmatprep.subr.bf16.mxu0 %v4473
      %6647 = vmatpush1.bf16.msra.mxu0 %v4472
      %6648 = vmatprep.subr.bf16.mxu0 %v4477
      %6649 = vmatpush1.bf16.msra.mxu0 %v4476
      %6650 = vmatprep.subr.bf16.mxu0 %v4481
      %6651 = vmatpush1.bf16.msra.mxu0 %v4480
      %6652 = vmatprep.subr.bf16.mxu0 %v4485
      %6653 = vmatpush1.bf16.msra.mxu0 %v4484
      %6654 = vmatprep.subr.bf16.mxu0 %v4489
      %6655 = vmatpush1.bf16.msra.mxu0 %v4488
      %6656 = vmatprep.subr.bf16.mxu0 %v4493
      %6657 = vmatpush1.bf16.msra.mxu0 %v4492
      %6658 = vmatprep.subr.bf16.mxu0 %v4497
      %6659 = vmatpush1.bf16.msra.mxu0 %v4496
      %6660 = vmatprep.subr.bf16.mxu0 %v4501
      %6661 = vmatpush1.bf16.msra.mxu0 %v4500
      %6662 = vmatprep.subr.bf16.mxu0 %v4505
      %6663 = vmatpush1.bf16.msra.mxu0 %v4504
      %6664 = vmatprep.subr.bf16.mxu0 %v4509
      %6665 = vmatpush1.bf16.msra.mxu0 %v4508
      %6666 = vmatprep.subr.bf16.mxu0 %v4513
      %6667 = vmatpush1.bf16.msra.mxu0 %v4512
      %6668 = vmatprep.subr.bf16.mxu0 %v4517
      %6669 = vmatpush1.bf16.msra.mxu0 %v4516
      %6670 = vmatprep.subr.bf16.mxu0 %v4521
      %6671 = vmatpush1.bf16.msra.mxu0 %v4520
      %6672 = vmatprep.mubr.bf16.mxu0 %v1219
      %6673 = vmatmul.mubr.bf16.gmra.mrb[0].mxu0 %v1218
      %v6674 = vpop.f32.mrb[0].mxu0
      %v6675 = vadd.f32 %v6634, %v6674
      %v6676 = vpop.f32.mrb[0].mxu0
      %v6677 = vadd.f32 %v6636, %v6676
      %v6678 = vpop.f32.mrb[0].mxu0
      %v6679 = vpop.f32.mrb[0].mxu0
      %6680 = vdwg.mxu0
      %6681 = vmatprep.subr.bf16.mxu0 %v4525
      %6682 = vmatpush1.bf16.msra.mxu0 %v4524
      %6683 = vmatprep.subr.bf16.mxu0 %v4529
      %6684 = vmatpush1.bf16.msra.mxu0 %v4528
      %6685 = vmatprep.subr.bf16.mxu0 %v4533
      %6686 = vmatpush1.bf16.msra.mxu0 %v4532
      %6687 = vmatprep.subr.bf16.mxu0 %v4537
      %6688 = vmatpush1.bf16.msra.mxu0 %v4536
      %6689 = vmatprep.subr.bf16.mxu0 %v4541
      %6690 = vmatpush1.bf16.msra.mxu0 %v4540
      %6691 = vmatprep.subr.bf16.mxu0 %v4545
      %6692 = vmatpush1.bf16.msra.mxu0 %v4544
      %6693 = vmatprep.subr.bf16.mxu0 %v4549
      %6694 = vmatpush1.bf16.msra.mxu0 %v4548
      %6695 = vmatprep.subr.bf16.mxu0 %v4553
      %6696 = vmatpush1.bf16.msra.mxu0 %v4552
      %6697 = vmatprep.subr.bf16.mxu0 %v4557
      %6698 = vmatpush1.bf16.msra.mxu0 %v4556
      %6699 = vmatprep.subr.bf16.mxu0 %v4561
      %6700 = vmatpush1.bf16.msra.mxu0 %v4560
      %6701 = vmatprep.subr.bf16.mxu0 %v4565
      %6702 = vmatpush1.bf16.msra.mxu0 %v4564
      %6703 = vmatprep.subr.bf16.mxu0 %v4569
      %6704 = vmatpush1.bf16.msra.mxu0 %v4568
      %6705 = vmatprep.subr.bf16.mxu0 %v4573
      %6706 = vmatpush1.bf16.msra.mxu0 %v4572
      %6707 = vmatprep.subr.bf16.mxu0 %v4577
      %6708 = vmatpush1.bf16.msra.mxu0 %v4576
      %6709 = vmatprep.subr.bf16.mxu0 %v4581
      %6710 = vmatpush1.bf16.msra.mxu0 %v4580
      %6711 = vmatprep.subr.bf16.mxu0 %v4585
      %6712 = vmatpush1.bf16.msra.mxu0 %v4584
      %6713 = vmatprep.mubr.bf16.mxu0 %v1221
      %6714 = vmatmul.mubr.bf16.gmra.mrb[0].mxu0 %v1220
      %v6715 = vpop.f32.mrb[0].mxu0
      %v6716 = vadd.f32 %v6675, %v6715
      %v6717 = vpop.f32.mrb[0].mxu0
      %v6718 = vadd.f32 %v6677, %v6717
      %v6719 = vpop.f32.mrb[0].mxu0
      %v6720 = vpop.f32.mrb[0].mxu0
      %6721 = vdwg.mxu0
      %6722 = vmatprep.subr.bf16.mxu0 %v4589
      %6723 = vmatpush1.bf16.msra.mxu0 %v4588
      %6724 = vmatprep.subr.bf16.mxu0 %v4593
      %6725 = vmatpush1.bf16.msra.mxu0 %v4592
      %6726 = vmatprep.subr.bf16.mxu0 %v4597
      %6727 = vmatpush1.bf16.msra.mxu0 %v4596
      %6728 = vmatprep.subr.bf16.mxu0 %v4601
      %6729 = vmatpush1.bf16.msra.mxu0 %v4600
      %6730 = vmatprep.subr.bf16.mxu0 %v4605
      %6731 = vmatpush1.bf16.msra.mxu0 %v4604
      %6732 = vmatprep.subr.bf16.mxu0 %v4609
      %6733 = vmatpush1.bf16.msra.mxu0 %v4608
      %6734 = vmatprep.subr.bf16.mxu0 %v4613
      %6735 = vmatpush1.bf16.msra.mxu0 %v4612
      %6736 = vmatprep.subr.bf16.mxu0 %v4617
      %6737 = vmatpush1.bf16.msra.mxu0 %v4616
      %6738 = vmatprep.subr.bf16.mxu0 %v4621
      %6739 = vmatpush1.bf16.msra.mxu0 %v4620
      %6740 = vmatprep.subr.bf16.mxu0 %v4625
      %6741 = vmatpush1.bf16.msra.mxu0 %v4624
      %6742 = vmatprep.subr.bf16.mxu0 %v4629
      %6743 = vmatpush1.bf16.msra.mxu0 %v4628
      %6744 = vmatprep.subr.bf16.mxu0 %v4633
      %6745 = vmatpush1.bf16.msra.mxu0 %v4632
      %6746 = vmatprep.subr.bf16.mxu0 %v4637
      %6747 = vmatpush1.bf16.msra.mxu0 %v4636
      %6748 = vmatprep.subr.bf16.mxu0 %v4641
      %6749 = vmatpush1.bf16.msra.mxu0 %v4640
      %6750 = vmatprep.subr.bf16.mxu0 %v4645
      %6751 = vmatpush1.bf16.msra.mxu0 %v4644
      %6752 = vmatprep.subr.bf16.mxu0 %v4649
      %6753 = vmatpush1.bf16.msra.mxu0 %v4648
      %6754 = vmatprep.mubr.bf16.mxu0 %v1223
      %6755 = vmatmul.mubr.bf16.gmra.mrb[0].mxu0 %v1222
      %v6756 = vpop.f32.mrb[0].mxu0
      %v6757 = vadd.f32 %v6716, %v6756
      %v6758 = vpop.f32.mrb[0].mxu0
      %v6759 = vadd.f32 %v6718, %v6758
      %v6760 = vpop.f32.mrb[0].mxu0
      %v6761 = vpop.f32.mrb[0].mxu0
      %6762 = vdwg.mxu0
      %6763 = vmatprep.subr.bf16.mxu0 %v4653
      %6764 = vmatpush1.bf16.msra.mxu0 %v4652
      %6765 = vmatprep.subr.bf16.mxu0 %v4657
      %6766 = vmatpush1.bf16.msra.mxu0 %v4656
      %6767 = vmatprep.subr.bf16.mxu0 %v4661
      %6768 = vmatpush1.bf16.msra.mxu0 %v4660
      %6769 = vmatprep.subr.bf16.mxu0 %v4665
      %6770 = vmatpush1.bf16.msra.mxu0 %v4664
      %6771 = vmatprep.subr.bf16.mxu0 %v4669
      %6772 = vmatpush1.bf16.msra.mxu0 %v4668
      %6773 = vmatprep.subr.bf16.mxu0 %v4673
      %6774 = vmatpush1.bf16.msra.mxu0 %v4672
      %6775 = vmatprep.subr.bf16.mxu0 %v4677
      %6776 = vmatpush1.bf16.msra.mxu0 %v4676
      %6777 = vmatprep.subr.bf16.mxu0 %v4681
      %6778 = vmatpush1.bf16.msra.mxu0 %v4680
      %6779 = vmatprep.subr.bf16.mxu0 %v4685
      %6780 = vmatpush1.bf16.msra.mxu0 %v4684
      %6781 = vmatprep.subr.bf16.mxu0 %v4689
      %6782 = vmatpush1.bf16.msra.mxu0 %v4688
      %6783 = vmatprep.subr.bf16.mxu0 %v4693
      %6784 = vmatpush1.bf16.msra.mxu0 %v4692
      %6785 = vmatprep.subr.bf16.mxu0 %v4697
      %6786 = vmatpush1.bf16.msra.mxu0 %v4696
      %6787 = vmatprep.subr.bf16.mxu0 %v4701
      %6788 = vmatpush1.bf16.msra.mxu0 %v4700
      %6789 = vmatprep.subr.bf16.mxu0 %v4705
      %6790 = vmatpush1.bf16.msra.mxu0 %v4704
      %6791 = vmatprep.subr.bf16.mxu0 %v4709
      %6792 = vmatpush1.bf16.msra.mxu0 %v4708
      %6793 = vmatprep.subr.bf16.mxu0 %v4713
      %6794 = vmatpush1.bf16.msra.mxu0 %v4712
      %6795 = vmatprep.mubr.bf16.mxu0 %v1225
      %6796 = vmatmul.mubr.bf16.gmra.mrb[0].mxu0 %v1224
      %v6797 = vpop.f32.mrb[0].mxu0
      %v6798 = vadd.f32 %v6757, %v6797
      %v6799 = vpop.f32.mrb[0].mxu0
      %v6800 = vadd.f32 %v6759, %v6799
      %v6801 = vpop.f32.mrb[0].mxu0
      %v6802 = vpop.f32.mrb[0].mxu0
      %6803 = vdwg.mxu0
      %6804 = vmatprep.subr.bf16.mxu0 %v4717
      %6805 = vmatpush1.bf16.msra.mxu0 %v4716
      %6806 = vmatprep.subr.bf16.mxu0 %v4721
      %6807 = vmatpush1.bf16.msra.mxu0 %v4720
      %6808 = vmatprep.subr.bf16.mxu0 %v4725
      %6809 = vmatpush1.bf16.msra.mxu0 %v4724
      %6810 = vmatprep.subr.bf16.mxu0 %v4729
      %6811 = vmatpush1.bf16.msra.mxu0 %v4728
      %6812 = vmatprep.subr.bf16.mxu0 %v4733
      %6813 = vmatpush1.bf16.msra.mxu0 %v4732
      %6814 = vmatprep.subr.bf16.mxu0 %v4737
      %6815 = vmatpush1.bf16.msra.mxu0 %v4736
      %6816 = vmatprep.subr.bf16.mxu0 %v4741
      %6817 = vmatpush1.bf16.msra.mxu0 %v4740
      %6818 = vmatprep.subr.bf16.mxu0 %v4745
      %6819 = vmatpush1.bf16.msra.mxu0 %v4744
      %6820 = vmatprep.subr.bf16.mxu0 %v4749
      %6821 = vmatpush1.bf16.msra.mxu0 %v4748
      %6822 = vmatprep.subr.bf16.mxu0 %v4753
      %6823 = vmatpush1.bf16.msra.mxu0 %v4752
      %6824 = vmatprep.subr.bf16.mxu0 %v4757
      %6825 = vmatpush1.bf16.msra.mxu0 %v4756
      %6826 = vmatprep.subr.bf16.mxu0 %v4761
      %6827 = vmatpush1.bf16.msra.mxu0 %v4760
      %6828 = vmatprep.subr.bf16.mxu0 %v4765
      %6829 = vmatpush1.bf16.msra.mxu0 %v4764
      %6830 = vmatprep.subr.bf16.mxu0 %v4769
      %6831 = vmatpush1.bf16.msra.mxu0 %v4768
      %6832 = vmatprep.subr.bf16.mxu0 %v4773
      %6833 = vmatpush1.bf16.msra.mxu0 %v4772
      %6834 = vmatprep.subr.bf16.mxu0 %v4777
      %6835 = vmatpush1.bf16.msra.mxu0 %v4776
      %6836 = vmatprep.mubr.bf16.mxu0 %v1227
      %6837 = vmatmul.mubr.bf16.gmra.mrb[0].mxu0 %v1226
      %v6838 = vpop.f32.mrb[0].mxu0
      %v6839 = vadd.f32 %v6798, %v6838
      %v6840 = vpop.f32.mrb[0].mxu0
      %v6841 = vadd.f32 %v6800, %v6840
      %v6842 = vpop.f32.mrb[0].mxu0
      %v6843 = vpop.f32.mrb[0].mxu0
      %6844 = vdwg.mxu0
      %6845 = vmatprep.subr.bf16.mxu0 %v4781
      %6846 = vmatpush1.bf16.msra.mxu0 %v4780
      %6847 = vmatprep.subr.bf16.mxu0 %v4785
      %6848 = vmatpush1.bf16.msra.mxu0 %v4784
      %6849 = vmatprep.subr.bf16.mxu0 %v4789
      %6850 = vmatpush1.bf16.msra.mxu0 %v4788
      %6851 = vmatprep.subr.bf16.mxu0 %v4793
      %6852 = vmatpush1.bf16.msra.mxu0 %v4792
      %6853 = vmatprep.subr.bf16.mxu0 %v4797
      %6854 = vmatpush1.bf16.msra.mxu0 %v4796
      %6855 = vmatprep.subr.bf16.mxu0 %v4801
      %6856 = vmatpush1.bf16.msra.mxu0 %v4800
      %6857 = vmatprep.subr.bf16.mxu0 %v4805
      %6858 = vmatpush1.bf16.msra.mxu0 %v4804
      %6859 = vmatprep.subr.bf16.mxu0 %v4809
      %6860 = vmatpush1.bf16.msra.mxu0 %v4808
      %6861 = vmatprep.subr.bf16.mxu0 %v4813
      %6862 = vmatpush1.bf16.msra.mxu0 %v4812
      %6863 = vmatprep.subr.bf16.mxu0 %v4817
      %6864 = vmatpush1.bf16.msra.mxu0 %v4816
      %6865 = vmatprep.subr.bf16.mxu0 %v4821
      %6866 = vmatpush1.bf16.msra.mxu0 %v4820
      %6867 = vmatprep.subr.bf16.mxu0 %v4825
      %6868 = vmatpush1.bf16.msra.mxu0 %v4824
      %6869 = vmatprep.subr.bf16.mxu0 %v4829
      %6870 = vmatpush1.bf16.msra.mxu0 %v4828
      %6871 = vmatprep.subr.bf16.mxu0 %v4833
      %6872 = vmatpush1.bf16.msra.mxu0 %v4832
      %6873 = vmatprep.subr.bf16.mxu0 %v4837
      %6874 = vmatpush1.bf16.msra.mxu0 %v4836
      %6875 = vmatprep.subr.bf16.mxu0 %v4841
      %6876 = vmatpush1.bf16.msra.mxu0 %v4840
      %6877 = vmatprep.mubr.bf16.mxu0 %v1229
      %6878 = vmatmul.mubr.bf16.gmra.mrb[0].mxu0 %v1228
      %v6879 = vpop.f32.mrb[0].mxu0
      %v6880 = vadd.f32 %v6839, %v6879
      %v6881 = vpop.f32.mrb[0].mxu0
      %v6882 = vadd.f32 %v6841, %v6881
      %v6883 = vpop.f32.mrb[0].mxu0
      %v6884 = vpop.f32.mrb[0].mxu0
      %6885 = vdwg.mxu0
      %v6886 = vadd.f32 %v246, %v6306
      %v6887 = vadd.f32 %v247, %v6308
      %v6888 = vadd.f32 %v248, %v6880
      %v6889 = vadd.f32 %v249, %v6882
      %6890 = vst [vmem:[#allocation2] sm:$0xff] %v6886
      %6891 = vst [vmem:[#allocation2 + $0x8] sm:$0xff] %v6887
      %6892 = vst [vmem:[#allocation2 + $0x10] sm:$0xff] %v6888
      %6893 = vst [vmem:[#allocation2 + $0x18] sm:$0xff] %v6889
      %p6894 = scmp.eq.s32.totalorder %s16, 1
      // Predicated region
      $region45: #{dqn_forward.7} parent=39 // pred_check
        %p6895 = pneg %p6894
      $region46: #{dqn_forward.7} parent=39 // pred_check_branch
        %6897 = sbr.rel (%p6895) target = $region48
      $region47: #{dqn_forward.7} parent=39 // pred_region
        %v6898 = vld [vmem:[#allocation2] sm:$0xff]
        %v6899 = vld [vmem:[#allocation2 + $0x8] sm:$0xff]
        %v6900 = vld [vmem:[#allocation2 + $0x10] sm:$0xff]
        %v6901 = vld [vmem:[#allocation2 + $0x18] sm:$0xff]
        %v6902 = vld [vmem:[%s2] sm:$0xf]
        %v6904 = vlaneseq
        %v6905 = vshrl.u32 %v6904, 7
        %v6906 = vsub.s32 0, %v6905
        %v6907 = vrot.slane %v6902, %v6906
        %v6908 = vlaneseq
        %v6909 = vshrl.u32 %v6908, 7
        %v6910 = vsub.s32 1, %v6909
        %v6911 = vrot.slane %v6902, %v6910
        %v6912 = vlaneseq
        %v6913 = vshrl.u32 %v6912, 7
        %v6914 = vsub.s32 2, %v6913
        %v6915 = vrot.slane %v6902, %v6914
        %v6916 = vlaneseq
        %v6917 = vshrl.u32 %v6916, 7
        %v6918 = vsub.s32 3, %v6917
        %v6919 = vrot.slane %v6902, %v6918
        %v6924 = vadd.f32 %v6898, %v6907
        %v6925 = vadd.f32 %v6899, %v6911
        %v6926 = vadd.f32 %v6900, %v6915
        %v6927 = vadd.f32 %v6901, %v6919
        %v6928 = vmax.f32 %v6924, 0.0
        %v6929 = vmax.f32 %v6925, 0.0
        %v6930 = vmax.f32 %v6926, 0.0
        %v6931 = vmax.f32 %v6927, 0.0
        %v6932 = vpack.c.bf16 %v6928, %v6928
        %v6933 = vpack.c.bf16 %v6929, %v6929
        %v6934 = vpack.c.bf16 %v6930, %v6930
        %v6935 = vpack.c.bf16 %v6931, %v6931
        %v6936 = vld [vmem:[%s3] sm:$0xf]
        %v6937 = vld [vmem:[%s3 + $0x4] sm:$0xf]
        %v6938 = vld [vmem:[%s3 + $0x8] sm:$0xf]
        %v6939 = vld [vmem:[%s3 + $0xc] sm:$0xf]
        %v6940 = vld [vmem:[%s3 + $0x10] sm:$0xf]
        %v6941 = vld [vmem:[%s3 + $0x14] sm:$0xf]
        %v6942 = vld [vmem:[%s3 + $0x18] sm:$0xf]
        %v6943 = vld [vmem:[%s3 + $0x1c] sm:$0xf]
        %v6944 = vld [vmem:[%s3 + $0x20] sm:$0xf]
        %v6945 = vld [vmem:[%s3 + $0x24] sm:$0xf]
        %v6946 = vld [vmem:[%s3 + $0x28] sm:$0xf]
        %v6947 = vld [vmem:[%s3 + $0x2c] sm:$0xf]
        %v6948 = vld [vmem:[%s3 + $0x30] sm:$0xf]
        %v6949 = vld [vmem:[%s3 + $0x34] sm:$0xf]
        %v6950 = vld [vmem:[%s3 + $0x38] sm:$0xf]
        %v6951 = vld [vmem:[%s3 + $0x3c] sm:$0xf]
        %v6952 = vld [vmem:[%s3 + $0x40] sm:$0xf]
        %v6953 = vld [vmem:[%s3 + $0x44] sm:$0xf]
        %v6954 = vld [vmem:[%s3 + $0x48] sm:$0xf]
        %v6955 = vld [vmem:[%s3 + $0x4c] sm:$0xf]
        %v6956 = vld [vmem:[%s3 + $0x50] sm:$0xf]
        %v6957 = vld [vmem:[%s3 + $0x54] sm:$0xf]
        %v6958 = vld [vmem:[%s3 + $0x58] sm:$0xf]
        %v6959 = vld [vmem:[%s3 + $0x5c] sm:$0xf]
        %v6960 = vld [vmem:[%s3 + $0x60] sm:$0xf]
        %v6961 = vld [vmem:[%s3 + $0x64] sm:$0xf]
        %v6962 = vld [vmem:[%s3 + $0x68] sm:$0xf]
        %v6963 = vld [vmem:[%s3 + $0x6c] sm:$0xf]
        %v6964 = vld [vmem:[%s3 + $0x70] sm:$0xf]
        %v6965 = vld [vmem:[%s3 + $0x74] sm:$0xf]
        %v6966 = vld [vmem:[%s3 + $0x78] sm:$0xf]
        %v6967 = vld [vmem:[%s3 + $0x7c] sm:$0xf]
        %v6968 = vld [vmem:[%s3 + $0x80] sm:$0xf]
        %v6969 = vld [vmem:[%s3 + $0x84] sm:$0xf]
        %v6970 = vld [vmem:[%s3 + $0x88] sm:$0xf]
        %v6971 = vld [vmem:[%s3 + $0x8c] sm:$0xf]
        %v6972 = vld [vmem:[%s3 + $0x90] sm:$0xf]
        %v6973 = vld [vmem:[%s3 + $0x94] sm:$0xf]
        %v6974 = vld [vmem:[%s3 + $0x98] sm:$0xf]
        %v6975 = vld [vmem:[%s3 + $0x9c] sm:$0xf]
        %v6976 = vld [vmem:[%s3 + $0xa0] sm:$0xf]
        %v6977 = vld [vmem:[%s3 + $0xa4] sm:$0xf]
        %v6978 = vld [vmem:[%s3 + $0xa8] sm:$0xf]
        %v6979 = vld [vmem:[%s3 + $0xac] sm:$0xf]
        %v6980 = vld [vmem:[%s3 + $0xb0] sm:$0xf]
        %v6981 = vld [vmem:[%s3 + $0xb4] sm:$0xf]
        %v6982 = vld [vmem:[%s3 + $0xb8] sm:$0xf]
        %v6983 = vld [vmem:[%s3 + $0xbc] sm:$0xf]
        %v6984 = vld [vmem:[%s3 + $0xc0] sm:$0xf]
        %v6985 = vld [vmem:[%s3 + $0xc4] sm:$0xf]
        %v6986 = vld [vmem:[%s3 + $0xc8] sm:$0xf]
        %v6987 = vld [vmem:[%s3 + $0xcc] sm:$0xf]
        %v6988 = vld [vmem:[%s3 + $0xd0] sm:$0xf]
        %v6989 = vld [vmem:[%s3 + $0xd4] sm:$0xf]
        %v6990 = vld [vmem:[%s3 + $0xd8] sm:$0xf]
        %v6991 = vld [vmem:[%s3 + $0xdc] sm:$0xf]
        %v6992 = vld [vmem:[%s3 + $0xe0] sm:$0xf]
        %v6993 = vld [vmem:[%s3 + $0xe4] sm:$0xf]
        %v6994 = vld [vmem:[%s3 + $0xe8] sm:$0xf]
        %v6995 = vld [vmem:[%s3 + $0xec] sm:$0xf]
        %v6996 = vld [vmem:[%s3 + $0xf0] sm:$0xf]
        %v6997 = vld [vmem:[%s3 + $0xf4] sm:$0xf]
        %v6998 = vld [vmem:[%s3 + $0xf8] sm:$0xf]
        %v6999 = vld [vmem:[%s3 + $0xfc] sm:$0xf]
        %v7000 = vld [vmem:[%s4] sm:$0x1]
        %v7002 = vlaneseq
        %v7003 = vshrl.u32 %v7002, 7
        %v7004 = vsub.s32 0, %v7003
        %v7005 = vrot.slane %v7000, %v7004
        %v7071 = vunpack.c.l.b16 %v6936
        %v7072 = vunpack.c.l.b16 %v6937
        %v7073 = vunpack.c.l.b16 %v6938
        %v7074 = vunpack.c.l.b16 %v6939
        %v7075 = vunpack.c.l.b16 %v6940
        %v7076 = vunpack.c.l.b16 %v6941
        %v7077 = vunpack.c.l.b16 %v6942
        %v7078 = vunpack.c.l.b16 %v6943
        %v7079 = vunpack.c.l.b16 %v6944
        %v7080 = vunpack.c.l.b16 %v6945
        %v7081 = vunpack.c.l.b16 %v6946
        %v7082 = vunpack.c.l.b16 %v6947
        %v7083 = vunpack.c.l.b16 %v6948
        %v7084 = vunpack.c.l.b16 %v6949
        %v7085 = vunpack.c.l.b16 %v6950
        %v7086 = vunpack.c.l.b16 %v6951
        %v7087 = vunpack.c.l.b16 %v6952
        %v7088 = vunpack.c.l.b16 %v6953
        %v7089 = vunpack.c.l.b16 %v6954
        %v7090 = vunpack.c.l.b16 %v6955
        %v7091 = vunpack.c.l.b16 %v6956
        %v7092 = vunpack.c.l.b16 %v6957
        %v7093 = vunpack.c.l.b16 %v6958
        %v7094 = vunpack.c.l.b16 %v6959
        %v7095 = vunpack.c.l.b16 %v6960
        %v7096 = vunpack.c.l.b16 %v6961
        %v7097 = vunpack.c.l.b16 %v6962
        %v7098 = vunpack.c.l.b16 %v6963
        %v7099 = vunpack.c.l.b16 %v6964
        %v7100 = vunpack.c.l.b16 %v6965
        %v7101 = vunpack.c.l.b16 %v6966
        %v7102 = vunpack.c.l.b16 %v6967
        %v7103 = vunpack.c.l.b16 %v6968
        %v7104 = vunpack.c.l.b16 %v6969
        %v7105 = vunpack.c.l.b16 %v6970
        %v7106 = vunpack.c.l.b16 %v6971
        %v7107 = vunpack.c.l.b16 %v6972
        %v7108 = vunpack.c.l.b16 %v6973
        %v7109 = vunpack.c.l.b16 %v6974
        %v7110 = vunpack.c.l.b16 %v6975
        %v7111 = vunpack.c.l.b16 %v6976
        %v7112 = vunpack.c.l.b16 %v6977
        %v7113 = vunpack.c.l.b16 %v6978
        %v7114 = vunpack.c.l.b16 %v6979
        %v7115 = vunpack.c.l.b16 %v6980
        %v7116 = vunpack.c.l.b16 %v6981
        %v7117 = vunpack.c.l.b16 %v6982
        %v7118 = vunpack.c.l.b16 %v6983
        %v7119 = vunpack.c.l.b16 %v6984
        %v7120 = vunpack.c.l.b16 %v6985
        %v7121 = vunpack.c.l.b16 %v6986
        %v7122 = vunpack.c.l.b16 %v6987
        %v7123 = vunpack.c.l.b16 %v6988
        %v7124 = vunpack.c.l.b16 %v6989
        %v7125 = vunpack.c.l.b16 %v6990
        %v7126 = vunpack.c.l.b16 %v6991
        %v7127 = vunpack.c.l.b16 %v6992
        %v7128 = vunpack.c.l.b16 %v6993
        %v7129 = vunpack.c.l.b16 %v6994
        %v7130 = vunpack.c.l.b16 %v6995
        %v7131 = vunpack.c.l.b16 %v6996
        %v7132 = vunpack.c.l.b16 %v6997
        %v7133 = vunpack.c.l.b16 %v6998
        %v7134 = vunpack.c.l.b16 %v6999
        %v7135 = vpack.c.b16 %v7072, %v7071
        %v7136 = vpack.c.b16 %v7074, %v7073
        %v7137 = vpack.c.b16 %v7076, %v7075
        %v7138 = vpack.c.b16 %v7078, %v7077
        %v7139 = vpack.c.b16 %v7080, %v7079
        %v7140 = vpack.c.b16 %v7082, %v7081
        %v7141 = vpack.c.b16 %v7084, %v7083
        %v7142 = vpack.c.b16 %v7086, %v7085
        %v7143 = vpack.c.b16 %v7088, %v7087
        %v7144 = vpack.c.b16 %v7090, %v7089
        %v7145 = vpack.c.b16 %v7092, %v7091
        %v7146 = vpack.c.b16 %v7094, %v7093
        %v7147 = vpack.c.b16 %v7096, %v7095
        %v7148 = vpack.c.b16 %v7098, %v7097
        %v7149 = vpack.c.b16 %v7100, %v7099
        %v7150 = vpack.c.b16 %v7102, %v7101
        %v7151 = vpack.c.b16 %v7104, %v7103
        %v7152 = vpack.c.b16 %v7106, %v7105
        %v7153 = vpack.c.b16 %v7108, %v7107
        %v7154 = vpack.c.b16 %v7110, %v7109
        %v7155 = vpack.c.b16 %v7112, %v7111
        %v7156 = vpack.c.b16 %v7114, %v7113
        %v7157 = vpack.c.b16 %v7116, %v7115
        %v7158 = vpack.c.b16 %v7118, %v7117
        %v7159 = vpack.c.b16 %v7120, %v7119
        %v7160 = vpack.c.b16 %v7122, %v7121
        %v7161 = vpack.c.b16 %v7124, %v7123
        %v7162 = vpack.c.b16 %v7126, %v7125
        %v7163 = vpack.c.b16 %v7128, %v7127
        %v7164 = vpack.c.b16 %v7130, %v7129
        %v7165 = vpack.c.b16 %v7132, %v7131
        %v7166 = vpack.c.b16 %v7134, %v7133
        %7199 = vmatprep.subr.bf16.mxu0 0
        %7200 = vmatpush1.bf16.msra.mxu0 %v7135
        %7201 = vmatprep.subr.bf16.mxu0 0
        %7202 = vmatpush1.bf16.msra.mxu0 %v7136
        %7203 = vmatprep.subr.bf16.mxu0 0
        %7204 = vmatpush1.bf16.msra.mxu0 %v7137
        %7205 = vmatprep.subr.bf16.mxu0 0
        %7206 = vmatpush1.bf16.msra.mxu0 %v7138
        %7207 = vmatprep.subr.bf16.mxu0 0
        %7208 = vmatpush1.bf16.msra.mxu0 %v7139
        %7209 = vmatprep.subr.bf16.mxu0 0
        %7210 = vmatpush1.bf16.msra.mxu0 %v7140
        %7211 = vmatprep.subr.bf16.mxu0 0
        %7212 = vmatpush1.bf16.msra.mxu0 %v7141
        %7213 = vmatprep.subr.bf16.mxu0 0
        %7214 = vmatpush1.bf16.msra.mxu0 %v7142
        %7215 = vmatprep.subr.bf16.mxu0 0
        %7216 = vmatpush1.bf16.msra.mxu0 %v7143
        %7217 = vmatprep.subr.bf16.mxu0 0
        %7218 = vmatpush1.bf16.msra.mxu0 %v7144
        %7219 = vmatprep.subr.bf16.mxu0 0
        %7220 = vmatpush1.bf16.msra.mxu0 %v7145
        %7221 = vmatprep.subr.bf16.mxu0 0
        %7222 = vmatpush1.bf16.msra.mxu0 %v7146
        %7223 = vmatprep.subr.bf16.mxu0 0
        %7224 = vmatpush1.bf16.msra.mxu0 %v7147
        %7225 = vmatprep.subr.bf16.mxu0 0
        %7226 = vmatpush1.bf16.msra.mxu0 %v7148
        %7227 = vmatprep.subr.bf16.mxu0 0
        %7228 = vmatpush1.bf16.msra.mxu0 %v7149
        %7229 = vmatprep.subr.bf16.mxu0 0
        %7230 = vmatpush1.bf16.msra.mxu0 %v7150
        %7231 = vmatprep.mubr.bf16.mxu0 %v6933
        %7232 = vmatmul.mubr.bf16.gmra.mrb[0].mxu0 %v6932
        %v7233 = vpop.f32.mrb[0].mxu0
        %v7234 = vadd.f32 %v7005, %v7233
        %v7235 = vpop.f32.mrb[0].mxu0
        %v7236 = vpop.f32.mrb[0].mxu0
        %v7237 = vpop.f32.mrb[0].mxu0
        %7238 = vdwg.mxu0
        %7239 = vmatprep.subr.bf16.mxu0 0
        %7240 = vmatpush1.bf16.msra.mxu0 %v7151
        %7241 = vmatprep.subr.bf16.mxu0 0
        %7242 = vmatpush1.bf16.msra.mxu0 %v7152
        %7243 = vmatprep.subr.bf16.mxu0 0
        %7244 = vmatpush1.bf16.msra.mxu0 %v7153
        %7245 = vmatprep.subr.bf16.mxu0 0
        %7246 = vmatpush1.bf16.msra.mxu0 %v7154
        %7247 = vmatprep.subr.bf16.mxu0 0
        %7248 = vmatpush1.bf16.msra.mxu0 %v7155
        %7249 = vmatprep.subr.bf16.mxu0 0
        %7250 = vmatpush1.bf16.msra.mxu0 %v7156
        %7251 = vmatprep.subr.bf16.mxu0 0
        %7252 = vmatpush1.bf16.msra.mxu0 %v7157
        %7253 = vmatprep.subr.bf16.mxu0 0
        %7254 = vmatpush1.bf16.msra.mxu0 %v7158
        %7255 = vmatprep.subr.bf16.mxu0 0
        %7256 = vmatpush1.bf16.msra.mxu0 %v7159
        %7257 = vmatprep.subr.bf16.mxu0 0
        %7258 = vmatpush1.bf16.msra.mxu0 %v7160
        %7259 = vmatprep.subr.bf16.mxu0 0
        %7260 = vmatpush1.bf16.msra.mxu0 %v7161
        %7261 = vmatprep.subr.bf16.mxu0 0
        %7262 = vmatpush1.bf16.msra.mxu0 %v7162
        %7263 = vmatprep.subr.bf16.mxu0 0
        %7264 = vmatpush1.bf16.msra.mxu0 %v7163
        %7265 = vmatprep.subr.bf16.mxu0 0
        %7266 = vmatpush1.bf16.msra.mxu0 %v7164
        %7267 = vmatprep.subr.bf16.mxu0 0
        %7268 = vmatpush1.bf16.msra.mxu0 %v7165
        %7269 = vmatprep.subr.bf16.mxu0 0
        %7270 = vmatpush1.bf16.msra.mxu0 %v7166
        %7271 = vmatprep.mubr.bf16.mxu0 %v6935
        %7272 = vmatmul.mubr.bf16.gmra.mrb[0].mxu0 %v6934
        %v7273 = vpop.f32.mrb[0].mxu0
        %v7274 = vadd.f32 %v7234, %v7273
        %v7275 = vpop.f32.mrb[0].mxu0
        %v7276 = vpop.f32.mrb[0].mxu0
        %v7277 = vpop.f32.mrb[0].mxu0
        %7278 = vdwg.mxu0
        %7279 = vst [vmem:[%s5] sm:$0xff] %v7274
      $region48: #{dqn_forward.7} parent=39 // pred_fallthru
        _
      // Predicated region
      $region49: #{dqn_forward.7} parent=39 // pred_check
        %p7280 = pneg %p144
      $region50: #{dqn_forward.7} parent=39 // pred_check_branch
        %7282 = sbr.rel (%p7280) target = $region52
      $region51: #{dqn_forward.7} parent=39 // pred_region
        _
      $region52: #{dqn_forward.7} parent=39 // pred_fallthru
        _
      // Predicated region
      $region53: #{dqn_forward.7} parent=39 // pred_check
        %p7283 = pneg %p144
      $region54: #{dqn_forward.7} parent=39 // pred_check_branch
        %7285 = sbr.rel (%p7283) target = $region56
      $region55: #{dqn_forward.7} parent=39 // pred_region
        _
      $region56: #{dqn_forward.7} parent=39 // pred_fallthru
        _
    $region40: #{dqn_forward.7} parent=5 // pred_fallthru
      _
    %p7286 = scmp.le.s32.totalorder 2, %s11
    // Predicated region
    $region57: #{dqn_forward.7} parent=5 // pred_check
      %p7287 = pneg %p7286
    $region58: #{dqn_forward.7} parent=5 // pred_check_branch
      %7289 = sbr.rel (%p7287) target = $region60
    $region59: #{dqn_forward.7} parent=5 // pred_region
      %s7290 = ssub.s32 %s11, 2
    $region60: #{dqn_forward.7} parent=5 // pred_fallthru
      _
  $region6: #{dqn_forward.7} parent=0 // loop_footer
    %s15 = sadd.s32 1, %s11
  $region7: #{dqn_forward.7} parent=0 // loop_footer_branch
    %10 = sbr.rel target = $region3
  $region8: #{dqn_forward.7} parent=0 // loop_exit
    _

</llo_original>
